<compile_context>
chip_gen: v7x
topology: tpu7x:2x2x1
jax: 0.10.0
libtpu: 0.0.40
codegen_flags: <defaults>
</compile_context>

<pallas_src>
import functools

import jax
import jax.numpy as jnp
import numpy as np
from jax import lax
from jax.experimental import pallas as pl
from jax.experimental.pallas import tpu as pltpu

TM_MAX = 512  # spatial tile (rows of the flattened (N*D*H*W, C) matrix)


def _round_up(x, m):
    return (x + m - 1) // m * m


# ---------------------------------------------------------------------------
# Kernel 1: fused pointwise stage (in1 -> in2 -> BN_m1/PReLU epilogue, + shortcut)
# ---------------------------------------------------------------------------
def _fused_pointwise_kernel(alphas_ref,                # SMEM (4,) PReLU alphas
                            x_ref,                     # (TM, Cin)
                            s1_ref, b1_ref, w1_ref,    # in1: BN + 1x1x1 conv
                            s2_ref, b2_ref, w2_ref,    # in2: BN + 1x1x1 conv
                            sm_ref, bm_ref,            # m1 BN (epilogue)
                            ss_ref, bs_ref, ws_ref,    # shortcut: BN + 1x1x1 conv
                            h3_ref, sc_ref):
    x = x_ref[...]

    z = x * s1_ref[...] + b1_ref[...]
    z = jnp.where(z > 0, z, alphas_ref[0] * z)
    x1 = jnp.dot(z, w1_ref[...], preferred_element_type=jnp.float32)

    z = x1 * s2_ref[...] + b2_ref[...]
    z = jnp.where(z > 0, z, alphas_ref[1] * z)
    x2 = jnp.dot(z, w2_ref[...], preferred_element_type=jnp.float32)

    z = x2 * sm_ref[...] + bm_ref[...]
    h3_ref[...] = jnp.where(z > 0, z, alphas_ref[2] * z)

    z = x * ss_ref[...] + bs_ref[...]
    z = jnp.where(z > 0, z, alphas_ref[3] * z)
    sc_ref[...] = jnp.dot(z, ws_ref[...], preferred_element_type=jnp.float32)


def fused_pointwise(x2d, params):
    """x2d: (M, Cin) -> (h3 (M, Cmid), shortcut (M, Cout))."""
    M, cin = x2d.shape
    s1, b1, a1, w1 = params["in1"]
    s2, b2, a2, w2 = params["in2"]
    sm, bm, am, _w3 = params["m1"]
    ss, bs, asc, ws = params["shortcut"]
    cb, cmid, cout = w1.shape[1], w2.shape[1], ws.shape[1]

    tm = TM_MAX if M >= TM_MAX else M
    Mp = _round_up(M, tm)
    xp = x2d if Mp == M else jnp.pad(x2d, ((0, Mp - M), (0, 0)))

    alphas = jnp.array([a1, a2, am, asc], dtype=jnp.float32)

    def vec(c):
        return pl.BlockSpec((1, c), lambda i: (0, 0))

    h3, sc = pl.pallas_call(
        _fused_pointwise_kernel,
        out_shape=(jax.ShapeDtypeStruct((Mp, cmid), jnp.float32),
                   jax.ShapeDtypeStruct((Mp, cout), jnp.float32)),
        grid=(Mp // tm,),
        in_specs=[
            pl.BlockSpec(memory_space=pltpu.MemorySpace.SMEM),           # alphas
            pl.BlockSpec((tm, cin), lambda i: (i, 0)),                   # x tile
            vec(cin), vec(cin), pl.BlockSpec((cin, cb), lambda i: (0, 0)),
            vec(cb), vec(cb), pl.BlockSpec((cb, cmid), lambda i: (0, 0)),
            vec(cmid), vec(cmid),
            vec(cin), vec(cin), pl.BlockSpec((cin, cout), lambda i: (0, 0)),
        ],
        out_specs=(pl.BlockSpec((tm, cmid), lambda i: (i, 0)),
                   pl.BlockSpec((tm, cout), lambda i: (i, 0))),
        compiler_params=pltpu.CompilerParams(dimension_semantics=("parallel",)),
    )(alphas, xp,
      s1.reshape(1, cin), b1.reshape(1, cin), w1,
      s2.reshape(1, cb), b2.reshape(1, cb), w2,
      sm.reshape(1, cmid), bm.reshape(1, cmid),
      ss.reshape(1, cin), bs.reshape(1, cin), ws)
    if Mp != M:
        h3, sc = h3[:M], sc[:M]
    return h3, sc


# ---------------------------------------------------------------------------
# Kernel 2: 3x3x3 dilated conv (tap accumulation, no im2col) + BN_m2/PReLU epilogue
# ---------------------------------------------------------------------------
def _conv3x3x3_bn_prelu_kernel(alpha_ref, p0_ref, p1_ref, p2_ref, w_ref,
                               s_ref, b_ref, out_ref, *, H, W, dil):
    HW = H * W
    acc = None
    for a, p_ref in enumerate((p0_ref, p1_ref, p2_ref)):     # depth taps
        for kb in range(3):                                   # height taps
            for kc in range(3):                               # width taps
                patch = p_ref[0, 0,
                              kb * dil:kb * dil + H,
                              kc * dil:kc * dil + W, :]
                patch = patch.reshape(HW, patch.shape[-1])
                contrib = jnp.dot(patch, w_ref[a, kb, kc],
                                  preferred_element_type=jnp.float32)
                acc = contrib if acc is None else acc + contrib
    z = acc * s_ref[...] + b_ref[...]
    out_ref[0, 0] = jnp.where(z > 0, z, alpha_ref[0] * z)


def conv_m1(hp, w3, s_m2, b_m2, a_m2, dil, N, D, H, W):
    """hp: padded h3 (N, D+2d, H+2d, W+2d, Cmid) -> PReLU(BN_m2(conv3x3x3(h3)))
    returned flat as (N, D, H*W, Cout)."""
    cmid = hp.shape[-1]
    cout = w3.shape[-1]
    Hp, Wp = H + 2 * dil, W + 2 * dil
    HW = H * W

    def plane_spec(a):
        return pl.BlockSpec((1, 1, Hp, Wp, cmid),
                            lambda n, d: (n, d + a * dil, 0, 0, 0))

    kernel = functools.partial(_conv3x3x3_bn_prelu_kernel, H=H, W=W, dil=dil)
    return pl.pallas_call(
        kernel,
        out_shape=jax.ShapeDtypeStruct((N, D, HW, cout), jnp.float32),
        grid=(N, D),
        in_specs=[
            pl.BlockSpec(memory_space=pltpu.MemorySpace.SMEM),            # alpha_m2
            plane_spec(0), plane_spec(1), plane_spec(2),
            pl.BlockSpec((3, 3, 3, cmid, cout), lambda n, d: (0, 0, 0, 0, 0)),
            pl.BlockSpec((1, cout), lambda n, d: (0, 0)),
            pl.BlockSpec((1, cout), lambda n, d: (0, 0)),
        ],
        out_specs=pl.BlockSpec((1, 1, HW, cout), lambda n, d: (n, d, 0, 0)),
        compiler_params=pltpu.CompilerParams(
            dimension_semantics=("parallel", "parallel")),
    )(jnp.array([a_m2], dtype=jnp.float32), hp, hp, hp, w3,
      s_m2.reshape(1, cout), b_m2.reshape(1, cout))


# ---------------------------------------------------------------------------
# Kernel 3: 3x3x1 dilated conv (tap accumulation) fused with residual add
# ---------------------------------------------------------------------------
def _conv3x3x1_residual_kernel(p0_ref, p1_ref, p2_ref, res_ref, w_ref, out_ref,
                               *, H, W, dil):
    HW = H * W
    acc = res_ref[0, 0]                                       # start from shortcut
    for a, p_ref in enumerate((p0_ref, p1_ref, p2_ref)):      # depth taps
        for kb in range(3):                                   # height taps
            patch = p_ref[0, 0, kb * dil:kb * dil + H, :, :]
            patch = patch.reshape(HW, patch.shape[-1])
            acc = acc + jnp.dot(patch, w_ref[a, kb],
                                preferred_element_type=jnp.float32)
    out_ref[0, 0] = acc


def conv_m2_residual(hp4, shortcut_nd, w4, dil, N, D, H, W):
    """hp4: padded h4 (N, D+2d, H+2d, W, Cout); shortcut_nd: (N, D, H*W, Cout)."""
    cout = w4.shape[-1]
    Hp = H + 2 * dil
    HW = H * W
    w4m = w4.reshape(3, 3, w4.shape[-2], cout)   # (3,3,1,Cin,Cout) -> (3,3,Cin,Cout)

    def plane_spec(a):
        return pl.BlockSpec((1, 1, Hp, W, hp4.shape[-1]),
                            lambda n, d: (n, d + a * dil, 0, 0, 0))

    kernel = functools.partial(_conv3x3x1_residual_kernel, H=H, W=W, dil=dil)
    return pl.pallas_call(
        kernel,
        out_shape=jax.ShapeDtypeStruct((N, D, HW, cout), jnp.float32),
        grid=(N, D),
        in_specs=[
            plane_spec(0), plane_spec(1), plane_spec(2),
            pl.BlockSpec((1, 1, HW, cout), lambda n, d: (n, d, 0, 0)),     # shortcut
            pl.BlockSpec((3, 3, w4.shape[-2], cout), lambda n, d: (0, 0, 0, 0)),
        ],
        out_specs=pl.BlockSpec((1, 1, HW, cout), lambda n, d: (n, d, 0, 0)),
        compiler_params=pltpu.CompilerParams(
            dimension_semantics=("parallel", "parallel")),
    )(hp4, hp4, hp4, shortcut_nd, w4m)


# ---------------------------------------------------------------------------
# MFunit forward (stride=1, g=1, norm='bn' eval-mode, num_in != num_out)
# ---------------------------------------------------------------------------
def mfunit_forward(x_ncdhw, params):
    N, cin, D, H, W = x_ncdhw.shape
    M = N * D * H * W
    dd = params["d_m1"]      # dilation of the 3x3x3 conv (isotropic)
    d1 = params["d_m2"]      # dilation of the 3x3x1 conv (D and H axes)

    xc = jnp.transpose(x_ncdhw, (0, 2, 3, 4, 1))          # channels-last
    x2d = xc.reshape(M, cin)

    # Stage A: in1 -> in2 -> BN_m1/PReLU epilogue, plus shortcut branch (one kernel)
    h3_2d, sc_2d = fused_pointwise(x2d, params)
    cmid, cout = h3_2d.shape[1], sc_2d.shape[1]

    # Stage B: 3x3x3 dilated conv (tap accumulation) + BN_m2/PReLU epilogue
    s_m2, b_m2, a_m2, w4 = params["m2"]
    w3 = params["m1"][3]
    h3 = h3_2d.reshape(N, D, H, W, cmid)
    hp = jnp.pad(h3, ((0, 0), (dd, dd), (dd, dd), (dd, dd), (0, 0)))
    h4_flat = conv_m1(hp, w3, s_m2, b_m2, a_m2, dd, N, D, H, W)

    # Stage C: 3x3x1 dilated conv (tap accumulation) + residual add
    h4 = h4_flat.reshape(N, D, H, W, cout)
    hp4 = jnp.pad(h4, ((0, 0), (d1, d1), (d1, d1), (0, 0), (0, 0)))
    sc_nd = sc_2d.reshape(N, D, H * W, cout)
    out_flat = conv_m2_residual(hp4, sc_nd, w4, d1, N, D, H, W)

    out = out_flat.reshape(N, D, H, W, cout)
    return jnp.transpose(out, (0, 4, 1, 2, 3))            # back to NCDHW


# ---------------------------------------------------------------------------
# Pure-JAX reference (for the correctness check)
# ---------------------------------------------------------------------------
def _bn_prelu_ref(x, scale, shift, alpha):
    z = x * scale + shift
    return jnp.where(z > 0, z, alpha * z)


def _conv3d_ref(h, w_dhwio, dil):
    kd, kh, kw = w_dhwio.shape[:3]
    pd, ph, pw = (kd - 1) // 2 * dil[0], (kh - 1) // 2 * dil[1], (kw - 1) // 2 * dil[2]
    return lax.conv_general_dilated(
        h, w_dhwio, window_strides=(1, 1, 1),
        padding=[(pd, pd), (ph, ph), (pw, pw)], rhs_dilation=dil,
        dimension_numbers=("NDHWC", "DHWIO", "NDHWC"))


def mfunit_reference(x_ncdhw, params):
    dd, d1 = params["d_m1"], params["d_m2"]
    xc = jnp.transpose(x_ncdhw, (0, 2, 3, 4, 1))
    s, b, a, w = params["in1"]
    x1 = _bn_prelu_ref(xc, s, b, a) @ w
    s, b, a, w = params["in2"]
    x2 = _bn_prelu_ref(x1, s, b, a) @ w
    s, b, a, w3 = params["m1"]
    x3 = _conv3d_ref(_bn_prelu_ref(x2, s, b, a), w3, (dd, dd, dd))
    s, b, a, w4 = params["m2"]
    x4 = _conv3d_ref(_bn_prelu_ref(x3, s, b, a), w4, (d1, d1, 1))
    s, b, a, w = params["shortcut"]
    sc = _bn_prelu_ref(xc, s, b, a) @ w
    return jnp.transpose(x4 + sc, (0, 4, 1, 2, 3))


# ---------------------------------------------------------------------------
# Deterministic parameter init (BN eval-mode folded into scale/shift)
# ---------------------------------------------------------------------------
def make_bn(key, c):
    k1, k2, k3, k4 = jax.random.split(key, 4)
    gamma = 1.0 + 0.1 * jax.random.normal(k1, (c,), jnp.float32)
    beta = 0.1 * jax.random.normal(k2, (c,), jnp.float32)
    mean = 0.1 * jax.random.normal(k3, (c,), jnp.float32)
    var = jnp.abs(jax.random.normal(k4, (c,), jnp.float32)) + 0.5
    scale = gamma / jnp.sqrt(var + 1e-5)
    shift = beta - mean * scale
    return scale, shift


if __name__ == "__main__":
    # MFunit(num_in=8, num_out=16, g=1, stride=1, d=(1,1), norm='bn'), small volume.
    N, num_in, D, H, W = 2, 8, 8, 8, 8
    num_out = 16
    num_mid = num_in if num_in <= num_out else num_out   # 8
    c_b = num_in // 4                                    # 2

    key = jax.random.PRNGKey(0)
    keys = jax.random.split(key, 12)

    s_in1, b_in1 = make_bn(keys[0], num_in)
    s_in2, b_in2 = make_bn(keys[1], c_b)
    s_m1, b_m1 = make_bn(keys[2], num_mid)
    s_m2, b_m2 = make_bn(keys[3], num_out)
    s_sc, b_sc = make_bn(keys[4], num_in)

    a_in1, a_in2, a_m1, a_m2, a_sc = (np.float32(v)
                                      for v in (0.25, 0.20, 0.30, 0.25, 0.15))

    w_in1 = 0.1 * jax.random.normal(keys[5], (num_in, c_b), jnp.float32)
    w_in2 = 0.1 * jax.random.normal(keys[6], (c_b, num_mid), jnp.float32)
    w_sc = 0.1 * jax.random.normal(keys[7], (num_in, num_out), jnp.float32)
    w3 = 0.1 * jax.random.normal(keys[8], (3, 3, 3, num_mid, num_out), jnp.float32)
    w4 = 0.1 * jax.random.normal(keys[9], (3, 3, 1, num_out, num_out), jnp.float32)

    params = {
        "in1": (s_in1, b_in1, a_in1, w_in1),
        "in2": (s_in2, b_in2, a_in2, w_in2),
        "m1": (s_m1, b_m1, a_m1, w3),
        "m2": (s_m2, b_m2, a_m2, w4),
        "shortcut": (s_sc, b_sc, a_sc, w_sc),
        "d_m1": 1,   # d[0] for the 3x3x3 conv
        "d_m2": 1,   # d[1] for the 3x3x1 conv (D/H axes)
    }

    x = jax.random.normal(keys[10], (N, num_in, D, H, W), jnp.float32)  # NCDHW

    fwd = jax.jit(functools.partial(mfunit_forward, params=params))
    out = jax.block_until_ready(fwd(x))

    ref = mfunit_reference(x, params)
    np.testing.assert_allclose(np.asarray(out), np.asarray(ref), rtol=2e-3, atol=2e-3)
    assert out.shape == (N, num_out, D, H, W)
    print("KERNEL_OK")
</pallas_src>

<mosaic_0001>
module attributes {stable_mosaic.version = 11 : i64} {
  func.func @_fused_pointwise_kernel(%arg0: i32, %arg1: memref<4xf32, #tpu.memory_space<smem>>, %arg2: memref<512x8xf32, #tpu.memory_space<vmem>>, %arg3: memref<1x8xf32, #tpu.memory_space<vmem>>, %arg4: memref<1x8xf32, #tpu.memory_space<vmem>>, %arg5: memref<8x2xf32, #tpu.memory_space<vmem>>, %arg6: memref<1x2xf32, #tpu.memory_space<vmem>>, %arg7: memref<1x2xf32, #tpu.memory_space<vmem>>, %arg8: memref<2x8xf32, #tpu.memory_space<vmem>>, %arg9: memref<1x8xf32, #tpu.memory_space<vmem>>, %arg10: memref<1x8xf32, #tpu.memory_space<vmem>>, %arg11: memref<1x8xf32, #tpu.memory_space<vmem>>, %arg12: memref<1x8xf32, #tpu.memory_space<vmem>>, %arg13: memref<8x16xf32, #tpu.memory_space<vmem>>, %arg14: memref<512x8xf32, #tpu.memory_space<vmem>>, %arg15: memref<512x16xf32, #tpu.memory_space<vmem>>) attributes {dimension_semantics = [#tpu.dimension_semantics<parallel>], iteration_bounds = array<i64: 2>, scalar_prefetch = 0 : i64, scratch_operands = 0 : i64, tpu.core_type = #tpu.core_type<tc>, window_params = [{transform_indices = @transform_0, window_bounds = array<i64: 4>}, {transform_indices = @transform_1, window_bounds = array<i64: 512, 8>}, {pipeline_mode = #tpu.pipeline_mode<synchronous>, transform_indices = @transform_2, window_bounds = array<i64: 1, 8>}, {pipeline_mode = #tpu.pipeline_mode<synchronous>, transform_indices = @transform_3, window_bounds = array<i64: 1, 8>}, {pipeline_mode = #tpu.pipeline_mode<synchronous>, transform_indices = @transform_4, window_bounds = array<i64: 8, 2>}, {pipeline_mode = #tpu.pipeline_mode<synchronous>, transform_indices = @transform_5, window_bounds = array<i64: 1, 2>}, {pipeline_mode = #tpu.pipeline_mode<synchronous>, transform_indices = @transform_6, window_bounds = array<i64: 1, 2>}, {pipeline_mode = #tpu.pipeline_mode<synchronous>, transform_indices = @transform_7, window_bounds = array<i64: 2, 8>}, {pipeline_mode = #tpu.pipeline_mode<synchronous>, transform_indices = @transform_8, window_bounds = array<i64: 1, 8>}, {pipeline_mode = #tpu.pipeline_mode<synchronous>, transform_indices = @transform_9, window_bounds = array<i64: 1, 8>}, {pipeline_mode = #tpu.pipeline_mode<synchronous>, transform_indices = @transform_10, window_bounds = array<i64: 1, 8>}, {pipeline_mode = #tpu.pipeline_mode<synchronous>, transform_indices = @transform_11, window_bounds = array<i64: 1, 8>}, {pipeline_mode = #tpu.pipeline_mode<synchronous>, transform_indices = @transform_12, window_bounds = array<i64: 8, 16>}, {transform_indices = @transform_13, window_bounds = array<i64: 512, 8>}, {transform_indices = @transform_14, window_bounds = array<i64: 512, 16>}]} {
    %c0 = arith.constant 0 : index
    %c0_0 = arith.constant 0 : index
    %0 = vector.load %arg2[%c0, %c0_0] : memref<512x8xf32, #tpu.memory_space<vmem>>, vector<512x8xf32>
    %c0_1 = arith.constant 0 : index
    %c0_2 = arith.constant 0 : index
    %1 = vector.load %arg3[%c0_1, %c0_2] : memref<1x8xf32, #tpu.memory_space<vmem>>, vector<1x8xf32>
    %2 = vector.broadcast %1 : vector<1x8xf32> to vector<512x8xf32>
    %3 = arith.mulf %0, %2 : vector<512x8xf32>
    %c0_3 = arith.constant 0 : index
    %c0_4 = arith.constant 0 : index
    %4 = vector.load %arg4[%c0_3, %c0_4] : memref<1x8xf32, #tpu.memory_space<vmem>>, vector<1x8xf32>
    %5 = vector.broadcast %4 : vector<1x8xf32> to vector<512x8xf32>
    %6 = arith.addf %3, %5 : vector<512x8xf32>
    %cst = arith.constant 0.000000e+00 : f32
    %7 = vector.broadcast %cst : f32 to vector<512x8xf32>
    %8 = arith.cmpf ogt, %6, %7 : vector<512x8xf32>
    %c0_5 = arith.constant 0 : index
    %9 = memref.load %arg1[%c0_5] : memref<4xf32, #tpu.memory_space<smem>>
    %10 = vector.broadcast %9 : f32 to vector<512x8xf32>
    %11 = arith.mulf %10, %6 : vector<512x8xf32>
    %12 = arith.select %8, %6, %11 : vector<512x8xi1>, vector<512x8xf32>
    %c0_6 = arith.constant 0 : index
    %c0_7 = arith.constant 0 : index
    %13 = vector.load %arg5[%c0_6, %c0_7] : memref<8x2xf32, #tpu.memory_space<vmem>>, vector<8x2xf32>
    %cst_8 = arith.constant dense<0.000000e+00> : vector<512x2xf32>
    %14 = tpu.matmul %12, %13, %cst_8 {dimension_numbers = #tpu.dot_dimension_numbers<[1], [0], [0], [1], [0, 0, 1, 1], [], []>} : vector<512x8xf32>, vector<8x2xf32>, vector<512x2xf32> -> vector<512x2xf32>
    %c0_9 = arith.constant 0 : index
    %c0_10 = arith.constant 0 : index
    %15 = vector.load %arg6[%c0_9, %c0_10] : memref<1x2xf32, #tpu.memory_space<vmem>>, vector<1x2xf32>
    %16 = vector.broadcast %15 : vector<1x2xf32> to vector<512x2xf32>
    %17 = arith.mulf %14, %16 : vector<512x2xf32>
    %c0_11 = arith.constant 0 : index
    %c0_12 = arith.constant 0 : index
    %18 = vector.load %arg7[%c0_11, %c0_12] : memref<1x2xf32, #tpu.memory_space<vmem>>, vector<1x2xf32>
    %19 = vector.broadcast %18 : vector<1x2xf32> to vector<512x2xf32>
    %20 = arith.addf %17, %19 : vector<512x2xf32>
    %cst_13 = arith.constant 0.000000e+00 : f32
    %21 = vector.broadcast %cst_13 : f32 to vector<512x2xf32>
    %22 = arith.cmpf ogt, %20, %21 : vector<512x2xf32>
    %c1 = arith.constant 1 : index
    %23 = memref.load %arg1[%c1] : memref<4xf32, #tpu.memory_space<smem>>
    %24 = vector.broadcast %23 : f32 to vector<512x2xf32>
    %25 = arith.mulf %24, %20 : vector<512x2xf32>
    %26 = arith.select %22, %20, %25 : vector<512x2xi1>, vector<512x2xf32>
    %c0_14 = arith.constant 0 : index
    %c0_15 = arith.constant 0 : index
    %27 = vector.load %arg8[%c0_14, %c0_15] : memref<2x8xf32, #tpu.memory_space<vmem>>, vector<2x8xf32>
    %cst_16 = arith.constant dense<0.000000e+00> : vector<512x8xf32>
    %28 = tpu.matmul %26, %27, %cst_16 {dimension_numbers = #tpu.dot_dimension_numbers<[1], [0], [0], [1], [0, 0, 1, 1], [], []>} : vector<512x2xf32>, vector<2x8xf32>, vector<512x8xf32> -> vector<512x8xf32>
    %c0_17 = arith.constant 0 : index
    %c0_18 = arith.constant 0 : index
    %29 = vector.load %arg9[%c0_17, %c0_18] : memref<1x8xf32, #tpu.memory_space<vmem>>, vector<1x8xf32>
    %30 = vector.broadcast %29 : vector<1x8xf32> to vector<512x8xf32>
    %31 = arith.mulf %28, %30 : vector<512x8xf32>
    %c0_19 = arith.constant 0 : index
    %c0_20 = arith.constant 0 : index
    %32 = vector.load %arg10[%c0_19, %c0_20] : memref<1x8xf32, #tpu.memory_space<vmem>>, vector<1x8xf32>
    %33 = vector.broadcast %32 : vector<1x8xf32> to vector<512x8xf32>
    %34 = arith.addf %31, %33 : vector<512x8xf32>
    %cst_21 = arith.constant 0.000000e+00 : f32
    %35 = vector.broadcast %cst_21 : f32 to vector<512x8xf32>
    %36 = arith.cmpf ogt, %34, %35 : vector<512x8xf32>
    %c2 = arith.constant 2 : index
    %37 = memref.load %arg1[%c2] : memref<4xf32, #tpu.memory_space<smem>>
    %38 = vector.broadcast %37 : f32 to vector<512x8xf32>
    %39 = arith.mulf %38, %34 : vector<512x8xf32>
    %40 = arith.select %36, %34, %39 : vector<512x8xi1>, vector<512x8xf32>
    %c0_22 = arith.constant 0 : index
    %c0_23 = arith.constant 0 : index
    %41 = vector.load %arg14[%c0_22, %c0_23] : memref<512x8xf32, #tpu.memory_space<vmem>>, vector<512x8xf32>
    tpu.vector_store %arg14[%c0_22, %c0_23], %40 {strides = array<i32>} : memref<512x8xf32, #tpu.memory_space<vmem>>, vector<512x8xf32>,
    %c0_24 = arith.constant 0 : index
    %c0_25 = arith.constant 0 : index
    %42 = vector.load %arg11[%c0_24, %c0_25] : memref<1x8xf32, #tpu.memory_space<vmem>>, vector<1x8xf32>
    %43 = vector.broadcast %42 : vector<1x8xf32> to vector<512x8xf32>
    %44 = arith.mulf %0, %43 : vector<512x8xf32>
    %c0_26 = arith.constant 0 : index
    %c0_27 = arith.constant 0 : index
    %45 = vector.load %arg12[%c0_26, %c0_27] : memref<1x8xf32, #tpu.memory_space<vmem>>, vector<1x8xf32>
    %46 = vector.broadcast %45 : vector<1x8xf32> to vector<512x8xf32>
    %47 = arith.addf %44, %46 : vector<512x8xf32>
    %cst_28 = arith.constant 0.000000e+00 : f32
    %48 = vector.broadcast %cst_28 : f32 to vector<512x8xf32>
    %49 = arith.cmpf ogt, %47, %48 : vector<512x8xf32>
    %c3 = arith.constant 3 : index
    %50 = memref.load %arg1[%c3] : memref<4xf32, #tpu.memory_space<smem>>
    %51 = vector.broadcast %50 : f32 to vector<512x8xf32>
    %52 = arith.mulf %51, %47 : vector<512x8xf32>
    %53 = arith.select %49, %47, %52 : vector<512x8xi1>, vector<512x8xf32>
    %c0_29 = arith.constant 0 : index
    %c0_30 = arith.constant 0 : index
    %54 = vector.load %arg13[%c0_29, %c0_30] : memref<8x16xf32, #tpu.memory_space<vmem>>, vector<8x16xf32>
    %cst_31 = arith.constant dense<0.000000e+00> : vector<512x16xf32>
    %55 = tpu.matmul %53, %54, %cst_31 {dimension_numbers = #tpu.dot_dimension_numbers<[1], [0], [0], [1], [0, 0, 1, 1], [], []>} : vector<512x8xf32>, vector<8x16xf32>, vector<512x16xf32> -> vector<512x16xf32>
    %c0_32 = arith.constant 0 : index
    %c0_33 = arith.constant 0 : index
    %56 = vector.load %arg15[%c0_32, %c0_33] : memref<512x16xf32, #tpu.memory_space<vmem>>, vector<512x16xf32>
    tpu.vector_store %arg15[%c0_32, %c0_33], %55 {strides = array<i32>} : memref<512x16xf32, #tpu.memory_space<vmem>>, vector<512x16xf32>,
    return
  }
  func.func @transform_0(%arg0: i32) -> i32 {
    %c0_i32 = arith.constant 0 : i32
    %c0_i32_0 = arith.constant 0 : i32
    return %c0_i32 : i32
  }
  func.func @transform_1(%arg0: i32) -> (i32, i32) {
    %c0_i32 = arith.constant 0 : i32
    %c0_i32_0 = arith.constant 0 : i32
    return %arg0, %c0_i32 : i32, i32
  }
  func.func @transform_2(%arg0: i32) -> (i32, i32) {
    %c0_i32 = arith.constant 0 : i32
    %c0_i32_0 = arith.constant 0 : i32
    %c0_i32_1 = arith.constant 0 : i32
    return %c0_i32, %c0_i32_0 : i32, i32
  }
  func.func @transform_3(%arg0: i32) -> (i32, i32) {
    %c0_i32 = arith.constant 0 : i32
    %c0_i32_0 = arith.constant 0 : i32
    %c0_i32_1 = arith.constant 0 : i32
    return %c0_i32, %c0_i32_0 : i32, i32
  }
  func.func @transform_4(%arg0: i32) -> (i32, i32) {
    %c0_i32 = arith.constant 0 : i32
    %c0_i32_0 = arith.constant 0 : i32
    %c0_i32_1 = arith.constant 0 : i32
    return %c0_i32, %c0_i32_0 : i32, i32
  }
  func.func @transform_5(%arg0: i32) -> (i32, i32) {
    %c0_i32 = arith.constant 0 : i32
    %c0_i32_0 = arith.constant 0 : i32
    %c0_i32_1 = arith.constant 0 : i32
    return %c0_i32, %c0_i32_0 : i32, i32
  }
  func.func @transform_6(%arg0: i32) -> (i32, i32) {
    %c0_i32 = arith.constant 0 : i32
    %c0_i32_0 = arith.constant 0 : i32
    %c0_i32_1 = arith.constant 0 : i32
    return %c0_i32, %c0_i32_0 : i32, i32
  }
  func.func @transform_7(%arg0: i32) -> (i32, i32) {
    %c0_i32 = arith.constant 0 : i32
    %c0_i32_0 = arith.constant 0 : i32
    %c0_i32_1 = arith.constant 0 : i32
    return %c0_i32, %c0_i32_0 : i32, i32
  }
  func.func @transform_8(%arg0: i32) -> (i32, i32) {
    %c0_i32 = arith.constant 0 : i32
    %c0_i32_0 = arith.constant 0 : i32
    %c0_i32_1 = arith.constant 0 : i32
    return %c0_i32, %c0_i32_0 : i32, i32
  }
  func.func @transform_9(%arg0: i32) -> (i32, i32) {
    %c0_i32 = arith.constant 0 : i32
    %c0_i32_0 = arith.constant 0 : i32
    %c0_i32_1 = arith.constant 0 : i32
    return %c0_i32, %c0_i32_0 : i32, i32
  }
  func.func @transform_10(%arg0: i32) -> (i32, i32) {
    %c0_i32 = arith.constant 0 : i32
    %c0_i32_0 = arith.constant 0 : i32
    %c0_i32_1 = arith.constant 0 : i32
    return %c0_i32, %c0_i32_0 : i32, i32
  }
  func.func @transform_11(%arg0: i32) -> (i32, i32) {
    %c0_i32 = arith.constant 0 : i32
    %c0_i32_0 = arith.constant 0 : i32
    %c0_i32_1 = arith.constant 0 : i32
    return %c0_i32, %c0_i32_0 : i32, i32
  }
  func.func @transform_12(%arg0: i32) -> (i32, i32) {
    %c0_i32 = arith.constant 0 : i32
    %c0_i32_0 = arith.constant 0 : i32
    %c0_i32_1 = arith.constant 0 : i32
    return %c0_i32, %c0_i32_0 : i32, i32
  }
  func.func @transform_13(%arg0: i32) -> (i32, i32) {
    %c0_i32 = arith.constant 0 : i32
    %c0_i32_0 = arith.constant 0 : i32
    return %arg0, %c0_i32 : i32, i32
  }
  func.func @transform_14(%arg0: i32) -> (i32, i32) {
    %c0_i32 = arith.constant 0 : i32
    %c0_i32_0 = arith.constant 0 : i32
    return %arg0, %c0_i32 : i32, i32
  }
}

module attributes {stable_mosaic.version = 11 : i64} {
  func.func @_conv3x3x3_bn_prelu_kernel(%arg0: i32, %arg1: i32, %arg2: memref<1xf32, #tpu.memory_space<smem>>, %arg3: memref<1x1x10x10x8xf32, #tpu.memory_space<vmem>>, %arg4: memref<1x1x10x10x8xf32, #tpu.memory_space<vmem>>, %arg5: memref<1x1x10x10x8xf32, #tpu.memory_space<vmem>>, %arg6: memref<3x3x3x8x16xf32, #tpu.memory_space<vmem>>, %arg7: memref<1x16xf32, #tpu.memory_space<vmem>>, %arg8: memref<1x16xf32, #tpu.memory_space<vmem>>, %arg9: memref<1x1x64x16xf32, #tpu.memory_space<vmem>>) attributes {dimension_semantics = [#tpu.dimension_semantics<parallel>, #tpu.dimension_semantics<parallel>], iteration_bounds = array<i64: 2, 8>, scalar_prefetch = 0 : i64, scratch_operands = 0 : i64, tpu.core_type = #tpu.core_type<tc>, window_params = [{transform_indices = @transform_0, window_bounds = array<i64: 1>}, {transform_indices = @transform_1, window_bounds = array<i64: 1, 1, 10, 10, 8>}, {transform_indices = @transform_2, window_bounds = array<i64: 1, 1, 10, 10, 8>}, {transform_indices = @transform_3, window_bounds = array<i64: 1, 1, 10, 10, 8>}, {pipeline_mode = #tpu.pipeline_mode<synchronous>, transform_indices = @transform_4, window_bounds = array<i64: 3, 3, 3, 8, 16>}, {pipeline_mode = #tpu.pipeline_mode<synchronous>, transform_indices = @transform_5, window_bounds = array<i64: 1, 16>}, {pipeline_mode = #tpu.pipeline_mode<synchronous>, transform_indices = @transform_6, window_bounds = array<i64: 1, 16>}, {transform_indices = @transform_7, window_bounds = array<i64: 1, 1, 64, 16>}]} {
    %c0 = arith.constant 0 : index
    %c0_0 = arith.constant 0 : index
    %c0_1 = arith.constant 0 : index
    %c0_2 = arith.constant 0 : index
    %c0_3 = arith.constant 0 : index
    %0 = vector.load %arg3[%c0, %c0_0, %c0_1, %c0_2, %c0_3] : memref<1x1x10x10x8xf32, #tpu.memory_space<vmem>>, vector<1x1x8x8x8xf32>
    %1 = vector.shape_cast %0 : vector<1x1x8x8x8xf32> to vector<8x8x8xf32>
    %2 = vector.shape_cast %1 : vector<8x8x8xf32> to vector<64x8xf32>
    %c0_4 = arith.constant 0 : index
    %c0_5 = arith.constant 0 : index
    %c0_6 = arith.constant 0 : index
    %c0_7 = arith.constant 0 : index
    %c0_8 = arith.constant 0 : index
    %3 = vector.load %arg6[%c0_4, %c0_5, %c0_6, %c0_7, %c0_8] : memref<3x3x3x8x16xf32, #tpu.memory_space<vmem>>, vector<1x1x1x8x16xf32>
    %4 = vector.shape_cast %3 : vector<1x1x1x8x16xf32> to vector<8x16xf32>
    %cst = arith.constant dense<0.000000e+00> : vector<64x16xf32>
    %5 = tpu.matmul %2, %4, %cst {dimension_numbers = #tpu.dot_dimension_numbers<[1], [0], [0], [1], [0, 0, 1, 1], [], []>} : vector<64x8xf32>, vector<8x16xf32>, vector<64x16xf32> -> vector<64x16xf32>
    %c0_9 = arith.constant 0 : index
    %c0_10 = arith.constant 0 : index
    %c0_11 = arith.constant 0 : index
    %c1 = arith.constant 1 : index
    %c0_12 = arith.constant 0 : index
    %6 = vector.load %arg3[%c0_9, %c0_10, %c0_11, %c1, %c0_12] : memref<1x1x10x10x8xf32, #tpu.memory_space<vmem>>, vector<1x1x8x8x8xf32>
    %7 = vector.shape_cast %6 : vector<1x1x8x8x8xf32> to vector<8x8x8xf32>
    %8 = vector.shape_cast %7 : vector<8x8x8xf32> to vector<64x8xf32>
    %c0_13 = arith.constant 0 : index
    %c0_14 = arith.constant 0 : index
    %c1_15 = arith.constant 1 : index
    %c0_16 = arith.constant 0 : index
    %c0_17 = arith.constant 0 : index
    %9 = vector.load %arg6[%c0_13, %c0_14, %c1_15, %c0_16, %c0_17] : memref<3x3x3x8x16xf32, #tpu.memory_space<vmem>>, vector<1x1x1x8x16xf32>
    %10 = vector.shape_cast %9 : vector<1x1x1x8x16xf32> to vector<8x16xf32>
    %cst_18 = arith.constant dense<0.000000e+00> : vector<64x16xf32>
    %11 = tpu.matmul %8, %10, %cst_18 {dimension_numbers = #tpu.dot_dimension_numbers<[1], [0], [0], [1], [0, 0, 1, 1], [], []>} : vector<64x8xf32>, vector<8x16xf32>, vector<64x16xf32> -> vector<64x16xf32>
    %12 = arith.addf %5, %11 : vector<64x16xf32>
    %c0_19 = arith.constant 0 : index
    %c0_20 = arith.constant 0 : index
    %c0_21 = arith.constant 0 : index
    %c2 = arith.constant 2 : index
    %c0_22 = arith.constant 0 : index
    %13 = vector.load %arg3[%c0_19, %c0_20, %c0_21, %c2, %c0_22] : memref<1x1x10x10x8xf32, #tpu.memory_space<vmem>>, vector<1x1x8x8x8xf32>
    %14 = vector.shape_cast %13 : vector<1x1x8x8x8xf32> to vector<8x8x8xf32>
    %15 = vector.shape_cast %14 : vector<8x8x8xf32> to vector<64x8xf32>
    %c0_23 = arith.constant 0 : index
    %c0_24 = arith.constant 0 : index
    %c2_25 = arith.constant 2 : index
    %c0_26 = arith.constant 0 : index
    %c0_27 = arith.constant 0 : index
    %16 = vector.load %arg6[%c0_23, %c0_24, %c2_25, %c0_26, %c0_27] : memref<3x3x3x8x16xf32, #tpu.memory_space<vmem>>, vector<1x1x1x8x16xf32>
    %17 = vector.shape_cast %16 : vector<1x1x1x8x16xf32> to vector<8x16xf32>
    %cst_28 = arith.constant dense<0.000000e+00> : vector<64x16xf32>
    %18 = tpu.matmul %15, %17, %cst_28 {dimension_numbers = #tpu.dot_dimension_numbers<[1], [0], [0], [1], [0, 0, 1, 1], [], []>} : vector<64x8xf32>, vector<8x16xf32>, vector<64x16xf32> -> vector<64x16xf32>
    %19 = arith.addf %12, %18 : vector<64x16xf32>
    %c0_29 = arith.constant 0 : index
    %c0_30 = arith.constant 0 : index
    %c1_31 = arith.constant 1 : index
    %c0_32 = arith.constant 0 : index
    %c0_33 = arith.constant 0 : index
    %20 = vector.load %arg3[%c0_29, %c0_30, %c1_31, %c0_32, %c0_33] : memref<1x1x10x10x8xf32, #tpu.memory_space<vmem>>, vector<1x1x8x8x8xf32>
    %21 = vector.shape_cast %20 : vector<1x1x8x8x8xf32> to vector<8x8x8xf32>
    %22 = vector.shape_cast %21 : vector<8x8x8xf32> to vector<64x8xf32>
    %c0_34 = arith.constant 0 : index
    %c1_35 = arith.constant 1 : index
    %c0_36 = arith.constant 0 : index
    %c0_37 = arith.constant 0 : index
    %c0_38 = arith.constant 0 : index
    %23 = vector.load %arg6[%c0_34, %c1_35, %c0_36, %c0_37, %c0_38] : memref<3x3x3x8x16xf32, #tpu.memory_space<vmem>>, vector<1x1x1x8x16xf32>
    %24 = vector.shape_cast %23 : vector<1x1x1x8x16xf32> to vector<8x16xf32>
    %cst_39 = arith.constant dense<0.000000e+00> : vector<64x16xf32>
    %25 = tpu.matmul %22, %24, %cst_39 {dimension_numbers = #tpu.dot_dimension_numbers<[1], [0], [0], [1], [0, 0, 1, 1], [], []>} : vector<64x8xf32>, vector<8x16xf32>, vector<64x16xf32> -> vector<64x16xf32>
    %26 = arith.addf %19, %25 : vector<64x16xf32>
    %c0_40 = arith.constant 0 : index
    %c0_41 = arith.constant 0 : index
    %c1_42 = arith.constant 1 : index
    %c1_43 = arith.constant 1 : index
    %c0_44 = arith.constant 0 : index
    %27 = vector.load %arg3[%c0_40, %c0_41, %c1_42, %c1_43, %c0_44] : memref<1x1x10x10x8xf32, #tpu.memory_space<vmem>>, vector<1x1x8x8x8xf32>
    %28 = vector.shape_cast %27 : vector<1x1x8x8x8xf32> to vector<8x8x8xf32>
    %29 = vector.shape_cast %28 : vector<8x8x8xf32> to vector<64x8xf32>
    %c0_45 = arith.constant 0 : index
    %c1_46 = arith.constant 1 : index
    %c1_47 = arith.constant 1 : index
    %c0_48 = arith.constant 0 : index
    %c0_49 = arith.constant 0 : index
    %30 = vector.load %arg6[%c0_45, %c1_46, %c1_47, %c0_48, %c0_49] : memref<3x3x3x8x16xf32, #tpu.memory_space<vmem>>, vector<1x1x1x8x16xf32>
    %31 = vector.shape_cast %30 : vector<1x1x1x8x16xf32> to vector<8x16xf32>
    %cst_50 = arith.constant dense<0.000000e+00> : vector<64x16xf32>
    %32 = tpu.matmul %29, %31, %cst_50 {dimension_numbers = #tpu.dot_dimension_numbers<[1], [0], [0], [1], [0, 0, 1, 1], [], []>} : vector<64x8xf32>, vector<8x16xf32>, vector<64x16xf32> -> vector<64x16xf32>
    %33 = arith.addf %26, %32 : vector<64x16xf32>
    %c0_51 = arith.constant 0 : index
    %c0_52 = arith.constant 0 : index
    %c1_53 = arith.constant 1 : index
    %c2_54 = arith.constant 2 : index
    %c0_55 = arith.constant 0 : index
    %34 = vector.load %arg3[%c0_51, %c0_52, %c1_53, %c2_54, %c0_55] : memref<1x1x10x10x8xf32, #tpu.memory_space<vmem>>, vector<1x1x8x8x8xf32>
    %35 = vector.shape_cast %34 : vector<1x1x8x8x8xf32> to vector<8x8x8xf32>
    %36 = vector.shape_cast %35 : vector<8x8x8xf32> to vector<64x8xf32>
    %c0_56 = arith.constant 0 : index
    %c1_57 = arith.constant 1 : index
    %c2_58 = arith.constant 2 : index
    %c0_59 = arith.constant 0 : index
    %c0_60 = arith.constant 0 : index
    %37 = vector.load %arg6[%c0_56, %c1_57, %c2_58, %c0_59, %c0_60] : memref<3x3x3x8x16xf32, #tpu.memory_space<vmem>>, vector<1x1x1x8x16xf32>
    %38 = vector.shape_cast %37 : vector<1x1x1x8x16xf32> to vector<8x16xf32>
    %cst_61 = arith.constant dense<0.000000e+00> : vector<64x16xf32>
    %39 = tpu.matmul %36, %38, %cst_61 {dimension_numbers = #tpu.dot_dimension_numbers<[1], [0], [0], [1], [0, 0, 1, 1], [], []>} : vector<64x8xf32>, vector<8x16xf32>, vector<64x16xf32> -> vector<64x16xf32>
    %40 = arith.addf %33, %39 : vector<64x16xf32>
    %c0_62 = arith.constant 0 : index
    %c0_63 = arith.constant 0 : index
    %c2_64 = arith.constant 2 : index
    %c0_65 = arith.constant 0 : index
    %c0_66 = arith.constant 0 : index
    %41 = vector.load %arg3[%c0_62, %c0_63, %c2_64, %c0_65, %c0_66] : memref<1x1x10x10x8xf32, #tpu.memory_space<vmem>>, vector<1x1x8x8x8xf32>
    %42 = vector.shape_cast %41 : vector<1x1x8x8x8xf32> to vector<8x8x8xf32>
    %43 = vector.shape_cast %42 : vector<8x8x8xf32> to vector<64x8xf32>
    %c0_67 = arith.constant 0 : index
    %c2_68 = arith.constant 2 : index
    %c0_69 = arith.constant 0 : index
    %c0_70 = arith.constant 0 : index
    %c0_71 = arith.constant 0 : index
    %44 = vector.load %arg6[%c0_67, %c2_68, %c0_69, %c0_70, %c0_71] : memref<3x3x3x8x16xf32, #tpu.memory_space<vmem>>, vector<1x1x1x8x16xf32>
    %45 = vector.shape_cast %44 : vector<1x1x1x8x16xf32> to vector<8x16xf32>
    %cst_72 = arith.constant dense<0.000000e+00> : vector<64x16xf32>
    %46 = tpu.matmul %43, %45, %cst_72 {dimension_numbers = #tpu.dot_dimension_numbers<[1], [0], [0], [1], [0, 0, 1, 1], [], []>} : vector<64x8xf32>, vector<8x16xf32>, vector<64x16xf32> -> vector<64x16xf32>
    %47 = arith.addf %40, %46 : vector<64x16xf32>
    %c0_73 = arith.constant 0 : index
    %c0_74 = arith.constant 0 : index
    %c2_75 = arith.constant 2 : index
    %c1_76 = arith.constant 1 : index
    %c0_77 = arith.constant 0 : index
    %48 = vector.load %arg3[%c0_73, %c0_74, %c2_75, %c1_76, %c0_77] : memref<1x1x10x10x8xf32, #tpu.memory_space<vmem>>, vector<1x1x8x8x8xf32>
    %49 = vector.shape_cast %48 : vector<1x1x8x8x8xf32> to vector<8x8x8xf32>
    %50 = vector.shape_cast %49 : vector<8x8x8xf32> to vector<64x8xf32>
    %c0_78 = arith.constant 0 : index
    %c2_79 = arith.constant 2 : index
    %c1_80 = arith.constant 1 : index
    %c0_81 = arith.constant 0 : index
    %c0_82 = arith.constant 0 : index
    %51 = vector.load %arg6[%c0_78, %c2_79, %c1_80, %c0_81, %c0_82] : memref<3x3x3x8x16xf32, #tpu.memory_space<vmem>>, vector<1x1x1x8x16xf32>
    %52 = vector.shape_cast %51 : vector<1x1x1x8x16xf32> to vector<8x16xf32>
    %cst_83 = arith.constant dense<0.000000e+00> : vector<64x16xf32>
    %53 = tpu.matmul %50, %52, %cst_83 {dimension_numbers = #tpu.dot_dimension_numbers<[1], [0], [0], [1], [0, 0, 1, 1], [], []>} : vector<64x8xf32>, vector<8x16xf32>, vector<64x16xf32> -> vector<64x16xf32>
    %54 = arith.addf %47, %53 : vector<64x16xf32>
    %c0_84 = arith.constant 0 : index
    %c0_85 = arith.constant 0 : index
    %c2_86 = arith.constant 2 : index
    %c2_87 = arith.constant 2 : index
    %c0_88 = arith.constant 0 : index
    %55 = vector.load %arg3[%c0_84, %c0_85, %c2_86, %c2_87, %c0_88] : memref<1x1x10x10x8xf32, #tpu.memory_space<vmem>>, vector<1x1x8x8x8xf32>
    %56 = vector.shape_cast %55 : vector<1x1x8x8x8xf32> to vector<8x8x8xf32>
    %57 = vector.shape_cast %56 : vector<8x8x8xf32> to vector<64x8xf32>
    %c0_89 = arith.constant 0 : index
    %c2_90 = arith.constant 2 : index
    %c2_91 = arith.constant 2 : index
    %c0_92 = arith.constant 0 : index
    %c0_93 = arith.constant 0 : index
    %58 = vector.load %arg6[%c0_89, %c2_90, %c2_91, %c0_92, %c0_93] : memref<3x3x3x8x16xf32, #tpu.memory_space<vmem>>, vector<1x1x1x8x16xf32>
    %59 = vector.shape_cast %58 : vector<1x1x1x8x16xf32> to vector<8x16xf32>
    %cst_94 = arith.constant dense<0.000000e+00> : vector<64x16xf32>
    %60 = tpu.matmul %57, %59, %cst_94 {dimension_numbers = #tpu.dot_dimension_numbers<[1], [0], [0], [1], [0, 0, 1, 1], [], []>} : vector<64x8xf32>, vector<8x16xf32>, vector<64x16xf32> -> vector<64x16xf32>
    %61 = arith.addf %54, %60 : vector<64x16xf32>
    %c0_95 = arith.constant 0 : index
    %c0_96 = arith.constant 0 : index
    %c0_97 = arith.constant 0 : index
    %c0_98 = arith.constant 0 : index
    %c0_99 = arith.constant 0 : index
    %62 = vector.load %arg4[%c0_95, %c0_96, %c0_97, %c0_98, %c0_99] : memref<1x1x10x10x8xf32, #tpu.memory_space<vmem>>, vector<1x1x8x8x8xf32>
    %63 = vector.shape_cast %62 : vector<1x1x8x8x8xf32> to vector<8x8x8xf32>
    %64 = vector.shape_cast %63 : vector<8x8x8xf32> to vector<64x8xf32>
    %c1_100 = arith.constant 1 : index
    %c0_101 = arith.constant 0 : index
    %c0_102 = arith.constant 0 : index
    %c0_103 = arith.constant 0 : index
    %c0_104 = arith.constant 0 : index
    %65 = vector.load %arg6[%c1_100, %c0_101, %c0_102, %c0_103, %c0_104] : memref<3x3x3x8x16xf32, #tpu.memory_space<vmem>>, vector<1x1x1x8x16xf32>
    %66 = vector.shape_cast %65 : vector<1x1x1x8x16xf32> to vector<8x16xf32>
    %cst_105 = arith.constant dense<0.000000e+00> : vector<64x16xf32>
    %67 = tpu.matmul %64, %66, %cst_105 {dimension_numbers = #tpu.dot_dimension_numbers<[1], [0], [0], [1], [0, 0, 1, 1], [], []>} : vector<64x8xf32>, vector<8x16xf32>, vector<64x16xf32> -> vector<64x16xf32>
    %68 = arith.addf %61, %67 : vector<64x16xf32>
    %c0_106 = arith.constant 0 : index
    %c0_107 = arith.constant 0 : index
    %c0_108 = arith.constant 0 : index
    %c1_109 = arith.constant 1 : index
    %c0_110 = arith.constant 0 : index
    %69 = vector.load %arg4[%c0_106, %c0_107, %c0_108, %c1_109, %c0_110] : memref<1x1x10x10x8xf32, #tpu.memory_space<vmem>>, vector<1x1x8x8x8xf32>
    %70 = vector.shape_cast %69 : vector<1x1x8x8x8xf32> to vector<8x8x8xf32>
    %71 = vector.shape_cast %70 : vector<8x8x8xf32> to vector<64x8xf32>
    %c1_111 = arith.constant 1 : index
    %c0_112 = arith.constant 0 : index
    %c1_113 = arith.constant 1 : index
    %c0_114 = arith.constant 0 : index
    %c0_115 = arith.constant 0 : index
    %72 = vector.load %arg6[%c1_111, %c0_112, %c1_113, %c0_114, %c0_115] : memref<3x3x3x8x16xf32, #tpu.memory_space<vmem>>, vector<1x1x1x8x16xf32>
    %73 = vector.shape_cast %72 : vector<1x1x1x8x16xf32> to vector<8x16xf32>
    %cst_116 = arith.constant dense<0.000000e+00> : vector<64x16xf32>
    %74 = tpu.matmul %71, %73, %cst_116 {dimension_numbers = #tpu.dot_dimension_numbers<[1], [0], [0], [1], [0, 0, 1, 1], [], []>} : vector<64x8xf32>, vector<8x16xf32>, vector<64x16xf32> -> vector<64x16xf32>
    %75 = arith.addf %68, %74 : vector<64x16xf32>
    %c0_117 = arith.constant 0 : index
    %c0_118 = arith.constant 0 : index
    %c0_119 = arith.constant 0 : index
    %c2_120 = arith.constant 2 : index
    %c0_121 = arith.constant 0 : index
    %76 = vector.load %arg4[%c0_117, %c0_118, %c0_119, %c2_120, %c0_121] : memref<1x1x10x10x8xf32, #tpu.memory_space<vmem>>, vector<1x1x8x8x8xf32>
    %77 = vector.shape_cast %76 : vector<1x1x8x8x8xf32> to vector<8x8x8xf32>
    %78 = vector.shape_cast %77 : vector<8x8x8xf32> to vector<64x8xf32>
    %c1_122 = arith.constant 1 : index
    %c0_123 = arith.constant 0 : index
    %c2_124 = arith.constant 2 : index
    %c0_125 = arith.constant 0 : index
    %c0_126 = arith.constant 0 : index
    %79 = vector.load %arg6[%c1_122, %c0_123, %c2_124, %c0_125, %c0_126] : memref<3x3x3x8x16xf32, #tpu.memory_space<vmem>>, vector<1x1x1x8x16xf32>
    %80 = vector.shape_cast %79 : vector<1x1x1x8x16xf32> to vector<8x16xf32>
    %cst_127 = arith.constant dense<0.000000e+00> : vector<64x16xf32>
    %81 = tpu.matmul %78, %80, %cst_127 {dimension_numbers = #tpu.dot_dimension_numbers<[1], [0], [0], [1], [0, 0, 1, 1], [], []>} : vector<64x8xf32>, vector<8x16xf32>, vector<64x16xf32> -> vector<64x16xf32>
    %82 = arith.addf %75, %81 : vector<64x16xf32>
    %c0_128 = arith.constant 0 : index
    %c0_129 = arith.constant 0 : index
    %c1_130 = arith.constant 1 : index
    %c0_131 = arith.constant 0 : index
    %c0_132 = arith.constant 0 : index
    %83 = vector.load %arg4[%c0_128, %c0_129, %c1_130, %c0_131, %c0_132] : memref<1x1x10x10x8xf32, #tpu.memory_space<vmem>>, vector<1x1x8x8x8xf32>
    %84 = vector.shape_cast %83 : vector<1x1x8x8x8xf32> to vector<8x8x8xf32>
    %85 = vector.shape_cast %84 : vector<8x8x8xf32> to vector<64x8xf32>
    %c1_133 = arith.constant 1 : index
    %c1_134 = arith.constant 1 : index
    %c0_135 = arith.constant 0 : index
    %c0_136 = arith.constant 0 : index
    %c0_137 = arith.constant 0 : index
    %86 = vector.load %arg6[%c1_133, %c1_134, %c0_135, %c0_136, %c0_137] : memref<3x3x3x8x16xf32, #tpu.memory_space<vmem>>, vector<1x1x1x8x16xf32>
    %87 = vector.shape_cast %86 : vector<1x1x1x8x16xf32> to vector<8x16xf32>
    %cst_138 = arith.constant dense<0.000000e+00> : vector<64x16xf32>
    %88 = tpu.matmul %85, %87, %cst_138 {dimension_numbers = #tpu.dot_dimension_numbers<[1], [0], [0], [1], [0, 0, 1, 1], [], []>} : vector<64x8xf32>, vector<8x16xf32>, vector<64x16xf32> -> vector<64x16xf32>
    %89 = arith.addf %82, %88 : vector<64x16xf32>
    %c0_139 = arith.constant 0 : index
    %c0_140 = arith.constant 0 : index
    %c1_141 = arith.constant 1 : index
    %c1_142 = arith.constant 1 : index
    %c0_143 = arith.constant 0 : index
    %90 = vector.load %arg4[%c0_139, %c0_140, %c1_141, %c1_142, %c0_143] : memref<1x1x10x10x8xf32, #tpu.memory_space<vmem>>, vector<1x1x8x8x8xf32>
    %91 = vector.shape_cast %90 : vector<1x1x8x8x8xf32> to vector<8x8x8xf32>
    %92 = vector.shape_cast %91 : vector<8x8x8xf32> to vector<64x8xf32>
    %c1_144 = arith.constant 1 : index
    %c1_145 = arith.constant 1 : index
    %c1_146 = arith.constant 1 : index
    %c0_147 = arith.constant 0 : index
    %c0_148 = arith.constant 0 : index
    %93 = vector.load %arg6[%c1_144, %c1_145, %c1_146, %c0_147, %c0_148] : memref<3x3x3x8x16xf32, #tpu.memory_space<vmem>>, vector<1x1x1x8x16xf32>
    %94 = vector.shape_cast %93 : vector<1x1x1x8x16xf32> to vector<8x16xf32>
    %cst_149 = arith.constant dense<0.000000e+00> : vector<64x16xf32>
    %95 = tpu.matmul %92, %94, %cst_149 {dimension_numbers = #tpu.dot_dimension_numbers<[1], [0], [0], [1], [0, 0, 1, 1], [], []>} : vector<64x8xf32>, vector<8x16xf32>, vector<64x16xf32> -> vector<64x16xf32>
    %96 = arith.addf %89, %95 : vector<64x16xf32>
    %c0_150 = arith.constant 0 : index
    %c0_151 = arith.constant 0 : index
    %c1_152 = arith.constant 1 : index
    %c2_153 = arith.constant 2 : index
    %c0_154 = arith.constant 0 : index
    %97 = vector.load %arg4[%c0_150, %c0_151, %c1_152, %c2_153, %c0_154] : memref<1x1x10x10x8xf32, #tpu.memory_space<vmem>>, vector<1x1x8x8x8xf32>
    %98 = vector.shape_cast %97 : vector<1x1x8x8x8xf32> to vector<8x8x8xf32>
    %99 = vector.shape_cast %98 : vector<8x8x8xf32> to vector<64x8xf32>
    %c1_155 = arith.constant 1 : index
    %c1_156 = arith.constant 1 : index
    %c2_157 = arith.constant 2 : index
    %c0_158 = arith.constant 0 : index
    %c0_159 = arith.constant 0 : index
    %100 = vector.load %arg6[%c1_155, %c1_156, %c2_157, %c0_158, %c0_159] : memref<3x3x3x8x16xf32, #tpu.memory_space<vmem>>, vector<1x1x1x8x16xf32>
    %101 = vector.shape_cast %100 : vector<1x1x1x8x16xf32> to vector<8x16xf32>
    %cst_160 = arith.constant dense<0.000000e+00> : vector<64x16xf32>
    %102 = tpu.matmul %99, %101, %cst_160 {dimension_numbers = #tpu.dot_dimension_numbers<[1], [0], [0], [1], [0, 0, 1, 1], [], []>} : vector<64x8xf32>, vector<8x16xf32>, vector<64x16xf32> -> vector<64x16xf32>
    %103 = arith.addf %96, %102 : vector<64x16xf32>
    %c0_161 = arith.constant 0 : index
    %c0_162 = arith.constant 0 : index
    %c2_163 = arith.constant 2 : index
    %c0_164 = arith.constant 0 : index
    %c0_165 = arith.constant 0 : index
    %104 = vector.load %arg4[%c0_161, %c0_162, %c2_163, %c0_164, %c0_165] : memref<1x1x10x10x8xf32, #tpu.memory_space<vmem>>, vector<1x1x8x8x8xf32>
    %105 = vector.shape_cast %104 : vector<1x1x8x8x8xf32> to vector<8x8x8xf32>
    %106 = vector.shape_cast %105 : vector<8x8x8xf32> to vector<64x8xf32>
    %c1_166 = arith.constant 1 : index
    %c2_167 = arith.constant 2 : index
    %c0_168 = arith.constant 0 : index
    %c0_169 = arith.constant 0 : index
    %c0_170 = arith.constant 0 : index
    %107 = vector.load %arg6[%c1_166, %c2_167, %c0_168, %c0_169, %c0_170] : memref<3x3x3x8x16xf32, #tpu.memory_space<vmem>>, vector<1x1x1x8x16xf32>
    %108 = vector.shape_cast %107 : vector<1x1x1x8x16xf32> to vector<8x16xf32>
    %cst_171 = arith.constant dense<0.000000e+00> : vector<64x16xf32>
    %109 = tpu.matmul %106, %108, %cst_171 {dimension_numbers = #tpu.dot_dimension_numbers<[1], [0], [0], [1], [0, 0, 1, 1], [], []>} : vector<64x8xf32>, vector<8x16xf32>, vector<64x16xf32> -> vector<64x16xf32>
    %110 = arith.addf %103, %109 : vector<64x16xf32>
    %c0_172 = arith.constant 0 : index
    %c0_173 = arith.constant 0 : index
    %c2_174 = arith.constant 2 : index
    %c1_175 = arith.constant 1 : index
    %c0_176 = arith.constant 0 : index
    %111 = vector.load %arg4[%c0_172, %c0_173, %c2_174, %c1_175, %c0_176] : memref<1x1x10x10x8xf32, #tpu.memory_space<vmem>>, vector<1x1x8x8x8xf32>
    %112 = vector.shape_cast %111 : vector<1x1x8x8x8xf32> to vector<8x8x8xf32>
    %113 = vector.shape_cast %112 : vector<8x8x8xf32> to vector<64x8xf32>
    %c1_177 = arith.constant 1 : index
    %c2_178 = arith.constant 2 : index
    %c1_179 = arith.constant 1 : index
    %c0_180 = arith.constant 0 : index
    %c0_181 = arith.constant 0 : index
    %114 = vector.load %arg6[%c1_177, %c2_178, %c1_179, %c0_180, %c0_181] : memref<3x3x3x8x16xf32, #tpu.memory_space<vmem>>, vector<1x1x1x8x16xf32>
    %115 = vector.shape_cast %114 : vector<1x1x1x8x16xf32> to vector<8x16xf32>
    %cst_182 = arith.constant dense<0.000000e+00> : vector<64x16xf32>
    %116 = tpu.matmul %113, %115, %cst_182 {dimension_numbers = #tpu.dot_dimension_numbers<[1], [0], [0], [1], [0, 0, 1, 1], [], []>} : vector<64x8xf32>, vector<8x16xf32>, vector<64x16xf32> -> vector<64x16xf32>
    %117 = arith.addf %110, %116 : vector<64x16xf32>
    %c0_183 = arith.constant 0 : index
    %c0_184 = arith.constant 0 : index
    %c2_185 = arith.constant 2 : index
    %c2_186 = arith.constant 2 : index
    %c0_187 = arith.constant 0 : index
    %118 = vector.load %arg4[%c0_183, %c0_184, %c2_185, %c2_186, %c0_187] : memref<1x1x10x10x8xf32, #tpu.memory_space<vmem>>, vector<1x1x8x8x8xf32>
    %119 = vector.shape_cast %118 : vector<1x1x8x8x8xf32> to vector<8x8x8xf32>
    %120 = vector.shape_cast %119 : vector<8x8x8xf32> to vector<64x8xf32>
    %c1_188 = arith.constant 1 : index
    %c2_189 = arith.constant 2 : index
    %c2_190 = arith.constant 2 : index
    %c0_191 = arith.constant 0 : index
    %c0_192 = arith.constant 0 : index
    %121 = vector.load %arg6[%c1_188, %c2_189, %c2_190, %c0_191, %c0_192] : memref<3x3x3x8x16xf32, #tpu.memory_space<vmem>>, vector<1x1x1x8x16xf32>
    %122 = vector.shape_cast %121 : vector<1x1x1x8x16xf32> to vector<8x16xf32>
    %cst_193 = arith.constant dense<0.000000e+00> : vector<64x16xf32>
    %123 = tpu.matmul %120, %122, %cst_193 {dimension_numbers = #tpu.dot_dimension_numbers<[1], [0], [0], [1], [0, 0, 1, 1], [], []>} : vector<64x8xf32>, vector<8x16xf32>, vector<64x16xf32> -> vector<64x16xf32>
    %124 = arith.addf %117, %123 : vector<64x16xf32>
    %c0_194 = arith.constant 0 : index
    %c0_195 = arith.constant 0 : index
    %c0_196 = arith.constant 0 : index
    %c0_197 = arith.constant 0 : index
    %c0_198 = arith.constant 0 : index
    %125 = vector.load %arg5[%c0_194, %c0_195, %c0_196, %c0_197, %c0_198] : memref<1x1x10x10x8xf32, #tpu.memory_space<vmem>>, vector<1x1x8x8x8xf32>
    %126 = vector.shape_cast %125 : vector<1x1x8x8x8xf32> to vector<8x8x8xf32>
    %127 = vector.shape_cast %126 : vector<8x8x8xf32> to vector<64x8xf32>
    %c2_199 = arith.constant 2 : index
    %c0_200 = arith.constant 0 : index
    %c0_201 = arith.constant 0 : index
    %c0_202 = arith.constant 0 : index
    %c0_203 = arith.constant 0 : index
    %128 = vector.load %arg6[%c2_199, %c0_200, %c0_201, %c0_202, %c0_203] : memref<3x3x3x8x16xf32, #tpu.memory_space<vmem>>, vector<1x1x1x8x16xf32>
    %129 = vector.shape_cast %128 : vector<1x1x1x8x16xf32> to vector<8x16xf32>
    %cst_204 = arith.constant dense<0.000000e+00> : vector<64x16xf32>
    %130 = tpu.matmul %127, %129, %cst_204 {dimension_numbers = #tpu.dot_dimension_numbers<[1], [0], [0], [1], [0, 0, 1, 1], [], []>} : vector<64x8xf32>, vector<8x16xf32>, vector<64x16xf32> -> vector<64x16xf32>
    %131 = arith.addf %124, %130 : vector<64x16xf32>
    %c0_205 = arith.constant 0 : index
    %c0_206 = arith.constant 0 : index
    %c0_207 = arith.constant 0 : index
    %c1_208 = arith.constant 1 : index
    %c0_209 = arith.constant 0 : index
    %132 = vector.load %arg5[%c0_205, %c0_206, %c0_207, %c1_208, %c0_209] : memref<1x1x10x10x8xf32, #tpu.memory_space<vmem>>, vector<1x1x8x8x8xf32>
    %133 = vector.shape_cast %132 : vector<1x1x8x8x8xf32> to vector<8x8x8xf32>
    %134 = vector.shape_cast %133 : vector<8x8x8xf32> to vector<64x8xf32>
    %c2_210 = arith.constant 2 : index
    %c0_211 = arith.constant 0 : index
    %c1_212 = arith.constant 1 : index
    %c0_213 = arith.constant 0 : index
    %c0_214 = arith.constant 0 : index
    %135 = vector.load %arg6[%c2_210, %c0_211, %c1_212, %c0_213, %c0_214] : memref<3x3x3x8x16xf32, #tpu.memory_space<vmem>>, vector<1x1x1x8x16xf32>
    %136 = vector.shape_cast %135 : vector<1x1x1x8x16xf32> to vector<8x16xf32>
    %cst_215 = arith.constant dense<0.000000e+00> : vector<64x16xf32>
    %137 = tpu.matmul %134, %136, %cst_215 {dimension_numbers = #tpu.dot_dimension_numbers<[1], [0], [0], [1], [0, 0, 1, 1], [], []>} : vector<64x8xf32>, vector<8x16xf32>, vector<64x16xf32> -> vector<64x16xf32>
    %138 = arith.addf %131, %137 : vector<64x16xf32>
    %c0_216 = arith.constant 0 : index
    %c0_217 = arith.constant 0 : index
    %c0_218 = arith.constant 0 : index
    %c2_219 = arith.constant 2 : index
    %c0_220 = arith.constant 0 : index
    %139 = vector.load %arg5[%c0_216, %c0_217, %c0_218, %c2_219, %c0_220] : memref<1x1x10x10x8xf32, #tpu.memory_space<vmem>>, vector<1x1x8x8x8xf32>
    %140 = vector.shape_cast %139 : vector<1x1x8x8x8xf32> to vector<8x8x8xf32>
    %141 = vector.shape_cast %140 : vector<8x8x8xf32> to vector<64x8xf32>
    %c2_221 = arith.constant 2 : index
    %c0_222 = arith.constant 0 : index
    %c2_223 = arith.constant 2 : index
    %c0_224 = arith.constant 0 : index
    %c0_225 = arith.constant 0 : index
    %142 = vector.load %arg6[%c2_221, %c0_222, %c2_223, %c0_224, %c0_225] : memref<3x3x3x8x16xf32, #tpu.memory_space<vmem>>, vector<1x1x1x8x16xf32>
    %143 = vector.shape_cast %142 : vector<1x1x1x8x16xf32> to vector<8x16xf32>
    %cst_226 = arith.constant dense<0.000000e+00> : vector<64x16xf32>
    %144 = tpu.matmul %141, %143, %cst_226 {dimension_numbers = #tpu.dot_dimension_numbers<[1], [0], [0], [1], [0, 0, 1, 1], [], []>} : vector<64x8xf32>, vector<8x16xf32>, vector<64x16xf32> -> vector<64x16xf32>
    %145 = arith.addf %138, %144 : vector<64x16xf32>
    %c0_227 = arith.constant 0 : index
    %c0_228 = arith.constant 0 : index
    %c1_229 = arith.constant 1 : index
    %c0_230 = arith.constant 0 : index
    %c0_231 = arith.constant 0 : index
    %146 = vector.load %arg5[%c0_227, %c0_228, %c1_229, %c0_230, %c0_231] : memref<1x1x10x10x8xf32, #tpu.memory_space<vmem>>, vector<1x1x8x8x8xf32>
    %147 = vector.shape_cast %146 : vector<1x1x8x8x8xf32> to vector<8x8x8xf32>
    %148 = vector.shape_cast %147 : vector<8x8x8xf32> to vector<64x8xf32>
    %c2_232 = arith.constant 2 : index
    %c1_233 = arith.constant 1 : index
    %c0_234 = arith.constant 0 : index
    %c0_235 = arith.constant 0 : index
    %c0_236 = arith.constant 0 : index
    %149 = vector.load %arg6[%c2_232, %c1_233, %c0_234, %c0_235, %c0_236] : memref<3x3x3x8x16xf32, #tpu.memory_space<vmem>>, vector<1x1x1x8x16xf32>
    %150 = vector.shape_cast %149 : vector<1x1x1x8x16xf32> to vector<8x16xf32>
    %cst_237 = arith.constant dense<0.000000e+00> : vector<64x16xf32>
    %151 = tpu.matmul %148, %150, %cst_237 {dimension_numbers = #tpu.dot_dimension_numbers<[1], [0], [0], [1], [0, 0, 1, 1], [], []>} : vector<64x8xf32>, vector<8x16xf32>, vector<64x16xf32> -> vector<64x16xf32>
    %152 = arith.addf %145, %151 : vector<64x16xf32>
    %c0_238 = arith.constant 0 : index
    %c0_239 = arith.constant 0 : index
    %c1_240 = arith.constant 1 : index
    %c1_241 = arith.constant 1 : index
    %c0_242 = arith.constant 0 : index
    %153 = vector.load %arg5[%c0_238, %c0_239, %c1_240, %c1_241, %c0_242] : memref<1x1x10x10x8xf32, #tpu.memory_space<vmem>>, vector<1x1x8x8x8xf32>
    %154 = vector.shape_cast %153 : vector<1x1x8x8x8xf32> to vector<8x8x8xf32>
    %155 = vector.shape_cast %154 : vector<8x8x8xf32> to vector<64x8xf32>
    %c2_243 = arith.constant 2 : index
    %c1_244 = arith.constant 1 : index
    %c1_245 = arith.constant 1 : index
    %c0_246 = arith.constant 0 : index
    %c0_247 = arith.constant 0 : index
    %156 = vector.load %arg6[%c2_243, %c1_244, %c1_245, %c0_246, %c0_247] : memref<3x3x3x8x16xf32, #tpu.memory_space<vmem>>, vector<1x1x1x8x16xf32>
    %157 = vector.shape_cast %156 : vector<1x1x1x8x16xf32> to vector<8x16xf32>
    %cst_248 = arith.constant dense<0.000000e+00> : vector<64x16xf32>
    %158 = tpu.matmul %155, %157, %cst_248 {dimension_numbers = #tpu.dot_dimension_numbers<[1], [0], [0], [1], [0, 0, 1, 1], [], []>} : vector<64x8xf32>, vector<8x16xf32>, vector<64x16xf32> -> vector<64x16xf32>
    %159 = arith.addf %152, %158 : vector<64x16xf32>
    %c0_249 = arith.constant 0 : index
    %c0_250 = arith.constant 0 : index
    %c1_251 = arith.constant 1 : index
    %c2_252 = arith.constant 2 : index
    %c0_253 = arith.constant 0 : index
    %160 = vector.load %arg5[%c0_249, %c0_250, %c1_251, %c2_252, %c0_253] : memref<1x1x10x10x8xf32, #tpu.memory_space<vmem>>, vector<1x1x8x8x8xf32>
    %161 = vector.shape_cast %160 : vector<1x1x8x8x8xf32> to vector<8x8x8xf32>
    %162 = vector.shape_cast %161 : vector<8x8x8xf32> to vector<64x8xf32>
    %c2_254 = arith.constant 2 : index
    %c1_255 = arith.constant 1 : index
    %c2_256 = arith.constant 2 : index
    %c0_257 = arith.constant 0 : index
    %c0_258 = arith.constant 0 : index
    %163 = vector.load %arg6[%c2_254, %c1_255, %c2_256, %c0_257, %c0_258] : memref<3x3x3x8x16xf32, #tpu.memory_space<vmem>>, vector<1x1x1x8x16xf32>
    %164 = vector.shape_cast %163 : vector<1x1x1x8x16xf32> to vector<8x16xf32>
    %cst_259 = arith.constant dense<0.000000e+00> : vector<64x16xf32>
    %165 = tpu.matmul %162, %164, %cst_259 {dimension_numbers = #tpu.dot_dimension_numbers<[1], [0], [0], [1], [0, 0, 1, 1], [], []>} : vector<64x8xf32>, vector<8x16xf32>, vector<64x16xf32> -> vector<64x16xf32>
    %166 = arith.addf %159, %165 : vector<64x16xf32>
    %c0_260 = arith.constant 0 : index
    %c0_261 = arith.constant 0 : index
    %c2_262 = arith.constant 2 : index
    %c0_263 = arith.constant 0 : index
    %c0_264 = arith.constant 0 : index
    %167 = vector.load %arg5[%c0_260, %c0_261, %c2_262, %c0_263, %c0_264] : memref<1x1x10x10x8xf32, #tpu.memory_space<vmem>>, vector<1x1x8x8x8xf32>
    %168 = vector.shape_cast %167 : vector<1x1x8x8x8xf32> to vector<8x8x8xf32>
    %169 = vector.shape_cast %168 : vector<8x8x8xf32> to vector<64x8xf32>
    %c2_265 = arith.constant 2 : index
    %c2_266 = arith.constant 2 : index
    %c0_267 = arith.constant 0 : index
    %c0_268 = arith.constant 0 : index
    %c0_269 = arith.constant 0 : index
    %170 = vector.load %arg6[%c2_265, %c2_266, %c0_267, %c0_268, %c0_269] : memref<3x3x3x8x16xf32, #tpu.memory_space<vmem>>, vector<1x1x1x8x16xf32>
    %171 = vector.shape_cast %170 : vector<1x1x1x8x16xf32> to vector<8x16xf32>
    %cst_270 = arith.constant dense<0.000000e+00> : vector<64x16xf32>
    %172 = tpu.matmul %169, %171, %cst_270 {dimension_numbers = #tpu.dot_dimension_numbers<[1], [0], [0], [1], [0, 0, 1, 1], [], []>} : vector<64x8xf32>, vector<8x16xf32>, vector<64x16xf32> -> vector<64x16xf32>
    %173 = arith.addf %166, %172 : vector<64x16xf32>
    %c0_271 = arith.constant 0 : index
    %c0_272 = arith.constant 0 : index
    %c2_273 = arith.constant 2 : index
    %c1_274 = arith.constant 1 : index
    %c0_275 = arith.constant 0 : index
    %174 = vector.load %arg5[%c0_271, %c0_272, %c2_273, %c1_274, %c0_275] : memref<1x1x10x10x8xf32, #tpu.memory_space<vmem>>, vector<1x1x8x8x8xf32>
    %175 = vector.shape_cast %174 : vector<1x1x8x8x8xf32> to vector<8x8x8xf32>
    %176 = vector.shape_cast %175 : vector<8x8x8xf32> to vector<64x8xf32>
    %c2_276 = arith.constant 2 : index
    %c2_277 = arith.constant 2 : index
    %c1_278 = arith.constant 1 : index
    %c0_279 = arith.constant 0 : index
    %c0_280 = arith.constant 0 : index
    %177 = vector.load %arg6[%c2_276, %c2_277, %c1_278, %c0_279, %c0_280] : memref<3x3x3x8x16xf32, #tpu.memory_space<vmem>>, vector<1x1x1x8x16xf32>
    %178 = vector.shape_cast %177 : vector<1x1x1x8x16xf32> to vector<8x16xf32>
    %cst_281 = arith.constant dense<0.000000e+00> : vector<64x16xf32>
    %179 = tpu.matmul %176, %178, %cst_281 {dimension_numbers = #tpu.dot_dimension_numbers<[1], [0], [0], [1], [0, 0, 1, 1], [], []>} : vector<64x8xf32>, vector<8x16xf32>, vector<64x16xf32> -> vector<64x16xf32>
    %180 = arith.addf %173, %179 : vector<64x16xf32>
    %c0_282 = arith.constant 0 : index
    %c0_283 = arith.constant 0 : index
    %c2_284 = arith.constant 2 : index
    %c2_285 = arith.constant 2 : index
    %c0_286 = arith.constant 0 : index
    %181 = vector.load %arg5[%c0_282, %c0_283, %c2_284, %c2_285, %c0_286] : memref<1x1x10x10x8xf32, #tpu.memory_space<vmem>>, vector<1x1x8x8x8xf32>
    %182 = vector.shape_cast %181 : vector<1x1x8x8x8xf32> to vector<8x8x8xf32>
    %183 = vector.shape_cast %182 : vector<8x8x8xf32> to vector<64x8xf32>
    %c2_287 = arith.constant 2 : index
    %c2_288 = arith.constant 2 : index
    %c2_289 = arith.constant 2 : index
    %c0_290 = arith.constant 0 : index
    %c0_291 = arith.constant 0 : index
    %184 = vector.load %arg6[%c2_287, %c2_288, %c2_289, %c0_290, %c0_291] : memref<3x3x3x8x16xf32, #tpu.memory_space<vmem>>, vector<1x1x1x8x16xf32>
    %185 = vector.shape_cast %184 : vector<1x1x1x8x16xf32> to vector<8x16xf32>
    %cst_292 = arith.constant dense<0.000000e+00> : vector<64x16xf32>
    %186 = tpu.matmul %183, %185, %cst_292 {dimension_numbers = #tpu.dot_dimension_numbers<[1], [0], [0], [1], [0, 0, 1, 1], [], []>} : vector<64x8xf32>, vector<8x16xf32>, vector<64x16xf32> -> vector<64x16xf32>
    %187 = arith.addf %180, %186 : vector<64x16xf32>
    %c0_293 = arith.constant 0 : index
    %c0_294 = arith.constant 0 : index
    %188 = vector.load %arg7[%c0_293, %c0_294] : memref<1x16xf32, #tpu.memory_space<vmem>>, vector<1x16xf32>
    %189 = vector.broadcast %188 : vector<1x16xf32> to vector<64x16xf32>
    %190 = arith.mulf %187, %189 : vector<64x16xf32>
    %c0_295 = arith.constant 0 : index
    %c0_296 = arith.constant 0 : index
    %191 = vector.load %arg8[%c0_295, %c0_296] : memref<1x16xf32, #tpu.memory_space<vmem>>, vector<1x16xf32>
    %192 = vector.broadcast %191 : vector<1x16xf32> to vector<64x16xf32>
    %193 = arith.addf %190, %192 : vector<64x16xf32>
    %cst_297 = arith.constant 0.000000e+00 : f32
    %194 = vector.broadcast %cst_297 : f32 to vector<64x16xf32>
    %195 = arith.cmpf ogt, %193, %194 : vector<64x16xf32>
    %c0_298 = arith.constant 0 : index
    %196 = memref.load %arg2[%c0_298] : memref<1xf32, #tpu.memory_space<smem>>
    %197 = vector.broadcast %196 : f32 to vector<64x16xf32>
    %198 = arith.mulf %197, %193 : vector<64x16xf32>
    %199 = arith.select %195, %193, %198 : vector<64x16xi1>, vector<64x16xf32>
    %c0_299 = arith.constant 0 : index
    %c0_300 = arith.constant 0 : index
    %c0_301 = arith.constant 0 : index
    %c0_302 = arith.constant 0 : index
    %200 = vector.load %arg9[%c0_299, %c0_300, %c0_301, %c0_302] : memref<1x1x64x16xf32, #tpu.memory_space<vmem>>, vector<1x1x64x16xf32>
    %201 = vector.shape_cast %200 : vector<1x1x64x16xf32> to vector<64x16xf32>
    %202 = vector.shape_cast %199 : vector<64x16xf32> to vector<1x1x64x16xf32>
    tpu.vector_store %arg9[%c0_299, %c0_300, %c0_301, %c0_302], %202 {strides = array<i32>} : memref<1x1x64x16xf32, #tpu.memory_space<vmem>>, vector<1x1x64x16xf32>,
    return
  }
  func.func @transform_0(%arg0: i32, %arg1: i32) -> i32 {
    %c0_i32 = arith.constant 0 : i32
    %c0_i32_0 = arith.constant 0 : i32
    return %c0_i32 : i32
  }
  func.func @transform_1(%arg0: i32, %arg1: i32) -> (i32, i32, i32, i32, i32) {
    %c0_i32 = arith.constant 0 : i32
    %0 = arith.addi %arg1, %c0_i32 : i32
    %c0_i32_0 = arith.constant 0 : i32
    %c0_i32_1 = arith.constant 0 : i32
    %c0_i32_2 = arith.constant 0 : i32
    %c0_i32_3 = arith.constant 0 : i32
    return %arg0, %0, %c0_i32_0, %c0_i32_1, %c0_i32_2 : i32, i32, i32, i32, i32
  }
  func.func @transform_2(%arg0: i32, %arg1: i32) -> (i32, i32, i32, i32, i32) {
    %c1_i32 = arith.constant 1 : i32
    %0 = arith.addi %arg1, %c1_i32 : i32
    %c0_i32 = arith.constant 0 : i32
    %c0_i32_0 = arith.constant 0 : i32
    %c0_i32_1 = arith.constant 0 : i32
    %c0_i32_2 = arith.constant 0 : i32
    return %arg0, %0, %c0_i32, %c0_i32_0, %c0_i32_1 : i32, i32, i32, i32, i32
  }
  func.func @transform_3(%arg0: i32, %arg1: i32) -> (i32, i32, i32, i32, i32) {
    %c2_i32 = arith.constant 2 : i32
    %0 = arith.addi %arg1, %c2_i32 : i32
    %c0_i32 = arith.constant 0 : i32
    %c0_i32_0 = arith.constant 0 : i32
    %c0_i32_1 = arith.constant 0 : i32
    %c0_i32_2 = arith.constant 0 : i32
    return %arg0, %0, %c0_i32, %c0_i32_0, %c0_i32_1 : i32, i32, i32, i32, i32
  }
  func.func @transform_4(%arg0: i32, %arg1: i32) -> (i32, i32, i32, i32, i32) {
    %c0_i32 = arith.constant 0 : i32
    %c0_i32_0 = arith.constant 0 : i32
    %c0_i32_1 = arith.constant 0 : i32
    %c0_i32_2 = arith.constant 0 : i32
    %c0_i32_3 = arith.constant 0 : i32
    %c0_i32_4 = arith.constant 0 : i32
    return %c0_i32, %c0_i32_0, %c0_i32_1, %c0_i32_2, %c0_i32_3 : i32, i32, i32, i32, i32
  }
  func.func @transform_5(%arg0: i32, %arg1: i32) -> (i32, i32) {
    %c0_i32 = arith.constant 0 : i32
    %c0_i32_0 = arith.constant 0 : i32
    %c0_i32_1 = arith.constant 0 : i32
    return %c0_i32, %c0_i32_0 : i32, i32
  }
  func.func @transform_6(%arg0: i32, %arg1: i32) -> (i32, i32) {
    %c0_i32 = arith.constant 0 : i32
    %c0_i32_0 = arith.constant 0 : i32
    %c0_i32_1 = arith.constant 0 : i32
    return %c0_i32, %c0_i32_0 : i32, i32
  }
  func.func @transform_7(%arg0: i32, %arg1: i32) -> (i32, i32, i32, i32) {
    %c0_i32 = arith.constant 0 : i32
    %c0_i32_0 = arith.constant 0 : i32
    %c0_i32_1 = arith.constant 0 : i32
    return %arg0, %arg1, %c0_i32, %c0_i32_0 : i32, i32, i32, i32
  }
}

module attributes {stable_mosaic.version = 11 : i64} {
  func.func @_conv3x3x1_residual_kernel(%arg0: i32, %arg1: i32, %arg2: memref<1x1x10x8x16xf32, #tpu.memory_space<vmem>>, %arg3: memref<1x1x10x8x16xf32, #tpu.memory_space<vmem>>, %arg4: memref<1x1x10x8x16xf32, #tpu.memory_space<vmem>>, %arg5: memref<1x1x64x16xf32, #tpu.memory_space<vmem>>, %arg6: memref<3x3x16x16xf32, #tpu.memory_space<vmem>>, %arg7: memref<1x1x64x16xf32, #tpu.memory_space<vmem>>) attributes {dimension_semantics = [#tpu.dimension_semantics<parallel>, #tpu.dimension_semantics<parallel>], iteration_bounds = array<i64: 2, 8>, scalar_prefetch = 0 : i64, scratch_operands = 0 : i64, tpu.core_type = #tpu.core_type<tc>, window_params = [{transform_indices = @transform_0, window_bounds = array<i64: 1, 1, 10, 8, 16>}, {transform_indices = @transform_1, window_bounds = array<i64: 1, 1, 10, 8, 16>}, {transform_indices = @transform_2, window_bounds = array<i64: 1, 1, 10, 8, 16>}, {transform_indices = @transform_3, window_bounds = array<i64: 1, 1, 64, 16>}, {pipeline_mode = #tpu.pipeline_mode<synchronous>, transform_indices = @transform_4, window_bounds = array<i64: 3, 3, 16, 16>}, {transform_indices = @transform_5, window_bounds = array<i64: 1, 1, 64, 16>}]} {
    %c0 = arith.constant 0 : index
    %c0_0 = arith.constant 0 : index
    %c0_1 = arith.constant 0 : index
    %c0_2 = arith.constant 0 : index
    %0 = vector.load %arg5[%c0, %c0_0, %c0_1, %c0_2] : memref<1x1x64x16xf32, #tpu.memory_space<vmem>>, vector<1x1x64x16xf32>
    %1 = vector.shape_cast %0 : vector<1x1x64x16xf32> to vector<64x16xf32>
    %c0_3 = arith.constant 0 : index
    %c0_4 = arith.constant 0 : index
    %c0_5 = arith.constant 0 : index
    %c0_6 = arith.constant 0 : index
    %c0_7 = arith.constant 0 : index
    %2 = vector.load %arg2[%c0_3, %c0_4, %c0_5, %c0_6, %c0_7] : memref<1x1x10x8x16xf32, #tpu.memory_space<vmem>>, vector<1x1x8x8x16xf32>
    %3 = vector.shape_cast %2 : vector<1x1x8x8x16xf32> to vector<8x8x16xf32>
    %4 = vector.shape_cast %3 : vector<8x8x16xf32> to vector<64x16xf32>
    %c0_8 = arith.constant 0 : index
    %c0_9 = arith.constant 0 : index
    %c0_10 = arith.constant 0 : index
    %c0_11 = arith.constant 0 : index
    %5 = vector.load %arg6[%c0_8, %c0_9, %c0_10, %c0_11] : memref<3x3x16x16xf32, #tpu.memory_space<vmem>>, vector<1x1x16x16xf32>
    %6 = vector.shape_cast %5 : vector<1x1x16x16xf32> to vector<16x16xf32>
    %cst = arith.constant dense<0.000000e+00> : vector<64x16xf32>
    %7 = tpu.matmul %4, %6, %cst {dimension_numbers = #tpu.dot_dimension_numbers<[1], [0], [0], [1], [0, 0, 1, 1], [], []>} : vector<64x16xf32>, vector<16x16xf32>, vector<64x16xf32> -> vector<64x16xf32>
    %8 = arith.addf %1, %7 : vector<64x16xf32>
    %c0_12 = arith.constant 0 : index
    %c0_13 = arith.constant 0 : index
    %c1 = arith.constant 1 : index
    %c0_14 = arith.constant 0 : index
    %c0_15 = arith.constant 0 : index
    %9 = vector.load %arg2[%c0_12, %c0_13, %c1, %c0_14, %c0_15] : memref<1x1x10x8x16xf32, #tpu.memory_space<vmem>>, vector<1x1x8x8x16xf32>
    %10 = vector.shape_cast %9 : vector<1x1x8x8x16xf32> to vector<8x8x16xf32>
    %11 = vector.shape_cast %10 : vector<8x8x16xf32> to vector<64x16xf32>
    %c0_16 = arith.constant 0 : index
    %c1_17 = arith.constant 1 : index
    %c0_18 = arith.constant 0 : index
    %c0_19 = arith.constant 0 : index
    %12 = vector.load %arg6[%c0_16, %c1_17, %c0_18, %c0_19] : memref<3x3x16x16xf32, #tpu.memory_space<vmem>>, vector<1x1x16x16xf32>
    %13 = vector.shape_cast %12 : vector<1x1x16x16xf32> to vector<16x16xf32>
    %cst_20 = arith.constant dense<0.000000e+00> : vector<64x16xf32>
    %14 = tpu.matmul %11, %13, %cst_20 {dimension_numbers = #tpu.dot_dimension_numbers<[1], [0], [0], [1], [0, 0, 1, 1], [], []>} : vector<64x16xf32>, vector<16x16xf32>, vector<64x16xf32> -> vector<64x16xf32>
    %15 = arith.addf %8, %14 : vector<64x16xf32>
    %c0_21 = arith.constant 0 : index
    %c0_22 = arith.constant 0 : index
    %c2 = arith.constant 2 : index
    %c0_23 = arith.constant 0 : index
    %c0_24 = arith.constant 0 : index
    %16 = vector.load %arg2[%c0_21, %c0_22, %c2, %c0_23, %c0_24] : memref<1x1x10x8x16xf32, #tpu.memory_space<vmem>>, vector<1x1x8x8x16xf32>
    %17 = vector.shape_cast %16 : vector<1x1x8x8x16xf32> to vector<8x8x16xf32>
    %18 = vector.shape_cast %17 : vector<8x8x16xf32> to vector<64x16xf32>
    %c0_25 = arith.constant 0 : index
    %c2_26 = arith.constant 2 : index
    %c0_27 = arith.constant 0 : index
    %c0_28 = arith.constant 0 : index
    %19 = vector.load %arg6[%c0_25, %c2_26, %c0_27, %c0_28] : memref<3x3x16x16xf32, #tpu.memory_space<vmem>>, vector<1x1x16x16xf32>
    %20 = vector.shape_cast %19 : vector<1x1x16x16xf32> to vector<16x16xf32>
    %cst_29 = arith.constant dense<0.000000e+00> : vector<64x16xf32>
    %21 = tpu.matmul %18, %20, %cst_29 {dimension_numbers = #tpu.dot_dimension_numbers<[1], [0], [0], [1], [0, 0, 1, 1], [], []>} : vector<64x16xf32>, vector<16x16xf32>, vector<64x16xf32> -> vector<64x16xf32>
    %22 = arith.addf %15, %21 : vector<64x16xf32>
    %c0_30 = arith.constant 0 : index
    %c0_31 = arith.constant 0 : index
    %c0_32 = arith.constant 0 : index
    %c0_33 = arith.constant 0 : index
    %c0_34 = arith.constant 0 : index
    %23 = vector.load %arg3[%c0_30, %c0_31, %c0_32, %c0_33, %c0_34] : memref<1x1x10x8x16xf32, #tpu.memory_space<vmem>>, vector<1x1x8x8x16xf32>
    %24 = vector.shape_cast %23 : vector<1x1x8x8x16xf32> to vector<8x8x16xf32>
    %25 = vector.shape_cast %24 : vector<8x8x16xf32> to vector<64x16xf32>
    %c1_35 = arith.constant 1 : index
    %c0_36 = arith.constant 0 : index
    %c0_37 = arith.constant 0 : index
    %c0_38 = arith.constant 0 : index
    %26 = vector.load %arg6[%c1_35, %c0_36, %c0_37, %c0_38] : memref<3x3x16x16xf32, #tpu.memory_space<vmem>>, vector<1x1x16x16xf32>
    %27 = vector.shape_cast %26 : vector<1x1x16x16xf32> to vector<16x16xf32>
    %cst_39 = arith.constant dense<0.000000e+00> : vector<64x16xf32>
    %28 = tpu.matmul %25, %27, %cst_39 {dimension_numbers = #tpu.dot_dimension_numbers<[1], [0], [0], [1], [0, 0, 1, 1], [], []>} : vector<64x16xf32>, vector<16x16xf32>, vector<64x16xf32> -> vector<64x16xf32>
    %29 = arith.addf %22, %28 : vector<64x16xf32>
    %c0_40 = arith.constant 0 : index
    %c0_41 = arith.constant 0 : index
    %c1_42 = arith.constant 1 : index
    %c0_43 = arith.constant 0 : index
    %c0_44 = arith.constant 0 : index
    %30 = vector.load %arg3[%c0_40, %c0_41, %c1_42, %c0_43, %c0_44] : memref<1x1x10x8x16xf32, #tpu.memory_space<vmem>>, vector<1x1x8x8x16xf32>
    %31 = vector.shape_cast %30 : vector<1x1x8x8x16xf32> to vector<8x8x16xf32>
    %32 = vector.shape_cast %31 : vector<8x8x16xf32> to vector<64x16xf32>
    %c1_45 = arith.constant 1 : index
    %c1_46 = arith.constant 1 : index
    %c0_47 = arith.constant 0 : index
    %c0_48 = arith.constant 0 : index
    %33 = vector.load %arg6[%c1_45, %c1_46, %c0_47, %c0_48] : memref<3x3x16x16xf32, #tpu.memory_space<vmem>>, vector<1x1x16x16xf32>
    %34 = vector.shape_cast %33 : vector<1x1x16x16xf32> to vector<16x16xf32>
    %cst_49 = arith.constant dense<0.000000e+00> : vector<64x16xf32>
    %35 = tpu.matmul %32, %34, %cst_49 {dimension_numbers = #tpu.dot_dimension_numbers<[1], [0], [0], [1], [0, 0, 1, 1], [], []>} : vector<64x16xf32>, vector<16x16xf32>, vector<64x16xf32> -> vector<64x16xf32>
    %36 = arith.addf %29, %35 : vector<64x16xf32>
    %c0_50 = arith.constant 0 : index
    %c0_51 = arith.constant 0 : index
    %c2_52 = arith.constant 2 : index
    %c0_53 = arith.constant 0 : index
    %c0_54 = arith.constant 0 : index
    %37 = vector.load %arg3[%c0_50, %c0_51, %c2_52, %c0_53, %c0_54] : memref<1x1x10x8x16xf32, #tpu.memory_space<vmem>>, vector<1x1x8x8x16xf32>
    %38 = vector.shape_cast %37 : vector<1x1x8x8x16xf32> to vector<8x8x16xf32>
    %39 = vector.shape_cast %38 : vector<8x8x16xf32> to vector<64x16xf32>
    %c1_55 = arith.constant 1 : index
    %c2_56 = arith.constant 2 : index
    %c0_57 = arith.constant 0 : index
    %c0_58 = arith.constant 0 : index
    %40 = vector.load %arg6[%c1_55, %c2_56, %c0_57, %c0_58] : memref<3x3x16x16xf32, #tpu.memory_space<vmem>>, vector<1x1x16x16xf32>
    %41 = vector.shape_cast %40 : vector<1x1x16x16xf32> to vector<16x16xf32>
    %cst_59 = arith.constant dense<0.000000e+00> : vector<64x16xf32>
    %42 = tpu.matmul %39, %41, %cst_59 {dimension_numbers = #tpu.dot_dimension_numbers<[1], [0], [0], [1], [0, 0, 1, 1], [], []>} : vector<64x16xf32>, vector<16x16xf32>, vector<64x16xf32> -> vector<64x16xf32>
    %43 = arith.addf %36, %42 : vector<64x16xf32>
    %c0_60 = arith.constant 0 : index
    %c0_61 = arith.constant 0 : index
    %c0_62 = arith.constant 0 : index
    %c0_63 = arith.constant 0 : index
    %c0_64 = arith.constant 0 : index
    %44 = vector.load %arg4[%c0_60, %c0_61, %c0_62, %c0_63, %c0_64] : memref<1x1x10x8x16xf32, #tpu.memory_space<vmem>>, vector<1x1x8x8x16xf32>
    %45 = vector.shape_cast %44 : vector<1x1x8x8x16xf32> to vector<8x8x16xf32>
    %46 = vector.shape_cast %45 : vector<8x8x16xf32> to vector<64x16xf32>
    %c2_65 = arith.constant 2 : index
    %c0_66 = arith.constant 0 : index
    %c0_67 = arith.constant 0 : index
    %c0_68 = arith.constant 0 : index
    %47 = vector.load %arg6[%c2_65, %c0_66, %c0_67, %c0_68] : memref<3x3x16x16xf32, #tpu.memory_space<vmem>>, vector<1x1x16x16xf32>
    %48 = vector.shape_cast %47 : vector<1x1x16x16xf32> to vector<16x16xf32>
    %cst_69 = arith.constant dense<0.000000e+00> : vector<64x16xf32>
    %49 = tpu.matmul %46, %48, %cst_69 {dimension_numbers = #tpu.dot_dimension_numbers<[1], [0], [0], [1], [0, 0, 1, 1], [], []>} : vector<64x16xf32>, vector<16x16xf32>, vector<64x16xf32> -> vector<64x16xf32>
    %50 = arith.addf %43, %49 : vector<64x16xf32>
    %c0_70 = arith.constant 0 : index
    %c0_71 = arith.constant 0 : index
    %c1_72 = arith.constant 1 : index
    %c0_73 = arith.constant 0 : index
    %c0_74 = arith.constant 0 : index
    %51 = vector.load %arg4[%c0_70, %c0_71, %c1_72, %c0_73, %c0_74] : memref<1x1x10x8x16xf32, #tpu.memory_space<vmem>>, vector<1x1x8x8x16xf32>
    %52 = vector.shape_cast %51 : vector<1x1x8x8x16xf32> to vector<8x8x16xf32>
    %53 = vector.shape_cast %52 : vector<8x8x16xf32> to vector<64x16xf32>
    %c2_75 = arith.constant 2 : index
    %c1_76 = arith.constant 1 : index
    %c0_77 = arith.constant 0 : index
    %c0_78 = arith.constant 0 : index
    %54 = vector.load %arg6[%c2_75, %c1_76, %c0_77, %c0_78] : memref<3x3x16x16xf32, #tpu.memory_space<vmem>>, vector<1x1x16x16xf32>
    %55 = vector.shape_cast %54 : vector<1x1x16x16xf32> to vector<16x16xf32>
    %cst_79 = arith.constant dense<0.000000e+00> : vector<64x16xf32>
    %56 = tpu.matmul %53, %55, %cst_79 {dimension_numbers = #tpu.dot_dimension_numbers<[1], [0], [0], [1], [0, 0, 1, 1], [], []>} : vector<64x16xf32>, vector<16x16xf32>, vector<64x16xf32> -> vector<64x16xf32>
    %57 = arith.addf %50, %56 : vector<64x16xf32>
    %c0_80 = arith.constant 0 : index
    %c0_81 = arith.constant 0 : index
    %c2_82 = arith.constant 2 : index
    %c0_83 = arith.constant 0 : index
    %c0_84 = arith.constant 0 : index
    %58 = vector.load %arg4[%c0_80, %c0_81, %c2_82, %c0_83, %c0_84] : memref<1x1x10x8x16xf32, #tpu.memory_space<vmem>>, vector<1x1x8x8x16xf32>
    %59 = vector.shape_cast %58 : vector<1x1x8x8x16xf32> to vector<8x8x16xf32>
    %60 = vector.shape_cast %59 : vector<8x8x16xf32> to vector<64x16xf32>
    %c2_85 = arith.constant 2 : index
    %c2_86 = arith.constant 2 : index
    %c0_87 = arith.constant 0 : index
    %c0_88 = arith.constant 0 : index
    %61 = vector.load %arg6[%c2_85, %c2_86, %c0_87, %c0_88] : memref<3x3x16x16xf32, #tpu.memory_space<vmem>>, vector<1x1x16x16xf32>
    %62 = vector.shape_cast %61 : vector<1x1x16x16xf32> to vector<16x16xf32>
    %cst_89 = arith.constant dense<0.000000e+00> : vector<64x16xf32>
    %63 = tpu.matmul %60, %62, %cst_89 {dimension_numbers = #tpu.dot_dimension_numbers<[1], [0], [0], [1], [0, 0, 1, 1], [], []>} : vector<64x16xf32>, vector<16x16xf32>, vector<64x16xf32> -> vector<64x16xf32>
    %64 = arith.addf %57, %63 : vector<64x16xf32>
    %c0_90 = arith.constant 0 : index
    %c0_91 = arith.constant 0 : index
    %c0_92 = arith.constant 0 : index
    %c0_93 = arith.constant 0 : index
    %65 = vector.load %arg7[%c0_90, %c0_91, %c0_92, %c0_93] : memref<1x1x64x16xf32, #tpu.memory_space<vmem>>, vector<1x1x64x16xf32>
    %66 = vector.shape_cast %65 : vector<1x1x64x16xf32> to vector<64x16xf32>
    %67 = vector.shape_cast %64 : vector<64x16xf32> to vector<1x1x64x16xf32>
    tpu.vector_store %arg7[%c0_90, %c0_91, %c0_92, %c0_93], %67 {strides = array<i32>} : memref<1x1x64x16xf32, #tpu.memory_space<vmem>>, vector<1x1x64x16xf32>,
    return
  }
  func.func @transform_0(%arg0: i32, %arg1: i32) -> (i32, i32, i32, i32, i32) {
    %c0_i32 = arith.constant 0 : i32
    %0 = arith.addi %arg1, %c0_i32 : i32
    %c0_i32_0 = arith.constant 0 : i32
    %c0_i32_1 = arith.constant 0 : i32
    %c0_i32_2 = arith.constant 0 : i32
    %c0_i32_3 = arith.constant 0 : i32
    return %arg0, %0, %c0_i32_0, %c0_i32_1, %c0_i32_2 : i32, i32, i32, i32, i32
  }
  func.func @transform_1(%arg0: i32, %arg1: i32) -> (i32, i32, i32, i32, i32) {
    %c1_i32 = arith.constant 1 : i32
    %0 = arith.addi %arg1, %c1_i32 : i32
    %c0_i32 = arith.constant 0 : i32
    %c0_i32_0 = arith.constant 0 : i32
    %c0_i32_1 = arith.constant 0 : i32
    %c0_i32_2 = arith.constant 0 : i32
    return %arg0, %0, %c0_i32, %c0_i32_0, %c0_i32_1 : i32, i32, i32, i32, i32
  }
  func.func @transform_2(%arg0: i32, %arg1: i32) -> (i32, i32, i32, i32, i32) {
    %c2_i32 = arith.constant 2 : i32
    %0 = arith.addi %arg1, %c2_i32 : i32
    %c0_i32 = arith.constant 0 : i32
    %c0_i32_0 = arith.constant 0 : i32
    %c0_i32_1 = arith.constant 0 : i32
    %c0_i32_2 = arith.constant 0 : i32
    return %arg0, %0, %c0_i32, %c0_i32_0, %c0_i32_1 : i32, i32, i32, i32, i32
  }
  func.func @transform_3(%arg0: i32, %arg1: i32) -> (i32, i32, i32, i32) {
    %c0_i32 = arith.constant 0 : i32
    %c0_i32_0 = arith.constant 0 : i32
    %c0_i32_1 = arith.constant 0 : i32
    return %arg0, %arg1, %c0_i32, %c0_i32_0 : i32, i32, i32, i32
  }
  func.func @transform_4(%arg0: i32, %arg1: i32) -> (i32, i32, i32, i32) {
    %c0_i32 = arith.constant 0 : i32
    %c0_i32_0 = arith.constant 0 : i32
    %c0_i32_1 = arith.constant 0 : i32
    %c0_i32_2 = arith.constant 0 : i32
    %c0_i32_3 = arith.constant 0 : i32
    return %c0_i32, %c0_i32_0, %c0_i32_1, %c0_i32_2 : i32, i32, i32, i32
  }
  func.func @transform_5(%arg0: i32, %arg1: i32) -> (i32, i32, i32, i32) {
    %c0_i32 = arith.constant 0 : i32
    %c0_i32_0 = arith.constant 0 : i32
    %c0_i32_1 = arith.constant 0 : i32
    return %arg0, %arg1, %c0_i32, %c0_i32_0 : i32, i32, i32, i32
  }
}

</mosaic_0001>

<llo_original>
// kernel: mfunit_forward.3
$region0: #{mfunit_forward.3}
  #allocation0 [shape = 'u32[]', space=smem, size = 0x4, offset = 0x4, fixed_abs, tag = 'smem constant byte address 0x4 - core index']
  #allocation1 [shape = 'u32[144,128]{1,0:T(1,128)}', space=vmem, size = 0x12000, scoped, tag = 'internal scratch']
  %s0 = inlined_call_operand.hbm [shape: f32[4], index: 0, kind: input, shape index: {}]
  %s1 = inlined_call_operand.vmem [shape: f32[1024,8], index: 1, kind: input, shape index: {}]
  %s2 = inlined_call_operand.hbm [shape: f32[1,8], index: 2, kind: input, shape index: {}]
  %s3 = inlined_call_operand.hbm [shape: f32[1,8], index: 3, kind: input, shape index: {}]
  %s4 = inlined_call_operand.hbm [shape: f32[8,2], index: 4, kind: input, shape index: {}]
  %s5 = inlined_call_operand.hbm [shape: f32[1,2], index: 5, kind: input, shape index: {}]
  %s6 = inlined_call_operand.hbm [shape: f32[1,2], index: 6, kind: input, shape index: {}]
  %s7 = inlined_call_operand.hbm [shape: f32[2,8], index: 7, kind: input, shape index: {}]
  %s8 = inlined_call_operand.hbm [shape: f32[1,8], index: 8, kind: input, shape index: {}]
  %s9 = inlined_call_operand.hbm [shape: f32[1,8], index: 9, kind: input, shape index: {}]
  %s10 = inlined_call_operand.hbm [shape: f32[1,8], index: 10, kind: input, shape index: {}]
  %s11 = inlined_call_operand.hbm [shape: f32[1,8], index: 11, kind: input, shape index: {}]
  %s12 = inlined_call_operand.hbm [shape: f32[8,16], index: 12, kind: input, shape index: {}]
  %s13 = inlined_call_operand.vmem [shape: f32[1024,8], index: 13, kind: output, shape index: {0}]
  %s14 = inlined_call_operand.vmem [shape: f32[1024,16], index: 14, kind: output, shape index: {1}]
  %15 = xla_tuple %s13, %s14
  %s16 = sld [smem:[#allocation0]]
  $region141: #{mfunit_forward.3} parent=0
    _
  %s18 = ssub.s32 1, %s16
  %s19 = scalar_select 0, %s18, %s16
  $region1: #{mfunit_forward.3} parent=0
    #allocation2 [shape = 'u8[512]{0}', space=smem, size = 0x200, scoped, tag = 'input window, operand 0, single buffered']
    #allocation3 [shape = 's32[2]{0}', space=sflag, size = 0x8, scoped, tag = 'scoped memory for mfunit_forward.3']
    #allocation4 [shape = 's32[2]{0}', space=sflag, size = 0x8, scoped, tag = 'scoped memory for mfunit_forward.3']
    #allocation5 [shape = 'u8[512]{0}', space=vmem, size = 0x400, scoped, tag = 'input window, operand 2, single buffered']
    #allocation6 [shape = 'u8[512]{0}', space=vmem, size = 0x400, scoped, tag = 'input window, operand 3, single buffered']
    #allocation7 [shape = 's32[1]{0}', space=sflag, size = 0x4, scoped, tag = 'scoped memory for mfunit_forward.3']
    #allocation8 [shape = 'u8[4096]{0}', space=vmem, size = 0x1000, scoped, tag = 'input window, operand 4, single buffered']
    #allocation9 [shape = 'u8[512]{0}', space=vmem, size = 0x400, scoped, tag = 'input window, operand 5, single buffered']
    #allocation10 [shape = 's32[1]{0}', space=sflag, size = 0x4, scoped, tag = 'scoped memory for mfunit_forward.3']
    #allocation11 [shape = 'u8[512]{0}', space=vmem, size = 0x400, scoped, tag = 'input window, operand 6, single buffered']
    #allocation12 [shape = 'u8[1024]{0}', space=vmem, size = 0x400, scoped, tag = 'input window, operand 7, single buffered']
    #allocation13 [shape = 's32[1]{0}', space=sflag, size = 0x4, scoped, tag = 'scoped memory for mfunit_forward.3']
    #allocation14 [shape = 'u8[512]{0}', space=vmem, size = 0x400, scoped, tag = 'input window, operand 8, single buffered']
    #allocation15 [shape = 'u8[512]{0}', space=vmem, size = 0x400, scoped, tag = 'input window, operand 9, single buffered']
    #allocation16 [shape = 's32[1]{0}', space=sflag, size = 0x4, scoped, tag = 'scoped memory for mfunit_forward.3']
    #allocation17 [shape = 'u8[512]{0}', space=vmem, size = 0x400, scoped, tag = 'input window, operand 10, single buffered']
    #allocation18 [shape = 'u8[512]{0}', space=vmem, size = 0x400, scoped, tag = 'input window, operand 11, single buffered']
    #allocation19 [shape = 's32[1]{0}', space=sflag, size = 0x4, scoped, tag = 'scoped memory for mfunit_forward.3']
    #allocation20 [shape = 'u8[4096]{0}', space=vmem, size = 0x1000, scoped, tag = 'input window, operand 12, single buffered']
    %20 = vsyncpa [#allocation4], 0
    %21 = vsyncpa [#allocation3], 0
    %22 = vsyncpa [#allocation7], 0
    %23 = vsyncpa [#allocation10], 0
    %24 = vsyncpa [#allocation13], 0
    %25 = vsyncpa [#allocation16], 0
    %26 = vsyncpa [#allocation19], 0
    loop: start=0, step=1, limit=4
    $region2: #{mfunit_forward.3} parent=1 // loop_pre_header
      _
    $region3: #{mfunit_forward.3} parent=1 // loop_header
      %s28 = sphi 0, %s32
      %p29 = scmp.ge.s32.totalorder %s28, 4
      %s36 = sphi 0, %s36
      %s38 = sphi 0, %s36
      %s39 = sphi 0, %s38
      %s53 = sphi 0, %s39
      %s59 = sphi 0, %s61
      %s62 = sphi 0, %s59
      %s63 = sphi 0, %s62
      %s79 = sphi 0, %s63
      %s83 = sphi 0, %s83
      %s85 = sphi 0, %s83
      %s86 = sphi 0, %s85
      %s100 = sphi 0, %s86
      %s104 = sphi 0, %s104
      %s106 = sphi 0, %s104
      %s107 = sphi 0, %s106
      %s121 = sphi 0, %s107
      %s125 = sphi 0, %s125
      %s127 = sphi 0, %s125
      %s128 = sphi 0, %s127
      %s142 = sphi 0, %s128
      %s146 = sphi 0, %s146
      %s148 = sphi 0, %s146
      %s149 = sphi 0, %s148
      %s163 = sphi 0, %s149
      %s167 = sphi 0, %s167
      %s169 = sphi 0, %s167
      %s170 = sphi 0, %s169
      %s184 = sphi 0, %s170
      %s188 = sphi 0, %s188
      %s190 = sphi 0, %s188
      %s191 = sphi 0, %s190
      %s205 = sphi 0, %s191
      %s209 = sphi 0, %s209
      %s211 = sphi 0, %s209
      %s212 = sphi 0, %s211
      %s226 = sphi 0, %s212
      %s230 = sphi 0, %s230
      %s232 = sphi 0, %s230
      %s233 = sphi 0, %s232
      %s247 = sphi 0, %s233
      %s251 = sphi 0, %s251
      %s253 = sphi 0, %s251
      %s254 = sphi 0, %s253
      %s268 = sphi 0, %s254
      %s272 = sphi 0, %s272
      %s274 = sphi 0, %s272
      %s275 = sphi 0, %s274
      %s289 = sphi 0, %s275
      %s293 = sphi 0, %s293
      %s295 = sphi 0, %s293
      %s296 = sphi 0, %s295
      %s310 = sphi 0, %s296
      %s316 = sphi 0, %s318
      %s319 = sphi 0, %s316
      %s320 = sphi 0, %s319
      %s336 = sphi 0, %s320
      %s342 = sphi 0, %s344
      %s345 = sphi 0, %s342
      %s346 = sphi 0, %s345
      %s362 = sphi 0, %s346
    $region4: #{mfunit_forward.3} parent=1 // loop_header_branch
      %31 = sbr.rel (%p29) target = $region8
    $region5: #{mfunit_forward.3} parent=1 // loop_body
      %s33 = ssub.s32 %s28, 1
      %s34 = ssub.s32 %s28, 2
      %s35 = sadd.s32 %s28, 1
      %s37 = sadd.s32 %s36, 1
      %p40 = scmp.eq.s32.totalorder %s28, 1
      %p41 = scmp.ne.s32.totalorder %s36, %s38
      %p42 = scmp.eq.s32.totalorder %s28, 0
      %p43 = por %p41, %p42
      %p44 = scmp.ne.s32.totalorder %s36, %s38
      %p45 = scmp.eq.s32.totalorder %s33, 1
      %p46 = por %p44, %p45
      %p47 = scmp.ne.s32.totalorder %s38, %s39
      %p48 = scmp.eq.s32.totalorder %s33, 0
      %p49 = por %p47, %p48
      %p50 = scmp.ne.s32.totalorder %s38, %s39
      %p51 = scmp.eq.s32.totalorder %s34, 1
      %p52 = por %p50, %p51
      %p54 = scmp.ne.s32.totalorder %s39, %s53
      %p55 = scmp.eq.s32.totalorder %s34, 0
      %p56 = por %p54, %p55
      %s57 = ssub.s32 %s28, %s35
      %p58 = scmp.eq.s32.totalorder %s57, 0
      %s60 = sadd.s32 %s59, 1
      %s61 = scalar_select %p58, %s59, %s60
      %p64 = pneg %p58
      %p65 = scmp.eq.s32.totalorder %s28, 1
      %p66 = por %p64, %p65
      %p67 = scmp.ne.s32.totalorder %s59, %s62
      %p68 = scmp.eq.s32.totalorder %s28, 0
      %p69 = por %p67, %p68
      %p70 = scmp.ne.s32.totalorder %s59, %s62
      %p71 = scmp.eq.s32.totalorder %s33, 1
      %p72 = por %p70, %p71
      %p73 = scmp.ne.s32.totalorder %s62, %s63
      %p74 = scmp.eq.s32.totalorder %s33, 0
      %p75 = por %p73, %p74
      %p76 = scmp.ne.s32.totalorder %s62, %s63
      %p77 = scmp.eq.s32.totalorder %s34, 1
      %p78 = por %p76, %p77
      %p80 = scmp.ne.s32.totalorder %s63, %s79
      %p81 = scmp.eq.s32.totalorder %s34, 0
      %p82 = por %p80, %p81
      %s84 = sadd.s32 %s83, 1
      %p87 = scmp.eq.s32.totalorder %s28, 1
      %p88 = scmp.ne.s32.totalorder %s83, %s85
      %p89 = scmp.eq.s32.totalorder %s28, 0
      %p90 = por %p88, %p89
      %p91 = scmp.ne.s32.totalorder %s83, %s85
      %p92 = scmp.eq.s32.totalorder %s33, 1
      %p93 = por %p91, %p92
      %p94 = scmp.ne.s32.totalorder %s85, %s86
      %p95 = scmp.eq.s32.totalorder %s33, 0
      %p96 = por %p94, %p95
      %p97 = scmp.ne.s32.totalorder %s85, %s86
      %p98 = scmp.eq.s32.totalorder %s34, 1
      %p99 = por %p97, %p98
      %p101 = scmp.ne.s32.totalorder %s86, %s100
      %p102 = scmp.eq.s32.totalorder %s34, 0
      %p103 = por %p101, %p102
      %s105 = sadd.s32 %s104, 1
      %p108 = scmp.eq.s32.totalorder %s28, 1
      %p109 = scmp.ne.s32.totalorder %s104, %s106
      %p110 = scmp.eq.s32.totalorder %s28, 0
      %p111 = por %p109, %p110
      %p112 = scmp.ne.s32.totalorder %s104, %s106
      %p113 = scmp.eq.s32.totalorder %s33, 1
      %p114 = por %p112, %p113
      %p115 = scmp.ne.s32.totalorder %s106, %s107
      %p116 = scmp.eq.s32.totalorder %s33, 0
      %p117 = por %p115, %p116
      %p118 = scmp.ne.s32.totalorder %s106, %s107
      %p119 = scmp.eq.s32.totalorder %s34, 1
      %p120 = por %p118, %p119
      %p122 = scmp.ne.s32.totalorder %s107, %s121
      %p123 = scmp.eq.s32.totalorder %s34, 0
      %p124 = por %p122, %p123
      %s126 = sadd.s32 %s125, 1
      %p129 = scmp.eq.s32.totalorder %s28, 1
      %p130 = scmp.ne.s32.totalorder %s125, %s127
      %p131 = scmp.eq.s32.totalorder %s28, 0
      %p132 = por %p130, %p131
      %p133 = scmp.ne.s32.totalorder %s125, %s127
      %p134 = scmp.eq.s32.totalorder %s33, 1
      %p135 = por %p133, %p134
      %p136 = scmp.ne.s32.totalorder %s127, %s128
      %p137 = scmp.eq.s32.totalorder %s33, 0
      %p138 = por %p136, %p137
      %p139 = scmp.ne.s32.totalorder %s127, %s128
      %p140 = scmp.eq.s32.totalorder %s34, 1
      %p141 = por %p139, %p140
      %p143 = scmp.ne.s32.totalorder %s128, %s142
      %p144 = scmp.eq.s32.totalorder %s34, 0
      %p145 = por %p143, %p144
      %s147 = sadd.s32 %s146, 1
      %p150 = scmp.eq.s32.totalorder %s28, 1
      %p151 = scmp.ne.s32.totalorder %s146, %s148
      %p152 = scmp.eq.s32.totalorder %s28, 0
      %p153 = por %p151, %p152
      %p154 = scmp.ne.s32.totalorder %s146, %s148
      %p155 = scmp.eq.s32.totalorder %s33, 1
      %p156 = por %p154, %p155
      %p157 = scmp.ne.s32.totalorder %s148, %s149
      %p158 = scmp.eq.s32.totalorder %s33, 0
      %p159 = por %p157, %p158
      %p160 = scmp.ne.s32.totalorder %s148, %s149
      %p161 = scmp.eq.s32.totalorder %s34, 1
      %p162 = por %p160, %p161
      %p164 = scmp.ne.s32.totalorder %s149, %s163
      %p165 = scmp.eq.s32.totalorder %s34, 0
      %p166 = por %p164, %p165
      %s168 = sadd.s32 %s167, 1
      %p171 = scmp.eq.s32.totalorder %s28, 1
      %p172 = scmp.ne.s32.totalorder %s167, %s169
      %p173 = scmp.eq.s32.totalorder %s28, 0
      %p174 = por %p172, %p173
      %p175 = scmp.ne.s32.totalorder %s167, %s169
      %p176 = scmp.eq.s32.totalorder %s33, 1
      %p177 = por %p175, %p176
      %p178 = scmp.ne.s32.totalorder %s169, %s170
      %p179 = scmp.eq.s32.totalorder %s33, 0
      %p180 = por %p178, %p179
      %p181 = scmp.ne.s32.totalorder %s169, %s170
      %p182 = scmp.eq.s32.totalorder %s34, 1
      %p183 = por %p181, %p182
      %p185 = scmp.ne.s32.totalorder %s170, %s184
      %p186 = scmp.eq.s32.totalorder %s34, 0
      %p187 = por %p185, %p186
      %s189 = sadd.s32 %s188, 1
      %p192 = scmp.eq.s32.totalorder %s28, 1
      %p193 = scmp.ne.s32.totalorder %s188, %s190
      %p194 = scmp.eq.s32.totalorder %s28, 0
      %p195 = por %p193, %p194
      %p196 = scmp.ne.s32.totalorder %s188, %s190
      %p197 = scmp.eq.s32.totalorder %s33, 1
      %p198 = por %p196, %p197
      %p199 = scmp.ne.s32.totalorder %s190, %s191
      %p200 = scmp.eq.s32.totalorder %s33, 0
      %p201 = por %p199, %p200
      %p202 = scmp.ne.s32.totalorder %s190, %s191
      %p203 = scmp.eq.s32.totalorder %s34, 1
      %p204 = por %p202, %p203
      %p206 = scmp.ne.s32.totalorder %s191, %s205
      %p207 = scmp.eq.s32.totalorder %s34, 0
      %p208 = por %p206, %p207
      %s210 = sadd.s32 %s209, 1
      %p213 = scmp.eq.s32.totalorder %s28, 1
      %p214 = scmp.ne.s32.totalorder %s209, %s211
      %p215 = scmp.eq.s32.totalorder %s28, 0
      %p216 = por %p214, %p215
      %p217 = scmp.ne.s32.totalorder %s209, %s211
      %p218 = scmp.eq.s32.totalorder %s33, 1
      %p219 = por %p217, %p218
      %p220 = scmp.ne.s32.totalorder %s211, %s212
      %p221 = scmp.eq.s32.totalorder %s33, 0
      %p222 = por %p220, %p221
      %p223 = scmp.ne.s32.totalorder %s211, %s212
      %p224 = scmp.eq.s32.totalorder %s34, 1
      %p225 = por %p223, %p224
      %p227 = scmp.ne.s32.totalorder %s212, %s226
      %p228 = scmp.eq.s32.totalorder %s34, 0
      %p229 = por %p227, %p228
      %s231 = sadd.s32 %s230, 1
      %p234 = scmp.eq.s32.totalorder %s28, 1
      %p235 = scmp.ne.s32.totalorder %s230, %s232
      %p236 = scmp.eq.s32.totalorder %s28, 0
      %p237 = por %p235, %p236
      %p238 = scmp.ne.s32.totalorder %s230, %s232
      %p239 = scmp.eq.s32.totalorder %s33, 1
      %p240 = por %p238, %p239
      %p241 = scmp.ne.s32.totalorder %s232, %s233
      %p242 = scmp.eq.s32.totalorder %s33, 0
      %p243 = por %p241, %p242
      %p244 = scmp.ne.s32.totalorder %s232, %s233
      %p245 = scmp.eq.s32.totalorder %s34, 1
      %p246 = por %p244, %p245
      %p248 = scmp.ne.s32.totalorder %s233, %s247
      %p249 = scmp.eq.s32.totalorder %s34, 0
      %p250 = por %p248, %p249
      %s252 = sadd.s32 %s251, 1
      %p255 = scmp.eq.s32.totalorder %s28, 1
      %p256 = scmp.ne.s32.totalorder %s251, %s253
      %p257 = scmp.eq.s32.totalorder %s28, 0
      %p258 = por %p256, %p257
      %p259 = scmp.ne.s32.totalorder %s251, %s253
      %p260 = scmp.eq.s32.totalorder %s33, 1
      %p261 = por %p259, %p260
      %p262 = scmp.ne.s32.totalorder %s253, %s254
      %p263 = scmp.eq.s32.totalorder %s33, 0
      %p264 = por %p262, %p263
      %p265 = scmp.ne.s32.totalorder %s253, %s254
      %p266 = scmp.eq.s32.totalorder %s34, 1
      %p267 = por %p265, %p266
      %p269 = scmp.ne.s32.totalorder %s254, %s268
      %p270 = scmp.eq.s32.totalorder %s34, 0
      %p271 = por %p269, %p270
      %s273 = sadd.s32 %s272, 1
      %p276 = scmp.eq.s32.totalorder %s28, 1
      %p277 = scmp.ne.s32.totalorder %s272, %s274
      %p278 = scmp.eq.s32.totalorder %s28, 0
      %p279 = por %p277, %p278
      %p280 = scmp.ne.s32.totalorder %s272, %s274
      %p281 = scmp.eq.s32.totalorder %s33, 1
      %p282 = por %p280, %p281
      %p283 = scmp.ne.s32.totalorder %s274, %s275
      %p284 = scmp.eq.s32.totalorder %s33, 0
      %p285 = por %p283, %p284
      %p286 = scmp.ne.s32.totalorder %s274, %s275
      %p287 = scmp.eq.s32.totalorder %s34, 1
      %p288 = por %p286, %p287
      %p290 = scmp.ne.s32.totalorder %s275, %s289
      %p291 = scmp.eq.s32.totalorder %s34, 0
      %p292 = por %p290, %p291
      %s294 = sadd.s32 %s293, 1
      %p297 = scmp.eq.s32.totalorder %s28, 1
      %p298 = scmp.ne.s32.totalorder %s293, %s295
      %p299 = scmp.eq.s32.totalorder %s28, 0
      %p300 = por %p298, %p299
      %p301 = scmp.ne.s32.totalorder %s293, %s295
      %p302 = scmp.eq.s32.totalorder %s33, 1
      %p303 = por %p301, %p302
      %p304 = scmp.ne.s32.totalorder %s295, %s296
      %p305 = scmp.eq.s32.totalorder %s33, 0
      %p306 = por %p304, %p305
      %p307 = scmp.ne.s32.totalorder %s295, %s296
      %p308 = scmp.eq.s32.totalorder %s34, 1
      %p309 = por %p307, %p308
      %p311 = scmp.ne.s32.totalorder %s296, %s310
      %p312 = scmp.eq.s32.totalorder %s34, 0
      %p313 = por %p311, %p312
      %s314 = ssub.s32 %s28, %s35
      %p315 = scmp.eq.s32.totalorder %s314, 0
      %s317 = sadd.s32 %s316, 1
      %s318 = scalar_select %p315, %s316, %s317
      %p321 = pneg %p315
      %p322 = scmp.eq.s32.totalorder %s28, 1
      %p323 = por %p321, %p322
      %p324 = scmp.ne.s32.totalorder %s316, %s319
      %p325 = scmp.eq.s32.totalorder %s28, 0
      %p326 = por %p324, %p325
      %p327 = scmp.ne.s32.totalorder %s316, %s319
      %p328 = scmp.eq.s32.totalorder %s33, 1
      %p329 = por %p327, %p328
      %p330 = scmp.ne.s32.totalorder %s319, %s320
      %p331 = scmp.eq.s32.totalorder %s33, 0
      %p332 = por %p330, %p331
      %p333 = scmp.ne.s32.totalorder %s319, %s320
      %p334 = scmp.eq.s32.totalorder %s34, 1
      %p335 = por %p333, %p334
      %p337 = scmp.ne.s32.totalorder %s320, %s336
      %p338 = scmp.eq.s32.totalorder %s34, 0
      %p339 = por %p337, %p338
      %s340 = ssub.s32 %s28, %s35
      %p341 = scmp.eq.s32.totalorder %s340, 0
      %s343 = sadd.s32 %s342, 1
      %s344 = scalar_select %p341, %s342, %s343
      %p347 = pneg %p341
      %p348 = scmp.eq.s32.totalorder %s28, 1
      %p349 = por %p347, %p348
      %p350 = scmp.ne.s32.totalorder %s342, %s345
      %p351 = scmp.eq.s32.totalorder %s28, 0
      %p352 = por %p350, %p351
      %p353 = scmp.ne.s32.totalorder %s342, %s345
      %p354 = scmp.eq.s32.totalorder %s33, 1
      %p355 = por %p353, %p354
      %p356 = scmp.ne.s32.totalorder %s345, %s346
      %p357 = scmp.eq.s32.totalorder %s33, 0
      %p358 = por %p356, %p357
      %p359 = scmp.ne.s32.totalorder %s345, %s346
      %p360 = scmp.eq.s32.totalorder %s34, 1
      %p361 = por %p359, %p360
      %p363 = scmp.ne.s32.totalorder %s346, %s362
      %p364 = scmp.eq.s32.totalorder %s34, 0
      %p365 = por %p363, %p364
      %p366 = scmp.le.s32.totalorder 1, %s28
      %p367 = scmp.lt.s32.totalorder %s28, 3
      %p368 = pnand %p366, %p367
      %p369 = pneg %p368
      // Predicated region
      $region9: #{mfunit_forward.3} parent=5 // pred_check
        _
      $region10: #{mfunit_forward.3} parent=5 // pred_check_branch
        %371 = sbr.rel (%p368) target = $region12
      $region11: #{mfunit_forward.3} parent=5 // pred_region
        %s372 = ssub.s32 %s28, 1
        // Predicated region
        $region13: #{mfunit_forward.3} parent=11 // pred_check
          %p373 = pneg %p49
        $region14: #{mfunit_forward.3} parent=11 // pred_check_branch
          %375 = sbr.rel (%p373) target = $region16
        $region15: #{mfunit_forward.3} parent=11 // pred_region
          %s377 = ssub.s32 16, 16
          %378 = vsyncadd [#allocation4], %s377
          %381 = dma.hbm_to_smem %s0, 16, [#allocation2], [#allocation4]
        $region16: #{mfunit_forward.3} parent=11 // pred_fallthru
          _
        // Predicated region
        $region17: #{mfunit_forward.3} parent=11 // pred_check
          %p382 = pneg %p96
        $region18: #{mfunit_forward.3} parent=11 // pred_check_branch
          %384 = sbr.rel (%p382) target = $region20
        $region19: #{mfunit_forward.3} parent=11 // pred_region
          %s386 = ssub.s32 16, 16
          %387 = vsyncadd [#allocation3], %s386
          %s389 = sshll.u32 [#allocation5], 4
          %s390 = int_to_ptr.vmem [resolvable:$true] %s389
          %392 = dma.hbm_to_vmem [thread:$0]  %s2, 16, %s390, [#allocation3]
        $region20: #{mfunit_forward.3} parent=11 // pred_fallthru
          _
        // Predicated region
        $region21: #{mfunit_forward.3} parent=11 // pred_check
          %p393 = pneg %p117
        $region22: #{mfunit_forward.3} parent=11 // pred_check_branch
          %395 = sbr.rel (%p393) target = $region24
        $region23: #{mfunit_forward.3} parent=11 // pred_region
          %s397 = ssub.s32 16, 16
          %398 = vsyncadd [#allocation7], %s397
          %s400 = sshll.u32 [#allocation6], 4
          %s401 = int_to_ptr.vmem [resolvable:$true] %s400
          %403 = dma.hbm_to_vmem [thread:$0]  %s3, 16, %s401, [#allocation7]
        $region24: #{mfunit_forward.3} parent=11 // pred_fallthru
          _
        // Predicated region
        $region25: #{mfunit_forward.3} parent=11 // pred_check
          %p404 = pneg %p138
        $region26: #{mfunit_forward.3} parent=11 // pred_check_branch
          %406 = sbr.rel (%p404) target = $region28
        $region27: #{mfunit_forward.3} parent=11 // pred_region
          %s408 = ssub.s32 128, 128
          %409 = vsyncadd [#allocation7], %s408
          %s411 = sshll.u32 [#allocation8], 4
          %s412 = int_to_ptr.vmem [resolvable:$true] %s411
          %414 = dma.hbm_to_vmem [thread:$0]  %s4, 128, %s412, [#allocation7]
        $region28: #{mfunit_forward.3} parent=11 // pred_fallthru
          _
        // Predicated region
        $region29: #{mfunit_forward.3} parent=11 // pred_check
          %p415 = pneg %p159
        $region30: #{mfunit_forward.3} parent=11 // pred_check_branch
          %417 = sbr.rel (%p415) target = $region32
        $region31: #{mfunit_forward.3} parent=11 // pred_region
          %s419 = ssub.s32 16, 16
          %420 = vsyncadd [#allocation10], %s419
          %s422 = sshll.u32 [#allocation9], 4
          %s423 = int_to_ptr.vmem [resolvable:$true] %s422
          %425 = dma.hbm_to_vmem [thread:$0]  %s5, 16, %s423, [#allocation10]
        $region32: #{mfunit_forward.3} parent=11 // pred_fallthru
          _
        // Predicated region
        $region33: #{mfunit_forward.3} parent=11 // pred_check
          %p426 = pneg %p180
        $region34: #{mfunit_forward.3} parent=11 // pred_check_branch
          %428 = sbr.rel (%p426) target = $region36
        $region35: #{mfunit_forward.3} parent=11 // pred_region
          %s430 = ssub.s32 16, 16
          %431 = vsyncadd [#allocation10], %s430
          %s433 = sshll.u32 [#allocation11], 4
          %s434 = int_to_ptr.vmem [resolvable:$true] %s433
          %436 = dma.hbm_to_vmem [thread:$0]  %s6, 16, %s434, [#allocation10]
        $region36: #{mfunit_forward.3} parent=11 // pred_fallthru
          _
        // Predicated region
        $region37: #{mfunit_forward.3} parent=11 // pred_check
          %p437 = pneg %p201
        $region38: #{mfunit_forward.3} parent=11 // pred_check_branch
          %439 = sbr.rel (%p437) target = $region40
        $region39: #{mfunit_forward.3} parent=11 // pred_region
          %s441 = ssub.s32 32, 32
          %442 = vsyncadd [#allocation13], %s441
          %s444 = sshll.u32 [#allocation12], 4
          %s445 = int_to_ptr.vmem [resolvable:$true] %s444
          %447 = dma.hbm_to_vmem [thread:$0]  %s7, 32, %s445, [#allocation13]
        $region40: #{mfunit_forward.3} parent=11 // pred_fallthru
          _
        // Predicated region
        $region41: #{mfunit_forward.3} parent=11 // pred_check
          %p448 = pneg %p222
        $region42: #{mfunit_forward.3} parent=11 // pred_check_branch
          %450 = sbr.rel (%p448) target = $region44
        $region43: #{mfunit_forward.3} parent=11 // pred_region
          %s452 = ssub.s32 16, 16
          %453 = vsyncadd [#allocation13], %s452
          %s455 = sshll.u32 [#allocation14], 4
          %s456 = int_to_ptr.vmem [resolvable:$true] %s455
          %458 = dma.hbm_to_vmem [thread:$0]  %s8, 16, %s456, [#allocation13]
        $region44: #{mfunit_forward.3} parent=11 // pred_fallthru
          _
        // Predicated region
        $region45: #{mfunit_forward.3} parent=11 // pred_check
          %p459 = pneg %p243
        $region46: #{mfunit_forward.3} parent=11 // pred_check_branch
          %461 = sbr.rel (%p459) target = $region48
        $region47: #{mfunit_forward.3} parent=11 // pred_region
          %s463 = ssub.s32 16, 16
          %464 = vsyncadd [#allocation16], %s463
          %s466 = sshll.u32 [#allocation15], 4
          %s467 = int_to_ptr.vmem [resolvable:$true] %s466
          %469 = dma.hbm_to_vmem [thread:$0]  %s9, 16, %s467, [#allocation16]
        $region48: #{mfunit_forward.3} parent=11 // pred_fallthru
          _
        // Predicated region
        $region49: #{mfunit_forward.3} parent=11 // pred_check
          %p470 = pneg %p264
        $region50: #{mfunit_forward.3} parent=11 // pred_check_branch
          %472 = sbr.rel (%p470) target = $region52
        $region51: #{mfunit_forward.3} parent=11 // pred_region
          %s474 = ssub.s32 16, 16
          %475 = vsyncadd [#allocation16], %s474
          %s477 = sshll.u32 [#allocation17], 4
          %s478 = int_to_ptr.vmem [resolvable:$true] %s477
          %480 = dma.hbm_to_vmem [thread:$0]  %s10, 16, %s478, [#allocation16]
        $region52: #{mfunit_forward.3} parent=11 // pred_fallthru
          _
        // Predicated region
        $region53: #{mfunit_forward.3} parent=11 // pred_check
          %p481 = pneg %p285
        $region54: #{mfunit_forward.3} parent=11 // pred_check_branch
          %483 = sbr.rel (%p481) target = $region56
        $region55: #{mfunit_forward.3} parent=11 // pred_region
          %s485 = ssub.s32 16, 16
          %486 = vsyncadd [#allocation19], %s485
          %s488 = sshll.u32 [#allocation18], 4
          %s489 = int_to_ptr.vmem [resolvable:$true] %s488
          %491 = dma.hbm_to_vmem [thread:$0]  %s11, 16, %s489, [#allocation19]
        $region56: #{mfunit_forward.3} parent=11 // pred_fallthru
          _
        // Predicated region
        $region57: #{mfunit_forward.3} parent=11 // pred_check
          %p492 = pneg %p306
        $region58: #{mfunit_forward.3} parent=11 // pred_check_branch
          %494 = sbr.rel (%p492) target = $region60
        $region59: #{mfunit_forward.3} parent=11 // pred_region
          %s496 = ssub.s32 128, 128
          %497 = vsyncadd [#allocation19], %s496
          %s499 = sshll.u32 [#allocation20], 4
          %s500 = int_to_ptr.vmem [resolvable:$true] %s499
          %502 = dma.hbm_to_vmem [thread:$0]  %s12, 128, %s500, [#allocation19]
        $region60: #{mfunit_forward.3} parent=11 // pred_fallthru
          _
      $region12: #{mfunit_forward.3} parent=5 // pred_fallthru
        _
      %p503 = scmp.lt.s32.totalorder %s28, 2
      // Predicated region
      $region61: #{mfunit_forward.3} parent=5 // pred_check
        %p504 = pneg %p503
      $region62: #{mfunit_forward.3} parent=5 // pred_check_branch
        %506 = sbr.rel (%p504) target = $region64
      $region63: #{mfunit_forward.3} parent=5 // pred_region
        // Predicated region
        $region65: #{mfunit_forward.3} parent=63 // pred_check
          %p507 = pneg %p69
        $region66: #{mfunit_forward.3} parent=63 // pred_check_branch
          %509 = sbr.rel (%p507) target = $region68
        $region67: #{mfunit_forward.3} parent=63 // pred_region
          %s510 = smul.u32 64, %s28
          %p511 = scmp.lt.s32.totalorder %s510, 127
          %s512 = scalar_select %p511, %s510, 127
          %s513 = smul.addr %s512, 8
          %s514 = scalar_lea.vmem %s1, %s513
          %s515 = smul.u32 64, %s28
        $region68: #{mfunit_forward.3} parent=63 // pred_fallthru
          _
      $region64: #{mfunit_forward.3} parent=5 // pred_fallthru
        _
      %p516 = scmp.le.s32.totalorder 1, %s28
      %p517 = scmp.lt.s32.totalorder %s28, 3
      %p518 = pnand %p516, %p517
      %p519 = pneg %p518
      // Predicated region
      $region69: #{mfunit_forward.3} parent=5 // pred_check
        _
      $region70: #{mfunit_forward.3} parent=5 // pred_check_branch
        %521 = sbr.rel (%p518) target = $region72
      $region71: #{mfunit_forward.3} parent=5 // pred_region
        %s522 = ssub.s32 %s28, 1
        // Predicated region
        $region73: #{mfunit_forward.3} parent=71 // pred_check
          %p523 = pneg %p49
        $region74: #{mfunit_forward.3} parent=71 // pred_check_branch
          %525 = sbr.rel (%p523) target = $region76
        $region75: #{mfunit_forward.3} parent=71 // pred_region
          %526 = dma.done [#allocation4], 16
        $region76: #{mfunit_forward.3} parent=71 // pred_fallthru
          _
        // Predicated region
        $region77: #{mfunit_forward.3} parent=71 // pred_check
          %p527 = pneg %p96
        $region78: #{mfunit_forward.3} parent=71 // pred_check_branch
          %529 = sbr.rel (%p527) target = $region80
        $region79: #{mfunit_forward.3} parent=71 // pred_region
          %530 = dma.done [#allocation3], 16
        $region80: #{mfunit_forward.3} parent=71 // pred_fallthru
          _
        // Predicated region
        $region81: #{mfunit_forward.3} parent=71 // pred_check
          %p531 = pneg %p117
        $region82: #{mfunit_forward.3} parent=71 // pred_check_branch
          %533 = sbr.rel (%p531) target = $region84
        $region83: #{mfunit_forward.3} parent=71 // pred_region
          %534 = dma.done [#allocation7], 16
        $region84: #{mfunit_forward.3} parent=71 // pred_fallthru
          _
        // Predicated region
        $region85: #{mfunit_forward.3} parent=71 // pred_check
          %p535 = pneg %p138
        $region86: #{mfunit_forward.3} parent=71 // pred_check_branch
          %537 = sbr.rel (%p535) target = $region88
        $region87: #{mfunit_forward.3} parent=71 // pred_region
          %538 = dma.done [#allocation7], 128
        $region88: #{mfunit_forward.3} parent=71 // pred_fallthru
          _
        // Predicated region
        $region89: #{mfunit_forward.3} parent=71 // pred_check
          %p539 = pneg %p159
        $region90: #{mfunit_forward.3} parent=71 // pred_check_branch
          %541 = sbr.rel (%p539) target = $region92
        $region91: #{mfunit_forward.3} parent=71 // pred_region
          %542 = dma.done [#allocation10], 16
        $region92: #{mfunit_forward.3} parent=71 // pred_fallthru
          _
        // Predicated region
        $region93: #{mfunit_forward.3} parent=71 // pred_check
          %p543 = pneg %p180
        $region94: #{mfunit_forward.3} parent=71 // pred_check_branch
          %545 = sbr.rel (%p543) target = $region96
        $region95: #{mfunit_forward.3} parent=71 // pred_region
          %546 = dma.done [#allocation10], 16
        $region96: #{mfunit_forward.3} parent=71 // pred_fallthru
          _
        // Predicated region
        $region97: #{mfunit_forward.3} parent=71 // pred_check
          %p547 = pneg %p201
        $region98: #{mfunit_forward.3} parent=71 // pred_check_branch
          %549 = sbr.rel (%p547) target = $region100
        $region99: #{mfunit_forward.3} parent=71 // pred_region
          %550 = dma.done [#allocation13], 32
        $region100: #{mfunit_forward.3} parent=71 // pred_fallthru
          _
        // Predicated region
        $region101: #{mfunit_forward.3} parent=71 // pred_check
          %p551 = pneg %p222
        $region102: #{mfunit_forward.3} parent=71 // pred_check_branch
          %553 = sbr.rel (%p551) target = $region104
        $region103: #{mfunit_forward.3} parent=71 // pred_region
          %554 = dma.done [#allocation13], 16
        $region104: #{mfunit_forward.3} parent=71 // pred_fallthru
          _
        // Predicated region
        $region105: #{mfunit_forward.3} parent=71 // pred_check
          %p555 = pneg %p243
        $region106: #{mfunit_forward.3} parent=71 // pred_check_branch
          %557 = sbr.rel (%p555) target = $region108
        $region107: #{mfunit_forward.3} parent=71 // pred_region
          %558 = dma.done [#allocation16], 16
        $region108: #{mfunit_forward.3} parent=71 // pred_fallthru
          _
        // Predicated region
        $region109: #{mfunit_forward.3} parent=71 // pred_check
          %p559 = pneg %p264
        $region110: #{mfunit_forward.3} parent=71 // pred_check_branch
          %561 = sbr.rel (%p559) target = $region112
        $region111: #{mfunit_forward.3} parent=71 // pred_region
          %562 = dma.done [#allocation16], 16
        $region112: #{mfunit_forward.3} parent=71 // pred_fallthru
          _
        // Predicated region
        $region113: #{mfunit_forward.3} parent=71 // pred_check
          %p563 = pneg %p285
        $region114: #{mfunit_forward.3} parent=71 // pred_check_branch
          %565 = sbr.rel (%p563) target = $region116
        $region115: #{mfunit_forward.3} parent=71 // pred_region
          %566 = dma.done [#allocation19], 16
        $region116: #{mfunit_forward.3} parent=71 // pred_fallthru
          _
        // Predicated region
        $region117: #{mfunit_forward.3} parent=71 // pred_check
          %p567 = pneg %p306
        $region118: #{mfunit_forward.3} parent=71 // pred_check_branch
          %569 = sbr.rel (%p567) target = $region120
        $region119: #{mfunit_forward.3} parent=71 // pred_region
          %570 = dma.done [#allocation19], 128
        $region120: #{mfunit_forward.3} parent=71 // pred_fallthru
          _
        %571 = sfence
        %p572 = pneg %p49
        %p573 = pneg %p46
        %s574 = smul.u32 64, %s33
        %p575 = scmp.lt.s32.totalorder %s574, 127
        %s576 = scalar_select %p575, %s574, 127
        %s577 = smul.addr %s576, 8
        %s578 = scalar_lea.vmem %s1, %s577
        %p579 = pneg %p75
        %p580 = pneg %p72
        %p581 = pneg %p96
        %p582 = pneg %p93
        %p583 = pneg %p117
        %p584 = pneg %p114
        %p585 = pneg %p138
        %p586 = pneg %p135
        %p587 = pneg %p159
        %p588 = pneg %p156
        %p589 = pneg %p180
        %p590 = pneg %p177
        %p591 = pneg %p201
        %p592 = pneg %p198
        %p593 = pneg %p222
        %p594 = pneg %p219
        %p595 = pneg %p243
        %p596 = pneg %p240
        %p597 = pneg %p264
        %p598 = pneg %p261
        %p599 = pneg %p285
        %p600 = pneg %p282
        %p601 = pneg %p306
        %p602 = pneg %p303
        %p603 = pneg %p332
        %p604 = pneg %p329
        %s605 = smul.u32 64, %s33
        %p606 = scmp.lt.s32.totalorder %s605, 127
        %s607 = scalar_select %p606, %s605, 127
        %s608 = smul.addr %s607, 8
        %s609 = scalar_lea.vmem %s13, %s608
        %p610 = pneg %p358
        %p611 = pneg %p355
        %s612 = smul.u32 64, %s33
        %p613 = scmp.lt.s32.totalorder %s612, 127
        %s614 = scalar_select %p613, %s612, 127
        %s615 = smul.addr %s614, 8
        %s616 = scalar_lea.vmem %s14, %s615
        %s617 = smul.u32 64, %s33
        %p618 = scmp.lt.s32.totalorder %s617, 127
        %s619 = scalar_select %p618, %s617, 127
        %s620 = smul.addr %s619, 8
        %s621 = scalar_lea.vmem %s1, %s620
        %s622 = smul.u32 64, %s33
        %s623 = smul.u32 64, %s33
        %p624 = scmp.lt.s32.totalorder %s623, 127
        %s625 = scalar_select %p624, %s623, 127
        %s626 = smul.addr %s625, 8
        %s627 = scalar_lea.vmem %s13, %s626
        %s628 = smul.u32 64, %s33
        %s629 = smul.u32 64, %s33
        %p630 = scmp.lt.s32.totalorder %s629, 127
        %s631 = scalar_select %p630, %s629, 127
        %s632 = smul.addr %s631, 8
        %s633 = scalar_lea.vmem %s14, %s632
        %s634 = smul.u32 64, %s33
        %v635 = vld [vmem:[%s621] sm:$0xff]
        %v636 = vld [vmem:[%s621 + $0x8] sm:$0xff]
        %v637 = vld [vmem:[%s621 + $0x10] sm:$0xff]
        %v638 = vld [vmem:[%s621 + $0x18] sm:$0xff]
        %v639 = vld [vmem:[%s621 + $0x20] sm:$0xff]
        %v640 = vld [vmem:[%s621 + $0x28] sm:$0xff]
        %v641 = vld [vmem:[%s621 + $0x30] sm:$0xff]
        %v642 = vld [vmem:[%s621 + $0x38] sm:$0xff]
        %v643 = vld [vmem:[%s621 + $0x40] sm:$0xff]
        %v644 = vld [vmem:[%s621 + $0x48] sm:$0xff]
        %v645 = vld [vmem:[%s621 + $0x50] sm:$0xff]
        %v646 = vld [vmem:[%s621 + $0x58] sm:$0xff]
        %v647 = vld [vmem:[%s621 + $0x60] sm:$0xff]
        %v648 = vld [vmem:[%s621 + $0x68] sm:$0xff]
        %v649 = vld [vmem:[%s621 + $0x70] sm:$0xff]
        %v650 = vld [vmem:[%s621 + $0x78] sm:$0xff]
        %v651 = vld [vmem:[%s621 + $0x80] sm:$0xff]
        %v652 = vld [vmem:[%s621 + $0x88] sm:$0xff]
        %v653 = vld [vmem:[%s621 + $0x90] sm:$0xff]
        %v654 = vld [vmem:[%s621 + $0x98] sm:$0xff]
        %v655 = vld [vmem:[%s621 + $0xa0] sm:$0xff]
        %v656 = vld [vmem:[%s621 + $0xa8] sm:$0xff]
        %v657 = vld [vmem:[%s621 + $0xb0] sm:$0xff]
        %v658 = vld [vmem:[%s621 + $0xb8] sm:$0xff]
        %v659 = vld [vmem:[%s621 + $0xc0] sm:$0xff]
        %v660 = vld [vmem:[%s621 + $0xc8] sm:$0xff]
        %v661 = vld [vmem:[%s621 + $0xd0] sm:$0xff]
        %v662 = vld [vmem:[%s621 + $0xd8] sm:$0xff]
        %v663 = vld [vmem:[%s621 + $0xe0] sm:$0xff]
        %v664 = vld [vmem:[%s621 + $0xe8] sm:$0xff]
        %v665 = vld [vmem:[%s621 + $0xf0] sm:$0xff]
        %v666 = vld [vmem:[%s621 + $0xf8] sm:$0xff]
        %v667 = vld [vmem:[%s621 + $0x100] sm:$0xff]
        %v668 = vld [vmem:[%s621 + $0x108] sm:$0xff]
        %v669 = vld [vmem:[%s621 + $0x110] sm:$0xff]
        %v670 = vld [vmem:[%s621 + $0x118] sm:$0xff]
        %v671 = vld [vmem:[%s621 + $0x120] sm:$0xff]
        %v672 = vld [vmem:[%s621 + $0x128] sm:$0xff]
        %v673 = vld [vmem:[%s621 + $0x130] sm:$0xff]
        %v674 = vld [vmem:[%s621 + $0x138] sm:$0xff]
        %v675 = vld [vmem:[%s621 + $0x140] sm:$0xff]
        %v676 = vld [vmem:[%s621 + $0x148] sm:$0xff]
        %v677 = vld [vmem:[%s621 + $0x150] sm:$0xff]
        %v678 = vld [vmem:[%s621 + $0x158] sm:$0xff]
        %v679 = vld [vmem:[%s621 + $0x160] sm:$0xff]
        %v680 = vld [vmem:[%s621 + $0x168] sm:$0xff]
        %v681 = vld [vmem:[%s621 + $0x170] sm:$0xff]
        %v682 = vld [vmem:[%s621 + $0x178] sm:$0xff]
        %v683 = vld [vmem:[%s621 + $0x180] sm:$0xff]
        %v684 = vld [vmem:[%s621 + $0x188] sm:$0xff]
        %v685 = vld [vmem:[%s621 + $0x190] sm:$0xff]
        %v686 = vld [vmem:[%s621 + $0x198] sm:$0xff]
        %v687 = vld [vmem:[%s621 + $0x1a0] sm:$0xff]
        %v688 = vld [vmem:[%s621 + $0x1a8] sm:$0xff]
        %v689 = vld [vmem:[%s621 + $0x1b0] sm:$0xff]
        %v690 = vld [vmem:[%s621 + $0x1b8] sm:$0xff]
        %v691 = vld [vmem:[%s621 + $0x1c0] sm:$0xff]
        %v692 = vld [vmem:[%s621 + $0x1c8] sm:$0xff]
        %v693 = vld [vmem:[%s621 + $0x1d0] sm:$0xff]
        %v694 = vld [vmem:[%s621 + $0x1d8] sm:$0xff]
        %v695 = vld [vmem:[%s621 + $0x1e0] sm:$0xff]
        %v696 = vld [vmem:[%s621 + $0x1e8] sm:$0xff]
        %v697 = vld [vmem:[%s621 + $0x1f0] sm:$0xff]
        %v698 = vld [vmem:[%s621 + $0x1f8] sm:$0xff]
        %v699 = vld [vmem:[#allocation5] sm:$0x1]
        %v701 = vlaneseq
        %v702 = vshrl.u32 %v701, 7
        %v703 = vsub.s32 0, %v702
        %v704 = vrot.slane %v699, %v703
        %v706 = vmul.f32 %v635, %v704
        %v707 = vmul.f32 %v636, %v704
        %v708 = vmul.f32 %v637, %v704
        %v709 = vmul.f32 %v638, %v704
        %v710 = vmul.f32 %v639, %v704
        %v711 = vmul.f32 %v640, %v704
        %v712 = vmul.f32 %v641, %v704
        %v713 = vmul.f32 %v642, %v704
        %v714 = vmul.f32 %v643, %v704
        %v715 = vmul.f32 %v644, %v704
        %v716 = vmul.f32 %v645, %v704
        %v717 = vmul.f32 %v646, %v704
        %v718 = vmul.f32 %v647, %v704
        %v719 = vmul.f32 %v648, %v704
        %v720 = vmul.f32 %v649, %v704
        %v721 = vmul.f32 %v650, %v704
        %v722 = vmul.f32 %v651, %v704
        %v723 = vmul.f32 %v652, %v704
        %v724 = vmul.f32 %v653, %v704
        %v725 = vmul.f32 %v654, %v704
        %v726 = vmul.f32 %v655, %v704
        %v727 = vmul.f32 %v656, %v704
        %v728 = vmul.f32 %v657, %v704
        %v729 = vmul.f32 %v658, %v704
        %v730 = vmul.f32 %v659, %v704
        %v731 = vmul.f32 %v660, %v704
        %v732 = vmul.f32 %v661, %v704
        %v733 = vmul.f32 %v662, %v704
        %v734 = vmul.f32 %v663, %v704
        %v735 = vmul.f32 %v664, %v704
        %v736 = vmul.f32 %v665, %v704
        %v737 = vmul.f32 %v666, %v704
        %v738 = vmul.f32 %v667, %v704
        %v739 = vmul.f32 %v668, %v704
        %v740 = vmul.f32 %v669, %v704
        %v741 = vmul.f32 %v670, %v704
        %v742 = vmul.f32 %v671, %v704
        %v743 = vmul.f32 %v672, %v704
        %v744 = vmul.f32 %v673, %v704
        %v745 = vmul.f32 %v674, %v704
        %v746 = vmul.f32 %v675, %v704
        %v747 = vmul.f32 %v676, %v704
        %v748 = vmul.f32 %v677, %v704
        %v749 = vmul.f32 %v678, %v704
        %v750 = vmul.f32 %v679, %v704
        %v751 = vmul.f32 %v680, %v704
        %v752 = vmul.f32 %v681, %v704
        %v753 = vmul.f32 %v682, %v704
        %v754 = vmul.f32 %v683, %v704
        %v755 = vmul.f32 %v684, %v704
        %v756 = vmul.f32 %v685, %v704
        %v757 = vmul.f32 %v686, %v704
        %v758 = vmul.f32 %v687, %v704
        %v759 = vmul.f32 %v688, %v704
        %v760 = vmul.f32 %v689, %v704
        %v761 = vmul.f32 %v690, %v704
        %v762 = vmul.f32 %v691, %v704
        %v763 = vmul.f32 %v692, %v704
        %v764 = vmul.f32 %v693, %v704
        %v765 = vmul.f32 %v694, %v704
        %v766 = vmul.f32 %v695, %v704
        %v767 = vmul.f32 %v696, %v704
        %v768 = vmul.f32 %v697, %v704
        %v769 = vmul.f32 %v698, %v704
        %v770 = vld [vmem:[#allocation6] sm:$0x1]
        %v772 = vlaneseq
        %v773 = vshrl.u32 %v772, 7
        %v774 = vsub.s32 0, %v773
        %v775 = vrot.slane %v770, %v774
        %v777 = vadd.f32 %v706, %v775
        %v778 = vadd.f32 %v707, %v775
        %v779 = vadd.f32 %v708, %v775
        %v780 = vadd.f32 %v709, %v775
        %v781 = vadd.f32 %v710, %v775
        %v782 = vadd.f32 %v711, %v775
        %v783 = vadd.f32 %v712, %v775
        %v784 = vadd.f32 %v713, %v775
        %v785 = vadd.f32 %v714, %v775
        %v786 = vadd.f32 %v715, %v775
        %v787 = vadd.f32 %v716, %v775
        %v788 = vadd.f32 %v717, %v775
        %v789 = vadd.f32 %v718, %v775
        %v790 = vadd.f32 %v719, %v775
        %v791 = vadd.f32 %v720, %v775
        %v792 = vadd.f32 %v721, %v775
        %v793 = vadd.f32 %v722, %v775
        %v794 = vadd.f32 %v723, %v775
        %v795 = vadd.f32 %v724, %v775
        %v796 = vadd.f32 %v725, %v775
        %v797 = vadd.f32 %v726, %v775
        %v798 = vadd.f32 %v727, %v775
        %v799 = vadd.f32 %v728, %v775
        %v800 = vadd.f32 %v729, %v775
        %v801 = vadd.f32 %v730, %v775
        %v802 = vadd.f32 %v731, %v775
        %v803 = vadd.f32 %v732, %v775
        %v804 = vadd.f32 %v733, %v775
        %v805 = vadd.f32 %v734, %v775
        %v806 = vadd.f32 %v735, %v775
        %v807 = vadd.f32 %v736, %v775
        %v808 = vadd.f32 %v737, %v775
        %v809 = vadd.f32 %v738, %v775
        %v810 = vadd.f32 %v739, %v775
        %v811 = vadd.f32 %v740, %v775
        %v812 = vadd.f32 %v741, %v775
        %v813 = vadd.f32 %v742, %v775
        %v814 = vadd.f32 %v743, %v775
        %v815 = vadd.f32 %v744, %v775
        %v816 = vadd.f32 %v745, %v775
        %v817 = vadd.f32 %v746, %v775
        %v818 = vadd.f32 %v747, %v775
        %v819 = vadd.f32 %v748, %v775
        %v820 = vadd.f32 %v749, %v775
        %v821 = vadd.f32 %v750, %v775
        %v822 = vadd.f32 %v751, %v775
        %v823 = vadd.f32 %v752, %v775
        %v824 = vadd.f32 %v753, %v775
        %v825 = vadd.f32 %v754, %v775
        %v826 = vadd.f32 %v755, %v775
        %v827 = vadd.f32 %v756, %v775
        %v828 = vadd.f32 %v757, %v775
        %v829 = vadd.f32 %v758, %v775
        %v830 = vadd.f32 %v759, %v775
        %v831 = vadd.f32 %v760, %v775
        %v832 = vadd.f32 %v761, %v775
        %v833 = vadd.f32 %v762, %v775
        %v834 = vadd.f32 %v763, %v775
        %v835 = vadd.f32 %v764, %v775
        %v836 = vadd.f32 %v765, %v775
        %v837 = vadd.f32 %v766, %v775
        %v838 = vadd.f32 %v767, %v775
        %v839 = vadd.f32 %v768, %v775
        %v840 = vadd.f32 %v769, %v775
        %vm841 = vcmp.gt.f32.partialorder %v777, 0.0
        %vm842 = vcmp.gt.f32.partialorder %v778, 0.0
        %vm843 = vcmp.gt.f32.partialorder %v779, 0.0
        %vm844 = vcmp.gt.f32.partialorder %v780, 0.0
        %vm845 = vcmp.gt.f32.partialorder %v781, 0.0
        %vm846 = vcmp.gt.f32.partialorder %v782, 0.0
        %vm847 = vcmp.gt.f32.partialorder %v783, 0.0
        %vm848 = vcmp.gt.f32.partialorder %v784, 0.0
        %vm849 = vcmp.gt.f32.partialorder %v785, 0.0
        %vm850 = vcmp.gt.f32.partialorder %v786, 0.0
        %vm851 = vcmp.gt.f32.partialorder %v787, 0.0
        %vm852 = vcmp.gt.f32.partialorder %v788, 0.0
        %vm853 = vcmp.gt.f32.partialorder %v789, 0.0
        %vm854 = vcmp.gt.f32.partialorder %v790, 0.0
        %vm855 = vcmp.gt.f32.partialorder %v791, 0.0
        %vm856 = vcmp.gt.f32.partialorder %v792, 0.0
        %vm857 = vcmp.gt.f32.partialorder %v793, 0.0
        %vm858 = vcmp.gt.f32.partialorder %v794, 0.0
        %vm859 = vcmp.gt.f32.partialorder %v795, 0.0
        %vm860 = vcmp.gt.f32.partialorder %v796, 0.0
        %vm861 = vcmp.gt.f32.partialorder %v797, 0.0
        %vm862 = vcmp.gt.f32.partialorder %v798, 0.0
        %vm863 = vcmp.gt.f32.partialorder %v799, 0.0
        %vm864 = vcmp.gt.f32.partialorder %v800, 0.0
        %vm865 = vcmp.gt.f32.partialorder %v801, 0.0
        %vm866 = vcmp.gt.f32.partialorder %v802, 0.0
        %vm867 = vcmp.gt.f32.partialorder %v803, 0.0
        %vm868 = vcmp.gt.f32.partialorder %v804, 0.0
        %vm869 = vcmp.gt.f32.partialorder %v805, 0.0
        %vm870 = vcmp.gt.f32.partialorder %v806, 0.0
        %vm871 = vcmp.gt.f32.partialorder %v807, 0.0
        %vm872 = vcmp.gt.f32.partialorder %v808, 0.0
        %vm873 = vcmp.gt.f32.partialorder %v809, 0.0
        %vm874 = vcmp.gt.f32.partialorder %v810, 0.0
        %vm875 = vcmp.gt.f32.partialorder %v811, 0.0
        %vm876 = vcmp.gt.f32.partialorder %v812, 0.0
        %vm877 = vcmp.gt.f32.partialorder %v813, 0.0
        %vm878 = vcmp.gt.f32.partialorder %v814, 0.0
        %vm879 = vcmp.gt.f32.partialorder %v815, 0.0
        %vm880 = vcmp.gt.f32.partialorder %v816, 0.0
        %vm881 = vcmp.gt.f32.partialorder %v817, 0.0
        %vm882 = vcmp.gt.f32.partialorder %v818, 0.0
        %vm883 = vcmp.gt.f32.partialorder %v819, 0.0
        %vm884 = vcmp.gt.f32.partialorder %v820, 0.0
        %vm885 = vcmp.gt.f32.partialorder %v821, 0.0
        %vm886 = vcmp.gt.f32.partialorder %v822, 0.0
        %vm887 = vcmp.gt.f32.partialorder %v823, 0.0
        %vm888 = vcmp.gt.f32.partialorder %v824, 0.0
        %vm889 = vcmp.gt.f32.partialorder %v825, 0.0
        %vm890 = vcmp.gt.f32.partialorder %v826, 0.0
        %vm891 = vcmp.gt.f32.partialorder %v827, 0.0
        %vm892 = vcmp.gt.f32.partialorder %v828, 0.0
        %vm893 = vcmp.gt.f32.partialorder %v829, 0.0
        %vm894 = vcmp.gt.f32.partialorder %v830, 0.0
        %vm895 = vcmp.gt.f32.partialorder %v831, 0.0
        %vm896 = vcmp.gt.f32.partialorder %v832, 0.0
        %vm897 = vcmp.gt.f32.partialorder %v833, 0.0
        %vm898 = vcmp.gt.f32.partialorder %v834, 0.0
        %vm899 = vcmp.gt.f32.partialorder %v835, 0.0
        %vm900 = vcmp.gt.f32.partialorder %v836, 0.0
        %vm901 = vcmp.gt.f32.partialorder %v837, 0.0
        %vm902 = vcmp.gt.f32.partialorder %v838, 0.0
        %vm903 = vcmp.gt.f32.partialorder %v839, 0.0
        %vm904 = vcmp.gt.f32.partialorder %v840, 0.0
        %s905 = sld [smem:[#allocation2]]
        %v906 = vstv %s905
        %v907 = vmul.f32 %v906, %v777
        %v908 = vmul.f32 %v906, %v778
        %v909 = vmul.f32 %v906, %v779
        %v910 = vmul.f32 %v906, %v780
        %v911 = vmul.f32 %v906, %v781
        %v912 = vmul.f32 %v906, %v782
        %v913 = vmul.f32 %v906, %v783
        %v914 = vmul.f32 %v906, %v784
        %v915 = vmul.f32 %v906, %v785
        %v916 = vmul.f32 %v906, %v786
        %v917 = vmul.f32 %v906, %v787
        %v918 = vmul.f32 %v906, %v788
        %v919 = vmul.f32 %v906, %v789
        %v920 = vmul.f32 %v906, %v790
        %v921 = vmul.f32 %v906, %v791
        %v922 = vmul.f32 %v906, %v792
        %v923 = vmul.f32 %v906, %v793
        %v924 = vmul.f32 %v906, %v794
        %v925 = vmul.f32 %v906, %v795
        %v926 = vmul.f32 %v906, %v796
        %v927 = vmul.f32 %v906, %v797
        %v928 = vmul.f32 %v906, %v798
        %v929 = vmul.f32 %v906, %v799
        %v930 = vmul.f32 %v906, %v800
        %v931 = vmul.f32 %v906, %v801
        %v932 = vmul.f32 %v906, %v802
        %v933 = vmul.f32 %v906, %v803
        %v934 = vmul.f32 %v906, %v804
        %v935 = vmul.f32 %v906, %v805
        %v936 = vmul.f32 %v906, %v806
        %v937 = vmul.f32 %v906, %v807
        %v938 = vmul.f32 %v906, %v808
        %v939 = vmul.f32 %v906, %v809
        %v940 = vmul.f32 %v906, %v810
        %v941 = vmul.f32 %v906, %v811
        %v942 = vmul.f32 %v906, %v812
        %v943 = vmul.f32 %v906, %v813
        %v944 = vmul.f32 %v906, %v814
        %v945 = vmul.f32 %v906, %v815
        %v946 = vmul.f32 %v906, %v816
        %v947 = vmul.f32 %v906, %v817
        %v948 = vmul.f32 %v906, %v818
        %v949 = vmul.f32 %v906, %v819
        %v950 = vmul.f32 %v906, %v820
        %v951 = vmul.f32 %v906, %v821
        %v952 = vmul.f32 %v906, %v822
        %v953 = vmul.f32 %v906, %v823
        %v954 = vmul.f32 %v906, %v824
        %v955 = vmul.f32 %v906, %v825
        %v956 = vmul.f32 %v906, %v826
        %v957 = vmul.f32 %v906, %v827
        %v958 = vmul.f32 %v906, %v828
        %v959 = vmul.f32 %v906, %v829
        %v960 = vmul.f32 %v906, %v830
        %v961 = vmul.f32 %v906, %v831
        %v962 = vmul.f32 %v906, %v832
        %v963 = vmul.f32 %v906, %v833
        %v964 = vmul.f32 %v906, %v834
        %v965 = vmul.f32 %v906, %v835
        %v966 = vmul.f32 %v906, %v836
        %v967 = vmul.f32 %v906, %v837
        %v968 = vmul.f32 %v906, %v838
        %v969 = vmul.f32 %v906, %v839
        %v970 = vmul.f32 %v906, %v840
        %v971 = vsel %vm841, %v777, %v907
        %v972 = vsel %vm842, %v778, %v908
        %v973 = vsel %vm843, %v779, %v909
        %v974 = vsel %vm844, %v780, %v910
        %v975 = vsel %vm845, %v781, %v911
        %v976 = vsel %vm846, %v782, %v912
        %v977 = vsel %vm847, %v783, %v913
        %v978 = vsel %vm848, %v784, %v914
        %v979 = vsel %vm849, %v785, %v915
        %v980 = vsel %vm850, %v786, %v916
        %v981 = vsel %vm851, %v787, %v917
        %v982 = vsel %vm852, %v788, %v918
        %v983 = vsel %vm853, %v789, %v919
        %v984 = vsel %vm854, %v790, %v920
        %v985 = vsel %vm855, %v791, %v921
        %v986 = vsel %vm856, %v792, %v922
        %v987 = vsel %vm857, %v793, %v923
        %v988 = vsel %vm858, %v794, %v924
        %v989 = vsel %vm859, %v795, %v925
        %v990 = vsel %vm860, %v796, %v926
        %v991 = vsel %vm861, %v797, %v927
        %v992 = vsel %vm862, %v798, %v928
        %v993 = vsel %vm863, %v799, %v929
        %v994 = vsel %vm864, %v800, %v930
        %v995 = vsel %vm865, %v801, %v931
        %v996 = vsel %vm866, %v802, %v932
        %v997 = vsel %vm867, %v803, %v933
        %v998 = vsel %vm868, %v804, %v934
        %v999 = vsel %vm869, %v805, %v935
        %v1000 = vsel %vm870, %v806, %v936
        %v1001 = vsel %vm871, %v807, %v937
        %v1002 = vsel %vm872, %v808, %v938
        %v1003 = vsel %vm873, %v809, %v939
        %v1004 = vsel %vm874, %v810, %v940
        %v1005 = vsel %vm875, %v811, %v941
        %v1006 = vsel %vm876, %v812, %v942
        %v1007 = vsel %vm877, %v813, %v943
        %v1008 = vsel %vm878, %v814, %v944
        %v1009 = vsel %vm879, %v815, %v945
        %v1010 = vsel %vm880, %v816, %v946
        %v1011 = vsel %vm881, %v817, %v947
        %v1012 = vsel %vm882, %v818, %v948
        %v1013 = vsel %vm883, %v819, %v949
        %v1014 = vsel %vm884, %v820, %v950
        %v1015 = vsel %vm885, %v821, %v951
        %v1016 = vsel %vm886, %v822, %v952
        %v1017 = vsel %vm887, %v823, %v953
        %v1018 = vsel %vm888, %v824, %v954
        %v1019 = vsel %vm889, %v825, %v955
        %v1020 = vsel %vm890, %v826, %v956
        %v1021 = vsel %vm891, %v827, %v957
        %v1022 = vsel %vm892, %v828, %v958
        %v1023 = vsel %vm893, %v829, %v959
        %v1024 = vsel %vm894, %v830, %v960
        %v1025 = vsel %vm895, %v831, %v961
        %v1026 = vsel %vm896, %v832, %v962
        %v1027 = vsel %vm897, %v833, %v963
        %v1028 = vsel %vm898, %v834, %v964
        %v1029 = vsel %vm899, %v835, %v965
        %v1030 = vsel %vm900, %v836, %v966
        %v1031 = vsel %vm901, %v837, %v967
        %v1032 = vsel %vm902, %v838, %v968
        %v1033 = vsel %vm903, %v839, %v969
        %v1034 = vsel %vm904, %v840, %v970
        %v1035 = vld [vmem:[#allocation8] sm:$0xff]
        %vm1036 = vcmask 64512
        %v1038 = vsel %vm1036, %v971, 0
        %v1041 = vsel %vm1036, %v972, 0
        %v1044 = vsel %vm1036, %v973, 0
        %v1047 = vsel %vm1036, %v974, 0
        %v1050 = vsel %vm1036, %v975, 0
        %v1053 = vsel %vm1036, %v976, 0
        %v1056 = vsel %vm1036, %v977, 0
        %v1059 = vsel %vm1036, %v978, 0
        %v1062 = vsel %vm1036, %v979, 0
        %v1065 = vsel %vm1036, %v980, 0
        %v1068 = vsel %vm1036, %v981, 0
        %v1071 = vsel %vm1036, %v982, 0
        %v1074 = vsel %vm1036, %v983, 0
        %v1077 = vsel %vm1036, %v984, 0
        %v1080 = vsel %vm1036, %v985, 0
        %v1083 = vsel %vm1036, %v986, 0
        %v1086 = vsel %vm1036, %v987, 0
        %v1089 = vsel %vm1036, %v988, 0
        %v1092 = vsel %vm1036, %v989, 0
        %v1095 = vsel %vm1036, %v990, 0
        %v1098 = vsel %vm1036, %v991, 0
        %v1101 = vsel %vm1036, %v992, 0
        %v1104 = vsel %vm1036, %v993, 0
        %v1107 = vsel %vm1036, %v994, 0
        %v1110 = vsel %vm1036, %v995, 0
        %v1113 = vsel %vm1036, %v996, 0
        %v1116 = vsel %vm1036, %v997, 0
        %v1119 = vsel %vm1036, %v998, 0
        %v1122 = vsel %vm1036, %v999, 0
        %v1125 = vsel %vm1036, %v1000, 0
        %v1128 = vsel %vm1036, %v1001, 0
        %v1131 = vsel %vm1036, %v1002, 0
        %v1134 = vsel %vm1036, %v1003, 0
        %v1137 = vsel %vm1036, %v1004, 0
        %v1140 = vsel %vm1036, %v1005, 0
        %v1143 = vsel %vm1036, %v1006, 0
        %v1146 = vsel %vm1036, %v1007, 0
        %v1149 = vsel %vm1036, %v1008, 0
        %v1152 = vsel %vm1036, %v1009, 0
        %v1155 = vsel %vm1036, %v1010, 0
        %v1158 = vsel %vm1036, %v1011, 0
        %v1161 = vsel %vm1036, %v1012, 0
        %v1164 = vsel %vm1036, %v1013, 0
        %v1167 = vsel %vm1036, %v1014, 0
        %v1170 = vsel %vm1036, %v1015, 0
        %v1173 = vsel %vm1036, %v1016, 0
        %v1176 = vsel %vm1036, %v1017, 0
        %v1179 = vsel %vm1036, %v1018, 0
        %v1182 = vsel %vm1036, %v1019, 0
        %v1185 = vsel %vm1036, %v1020, 0
        %v1188 = vsel %vm1036, %v1021, 0
        %v1191 = vsel %vm1036, %v1022, 0
        %v1194 = vsel %vm1036, %v1023, 0
        %v1197 = vsel %vm1036, %v1024, 0
        %v1200 = vsel %vm1036, %v1025, 0
        %v1203 = vsel %vm1036, %v1026, 0
        %v1206 = vsel %vm1036, %v1027, 0
        %v1209 = vsel %vm1036, %v1028, 0
        %v1212 = vsel %vm1036, %v1029, 0
        %v1215 = vsel %vm1036, %v1030, 0
        %v1218 = vsel %vm1036, %v1031, 0
        %v1221 = vsel %vm1036, %v1032, 0
        %v1224 = vsel %vm1036, %v1033, 0
        %v1227 = vsel %vm1036, %v1034, 0
        %1229 = vmatprep.subr.mxu0 0.0
        %1230 = vmatpush1.msra.mxu0 %v1035
        %1231 = vmatprep.subr.mxu0 0.0
        %1232 = vmatpush1.msra.mxu0 0.0
        %1233 = vmatprep.subr.mxu0 0.0
        %1234 = vmatpush1.msra.mxu0 0.0
        %1235 = vmatprep.subr.mxu0 0.0
        %1236 = vmatpush1.msra.mxu0 0.0
        %1237 = vmatprep.subr.mxu0 0.0
        %1238 = vmatpush1.msra.mxu0 0.0
        %1239 = vmatprep.subr.mxu0 0.0
        %1240 = vmatpush1.msra.mxu0 0.0
        %1241 = vmatprep.subr.mxu0 0.0
        %1242 = vmatpush1.msra.mxu0 0.0
        %1243 = vmatprep.subr.mxu0 0.0
        %1244 = vmatpush1.msra.mxu0 0.0
        %1245 = vmatprep.subr.mxu0 0.0
        %1246 = vmatpush1.msra.mxu0 0.0
        %1247 = vmatprep.subr.mxu0 0.0
        %1248 = vmatpush1.msra.mxu0 0.0
        %1249 = vmatprep.subr.mxu0 0.0
        %1250 = vmatpush1.msra.mxu0 0.0
        %1251 = vmatprep.subr.mxu0 0.0
        %1252 = vmatpush1.msra.mxu0 0.0
        %1253 = vmatprep.subr.mxu0 0.0
        %1254 = vmatpush1.msra.mxu0 0.0
        %1255 = vmatprep.subr.mxu0 0.0
        %1256 = vmatpush1.msra.mxu0 0.0
        %1257 = vmatprep.subr.mxu0 0.0
        %1258 = vmatpush1.msra.mxu0 0.0
        %1259 = vmatprep.subr.mxu0 0.0
        %1260 = vmatpush1.msra.mxu0 0.0
        %1261 = vmatprep.subr.mxu0 0.0
        %1262 = vmatpush1.msra.mxu0 0.0
        %1263 = vmatprep.subr.mxu0 0.0
        %1264 = vmatpush1.msra.mxu0 0.0
        %1265 = vmatprep.subr.mxu0 0.0
        %1266 = vmatpush1.msra.mxu0 0.0
        %1267 = vmatprep.subr.mxu0 0.0
        %1268 = vmatpush1.msra.mxu0 0.0
        %1269 = vmatprep.subr.mxu0 0.0
        %1270 = vmatpush1.msra.mxu0 0.0
        %1271 = vmatprep.subr.mxu0 0.0
        %1272 = vmatpush1.msra.mxu0 0.0
        %1273 = vmatprep.subr.mxu0 0.0
        %1274 = vmatpush1.msra.mxu0 0.0
        %1275 = vmatprep.subr.mxu0 0.0
        %1276 = vmatpush1.msra.mxu0 0.0
        %1277 = vmatprep.subr.mxu0 0.0
        %1278 = vmatpush1.msra.mxu0 0.0
        %1279 = vmatprep.subr.mxu0 0.0
        %1280 = vmatpush1.msra.mxu0 0.0
        %1281 = vmatprep.subr.mxu0 0.0
        %1282 = vmatpush1.msra.mxu0 0.0
        %1283 = vmatprep.subr.mxu0 0.0
        %1284 = vmatpush1.msra.mxu0 0.0
        %1285 = vmatprep.subr.mxu0 0.0
        %1286 = vmatpush1.msra.mxu0 0.0
        %1287 = vmatprep.subr.mxu0 0.0
        %1288 = vmatpush1.msra.mxu0 0.0
        %1289 = vmatprep.subr.mxu0 0.0
        %1290 = vmatpush1.msra.mxu0 0.0
        %1291 = vmatprep.subr.mxu0 0.0
        %1292 = vmatpush1.msra.mxu0 0.0
        %1293 = vmatprep.mubr.f32.mxu0 0.0
        %1294 = vmatmul.mubr.f32.gmra.mrb[0].mxu0 %v1038
        %v1295 = vpop.f32.mrb[0].mxu0
        %v1296 = vadd.f32 0.0, %v1295
        %v1297 = vpop.f32.mrb[0].mxu0
        %1298 = vmatprep.mubr.f32.mxu0 0.0
        %1299 = vmatmul.mubr.f32.gmra.mrb[0].mxu0 %v1041
        %v1300 = vpop.f32.mrb[0].mxu0
        %v1301 = vadd.f32 0.0, %v1300
        %v1302 = vpop.f32.mrb[0].mxu0
        %1303 = vmatprep.mubr.f32.mxu0 0.0
        %1304 = vmatmul.mubr.f32.gmra.mrb[0].mxu0 %v1044
        %v1305 = vpop.f32.mrb[0].mxu0
        %v1306 = vadd.f32 0.0, %v1305
        %v1307 = vpop.f32.mrb[0].mxu0
        %1308 = vmatprep.mubr.f32.mxu0 0.0
        %1309 = vmatmul.mubr.f32.gmra.mrb[0].mxu0 %v1047
        %v1310 = vpop.f32.mrb[0].mxu0
        %v1311 = vadd.f32 0.0, %v1310
        %v1312 = vpop.f32.mrb[0].mxu0
        %1313 = vmatprep.mubr.f32.mxu0 0.0
        %1314 = vmatmul.mubr.f32.gmra.mrb[0].mxu0 %v1050
        %v1315 = vpop.f32.mrb[0].mxu0
        %v1316 = vadd.f32 0.0, %v1315
        %v1317 = vpop.f32.mrb[0].mxu0
        %1318 = vmatprep.mubr.f32.mxu0 0.0
        %1319 = vmatmul.mubr.f32.gmra.mrb[0].mxu0 %v1053
        %v1320 = vpop.f32.mrb[0].mxu0
        %v1321 = vadd.f32 0.0, %v1320
        %v1322 = vpop.f32.mrb[0].mxu0
        %1323 = vmatprep.mubr.f32.mxu0 0.0
        %1324 = vmatmul.mubr.f32.gmra.mrb[0].mxu0 %v1056
        %v1325 = vpop.f32.mrb[0].mxu0
        %v1326 = vadd.f32 0.0, %v1325
        %v1327 = vpop.f32.mrb[0].mxu0
        %1328 = vmatprep.mubr.f32.mxu0 0.0
        %1329 = vmatmul.mubr.f32.gmra.mrb[0].mxu0 %v1059
        %v1330 = vpop.f32.mrb[0].mxu0
        %v1331 = vadd.f32 0.0, %v1330
        %v1332 = vpop.f32.mrb[0].mxu0
        %1333 = vmatprep.mubr.f32.mxu0 0.0
        %1334 = vmatmul.mubr.f32.gmra.mrb[0].mxu0 %v1062
        %v1335 = vpop.f32.mrb[0].mxu0
        %v1336 = vadd.f32 0.0, %v1335
        %v1337 = vpop.f32.mrb[0].mxu0
        %1338 = vmatprep.mubr.f32.mxu0 0.0
        %1339 = vmatmul.mubr.f32.gmra.mrb[0].mxu0 %v1065
        %v1340 = vpop.f32.mrb[0].mxu0
        %v1341 = vadd.f32 0.0, %v1340
        %v1342 = vpop.f32.mrb[0].mxu0
        %1343 = vmatprep.mubr.f32.mxu0 0.0
        %1344 = vmatmul.mubr.f32.gmra.mrb[0].mxu0 %v1068
        %v1345 = vpop.f32.mrb[0].mxu0
        %v1346 = vadd.f32 0.0, %v1345
        %v1347 = vpop.f32.mrb[0].mxu0
        %1348 = vmatprep.mubr.f32.mxu0 0.0
        %1349 = vmatmul.mubr.f32.gmra.mrb[0].mxu0 %v1071
        %v1350 = vpop.f32.mrb[0].mxu0
        %v1351 = vadd.f32 0.0, %v1350
        %v1352 = vpop.f32.mrb[0].mxu0
        %1353 = vmatprep.mubr.f32.mxu0 0.0
        %1354 = vmatmul.mubr.f32.gmra.mrb[0].mxu0 %v1074
        %v1355 = vpop.f32.mrb[0].mxu0
        %v1356 = vadd.f32 0.0, %v1355
        %v1357 = vpop.f32.mrb[0].mxu0
        %1358 = vmatprep.mubr.f32.mxu0 0.0
        %1359 = vmatmul.mubr.f32.gmra.mrb[0].mxu0 %v1077
        %v1360 = vpop.f32.mrb[0].mxu0
        %v1361 = vadd.f32 0.0, %v1360
        %v1362 = vpop.f32.mrb[0].mxu0
        %1363 = vmatprep.mubr.f32.mxu0 0.0
        %1364 = vmatmul.mubr.f32.gmra.mrb[0].mxu0 %v1080
        %v1365 = vpop.f32.mrb[0].mxu0
        %v1366 = vadd.f32 0.0, %v1365
        %v1367 = vpop.f32.mrb[0].mxu0
        %1368 = vmatprep.mubr.f32.mxu0 0.0
        %1369 = vmatmul.mubr.f32.gmra.mrb[0].mxu0 %v1083
        %v1370 = vpop.f32.mrb[0].mxu0
        %v1371 = vadd.f32 0.0, %v1370
        %v1372 = vpop.f32.mrb[0].mxu0
        %1373 = vmatprep.mubr.f32.mxu0 0.0
        %1374 = vmatmul.mubr.f32.gmra.mrb[0].mxu0 %v1086
        %v1375 = vpop.f32.mrb[0].mxu0
        %v1376 = vadd.f32 0.0, %v1375
        %v1377 = vpop.f32.mrb[0].mxu0
        %1378 = vmatprep.mubr.f32.mxu0 0.0
        %1379 = vmatmul.mubr.f32.gmra.mrb[0].mxu0 %v1089
        %v1380 = vpop.f32.mrb[0].mxu0
        %v1381 = vadd.f32 0.0, %v1380
        %v1382 = vpop.f32.mrb[0].mxu0
        %1383 = vmatprep.mubr.f32.mxu0 0.0
        %1384 = vmatmul.mubr.f32.gmra.mrb[0].mxu0 %v1092
        %v1385 = vpop.f32.mrb[0].mxu0
        %v1386 = vadd.f32 0.0, %v1385
        %v1387 = vpop.f32.mrb[0].mxu0
        %1388 = vmatprep.mubr.f32.mxu0 0.0
        %1389 = vmatmul.mubr.f32.gmra.mrb[0].mxu0 %v1095
        %v1390 = vpop.f32.mrb[0].mxu0
        %v1391 = vadd.f32 0.0, %v1390
        %v1392 = vpop.f32.mrb[0].mxu0
        %1393 = vmatprep.mubr.f32.mxu0 0.0
        %1394 = vmatmul.mubr.f32.gmra.mrb[0].mxu0 %v1098
        %v1395 = vpop.f32.mrb[0].mxu0
        %v1396 = vadd.f32 0.0, %v1395
        %v1397 = vpop.f32.mrb[0].mxu0
        %1398 = vmatprep.mubr.f32.mxu0 0.0
        %1399 = vmatmul.mubr.f32.gmra.mrb[0].mxu0 %v1101
        %v1400 = vpop.f32.mrb[0].mxu0
        %v1401 = vadd.f32 0.0, %v1400
        %v1402 = vpop.f32.mrb[0].mxu0
        %1403 = vmatprep.mubr.f32.mxu0 0.0
        %1404 = vmatmul.mubr.f32.gmra.mrb[0].mxu0 %v1104
        %v1405 = vpop.f32.mrb[0].mxu0
        %v1406 = vadd.f32 0.0, %v1405
        %v1407 = vpop.f32.mrb[0].mxu0
        %1408 = vmatprep.mubr.f32.mxu0 0.0
        %1409 = vmatmul.mubr.f32.gmra.mrb[0].mxu0 %v1107
        %v1410 = vpop.f32.mrb[0].mxu0
        %v1411 = vadd.f32 0.0, %v1410
        %v1412 = vpop.f32.mrb[0].mxu0
        %1413 = vmatprep.mubr.f32.mxu0 0.0
        %1414 = vmatmul.mubr.f32.gmra.mrb[0].mxu0 %v1110
        %v1415 = vpop.f32.mrb[0].mxu0
        %v1416 = vadd.f32 0.0, %v1415
        %v1417 = vpop.f32.mrb[0].mxu0
        %1418 = vmatprep.mubr.f32.mxu0 0.0
        %1419 = vmatmul.mubr.f32.gmra.mrb[0].mxu0 %v1113
        %v1420 = vpop.f32.mrb[0].mxu0
        %v1421 = vadd.f32 0.0, %v1420
        %v1422 = vpop.f32.mrb[0].mxu0
        %1423 = vmatprep.mubr.f32.mxu0 0.0
        %1424 = vmatmul.mubr.f32.gmra.mrb[0].mxu0 %v1116
        %v1425 = vpop.f32.mrb[0].mxu0
        %v1426 = vadd.f32 0.0, %v1425
        %v1427 = vpop.f32.mrb[0].mxu0
        %1428 = vmatprep.mubr.f32.mxu0 0.0
        %1429 = vmatmul.mubr.f32.gmra.mrb[0].mxu0 %v1119
        %v1430 = vpop.f32.mrb[0].mxu0
        %v1431 = vadd.f32 0.0, %v1430
        %v1432 = vpop.f32.mrb[0].mxu0
        %1433 = vmatprep.mubr.f32.mxu0 0.0
        %1434 = vmatmul.mubr.f32.gmra.mrb[0].mxu0 %v1122
        %v1435 = vpop.f32.mrb[0].mxu0
        %v1436 = vadd.f32 0.0, %v1435
        %v1437 = vpop.f32.mrb[0].mxu0
        %1438 = vmatprep.mubr.f32.mxu0 0.0
        %1439 = vmatmul.mubr.f32.gmra.mrb[0].mxu0 %v1125
        %v1440 = vpop.f32.mrb[0].mxu0
        %v1441 = vadd.f32 0.0, %v1440
        %v1442 = vpop.f32.mrb[0].mxu0
        %1443 = vmatprep.mubr.f32.mxu0 0.0
        %1444 = vmatmul.mubr.f32.gmra.mrb[0].mxu0 %v1128
        %v1445 = vpop.f32.mrb[0].mxu0
        %v1446 = vadd.f32 0.0, %v1445
        %v1447 = vpop.f32.mrb[0].mxu0
        %1448 = vmatprep.mubr.f32.mxu0 0.0
        %1449 = vmatmul.mubr.f32.gmra.mrb[0].mxu0 %v1131
        %v1450 = vpop.f32.mrb[0].mxu0
        %v1451 = vadd.f32 0.0, %v1450
        %v1452 = vpop.f32.mrb[0].mxu0
        %1453 = vmatprep.mubr.f32.mxu0 0.0
        %1454 = vmatmul.mubr.f32.gmra.mrb[0].mxu0 %v1134
        %v1455 = vpop.f32.mrb[0].mxu0
        %v1456 = vadd.f32 0.0, %v1455
        %v1457 = vpop.f32.mrb[0].mxu0
        %1458 = vmatprep.mubr.f32.mxu0 0.0
        %1459 = vmatmul.mubr.f32.gmra.mrb[0].mxu0 %v1137
        %v1460 = vpop.f32.mrb[0].mxu0
        %v1461 = vadd.f32 0.0, %v1460
        %v1462 = vpop.f32.mrb[0].mxu0
        %1463 = vmatprep.mubr.f32.mxu0 0.0
        %1464 = vmatmul.mubr.f32.gmra.mrb[0].mxu0 %v1140
        %v1465 = vpop.f32.mrb[0].mxu0
        %v1466 = vadd.f32 0.0, %v1465
        %v1467 = vpop.f32.mrb[0].mxu0
        %1468 = vmatprep.mubr.f32.mxu0 0.0
        %1469 = vmatmul.mubr.f32.gmra.mrb[0].mxu0 %v1143
        %v1470 = vpop.f32.mrb[0].mxu0
        %v1471 = vadd.f32 0.0, %v1470
        %v1472 = vpop.f32.mrb[0].mxu0
        %1473 = vmatprep.mubr.f32.mxu0 0.0
        %1474 = vmatmul.mubr.f32.gmra.mrb[0].mxu0 %v1146
        %v1475 = vpop.f32.mrb[0].mxu0
        %v1476 = vadd.f32 0.0, %v1475
        %v1477 = vpop.f32.mrb[0].mxu0
        %1478 = vmatprep.mubr.f32.mxu0 0.0
        %1479 = vmatmul.mubr.f32.gmra.mrb[0].mxu0 %v1149
        %v1480 = vpop.f32.mrb[0].mxu0
        %v1481 = vadd.f32 0.0, %v1480
        %v1482 = vpop.f32.mrb[0].mxu0
        %1483 = vmatprep.mubr.f32.mxu0 0.0
        %1484 = vmatmul.mubr.f32.gmra.mrb[0].mxu0 %v1152
        %v1485 = vpop.f32.mrb[0].mxu0
        %v1486 = vadd.f32 0.0, %v1485
        %v1487 = vpop.f32.mrb[0].mxu0
        %1488 = vmatprep.mubr.f32.mxu0 0.0
        %1489 = vmatmul.mubr.f32.gmra.mrb[0].mxu0 %v1155
        %v1490 = vpop.f32.mrb[0].mxu0
        %v1491 = vadd.f32 0.0, %v1490
        %v1492 = vpop.f32.mrb[0].mxu0
        %1493 = vmatprep.mubr.f32.mxu0 0.0
        %1494 = vmatmul.mubr.f32.gmra.mrb[0].mxu0 %v1158
        %v1495 = vpop.f32.mrb[0].mxu0
        %v1496 = vadd.f32 0.0, %v1495
        %v1497 = vpop.f32.mrb[0].mxu0
        %1498 = vmatprep.mubr.f32.mxu0 0.0
        %1499 = vmatmul.mubr.f32.gmra.mrb[0].mxu0 %v1161
        %v1500 = vpop.f32.mrb[0].mxu0
        %v1501 = vadd.f32 0.0, %v1500
        %v1502 = vpop.f32.mrb[0].mxu0
        %1503 = vmatprep.mubr.f32.mxu0 0.0
        %1504 = vmatmul.mubr.f32.gmra.mrb[0].mxu0 %v1164
        %v1505 = vpop.f32.mrb[0].mxu0
        %v1506 = vadd.f32 0.0, %v1505
        %v1507 = vpop.f32.mrb[0].mxu0
        %1508 = vmatprep.mubr.f32.mxu0 0.0
        %1509 = vmatmul.mubr.f32.gmra.mrb[0].mxu0 %v1167
        %v1510 = vpop.f32.mrb[0].mxu0
        %v1511 = vadd.f32 0.0, %v1510
        %v1512 = vpop.f32.mrb[0].mxu0
        %1513 = vmatprep.mubr.f32.mxu0 0.0
        %1514 = vmatmul.mubr.f32.gmra.mrb[0].mxu0 %v1170
        %v1515 = vpop.f32.mrb[0].mxu0
        %v1516 = vadd.f32 0.0, %v1515
        %v1517 = vpop.f32.mrb[0].mxu0
        %1518 = vmatprep.mubr.f32.mxu0 0.0
        %1519 = vmatmul.mubr.f32.gmra.mrb[0].mxu0 %v1173
        %v1520 = vpop.f32.mrb[0].mxu0
        %v1521 = vadd.f32 0.0, %v1520
        %v1522 = vpop.f32.mrb[0].mxu0
        %1523 = vmatprep.mubr.f32.mxu0 0.0
        %1524 = vmatmul.mubr.f32.gmra.mrb[0].mxu0 %v1176
        %v1525 = vpop.f32.mrb[0].mxu0
        %v1526 = vadd.f32 0.0, %v1525
        %v1527 = vpop.f32.mrb[0].mxu0
        %1528 = vmatprep.mubr.f32.mxu0 0.0
        %1529 = vmatmul.mubr.f32.gmra.mrb[0].mxu0 %v1179
        %v1530 = vpop.f32.mrb[0].mxu0
        %v1531 = vadd.f32 0.0, %v1530
        %v1532 = vpop.f32.mrb[0].mxu0
        %1533 = vmatprep.mubr.f32.mxu0 0.0
        %1534 = vmatmul.mubr.f32.gmra.mrb[0].mxu0 %v1182
        %v1535 = vpop.f32.mrb[0].mxu0
        %v1536 = vadd.f32 0.0, %v1535
        %v1537 = vpop.f32.mrb[0].mxu0
        %1538 = vmatprep.mubr.f32.mxu0 0.0
        %1539 = vmatmul.mubr.f32.gmra.mrb[0].mxu0 %v1185
        %v1540 = vpop.f32.mrb[0].mxu0
        %v1541 = vadd.f32 0.0, %v1540
        %v1542 = vpop.f32.mrb[0].mxu0
        %1543 = vmatprep.mubr.f32.mxu0 0.0
        %1544 = vmatmul.mubr.f32.gmra.mrb[0].mxu0 %v1188
        %v1545 = vpop.f32.mrb[0].mxu0
        %v1546 = vadd.f32 0.0, %v1545
        %v1547 = vpop.f32.mrb[0].mxu0
        %1548 = vmatprep.mubr.f32.mxu0 0.0
        %1549 = vmatmul.mubr.f32.gmra.mrb[0].mxu0 %v1191
        %v1550 = vpop.f32.mrb[0].mxu0
        %v1551 = vadd.f32 0.0, %v1550
        %v1552 = vpop.f32.mrb[0].mxu0
        %1553 = vmatprep.mubr.f32.mxu0 0.0
        %1554 = vmatmul.mubr.f32.gmra.mrb[0].mxu0 %v1194
        %v1555 = vpop.f32.mrb[0].mxu0
        %v1556 = vadd.f32 0.0, %v1555
        %v1557 = vpop.f32.mrb[0].mxu0
        %1558 = vmatprep.mubr.f32.mxu0 0.0
        %1559 = vmatmul.mubr.f32.gmra.mrb[0].mxu0 %v1197
        %v1560 = vpop.f32.mrb[0].mxu0
        %v1561 = vadd.f32 0.0, %v1560
        %v1562 = vpop.f32.mrb[0].mxu0
        %1563 = vmatprep.mubr.f32.mxu0 0.0
        %1564 = vmatmul.mubr.f32.gmra.mrb[0].mxu0 %v1200
        %v1565 = vpop.f32.mrb[0].mxu0
        %v1566 = vadd.f32 0.0, %v1565
        %v1567 = vpop.f32.mrb[0].mxu0
        %1568 = vmatprep.mubr.f32.mxu0 0.0
        %1569 = vmatmul.mubr.f32.gmra.mrb[0].mxu0 %v1203
        %v1570 = vpop.f32.mrb[0].mxu0
        %v1571 = vadd.f32 0.0, %v1570
        %v1572 = vpop.f32.mrb[0].mxu0
        %1573 = vmatprep.mubr.f32.mxu0 0.0
        %1574 = vmatmul.mubr.f32.gmra.mrb[0].mxu0 %v1206
        %v1575 = vpop.f32.mrb[0].mxu0
        %v1576 = vadd.f32 0.0, %v1575
        %v1577 = vpop.f32.mrb[0].mxu0
        %1578 = vmatprep.mubr.f32.mxu0 0.0
        %1579 = vmatmul.mubr.f32.gmra.mrb[0].mxu0 %v1209
        %v1580 = vpop.f32.mrb[0].mxu0
        %v1581 = vadd.f32 0.0, %v1580
        %v1582 = vpop.f32.mrb[0].mxu0
        %1583 = vmatprep.mubr.f32.mxu0 0.0
        %1584 = vmatmul.mubr.f32.gmra.mrb[0].mxu0 %v1212
        %v1585 = vpop.f32.mrb[0].mxu0
        %v1586 = vadd.f32 0.0, %v1585
        %v1587 = vpop.f32.mrb[0].mxu0
        %1588 = vmatprep.mubr.f32.mxu0 0.0
        %1589 = vmatmul.mubr.f32.gmra.mrb[0].mxu0 %v1215
        %v1590 = vpop.f32.mrb[0].mxu0
        %v1591 = vadd.f32 0.0, %v1590
        %v1592 = vpop.f32.mrb[0].mxu0
        %1593 = vmatprep.mubr.f32.mxu0 0.0
        %1594 = vmatmul.mubr.f32.gmra.mrb[0].mxu0 %v1218
        %v1595 = vpop.f32.mrb[0].mxu0
        %v1596 = vadd.f32 0.0, %v1595
        %v1597 = vpop.f32.mrb[0].mxu0
        %1598 = vmatprep.mubr.f32.mxu0 0.0
        %1599 = vmatmul.mubr.f32.gmra.mrb[0].mxu0 %v1221
        %v1600 = vpop.f32.mrb[0].mxu0
        %v1601 = vadd.f32 0.0, %v1600
        %v1602 = vpop.f32.mrb[0].mxu0
        %1603 = vmatprep.mubr.f32.mxu0 0.0
        %1604 = vmatmul.mubr.f32.gmra.mrb[0].mxu0 %v1224
        %v1605 = vpop.f32.mrb[0].mxu0
        %v1606 = vadd.f32 0.0, %v1605
        %v1607 = vpop.f32.mrb[0].mxu0
        %1608 = vmatprep.mubr.f32.mxu0 0.0
        %1609 = vmatmul.mubr.f32.gmra.mrb[0].mxu0 %v1227
        %v1610 = vpop.f32.mrb[0].mxu0
        %v1611 = vadd.f32 0.0, %v1610
        %v1612 = vpop.f32.mrb[0].mxu0
        %1613 = vdwg.mxu0
        %v1614 = vld [vmem:[#allocation9] sm:$0x1]
        %v1616 = vlaneseq
        %v1617 = vshrl.u32 %v1616, 7
        %v1618 = vsub.s32 0, %v1617
        %v1619 = vrot.slane %v1614, %v1618
        %v1621 = vmul.f32 %v1296, %v1619
        %v1622 = vmul.f32 %v1301, %v1619
        %v1623 = vmul.f32 %v1306, %v1619
        %v1624 = vmul.f32 %v1311, %v1619
        %v1625 = vmul.f32 %v1316, %v1619
        %v1626 = vmul.f32 %v1321, %v1619
        %v1627 = vmul.f32 %v1326, %v1619
        %v1628 = vmul.f32 %v1331, %v1619
        %v1629 = vmul.f32 %v1336, %v1619
        %v1630 = vmul.f32 %v1341, %v1619
        %v1631 = vmul.f32 %v1346, %v1619
        %v1632 = vmul.f32 %v1351, %v1619
        %v1633 = vmul.f32 %v1356, %v1619
        %v1634 = vmul.f32 %v1361, %v1619
        %v1635 = vmul.f32 %v1366, %v1619
        %v1636 = vmul.f32 %v1371, %v1619
        %v1637 = vmul.f32 %v1376, %v1619
        %v1638 = vmul.f32 %v1381, %v1619
        %v1639 = vmul.f32 %v1386, %v1619
        %v1640 = vmul.f32 %v1391, %v1619
        %v1641 = vmul.f32 %v1396, %v1619
        %v1642 = vmul.f32 %v1401, %v1619
        %v1643 = vmul.f32 %v1406, %v1619
        %v1644 = vmul.f32 %v1411, %v1619
        %v1645 = vmul.f32 %v1416, %v1619
        %v1646 = vmul.f32 %v1421, %v1619
        %v1647 = vmul.f32 %v1426, %v1619
        %v1648 = vmul.f32 %v1431, %v1619
        %v1649 = vmul.f32 %v1436, %v1619
        %v1650 = vmul.f32 %v1441, %v1619
        %v1651 = vmul.f32 %v1446, %v1619
        %v1652 = vmul.f32 %v1451, %v1619
        %v1653 = vmul.f32 %v1456, %v1619
        %v1654 = vmul.f32 %v1461, %v1619
        %v1655 = vmul.f32 %v1466, %v1619
        %v1656 = vmul.f32 %v1471, %v1619
        %v1657 = vmul.f32 %v1476, %v1619
        %v1658 = vmul.f32 %v1481, %v1619
        %v1659 = vmul.f32 %v1486, %v1619
        %v1660 = vmul.f32 %v1491, %v1619
        %v1661 = vmul.f32 %v1496, %v1619
        %v1662 = vmul.f32 %v1501, %v1619
        %v1663 = vmul.f32 %v1506, %v1619
        %v1664 = vmul.f32 %v1511, %v1619
        %v1665 = vmul.f32 %v1516, %v1619
        %v1666 = vmul.f32 %v1521, %v1619
        %v1667 = vmul.f32 %v1526, %v1619
        %v1668 = vmul.f32 %v1531, %v1619
        %v1669 = vmul.f32 %v1536, %v1619
        %v1670 = vmul.f32 %v1541, %v1619
        %v1671 = vmul.f32 %v1546, %v1619
        %v1672 = vmul.f32 %v1551, %v1619
        %v1673 = vmul.f32 %v1556, %v1619
        %v1674 = vmul.f32 %v1561, %v1619
        %v1675 = vmul.f32 %v1566, %v1619
        %v1676 = vmul.f32 %v1571, %v1619
        %v1677 = vmul.f32 %v1576, %v1619
        %v1678 = vmul.f32 %v1581, %v1619
        %v1679 = vmul.f32 %v1586, %v1619
        %v1680 = vmul.f32 %v1591, %v1619
        %v1681 = vmul.f32 %v1596, %v1619
        %v1682 = vmul.f32 %v1601, %v1619
        %v1683 = vmul.f32 %v1606, %v1619
        %v1684 = vmul.f32 %v1611, %v1619
        %v1685 = vld [vmem:[#allocation11] sm:$0x1]
        %v1687 = vlaneseq
        %v1688 = vshrl.u32 %v1687, 7
        %v1689 = vsub.s32 0, %v1688
        %v1690 = vrot.slane %v1685, %v1689
        %v1692 = vadd.f32 %v1621, %v1690
        %v1693 = vadd.f32 %v1622, %v1690
        %v1694 = vadd.f32 %v1623, %v1690
        %v1695 = vadd.f32 %v1624, %v1690
        %v1696 = vadd.f32 %v1625, %v1690
        %v1697 = vadd.f32 %v1626, %v1690
        %v1698 = vadd.f32 %v1627, %v1690
        %v1699 = vadd.f32 %v1628, %v1690
        %v1700 = vadd.f32 %v1629, %v1690
        %v1701 = vadd.f32 %v1630, %v1690
        %v1702 = vadd.f32 %v1631, %v1690
        %v1703 = vadd.f32 %v1632, %v1690
        %v1704 = vadd.f32 %v1633, %v1690
        %v1705 = vadd.f32 %v1634, %v1690
        %v1706 = vadd.f32 %v1635, %v1690
        %v1707 = vadd.f32 %v1636, %v1690
        %v1708 = vadd.f32 %v1637, %v1690
        %v1709 = vadd.f32 %v1638, %v1690
        %v1710 = vadd.f32 %v1639, %v1690
        %v1711 = vadd.f32 %v1640, %v1690
        %v1712 = vadd.f32 %v1641, %v1690
        %v1713 = vadd.f32 %v1642, %v1690
        %v1714 = vadd.f32 %v1643, %v1690
        %v1715 = vadd.f32 %v1644, %v1690
        %v1716 = vadd.f32 %v1645, %v1690
        %v1717 = vadd.f32 %v1646, %v1690
        %v1718 = vadd.f32 %v1647, %v1690
        %v1719 = vadd.f32 %v1648, %v1690
        %v1720 = vadd.f32 %v1649, %v1690
        %v1721 = vadd.f32 %v1650, %v1690
        %v1722 = vadd.f32 %v1651, %v1690
        %v1723 = vadd.f32 %v1652, %v1690
        %v1724 = vadd.f32 %v1653, %v1690
        %v1725 = vadd.f32 %v1654, %v1690
        %v1726 = vadd.f32 %v1655, %v1690
        %v1727 = vadd.f32 %v1656, %v1690
        %v1728 = vadd.f32 %v1657, %v1690
        %v1729 = vadd.f32 %v1658, %v1690
        %v1730 = vadd.f32 %v1659, %v1690
        %v1731 = vadd.f32 %v1660, %v1690
        %v1732 = vadd.f32 %v1661, %v1690
        %v1733 = vadd.f32 %v1662, %v1690
        %v1734 = vadd.f32 %v1663, %v1690
        %v1735 = vadd.f32 %v1664, %v1690
        %v1736 = vadd.f32 %v1665, %v1690
        %v1737 = vadd.f32 %v1666, %v1690
        %v1738 = vadd.f32 %v1667, %v1690
        %v1739 = vadd.f32 %v1668, %v1690
        %v1740 = vadd.f32 %v1669, %v1690
        %v1741 = vadd.f32 %v1670, %v1690
        %v1742 = vadd.f32 %v1671, %v1690
        %v1743 = vadd.f32 %v1672, %v1690
        %v1744 = vadd.f32 %v1673, %v1690
        %v1745 = vadd.f32 %v1674, %v1690
        %v1746 = vadd.f32 %v1675, %v1690
        %v1747 = vadd.f32 %v1676, %v1690
        %v1748 = vadd.f32 %v1677, %v1690
        %v1749 = vadd.f32 %v1678, %v1690
        %v1750 = vadd.f32 %v1679, %v1690
        %v1751 = vadd.f32 %v1680, %v1690
        %v1752 = vadd.f32 %v1681, %v1690
        %v1753 = vadd.f32 %v1682, %v1690
        %v1754 = vadd.f32 %v1683, %v1690
        %v1755 = vadd.f32 %v1684, %v1690
        %vm1756 = vcmp.gt.f32.partialorder %v1692, 0.0
        %vm1757 = vcmp.gt.f32.partialorder %v1693, 0.0
        %vm1758 = vcmp.gt.f32.partialorder %v1694, 0.0
        %vm1759 = vcmp.gt.f32.partialorder %v1695, 0.0
        %vm1760 = vcmp.gt.f32.partialorder %v1696, 0.0
        %vm1761 = vcmp.gt.f32.partialorder %v1697, 0.0
        %vm1762 = vcmp.gt.f32.partialorder %v1698, 0.0
        %vm1763 = vcmp.gt.f32.partialorder %v1699, 0.0
        %vm1764 = vcmp.gt.f32.partialorder %v1700, 0.0
        %vm1765 = vcmp.gt.f32.partialorder %v1701, 0.0
        %vm1766 = vcmp.gt.f32.partialorder %v1702, 0.0
        %vm1767 = vcmp.gt.f32.partialorder %v1703, 0.0
        %vm1768 = vcmp.gt.f32.partialorder %v1704, 0.0
        %vm1769 = vcmp.gt.f32.partialorder %v1705, 0.0
        %vm1770 = vcmp.gt.f32.partialorder %v1706, 0.0
        %vm1771 = vcmp.gt.f32.partialorder %v1707, 0.0
        %vm1772 = vcmp.gt.f32.partialorder %v1708, 0.0
        %vm1773 = vcmp.gt.f32.partialorder %v1709, 0.0
        %vm1774 = vcmp.gt.f32.partialorder %v1710, 0.0
        %vm1775 = vcmp.gt.f32.partialorder %v1711, 0.0
        %vm1776 = vcmp.gt.f32.partialorder %v1712, 0.0
        %vm1777 = vcmp.gt.f32.partialorder %v1713, 0.0
        %vm1778 = vcmp.gt.f32.partialorder %v1714, 0.0
        %vm1779 = vcmp.gt.f32.partialorder %v1715, 0.0
        %vm1780 = vcmp.gt.f32.partialorder %v1716, 0.0
        %vm1781 = vcmp.gt.f32.partialorder %v1717, 0.0
        %vm1782 = vcmp.gt.f32.partialorder %v1718, 0.0
        %vm1783 = vcmp.gt.f32.partialorder %v1719, 0.0
        %vm1784 = vcmp.gt.f32.partialorder %v1720, 0.0
        %vm1785 = vcmp.gt.f32.partialorder %v1721, 0.0
        %vm1786 = vcmp.gt.f32.partialorder %v1722, 0.0
        %vm1787 = vcmp.gt.f32.partialorder %v1723, 0.0
        %vm1788 = vcmp.gt.f32.partialorder %v1724, 0.0
        %vm1789 = vcmp.gt.f32.partialorder %v1725, 0.0
        %vm1790 = vcmp.gt.f32.partialorder %v1726, 0.0
        %vm1791 = vcmp.gt.f32.partialorder %v1727, 0.0
        %vm1792 = vcmp.gt.f32.partialorder %v1728, 0.0
        %vm1793 = vcmp.gt.f32.partialorder %v1729, 0.0
        %vm1794 = vcmp.gt.f32.partialorder %v1730, 0.0
        %vm1795 = vcmp.gt.f32.partialorder %v1731, 0.0
        %vm1796 = vcmp.gt.f32.partialorder %v1732, 0.0
        %vm1797 = vcmp.gt.f32.partialorder %v1733, 0.0
        %vm1798 = vcmp.gt.f32.partialorder %v1734, 0.0
        %vm1799 = vcmp.gt.f32.partialorder %v1735, 0.0
        %vm1800 = vcmp.gt.f32.partialorder %v1736, 0.0
        %vm1801 = vcmp.gt.f32.partialorder %v1737, 0.0
        %vm1802 = vcmp.gt.f32.partialorder %v1738, 0.0
        %vm1803 = vcmp.gt.f32.partialorder %v1739, 0.0
        %vm1804 = vcmp.gt.f32.partialorder %v1740, 0.0
        %vm1805 = vcmp.gt.f32.partialorder %v1741, 0.0
        %vm1806 = vcmp.gt.f32.partialorder %v1742, 0.0
        %vm1807 = vcmp.gt.f32.partialorder %v1743, 0.0
        %vm1808 = vcmp.gt.f32.partialorder %v1744, 0.0
        %vm1809 = vcmp.gt.f32.partialorder %v1745, 0.0
        %vm1810 = vcmp.gt.f32.partialorder %v1746, 0.0
        %vm1811 = vcmp.gt.f32.partialorder %v1747, 0.0
        %vm1812 = vcmp.gt.f32.partialorder %v1748, 0.0
        %vm1813 = vcmp.gt.f32.partialorder %v1749, 0.0
        %vm1814 = vcmp.gt.f32.partialorder %v1750, 0.0
        %vm1815 = vcmp.gt.f32.partialorder %v1751, 0.0
        %vm1816 = vcmp.gt.f32.partialorder %v1752, 0.0
        %vm1817 = vcmp.gt.f32.partialorder %v1753, 0.0
        %vm1818 = vcmp.gt.f32.partialorder %v1754, 0.0
        %vm1819 = vcmp.gt.f32.partialorder %v1755, 0.0
        %s1820 = sld [smem:[#allocation2 + $0x1]]
        %v1821 = vstv %s1820
        %v1822 = vmul.f32 %v1821, %v1692
        %v1823 = vmul.f32 %v1821, %v1693
        %v1824 = vmul.f32 %v1821, %v1694
        %v1825 = vmul.f32 %v1821, %v1695
        %v1826 = vmul.f32 %v1821, %v1696
        %v1827 = vmul.f32 %v1821, %v1697
        %v1828 = vmul.f32 %v1821, %v1698
        %v1829 = vmul.f32 %v1821, %v1699
        %v1830 = vmul.f32 %v1821, %v1700
        %v1831 = vmul.f32 %v1821, %v1701
        %v1832 = vmul.f32 %v1821, %v1702
        %v1833 = vmul.f32 %v1821, %v1703
        %v1834 = vmul.f32 %v1821, %v1704
        %v1835 = vmul.f32 %v1821, %v1705
        %v1836 = vmul.f32 %v1821, %v1706
        %v1837 = vmul.f32 %v1821, %v1707
        %v1838 = vmul.f32 %v1821, %v1708
        %v1839 = vmul.f32 %v1821, %v1709
        %v1840 = vmul.f32 %v1821, %v1710
        %v1841 = vmul.f32 %v1821, %v1711
        %v1842 = vmul.f32 %v1821, %v1712
        %v1843 = vmul.f32 %v1821, %v1713
        %v1844 = vmul.f32 %v1821, %v1714
        %v1845 = vmul.f32 %v1821, %v1715
        %v1846 = vmul.f32 %v1821, %v1716
        %v1847 = vmul.f32 %v1821, %v1717
        %v1848 = vmul.f32 %v1821, %v1718
        %v1849 = vmul.f32 %v1821, %v1719
        %v1850 = vmul.f32 %v1821, %v1720
        %v1851 = vmul.f32 %v1821, %v1721
        %v1852 = vmul.f32 %v1821, %v1722
        %v1853 = vmul.f32 %v1821, %v1723
        %v1854 = vmul.f32 %v1821, %v1724
        %v1855 = vmul.f32 %v1821, %v1725
        %v1856 = vmul.f32 %v1821, %v1726
        %v1857 = vmul.f32 %v1821, %v1727
        %v1858 = vmul.f32 %v1821, %v1728
        %v1859 = vmul.f32 %v1821, %v1729
        %v1860 = vmul.f32 %v1821, %v1730
        %v1861 = vmul.f32 %v1821, %v1731
        %v1862 = vmul.f32 %v1821, %v1732
        %v1863 = vmul.f32 %v1821, %v1733
        %v1864 = vmul.f32 %v1821, %v1734
        %v1865 = vmul.f32 %v1821, %v1735
        %v1866 = vmul.f32 %v1821, %v1736
        %v1867 = vmul.f32 %v1821, %v1737
        %v1868 = vmul.f32 %v1821, %v1738
        %v1869 = vmul.f32 %v1821, %v1739
        %v1870 = vmul.f32 %v1821, %v1740
        %v1871 = vmul.f32 %v1821, %v1741
        %v1872 = vmul.f32 %v1821, %v1742
        %v1873 = vmul.f32 %v1821, %v1743
        %v1874 = vmul.f32 %v1821, %v1744
        %v1875 = vmul.f32 %v1821, %v1745
        %v1876 = vmul.f32 %v1821, %v1746
        %v1877 = vmul.f32 %v1821, %v1747
        %v1878 = vmul.f32 %v1821, %v1748
        %v1879 = vmul.f32 %v1821, %v1749
        %v1880 = vmul.f32 %v1821, %v1750
        %v1881 = vmul.f32 %v1821, %v1751
        %v1882 = vmul.f32 %v1821, %v1752
        %v1883 = vmul.f32 %v1821, %v1753
        %v1884 = vmul.f32 %v1821, %v1754
        %v1885 = vmul.f32 %v1821, %v1755
        %v1886 = vsel %vm1756, %v1692, %v1822
        %v1887 = vsel %vm1757, %v1693, %v1823
        %v1888 = vsel %vm1758, %v1694, %v1824
        %v1889 = vsel %vm1759, %v1695, %v1825
        %v1890 = vsel %vm1760, %v1696, %v1826
        %v1891 = vsel %vm1761, %v1697, %v1827
        %v1892 = vsel %vm1762, %v1698, %v1828
        %v1893 = vsel %vm1763, %v1699, %v1829
        %v1894 = vsel %vm1764, %v1700, %v1830
        %v1895 = vsel %vm1765, %v1701, %v1831
        %v1896 = vsel %vm1766, %v1702, %v1832
        %v1897 = vsel %vm1767, %v1703, %v1833
        %v1898 = vsel %vm1768, %v1704, %v1834
        %v1899 = vsel %vm1769, %v1705, %v1835
        %v1900 = vsel %vm1770, %v1706, %v1836
        %v1901 = vsel %vm1771, %v1707, %v1837
        %v1902 = vsel %vm1772, %v1708, %v1838
        %v1903 = vsel %vm1773, %v1709, %v1839
        %v1904 = vsel %vm1774, %v1710, %v1840
        %v1905 = vsel %vm1775, %v1711, %v1841
        %v1906 = vsel %vm1776, %v1712, %v1842
        %v1907 = vsel %vm1777, %v1713, %v1843
        %v1908 = vsel %vm1778, %v1714, %v1844
        %v1909 = vsel %vm1779, %v1715, %v1845
        %v1910 = vsel %vm1780, %v1716, %v1846
        %v1911 = vsel %vm1781, %v1717, %v1847
        %v1912 = vsel %vm1782, %v1718, %v1848
        %v1913 = vsel %vm1783, %v1719, %v1849
        %v1914 = vsel %vm1784, %v1720, %v1850
        %v1915 = vsel %vm1785, %v1721, %v1851
        %v1916 = vsel %vm1786, %v1722, %v1852
        %v1917 = vsel %vm1787, %v1723, %v1853
        %v1918 = vsel %vm1788, %v1724, %v1854
        %v1919 = vsel %vm1789, %v1725, %v1855
        %v1920 = vsel %vm1790, %v1726, %v1856
        %v1921 = vsel %vm1791, %v1727, %v1857
        %v1922 = vsel %vm1792, %v1728, %v1858
        %v1923 = vsel %vm1793, %v1729, %v1859
        %v1924 = vsel %vm1794, %v1730, %v1860
        %v1925 = vsel %vm1795, %v1731, %v1861
        %v1926 = vsel %vm1796, %v1732, %v1862
        %v1927 = vsel %vm1797, %v1733, %v1863
        %v1928 = vsel %vm1798, %v1734, %v1864
        %v1929 = vsel %vm1799, %v1735, %v1865
        %v1930 = vsel %vm1800, %v1736, %v1866
        %v1931 = vsel %vm1801, %v1737, %v1867
        %v1932 = vsel %vm1802, %v1738, %v1868
        %v1933 = vsel %vm1803, %v1739, %v1869
        %v1934 = vsel %vm1804, %v1740, %v1870
        %v1935 = vsel %vm1805, %v1741, %v1871
        %v1936 = vsel %vm1806, %v1742, %v1872
        %v1937 = vsel %vm1807, %v1743, %v1873
        %v1938 = vsel %vm1808, %v1744, %v1874
        %v1939 = vsel %vm1809, %v1745, %v1875
        %v1940 = vsel %vm1810, %v1746, %v1876
        %v1941 = vsel %vm1811, %v1747, %v1877
        %v1942 = vsel %vm1812, %v1748, %v1878
        %v1943 = vsel %vm1813, %v1749, %v1879
        %v1944 = vsel %vm1814, %v1750, %v1880
        %v1945 = vsel %vm1815, %v1751, %v1881
        %v1946 = vsel %vm1816, %v1752, %v1882
        %v1947 = vsel %vm1817, %v1753, %v1883
        %v1948 = vsel %vm1818, %v1754, %v1884
        %v1949 = vsel %vm1819, %v1755, %v1885
        %v1950 = vld [vmem:[#allocation12] sm:$0x3]
        %vm1951 = vcmask 15360
        %v1953 = vsel %vm1951, %v1886, 0
        %v1956 = vsel %vm1951, %v1887, 0
        %v1959 = vsel %vm1951, %v1888, 0
        %v1962 = vsel %vm1951, %v1889, 0
        %v1965 = vsel %vm1951, %v1890, 0
        %v1968 = vsel %vm1951, %v1891, 0
        %v1971 = vsel %vm1951, %v1892, 0
        %v1974 = vsel %vm1951, %v1893, 0
        %v1977 = vsel %vm1951, %v1894, 0
        %v1980 = vsel %vm1951, %v1895, 0
        %v1983 = vsel %vm1951, %v1896, 0
        %v1986 = vsel %vm1951, %v1897, 0
        %v1989 = vsel %vm1951, %v1898, 0
        %v1992 = vsel %vm1951, %v1899, 0
        %v1995 = vsel %vm1951, %v1900, 0
        %v1998 = vsel %vm1951, %v1901, 0
        %v2001 = vsel %vm1951, %v1902, 0
        %v2004 = vsel %vm1951, %v1903, 0
        %v2007 = vsel %vm1951, %v1904, 0
        %v2010 = vsel %vm1951, %v1905, 0
        %v2013 = vsel %vm1951, %v1906, 0
        %v2016 = vsel %vm1951, %v1907, 0
        %v2019 = vsel %vm1951, %v1908, 0
        %v2022 = vsel %vm1951, %v1909, 0
        %v2025 = vsel %vm1951, %v1910, 0
        %v2028 = vsel %vm1951, %v1911, 0
        %v2031 = vsel %vm1951, %v1912, 0
        %v2034 = vsel %vm1951, %v1913, 0
        %v2037 = vsel %vm1951, %v1914, 0
        %v2040 = vsel %vm1951, %v1915, 0
        %v2043 = vsel %vm1951, %v1916, 0
        %v2046 = vsel %vm1951, %v1917, 0
        %v2049 = vsel %vm1951, %v1918, 0
        %v2052 = vsel %vm1951, %v1919, 0
        %v2055 = vsel %vm1951, %v1920, 0
        %v2058 = vsel %vm1951, %v1921, 0
        %v2061 = vsel %vm1951, %v1922, 0
        %v2064 = vsel %vm1951, %v1923, 0
        %v2067 = vsel %vm1951, %v1924, 0
        %v2070 = vsel %vm1951, %v1925, 0
        %v2073 = vsel %vm1951, %v1926, 0
        %v2076 = vsel %vm1951, %v1927, 0
        %v2079 = vsel %vm1951, %v1928, 0
        %v2082 = vsel %vm1951, %v1929, 0
        %v2085 = vsel %vm1951, %v1930, 0
        %v2088 = vsel %vm1951, %v1931, 0
        %v2091 = vsel %vm1951, %v1932, 0
        %v2094 = vsel %vm1951, %v1933, 0
        %v2097 = vsel %vm1951, %v1934, 0
        %v2100 = vsel %vm1951, %v1935, 0
        %v2103 = vsel %vm1951, %v1936, 0
        %v2106 = vsel %vm1951, %v1937, 0
        %v2109 = vsel %vm1951, %v1938, 0
        %v2112 = vsel %vm1951, %v1939, 0
        %v2115 = vsel %vm1951, %v1940, 0
        %v2118 = vsel %vm1951, %v1941, 0
        %v2121 = vsel %vm1951, %v1942, 0
        %v2124 = vsel %vm1951, %v1943, 0
        %v2127 = vsel %vm1951, %v1944, 0
        %v2130 = vsel %vm1951, %v1945, 0
        %v2133 = vsel %vm1951, %v1946, 0
        %v2136 = vsel %vm1951, %v1947, 0
        %v2139 = vsel %vm1951, %v1948, 0
        %v2142 = vsel %vm1951, %v1949, 0
        %vm2144 = vcmask 1041408
        %v2146 = vsel %vm2144, %v1950, 0
        %2148 = vmatprep.subr.mxu0 0.0
        %2149 = vmatpush1.msra.mxu0 %v2146
        %2150 = vmatprep.subr.mxu0 0.0
        %2151 = vmatpush1.msra.mxu0 0.0
        %2152 = vmatprep.subr.mxu0 0.0
        %2153 = vmatpush1.msra.mxu0 0.0
        %2154 = vmatprep.subr.mxu0 0.0
        %2155 = vmatpush1.msra.mxu0 0.0
        %2156 = vmatprep.subr.mxu0 0.0
        %2157 = vmatpush1.msra.mxu0 0.0
        %2158 = vmatprep.subr.mxu0 0.0
        %2159 = vmatpush1.msra.mxu0 0.0
        %2160 = vmatprep.subr.mxu0 0.0
        %2161 = vmatpush1.msra.mxu0 0.0
        %2162 = vmatprep.subr.mxu0 0.0
        %2163 = vmatpush1.msra.mxu0 0.0
        %2164 = vmatprep.subr.mxu0 0.0
        %2165 = vmatpush1.msra.mxu0 0.0
        %2166 = vmatprep.subr.mxu0 0.0
        %2167 = vmatpush1.msra.mxu0 0.0
        %2168 = vmatprep.subr.mxu0 0.0
        %2169 = vmatpush1.msra.mxu0 0.0
        %2170 = vmatprep.subr.mxu0 0.0
        %2171 = vmatpush1.msra.mxu0 0.0
        %2172 = vmatprep.subr.mxu0 0.0
        %2173 = vmatpush1.msra.mxu0 0.0
        %2174 = vmatprep.subr.mxu0 0.0
        %2175 = vmatpush1.msra.mxu0 0.0
        %2176 = vmatprep.subr.mxu0 0.0
        %2177 = vmatpush1.msra.mxu0 0.0
        %2178 = vmatprep.subr.mxu0 0.0
        %2179 = vmatpush1.msra.mxu0 0.0
        %2180 = vmatprep.subr.mxu0 0.0
        %2181 = vmatpush1.msra.mxu0 0.0
        %2182 = vmatprep.subr.mxu0 0.0
        %2183 = vmatpush1.msra.mxu0 0.0
        %2184 = vmatprep.subr.mxu0 0.0
        %2185 = vmatpush1.msra.mxu0 0.0
        %2186 = vmatprep.subr.mxu0 0.0
        %2187 = vmatpush1.msra.mxu0 0.0
        %2188 = vmatprep.subr.mxu0 0.0
        %2189 = vmatpush1.msra.mxu0 0.0
        %2190 = vmatprep.subr.mxu0 0.0
        %2191 = vmatpush1.msra.mxu0 0.0
        %2192 = vmatprep.subr.mxu0 0.0
        %2193 = vmatpush1.msra.mxu0 0.0
        %2194 = vmatprep.subr.mxu0 0.0
        %2195 = vmatpush1.msra.mxu0 0.0
        %2196 = vmatprep.subr.mxu0 0.0
        %2197 = vmatpush1.msra.mxu0 0.0
        %2198 = vmatprep.subr.mxu0 0.0
        %2199 = vmatpush1.msra.mxu0 0.0
        %2200 = vmatprep.subr.mxu0 0.0
        %2201 = vmatpush1.msra.mxu0 0.0
        %2202 = vmatprep.subr.mxu0 0.0
        %2203 = vmatpush1.msra.mxu0 0.0
        %2204 = vmatprep.subr.mxu0 0.0
        %2205 = vmatpush1.msra.mxu0 0.0
        %2206 = vmatprep.subr.mxu0 0.0
        %2207 = vmatpush1.msra.mxu0 0.0
        %2208 = vmatprep.subr.mxu0 0.0
        %2209 = vmatpush1.msra.mxu0 0.0
        %2210 = vmatprep.subr.mxu0 0.0
        %2211 = vmatpush1.msra.mxu0 0.0
        %2212 = vmatprep.mubr.f32.mxu0 0.0
        %2213 = vmatmul.mubr.f32.gmra.mrb[0].mxu0 %v1953
        %v2214 = vpop.f32.mrb[0].mxu0
        %v2215 = vadd.f32 0.0, %v2214
        %v2216 = vpop.f32.mrb[0].mxu0
        %2217 = vmatprep.mubr.f32.mxu0 0.0
        %2218 = vmatmul.mubr.f32.gmra.mrb[0].mxu0 %v1956
        %v2219 = vpop.f32.mrb[0].mxu0
        %v2220 = vadd.f32 0.0, %v2219
        %v2221 = vpop.f32.mrb[0].mxu0
        %2222 = vmatprep.mubr.f32.mxu0 0.0
        %2223 = vmatmul.mubr.f32.gmra.mrb[0].mxu0 %v1959
        %v2224 = vpop.f32.mrb[0].mxu0
        %v2225 = vadd.f32 0.0, %v2224
        %v2226 = vpop.f32.mrb[0].mxu0
        %2227 = vmatprep.mubr.f32.mxu0 0.0
        %2228 = vmatmul.mubr.f32.gmra.mrb[0].mxu0 %v1962
        %v2229 = vpop.f32.mrb[0].mxu0
        %v2230 = vadd.f32 0.0, %v2229
        %v2231 = vpop.f32.mrb[0].mxu0
        %2232 = vmatprep.mubr.f32.mxu0 0.0
        %2233 = vmatmul.mubr.f32.gmra.mrb[0].mxu0 %v1965
        %v2234 = vpop.f32.mrb[0].mxu0
        %v2235 = vadd.f32 0.0, %v2234
        %v2236 = vpop.f32.mrb[0].mxu0
        %2237 = vmatprep.mubr.f32.mxu0 0.0
        %2238 = vmatmul.mubr.f32.gmra.mrb[0].mxu0 %v1968
        %v2239 = vpop.f32.mrb[0].mxu0
        %v2240 = vadd.f32 0.0, %v2239
        %v2241 = vpop.f32.mrb[0].mxu0
        %2242 = vmatprep.mubr.f32.mxu0 0.0
        %2243 = vmatmul.mubr.f32.gmra.mrb[0].mxu0 %v1971
        %v2244 = vpop.f32.mrb[0].mxu0
        %v2245 = vadd.f32 0.0, %v2244
        %v2246 = vpop.f32.mrb[0].mxu0
        %2247 = vmatprep.mubr.f32.mxu0 0.0
        %2248 = vmatmul.mubr.f32.gmra.mrb[0].mxu0 %v1974
        %v2249 = vpop.f32.mrb[0].mxu0
        %v2250 = vadd.f32 0.0, %v2249
        %v2251 = vpop.f32.mrb[0].mxu0
        %2252 = vmatprep.mubr.f32.mxu0 0.0
        %2253 = vmatmul.mubr.f32.gmra.mrb[0].mxu0 %v1977
        %v2254 = vpop.f32.mrb[0].mxu0
        %v2255 = vadd.f32 0.0, %v2254
        %v2256 = vpop.f32.mrb[0].mxu0
        %2257 = vmatprep.mubr.f32.mxu0 0.0
        %2258 = vmatmul.mubr.f32.gmra.mrb[0].mxu0 %v1980
        %v2259 = vpop.f32.mrb[0].mxu0
        %v2260 = vadd.f32 0.0, %v2259
        %v2261 = vpop.f32.mrb[0].mxu0
        %2262 = vmatprep.mubr.f32.mxu0 0.0
        %2263 = vmatmul.mubr.f32.gmra.mrb[0].mxu0 %v1983
        %v2264 = vpop.f32.mrb[0].mxu0
        %v2265 = vadd.f32 0.0, %v2264
        %v2266 = vpop.f32.mrb[0].mxu0
        %2267 = vmatprep.mubr.f32.mxu0 0.0
        %2268 = vmatmul.mubr.f32.gmra.mrb[0].mxu0 %v1986
        %v2269 = vpop.f32.mrb[0].mxu0
        %v2270 = vadd.f32 0.0, %v2269
        %v2271 = vpop.f32.mrb[0].mxu0
        %2272 = vmatprep.mubr.f32.mxu0 0.0
        %2273 = vmatmul.mubr.f32.gmra.mrb[0].mxu0 %v1989
        %v2274 = vpop.f32.mrb[0].mxu0
        %v2275 = vadd.f32 0.0, %v2274
        %v2276 = vpop.f32.mrb[0].mxu0
        %2277 = vmatprep.mubr.f32.mxu0 0.0
        %2278 = vmatmul.mubr.f32.gmra.mrb[0].mxu0 %v1992
        %v2279 = vpop.f32.mrb[0].mxu0
        %v2280 = vadd.f32 0.0, %v2279
        %v2281 = vpop.f32.mrb[0].mxu0
        %2282 = vmatprep.mubr.f32.mxu0 0.0
        %2283 = vmatmul.mubr.f32.gmra.mrb[0].mxu0 %v1995
        %v2284 = vpop.f32.mrb[0].mxu0
        %v2285 = vadd.f32 0.0, %v2284
        %v2286 = vpop.f32.mrb[0].mxu0
        %2287 = vmatprep.mubr.f32.mxu0 0.0
        %2288 = vmatmul.mubr.f32.gmra.mrb[0].mxu0 %v1998
        %v2289 = vpop.f32.mrb[0].mxu0
        %v2290 = vadd.f32 0.0, %v2289
        %v2291 = vpop.f32.mrb[0].mxu0
        %2292 = vmatprep.mubr.f32.mxu0 0.0
        %2293 = vmatmul.mubr.f32.gmra.mrb[0].mxu0 %v2001
        %v2294 = vpop.f32.mrb[0].mxu0
        %v2295 = vadd.f32 0.0, %v2294
        %v2296 = vpop.f32.mrb[0].mxu0
        %2297 = vmatprep.mubr.f32.mxu0 0.0
        %2298 = vmatmul.mubr.f32.gmra.mrb[0].mxu0 %v2004
        %v2299 = vpop.f32.mrb[0].mxu0
        %v2300 = vadd.f32 0.0, %v2299
        %v2301 = vpop.f32.mrb[0].mxu0
        %2302 = vmatprep.mubr.f32.mxu0 0.0
        %2303 = vmatmul.mubr.f32.gmra.mrb[0].mxu0 %v2007
        %v2304 = vpop.f32.mrb[0].mxu0
        %v2305 = vadd.f32 0.0, %v2304
        %v2306 = vpop.f32.mrb[0].mxu0
        %2307 = vmatprep.mubr.f32.mxu0 0.0
        %2308 = vmatmul.mubr.f32.gmra.mrb[0].mxu0 %v2010
        %v2309 = vpop.f32.mrb[0].mxu0
        %v2310 = vadd.f32 0.0, %v2309
        %v2311 = vpop.f32.mrb[0].mxu0
        %2312 = vmatprep.mubr.f32.mxu0 0.0
        %2313 = vmatmul.mubr.f32.gmra.mrb[0].mxu0 %v2013
        %v2314 = vpop.f32.mrb[0].mxu0
        %v2315 = vadd.f32 0.0, %v2314
        %v2316 = vpop.f32.mrb[0].mxu0
        %2317 = vmatprep.mubr.f32.mxu0 0.0
        %2318 = vmatmul.mubr.f32.gmra.mrb[0].mxu0 %v2016
        %v2319 = vpop.f32.mrb[0].mxu0
        %v2320 = vadd.f32 0.0, %v2319
        %v2321 = vpop.f32.mrb[0].mxu0
        %2322 = vmatprep.mubr.f32.mxu0 0.0
        %2323 = vmatmul.mubr.f32.gmra.mrb[0].mxu0 %v2019
        %v2324 = vpop.f32.mrb[0].mxu0
        %v2325 = vadd.f32 0.0, %v2324
        %v2326 = vpop.f32.mrb[0].mxu0
        %2327 = vmatprep.mubr.f32.mxu0 0.0
        %2328 = vmatmul.mubr.f32.gmra.mrb[0].mxu0 %v2022
        %v2329 = vpop.f32.mrb[0].mxu0
        %v2330 = vadd.f32 0.0, %v2329
        %v2331 = vpop.f32.mrb[0].mxu0
        %2332 = vmatprep.mubr.f32.mxu0 0.0
        %2333 = vmatmul.mubr.f32.gmra.mrb[0].mxu0 %v2025
        %v2334 = vpop.f32.mrb[0].mxu0
        %v2335 = vadd.f32 0.0, %v2334
        %v2336 = vpop.f32.mrb[0].mxu0
        %2337 = vmatprep.mubr.f32.mxu0 0.0
        %2338 = vmatmul.mubr.f32.gmra.mrb[0].mxu0 %v2028
        %v2339 = vpop.f32.mrb[0].mxu0
        %v2340 = vadd.f32 0.0, %v2339
        %v2341 = vpop.f32.mrb[0].mxu0
        %2342 = vmatprep.mubr.f32.mxu0 0.0
        %2343 = vmatmul.mubr.f32.gmra.mrb[0].mxu0 %v2031
        %v2344 = vpop.f32.mrb[0].mxu0
        %v2345 = vadd.f32 0.0, %v2344
        %v2346 = vpop.f32.mrb[0].mxu0
        %2347 = vmatprep.mubr.f32.mxu0 0.0
        %2348 = vmatmul.mubr.f32.gmra.mrb[0].mxu0 %v2034
        %v2349 = vpop.f32.mrb[0].mxu0
        %v2350 = vadd.f32 0.0, %v2349
        %v2351 = vpop.f32.mrb[0].mxu0
        %2352 = vmatprep.mubr.f32.mxu0 0.0
        %2353 = vmatmul.mubr.f32.gmra.mrb[0].mxu0 %v2037
        %v2354 = vpop.f32.mrb[0].mxu0
        %v2355 = vadd.f32 0.0, %v2354
        %v2356 = vpop.f32.mrb[0].mxu0
        %2357 = vmatprep.mubr.f32.mxu0 0.0
        %2358 = vmatmul.mubr.f32.gmra.mrb[0].mxu0 %v2040
        %v2359 = vpop.f32.mrb[0].mxu0
        %v2360 = vadd.f32 0.0, %v2359
        %v2361 = vpop.f32.mrb[0].mxu0
        %2362 = vmatprep.mubr.f32.mxu0 0.0
        %2363 = vmatmul.mubr.f32.gmra.mrb[0].mxu0 %v2043
        %v2364 = vpop.f32.mrb[0].mxu0
        %v2365 = vadd.f32 0.0, %v2364
        %v2366 = vpop.f32.mrb[0].mxu0
        %2367 = vmatprep.mubr.f32.mxu0 0.0
        %2368 = vmatmul.mubr.f32.gmra.mrb[0].mxu0 %v2046
        %v2369 = vpop.f32.mrb[0].mxu0
        %v2370 = vadd.f32 0.0, %v2369
        %v2371 = vpop.f32.mrb[0].mxu0
        %2372 = vmatprep.mubr.f32.mxu0 0.0
        %2373 = vmatmul.mubr.f32.gmra.mrb[0].mxu0 %v2049
        %v2374 = vpop.f32.mrb[0].mxu0
        %v2375 = vadd.f32 0.0, %v2374
        %v2376 = vpop.f32.mrb[0].mxu0
        %2377 = vmatprep.mubr.f32.mxu0 0.0
        %2378 = vmatmul.mubr.f32.gmra.mrb[0].mxu0 %v2052
        %v2379 = vpop.f32.mrb[0].mxu0
        %v2380 = vadd.f32 0.0, %v2379
        %v2381 = vpop.f32.mrb[0].mxu0
        %2382 = vmatprep.mubr.f32.mxu0 0.0
        %2383 = vmatmul.mubr.f32.gmra.mrb[0].mxu0 %v2055
        %v2384 = vpop.f32.mrb[0].mxu0
        %v2385 = vadd.f32 0.0, %v2384
        %v2386 = vpop.f32.mrb[0].mxu0
        %2387 = vmatprep.mubr.f32.mxu0 0.0
        %2388 = vmatmul.mubr.f32.gmra.mrb[0].mxu0 %v2058
        %v2389 = vpop.f32.mrb[0].mxu0
        %v2390 = vadd.f32 0.0, %v2389
        %v2391 = vpop.f32.mrb[0].mxu0
        %2392 = vmatprep.mubr.f32.mxu0 0.0
        %2393 = vmatmul.mubr.f32.gmra.mrb[0].mxu0 %v2061
        %v2394 = vpop.f32.mrb[0].mxu0
        %v2395 = vadd.f32 0.0, %v2394
        %v2396 = vpop.f32.mrb[0].mxu0
        %2397 = vmatprep.mubr.f32.mxu0 0.0
        %2398 = vmatmul.mubr.f32.gmra.mrb[0].mxu0 %v2064
        %v2399 = vpop.f32.mrb[0].mxu0
        %v2400 = vadd.f32 0.0, %v2399
        %v2401 = vpop.f32.mrb[0].mxu0
        %2402 = vmatprep.mubr.f32.mxu0 0.0
        %2403 = vmatmul.mubr.f32.gmra.mrb[0].mxu0 %v2067
        %v2404 = vpop.f32.mrb[0].mxu0
        %v2405 = vadd.f32 0.0, %v2404
        %v2406 = vpop.f32.mrb[0].mxu0
        %2407 = vmatprep.mubr.f32.mxu0 0.0
        %2408 = vmatmul.mubr.f32.gmra.mrb[0].mxu0 %v2070
        %v2409 = vpop.f32.mrb[0].mxu0
        %v2410 = vadd.f32 0.0, %v2409
        %v2411 = vpop.f32.mrb[0].mxu0
        %2412 = vmatprep.mubr.f32.mxu0 0.0
        %2413 = vmatmul.mubr.f32.gmra.mrb[0].mxu0 %v2073
        %v2414 = vpop.f32.mrb[0].mxu0
        %v2415 = vadd.f32 0.0, %v2414
        %v2416 = vpop.f32.mrb[0].mxu0
        %2417 = vmatprep.mubr.f32.mxu0 0.0
        %2418 = vmatmul.mubr.f32.gmra.mrb[0].mxu0 %v2076
        %v2419 = vpop.f32.mrb[0].mxu0
        %v2420 = vadd.f32 0.0, %v2419
        %v2421 = vpop.f32.mrb[0].mxu0
        %2422 = vmatprep.mubr.f32.mxu0 0.0
        %2423 = vmatmul.mubr.f32.gmra.mrb[0].mxu0 %v2079
        %v2424 = vpop.f32.mrb[0].mxu0
        %v2425 = vadd.f32 0.0, %v2424
        %v2426 = vpop.f32.mrb[0].mxu0
        %2427 = vmatprep.mubr.f32.mxu0 0.0
        %2428 = vmatmul.mubr.f32.gmra.mrb[0].mxu0 %v2082
        %v2429 = vpop.f32.mrb[0].mxu0
        %v2430 = vadd.f32 0.0, %v2429
        %v2431 = vpop.f32.mrb[0].mxu0
        %2432 = vmatprep.mubr.f32.mxu0 0.0
        %2433 = vmatmul.mubr.f32.gmra.mrb[0].mxu0 %v2085
        %v2434 = vpop.f32.mrb[0].mxu0
        %v2435 = vadd.f32 0.0, %v2434
        %v2436 = vpop.f32.mrb[0].mxu0
        %2437 = vmatprep.mubr.f32.mxu0 0.0
        %2438 = vmatmul.mubr.f32.gmra.mrb[0].mxu0 %v2088
        %v2439 = vpop.f32.mrb[0].mxu0
        %v2440 = vadd.f32 0.0, %v2439
        %v2441 = vpop.f32.mrb[0].mxu0
        %2442 = vmatprep.mubr.f32.mxu0 0.0
        %2443 = vmatmul.mubr.f32.gmra.mrb[0].mxu0 %v2091
        %v2444 = vpop.f32.mrb[0].mxu0
        %v2445 = vadd.f32 0.0, %v2444
        %v2446 = vpop.f32.mrb[0].mxu0
        %2447 = vmatprep.mubr.f32.mxu0 0.0
        %2448 = vmatmul.mubr.f32.gmra.mrb[0].mxu0 %v2094
        %v2449 = vpop.f32.mrb[0].mxu0
        %v2450 = vadd.f32 0.0, %v2449
        %v2451 = vpop.f32.mrb[0].mxu0
        %2452 = vmatprep.mubr.f32.mxu0 0.0
        %2453 = vmatmul.mubr.f32.gmra.mrb[0].mxu0 %v2097
        %v2454 = vpop.f32.mrb[0].mxu0
        %v2455 = vadd.f32 0.0, %v2454
        %v2456 = vpop.f32.mrb[0].mxu0
        %2457 = vmatprep.mubr.f32.mxu0 0.0
        %2458 = vmatmul.mubr.f32.gmra.mrb[0].mxu0 %v2100
        %v2459 = vpop.f32.mrb[0].mxu0
        %v2460 = vadd.f32 0.0, %v2459
        %v2461 = vpop.f32.mrb[0].mxu0
        %2462 = vmatprep.mubr.f32.mxu0 0.0
        %2463 = vmatmul.mubr.f32.gmra.mrb[0].mxu0 %v2103
        %v2464 = vpop.f32.mrb[0].mxu0
        %v2465 = vadd.f32 0.0, %v2464
        %v2466 = vpop.f32.mrb[0].mxu0
        %2467 = vmatprep.mubr.f32.mxu0 0.0
        %2468 = vmatmul.mubr.f32.gmra.mrb[0].mxu0 %v2106
        %v2469 = vpop.f32.mrb[0].mxu0
        %v2470 = vadd.f32 0.0, %v2469
        %v2471 = vpop.f32.mrb[0].mxu0
        %2472 = vmatprep.mubr.f32.mxu0 0.0
        %2473 = vmatmul.mubr.f32.gmra.mrb[0].mxu0 %v2109
        %v2474 = vpop.f32.mrb[0].mxu0
        %v2475 = vadd.f32 0.0, %v2474
        %v2476 = vpop.f32.mrb[0].mxu0
        %2477 = vmatprep.mubr.f32.mxu0 0.0
        %2478 = vmatmul.mubr.f32.gmra.mrb[0].mxu0 %v2112
        %v2479 = vpop.f32.mrb[0].mxu0
        %v2480 = vadd.f32 0.0, %v2479
        %v2481 = vpop.f32.mrb[0].mxu0
        %2482 = vmatprep.mubr.f32.mxu0 0.0
        %2483 = vmatmul.mubr.f32.gmra.mrb[0].mxu0 %v2115
        %v2484 = vpop.f32.mrb[0].mxu0
        %v2485 = vadd.f32 0.0, %v2484
        %v2486 = vpop.f32.mrb[0].mxu0
        %2487 = vmatprep.mubr.f32.mxu0 0.0
        %2488 = vmatmul.mubr.f32.gmra.mrb[0].mxu0 %v2118
        %v2489 = vpop.f32.mrb[0].mxu0
        %v2490 = vadd.f32 0.0, %v2489
        %v2491 = vpop.f32.mrb[0].mxu0
        %2492 = vmatprep.mubr.f32.mxu0 0.0
        %2493 = vmatmul.mubr.f32.gmra.mrb[0].mxu0 %v2121
        %v2494 = vpop.f32.mrb[0].mxu0
        %v2495 = vadd.f32 0.0, %v2494
        %v2496 = vpop.f32.mrb[0].mxu0
        %2497 = vmatprep.mubr.f32.mxu0 0.0
        %2498 = vmatmul.mubr.f32.gmra.mrb[0].mxu0 %v2124
        %v2499 = vpop.f32.mrb[0].mxu0
        %v2500 = vadd.f32 0.0, %v2499
        %v2501 = vpop.f32.mrb[0].mxu0
        %2502 = vmatprep.mubr.f32.mxu0 0.0
        %2503 = vmatmul.mubr.f32.gmra.mrb[0].mxu0 %v2127
        %v2504 = vpop.f32.mrb[0].mxu0
        %v2505 = vadd.f32 0.0, %v2504
        %v2506 = vpop.f32.mrb[0].mxu0
        %2507 = vmatprep.mubr.f32.mxu0 0.0
        %2508 = vmatmul.mubr.f32.gmra.mrb[0].mxu0 %v2130
        %v2509 = vpop.f32.mrb[0].mxu0
        %v2510 = vadd.f32 0.0, %v2509
        %v2511 = vpop.f32.mrb[0].mxu0
        %2512 = vmatprep.mubr.f32.mxu0 0.0
        %2513 = vmatmul.mubr.f32.gmra.mrb[0].mxu0 %v2133
        %v2514 = vpop.f32.mrb[0].mxu0
        %v2515 = vadd.f32 0.0, %v2514
        %v2516 = vpop.f32.mrb[0].mxu0
        %2517 = vmatprep.mubr.f32.mxu0 0.0
        %2518 = vmatmul.mubr.f32.gmra.mrb[0].mxu0 %v2136
        %v2519 = vpop.f32.mrb[0].mxu0
        %v2520 = vadd.f32 0.0, %v2519
        %v2521 = vpop.f32.mrb[0].mxu0
        %2522 = vmatprep.mubr.f32.mxu0 0.0
        %2523 = vmatmul.mubr.f32.gmra.mrb[0].mxu0 %v2139
        %v2524 = vpop.f32.mrb[0].mxu0
        %v2525 = vadd.f32 0.0, %v2524
        %v2526 = vpop.f32.mrb[0].mxu0
        %2527 = vmatprep.mubr.f32.mxu0 0.0
        %2528 = vmatmul.mubr.f32.gmra.mrb[0].mxu0 %v2142
        %v2529 = vpop.f32.mrb[0].mxu0
        %v2530 = vadd.f32 0.0, %v2529
        %v2531 = vpop.f32.mrb[0].mxu0
        %2532 = vdwg.mxu0
        %v2533 = vld [vmem:[#allocation14] sm:$0x1]
        %v2535 = vlaneseq
        %v2536 = vshrl.u32 %v2535, 7
        %v2537 = vsub.s32 0, %v2536
        %v2538 = vrot.slane %v2533, %v2537
        %v2540 = vmul.f32 %v2215, %v2538
        %v2541 = vmul.f32 %v2220, %v2538
        %v2542 = vmul.f32 %v2225, %v2538
        %v2543 = vmul.f32 %v2230, %v2538
        %v2544 = vmul.f32 %v2235, %v2538
        %v2545 = vmul.f32 %v2240, %v2538
        %v2546 = vmul.f32 %v2245, %v2538
        %v2547 = vmul.f32 %v2250, %v2538
        %v2548 = vmul.f32 %v2255, %v2538
        %v2549 = vmul.f32 %v2260, %v2538
        %v2550 = vmul.f32 %v2265, %v2538
        %v2551 = vmul.f32 %v2270, %v2538
        %v2552 = vmul.f32 %v2275, %v2538
        %v2553 = vmul.f32 %v2280, %v2538
        %v2554 = vmul.f32 %v2285, %v2538
        %v2555 = vmul.f32 %v2290, %v2538
        %v2556 = vmul.f32 %v2295, %v2538
        %v2557 = vmul.f32 %v2300, %v2538
        %v2558 = vmul.f32 %v2305, %v2538
        %v2559 = vmul.f32 %v2310, %v2538
        %v2560 = vmul.f32 %v2315, %v2538
        %v2561 = vmul.f32 %v2320, %v2538
        %v2562 = vmul.f32 %v2325, %v2538
        %v2563 = vmul.f32 %v2330, %v2538
        %v2564 = vmul.f32 %v2335, %v2538
        %v2565 = vmul.f32 %v2340, %v2538
        %v2566 = vmul.f32 %v2345, %v2538
        %v2567 = vmul.f32 %v2350, %v2538
        %v2568 = vmul.f32 %v2355, %v2538
        %v2569 = vmul.f32 %v2360, %v2538
        %v2570 = vmul.f32 %v2365, %v2538
        %v2571 = vmul.f32 %v2370, %v2538
        %v2572 = vmul.f32 %v2375, %v2538
        %v2573 = vmul.f32 %v2380, %v2538
        %v2574 = vmul.f32 %v2385, %v2538
        %v2575 = vmul.f32 %v2390, %v2538
        %v2576 = vmul.f32 %v2395, %v2538
        %v2577 = vmul.f32 %v2400, %v2538
        %v2578 = vmul.f32 %v2405, %v2538
        %v2579 = vmul.f32 %v2410, %v2538
        %v2580 = vmul.f32 %v2415, %v2538
        %v2581 = vmul.f32 %v2420, %v2538
        %v2582 = vmul.f32 %v2425, %v2538
        %v2583 = vmul.f32 %v2430, %v2538
        %v2584 = vmul.f32 %v2435, %v2538
        %v2585 = vmul.f32 %v2440, %v2538
        %v2586 = vmul.f32 %v2445, %v2538
        %v2587 = vmul.f32 %v2450, %v2538
        %v2588 = vmul.f32 %v2455, %v2538
        %v2589 = vmul.f32 %v2460, %v2538
        %v2590 = vmul.f32 %v2465, %v2538
        %v2591 = vmul.f32 %v2470, %v2538
        %v2592 = vmul.f32 %v2475, %v2538
        %v2593 = vmul.f32 %v2480, %v2538
        %v2594 = vmul.f32 %v2485, %v2538
        %v2595 = vmul.f32 %v2490, %v2538
        %v2596 = vmul.f32 %v2495, %v2538
        %v2597 = vmul.f32 %v2500, %v2538
        %v2598 = vmul.f32 %v2505, %v2538
        %v2599 = vmul.f32 %v2510, %v2538
        %v2600 = vmul.f32 %v2515, %v2538
        %v2601 = vmul.f32 %v2520, %v2538
        %v2602 = vmul.f32 %v2525, %v2538
        %v2603 = vmul.f32 %v2530, %v2538
        %v2604 = vld [vmem:[#allocation15] sm:$0x1]
        %v2606 = vlaneseq
        %v2607 = vshrl.u32 %v2606, 7
        %v2608 = vsub.s32 0, %v2607
        %v2609 = vrot.slane %v2604, %v2608
        %v2611 = vadd.f32 %v2540, %v2609
        %v2612 = vadd.f32 %v2541, %v2609
        %v2613 = vadd.f32 %v2542, %v2609
        %v2614 = vadd.f32 %v2543, %v2609
        %v2615 = vadd.f32 %v2544, %v2609
        %v2616 = vadd.f32 %v2545, %v2609
        %v2617 = vadd.f32 %v2546, %v2609
        %v2618 = vadd.f32 %v2547, %v2609
        %v2619 = vadd.f32 %v2548, %v2609
        %v2620 = vadd.f32 %v2549, %v2609
        %v2621 = vadd.f32 %v2550, %v2609
        %v2622 = vadd.f32 %v2551, %v2609
        %v2623 = vadd.f32 %v2552, %v2609
        %v2624 = vadd.f32 %v2553, %v2609
        %v2625 = vadd.f32 %v2554, %v2609
        %v2626 = vadd.f32 %v2555, %v2609
        %v2627 = vadd.f32 %v2556, %v2609
        %v2628 = vadd.f32 %v2557, %v2609
        %v2629 = vadd.f32 %v2558, %v2609
        %v2630 = vadd.f32 %v2559, %v2609
        %v2631 = vadd.f32 %v2560, %v2609
        %v2632 = vadd.f32 %v2561, %v2609
        %v2633 = vadd.f32 %v2562, %v2609
        %v2634 = vadd.f32 %v2563, %v2609
        %v2635 = vadd.f32 %v2564, %v2609
        %v2636 = vadd.f32 %v2565, %v2609
        %v2637 = vadd.f32 %v2566, %v2609
        %v2638 = vadd.f32 %v2567, %v2609
        %v2639 = vadd.f32 %v2568, %v2609
        %v2640 = vadd.f32 %v2569, %v2609
        %v2641 = vadd.f32 %v2570, %v2609
        %v2642 = vadd.f32 %v2571, %v2609
        %v2643 = vadd.f32 %v2572, %v2609
        %v2644 = vadd.f32 %v2573, %v2609
        %v2645 = vadd.f32 %v2574, %v2609
        %v2646 = vadd.f32 %v2575, %v2609
        %v2647 = vadd.f32 %v2576, %v2609
        %v2648 = vadd.f32 %v2577, %v2609
        %v2649 = vadd.f32 %v2578, %v2609
        %v2650 = vadd.f32 %v2579, %v2609
        %v2651 = vadd.f32 %v2580, %v2609
        %v2652 = vadd.f32 %v2581, %v2609
        %v2653 = vadd.f32 %v2582, %v2609
        %v2654 = vadd.f32 %v2583, %v2609
        %v2655 = vadd.f32 %v2584, %v2609
        %v2656 = vadd.f32 %v2585, %v2609
        %v2657 = vadd.f32 %v2586, %v2609
        %v2658 = vadd.f32 %v2587, %v2609
        %v2659 = vadd.f32 %v2588, %v2609
        %v2660 = vadd.f32 %v2589, %v2609
        %v2661 = vadd.f32 %v2590, %v2609
        %v2662 = vadd.f32 %v2591, %v2609
        %v2663 = vadd.f32 %v2592, %v2609
        %v2664 = vadd.f32 %v2593, %v2609
        %v2665 = vadd.f32 %v2594, %v2609
        %v2666 = vadd.f32 %v2595, %v2609
        %v2667 = vadd.f32 %v2596, %v2609
        %v2668 = vadd.f32 %v2597, %v2609
        %v2669 = vadd.f32 %v2598, %v2609
        %v2670 = vadd.f32 %v2599, %v2609
        %v2671 = vadd.f32 %v2600, %v2609
        %v2672 = vadd.f32 %v2601, %v2609
        %v2673 = vadd.f32 %v2602, %v2609
        %v2674 = vadd.f32 %v2603, %v2609
        %vm2675 = vcmp.gt.f32.partialorder %v2611, 0.0
        %vm2676 = vcmp.gt.f32.partialorder %v2612, 0.0
        %vm2677 = vcmp.gt.f32.partialorder %v2613, 0.0
        %vm2678 = vcmp.gt.f32.partialorder %v2614, 0.0
        %vm2679 = vcmp.gt.f32.partialorder %v2615, 0.0
        %vm2680 = vcmp.gt.f32.partialorder %v2616, 0.0
        %vm2681 = vcmp.gt.f32.partialorder %v2617, 0.0
        %vm2682 = vcmp.gt.f32.partialorder %v2618, 0.0
        %vm2683 = vcmp.gt.f32.partialorder %v2619, 0.0
        %vm2684 = vcmp.gt.f32.partialorder %v2620, 0.0
        %vm2685 = vcmp.gt.f32.partialorder %v2621, 0.0
        %vm2686 = vcmp.gt.f32.partialorder %v2622, 0.0
        %vm2687 = vcmp.gt.f32.partialorder %v2623, 0.0
        %vm2688 = vcmp.gt.f32.partialorder %v2624, 0.0
        %vm2689 = vcmp.gt.f32.partialorder %v2625, 0.0
        %vm2690 = vcmp.gt.f32.partialorder %v2626, 0.0
        %vm2691 = vcmp.gt.f32.partialorder %v2627, 0.0
        %vm2692 = vcmp.gt.f32.partialorder %v2628, 0.0
        %vm2693 = vcmp.gt.f32.partialorder %v2629, 0.0
        %vm2694 = vcmp.gt.f32.partialorder %v2630, 0.0
        %vm2695 = vcmp.gt.f32.partialorder %v2631, 0.0
        %vm2696 = vcmp.gt.f32.partialorder %v2632, 0.0
        %vm2697 = vcmp.gt.f32.partialorder %v2633, 0.0
        %vm2698 = vcmp.gt.f32.partialorder %v2634, 0.0
        %vm2699 = vcmp.gt.f32.partialorder %v2635, 0.0
        %vm2700 = vcmp.gt.f32.partialorder %v2636, 0.0
        %vm2701 = vcmp.gt.f32.partialorder %v2637, 0.0
        %vm2702 = vcmp.gt.f32.partialorder %v2638, 0.0
        %vm2703 = vcmp.gt.f32.partialorder %v2639, 0.0
        %vm2704 = vcmp.gt.f32.partialorder %v2640, 0.0
        %vm2705 = vcmp.gt.f32.partialorder %v2641, 0.0
        %vm2706 = vcmp.gt.f32.partialorder %v2642, 0.0
        %vm2707 = vcmp.gt.f32.partialorder %v2643, 0.0
        %vm2708 = vcmp.gt.f32.partialorder %v2644, 0.0
        %vm2709 = vcmp.gt.f32.partialorder %v2645, 0.0
        %vm2710 = vcmp.gt.f32.partialorder %v2646, 0.0
        %vm2711 = vcmp.gt.f32.partialorder %v2647, 0.0
        %vm2712 = vcmp.gt.f32.partialorder %v2648, 0.0
        %vm2713 = vcmp.gt.f32.partialorder %v2649, 0.0
        %vm2714 = vcmp.gt.f32.partialorder %v2650, 0.0
        %vm2715 = vcmp.gt.f32.partialorder %v2651, 0.0
        %vm2716 = vcmp.gt.f32.partialorder %v2652, 0.0
        %vm2717 = vcmp.gt.f32.partialorder %v2653, 0.0
        %vm2718 = vcmp.gt.f32.partialorder %v2654, 0.0
        %vm2719 = vcmp.gt.f32.partialorder %v2655, 0.0
        %vm2720 = vcmp.gt.f32.partialorder %v2656, 0.0
        %vm2721 = vcmp.gt.f32.partialorder %v2657, 0.0
        %vm2722 = vcmp.gt.f32.partialorder %v2658, 0.0
        %vm2723 = vcmp.gt.f32.partialorder %v2659, 0.0
        %vm2724 = vcmp.gt.f32.partialorder %v2660, 0.0
        %vm2725 = vcmp.gt.f32.partialorder %v2661, 0.0
        %vm2726 = vcmp.gt.f32.partialorder %v2662, 0.0
        %vm2727 = vcmp.gt.f32.partialorder %v2663, 0.0
        %vm2728 = vcmp.gt.f32.partialorder %v2664, 0.0
        %vm2729 = vcmp.gt.f32.partialorder %v2665, 0.0
        %vm2730 = vcmp.gt.f32.partialorder %v2666, 0.0
        %vm2731 = vcmp.gt.f32.partialorder %v2667, 0.0
        %vm2732 = vcmp.gt.f32.partialorder %v2668, 0.0
        %vm2733 = vcmp.gt.f32.partialorder %v2669, 0.0
        %vm2734 = vcmp.gt.f32.partialorder %v2670, 0.0
        %vm2735 = vcmp.gt.f32.partialorder %v2671, 0.0
        %vm2736 = vcmp.gt.f32.partialorder %v2672, 0.0
        %vm2737 = vcmp.gt.f32.partialorder %v2673, 0.0
        %vm2738 = vcmp.gt.f32.partialorder %v2674, 0.0
        %s2739 = sld [smem:[#allocation2 + $0x2]]
        %v2740 = vstv %s2739
        %v2741 = vmul.f32 %v2740, %v2611
        %v2742 = vmul.f32 %v2740, %v2612
        %v2743 = vmul.f32 %v2740, %v2613
        %v2744 = vmul.f32 %v2740, %v2614
        %v2745 = vmul.f32 %v2740, %v2615
        %v2746 = vmul.f32 %v2740, %v2616
        %v2747 = vmul.f32 %v2740, %v2617
        %v2748 = vmul.f32 %v2740, %v2618
        %v2749 = vmul.f32 %v2740, %v2619
        %v2750 = vmul.f32 %v2740, %v2620
        %v2751 = vmul.f32 %v2740, %v2621
        %v2752 = vmul.f32 %v2740, %v2622
        %v2753 = vmul.f32 %v2740, %v2623
        %v2754 = vmul.f32 %v2740, %v2624
        %v2755 = vmul.f32 %v2740, %v2625
        %v2756 = vmul.f32 %v2740, %v2626
        %v2757 = vmul.f32 %v2740, %v2627
        %v2758 = vmul.f32 %v2740, %v2628
        %v2759 = vmul.f32 %v2740, %v2629
        %v2760 = vmul.f32 %v2740, %v2630
        %v2761 = vmul.f32 %v2740, %v2631
        %v2762 = vmul.f32 %v2740, %v2632
        %v2763 = vmul.f32 %v2740, %v2633
        %v2764 = vmul.f32 %v2740, %v2634
        %v2765 = vmul.f32 %v2740, %v2635
        %v2766 = vmul.f32 %v2740, %v2636
        %v2767 = vmul.f32 %v2740, %v2637
        %v2768 = vmul.f32 %v2740, %v2638
        %v2769 = vmul.f32 %v2740, %v2639
        %v2770 = vmul.f32 %v2740, %v2640
        %v2771 = vmul.f32 %v2740, %v2641
        %v2772 = vmul.f32 %v2740, %v2642
        %v2773 = vmul.f32 %v2740, %v2643
        %v2774 = vmul.f32 %v2740, %v2644
        %v2775 = vmul.f32 %v2740, %v2645
        %v2776 = vmul.f32 %v2740, %v2646
        %v2777 = vmul.f32 %v2740, %v2647
        %v2778 = vmul.f32 %v2740, %v2648
        %v2779 = vmul.f32 %v2740, %v2649
        %v2780 = vmul.f32 %v2740, %v2650
        %v2781 = vmul.f32 %v2740, %v2651
        %v2782 = vmul.f32 %v2740, %v2652
        %v2783 = vmul.f32 %v2740, %v2653
        %v2784 = vmul.f32 %v2740, %v2654
        %v2785 = vmul.f32 %v2740, %v2655
        %v2786 = vmul.f32 %v2740, %v2656
        %v2787 = vmul.f32 %v2740, %v2657
        %v2788 = vmul.f32 %v2740, %v2658
        %v2789 = vmul.f32 %v2740, %v2659
        %v2790 = vmul.f32 %v2740, %v2660
        %v2791 = vmul.f32 %v2740, %v2661
        %v2792 = vmul.f32 %v2740, %v2662
        %v2793 = vmul.f32 %v2740, %v2663
        %v2794 = vmul.f32 %v2740, %v2664
        %v2795 = vmul.f32 %v2740, %v2665
        %v2796 = vmul.f32 %v2740, %v2666
        %v2797 = vmul.f32 %v2740, %v2667
        %v2798 = vmul.f32 %v2740, %v2668
        %v2799 = vmul.f32 %v2740, %v2669
        %v2800 = vmul.f32 %v2740, %v2670
        %v2801 = vmul.f32 %v2740, %v2671
        %v2802 = vmul.f32 %v2740, %v2672
        %v2803 = vmul.f32 %v2740, %v2673
        %v2804 = vmul.f32 %v2740, %v2674
        %v2805 = vsel %vm2675, %v2611, %v2741
        %v2806 = vsel %vm2676, %v2612, %v2742
        %v2807 = vsel %vm2677, %v2613, %v2743
        %v2808 = vsel %vm2678, %v2614, %v2744
        %v2809 = vsel %vm2679, %v2615, %v2745
        %v2810 = vsel %vm2680, %v2616, %v2746
        %v2811 = vsel %vm2681, %v2617, %v2747
        %v2812 = vsel %vm2682, %v2618, %v2748
        %v2813 = vsel %vm2683, %v2619, %v2749
        %v2814 = vsel %vm2684, %v2620, %v2750
        %v2815 = vsel %vm2685, %v2621, %v2751
        %v2816 = vsel %vm2686, %v2622, %v2752
        %v2817 = vsel %vm2687, %v2623, %v2753
        %v2818 = vsel %vm2688, %v2624, %v2754
        %v2819 = vsel %vm2689, %v2625, %v2755
        %v2820 = vsel %vm2690, %v2626, %v2756
        %v2821 = vsel %vm2691, %v2627, %v2757
        %v2822 = vsel %vm2692, %v2628, %v2758
        %v2823 = vsel %vm2693, %v2629, %v2759
        %v2824 = vsel %vm2694, %v2630, %v2760
        %v2825 = vsel %vm2695, %v2631, %v2761
        %v2826 = vsel %vm2696, %v2632, %v2762
        %v2827 = vsel %vm2697, %v2633, %v2763
        %v2828 = vsel %vm2698, %v2634, %v2764
        %v2829 = vsel %vm2699, %v2635, %v2765
        %v2830 = vsel %vm2700, %v2636, %v2766
        %v2831 = vsel %vm2701, %v2637, %v2767
        %v2832 = vsel %vm2702, %v2638, %v2768
        %v2833 = vsel %vm2703, %v2639, %v2769
        %v2834 = vsel %vm2704, %v2640, %v2770
        %v2835 = vsel %vm2705, %v2641, %v2771
        %v2836 = vsel %vm2706, %v2642, %v2772
        %v2837 = vsel %vm2707, %v2643, %v2773
        %v2838 = vsel %vm2708, %v2644, %v2774
        %v2839 = vsel %vm2709, %v2645, %v2775
        %v2840 = vsel %vm2710, %v2646, %v2776
        %v2841 = vsel %vm2711, %v2647, %v2777
        %v2842 = vsel %vm2712, %v2648, %v2778
        %v2843 = vsel %vm2713, %v2649, %v2779
        %v2844 = vsel %vm2714, %v2650, %v2780
        %v2845 = vsel %vm2715, %v2651, %v2781
        %v2846 = vsel %vm2716, %v2652, %v2782
        %v2847 = vsel %vm2717, %v2653, %v2783
        %v2848 = vsel %vm2718, %v2654, %v2784
        %v2849 = vsel %vm2719, %v2655, %v2785
        %v2850 = vsel %vm2720, %v2656, %v2786
        %v2851 = vsel %vm2721, %v2657, %v2787
        %v2852 = vsel %vm2722, %v2658, %v2788
        %v2853 = vsel %vm2723, %v2659, %v2789
        %v2854 = vsel %vm2724, %v2660, %v2790
        %v2855 = vsel %vm2725, %v2661, %v2791
        %v2856 = vsel %vm2726, %v2662, %v2792
        %v2857 = vsel %vm2727, %v2663, %v2793
        %v2858 = vsel %vm2728, %v2664, %v2794
        %v2859 = vsel %vm2729, %v2665, %v2795
        %v2860 = vsel %vm2730, %v2666, %v2796
        %v2861 = vsel %vm2731, %v2667, %v2797
        %v2862 = vsel %vm2732, %v2668, %v2798
        %v2863 = vsel %vm2733, %v2669, %v2799
        %v2864 = vsel %vm2734, %v2670, %v2800
        %v2865 = vsel %vm2735, %v2671, %v2801
        %v2866 = vsel %vm2736, %v2672, %v2802
        %v2867 = vsel %vm2737, %v2673, %v2803
        %v2868 = vsel %vm2738, %v2674, %v2804
        %2869 = vst.msk [vmem:[%s627] sm:$0xff] %vm1036, %v2805
        %2870 = vst.msk [vmem:[%s627 + $0x8] sm:$0xff] %vm1036, %v2806
        %2871 = vst.msk [vmem:[%s627 + $0x10] sm:$0xff] %vm1036, %v2807
        %2872 = vst.msk [vmem:[%s627 + $0x18] sm:$0xff] %vm1036, %v2808
        %2873 = vst.msk [vmem:[%s627 + $0x20] sm:$0xff] %vm1036, %v2809
        %2874 = vst.msk [vmem:[%s627 + $0x28] sm:$0xff] %vm1036, %v2810
        %2875 = vst.msk [vmem:[%s627 + $0x30] sm:$0xff] %vm1036, %v2811
        %2876 = vst.msk [vmem:[%s627 + $0x38] sm:$0xff] %vm1036, %v2812
        %2877 = vst.msk [vmem:[%s627 + $0x40] sm:$0xff] %vm1036, %v2813
        %2878 = vst.msk [vmem:[%s627 + $0x48] sm:$0xff] %vm1036, %v2814
        %2879 = vst.msk [vmem:[%s627 + $0x50] sm:$0xff] %vm1036, %v2815
        %2880 = vst.msk [vmem:[%s627 + $0x58] sm:$0xff] %vm1036, %v2816
        %2881 = vst.msk [vmem:[%s627 + $0x60] sm:$0xff] %vm1036, %v2817
        %2882 = vst.msk [vmem:[%s627 + $0x68] sm:$0xff] %vm1036, %v2818
        %2883 = vst.msk [vmem:[%s627 + $0x70] sm:$0xff] %vm1036, %v2819
        %2884 = vst.msk [vmem:[%s627 + $0x78] sm:$0xff] %vm1036, %v2820
        %2885 = vst.msk [vmem:[%s627 + $0x80] sm:$0xff] %vm1036, %v2821
        %2886 = vst.msk [vmem:[%s627 + $0x88] sm:$0xff] %vm1036, %v2822
        %2887 = vst.msk [vmem:[%s627 + $0x90] sm:$0xff] %vm1036, %v2823
        %2888 = vst.msk [vmem:[%s627 + $0x98] sm:$0xff] %vm1036, %v2824
        %2889 = vst.msk [vmem:[%s627 + $0xa0] sm:$0xff] %vm1036, %v2825
        %2890 = vst.msk [vmem:[%s627 + $0xa8] sm:$0xff] %vm1036, %v2826
        %2891 = vst.msk [vmem:[%s627 + $0xb0] sm:$0xff] %vm1036, %v2827
        %2892 = vst.msk [vmem:[%s627 + $0xb8] sm:$0xff] %vm1036, %v2828
        %2893 = vst.msk [vmem:[%s627 + $0xc0] sm:$0xff] %vm1036, %v2829
        %2894 = vst.msk [vmem:[%s627 + $0xc8] sm:$0xff] %vm1036, %v2830
        %2895 = vst.msk [vmem:[%s627 + $0xd0] sm:$0xff] %vm1036, %v2831
        %2896 = vst.msk [vmem:[%s627 + $0xd8] sm:$0xff] %vm1036, %v2832
        %2897 = vst.msk [vmem:[%s627 + $0xe0] sm:$0xff] %vm1036, %v2833
        %2898 = vst.msk [vmem:[%s627 + $0xe8] sm:$0xff] %vm1036, %v2834
        %2899 = vst.msk [vmem:[%s627 + $0xf0] sm:$0xff] %vm1036, %v2835
        %2900 = vst.msk [vmem:[%s627 + $0xf8] sm:$0xff] %vm1036, %v2836
        %2901 = vst.msk [vmem:[%s627 + $0x100] sm:$0xff] %vm1036, %v2837
        %2902 = vst.msk [vmem:[%s627 + $0x108] sm:$0xff] %vm1036, %v2838
        %2903 = vst.msk [vmem:[%s627 + $0x110] sm:$0xff] %vm1036, %v2839
        %2904 = vst.msk [vmem:[%s627 + $0x118] sm:$0xff] %vm1036, %v2840
        %2905 = vst.msk [vmem:[%s627 + $0x120] sm:$0xff] %vm1036, %v2841
        %2906 = vst.msk [vmem:[%s627 + $0x128] sm:$0xff] %vm1036, %v2842
        %2907 = vst.msk [vmem:[%s627 + $0x130] sm:$0xff] %vm1036, %v2843
        %2908 = vst.msk [vmem:[%s627 + $0x138] sm:$0xff] %vm1036, %v2844
        %2909 = vst.msk [vmem:[%s627 + $0x140] sm:$0xff] %vm1036, %v2845
        %2910 = vst.msk [vmem:[%s627 + $0x148] sm:$0xff] %vm1036, %v2846
        %2911 = vst.msk [vmem:[%s627 + $0x150] sm:$0xff] %vm1036, %v2847
        %2912 = vst.msk [vmem:[%s627 + $0x158] sm:$0xff] %vm1036, %v2848
        %2913 = vst.msk [vmem:[%s627 + $0x160] sm:$0xff] %vm1036, %v2849
        %2914 = vst.msk [vmem:[%s627 + $0x168] sm:$0xff] %vm1036, %v2850
        %2915 = vst.msk [vmem:[%s627 + $0x170] sm:$0xff] %vm1036, %v2851
        %2916 = vst.msk [vmem:[%s627 + $0x178] sm:$0xff] %vm1036, %v2852
        %2917 = vst.msk [vmem:[%s627 + $0x180] sm:$0xff] %vm1036, %v2853
        %2918 = vst.msk [vmem:[%s627 + $0x188] sm:$0xff] %vm1036, %v2854
        %2919 = vst.msk [vmem:[%s627 + $0x190] sm:$0xff] %vm1036, %v2855
        %2920 = vst.msk [vmem:[%s627 + $0x198] sm:$0xff] %vm1036, %v2856
        %2921 = vst.msk [vmem:[%s627 + $0x1a0] sm:$0xff] %vm1036, %v2857
        %2922 = vst.msk [vmem:[%s627 + $0x1a8] sm:$0xff] %vm1036, %v2858
        %2923 = vst.msk [vmem:[%s627 + $0x1b0] sm:$0xff] %vm1036, %v2859
        %2924 = vst.msk [vmem:[%s627 + $0x1b8] sm:$0xff] %vm1036, %v2860
        %2925 = vst.msk [vmem:[%s627 + $0x1c0] sm:$0xff] %vm1036, %v2861
        %2926 = vst.msk [vmem:[%s627 + $0x1c8] sm:$0xff] %vm1036, %v2862
        %2927 = vst.msk [vmem:[%s627 + $0x1d0] sm:$0xff] %vm1036, %v2863
        %2928 = vst.msk [vmem:[%s627 + $0x1d8] sm:$0xff] %vm1036, %v2864
        %2929 = vst.msk [vmem:[%s627 + $0x1e0] sm:$0xff] %vm1036, %v2865
        %2930 = vst.msk [vmem:[%s627 + $0x1e8] sm:$0xff] %vm1036, %v2866
        %2931 = vst.msk [vmem:[%s627 + $0x1f0] sm:$0xff] %vm1036, %v2867
        %2932 = vst.msk [vmem:[%s627 + $0x1f8] sm:$0xff] %vm1036, %v2868
        %v2933 = vld [vmem:[#allocation17] sm:$0x1]
        %v2935 = vlaneseq
        %v2936 = vshrl.u32 %v2935, 7
        %v2937 = vsub.s32 0, %v2936
        %v2938 = vrot.slane %v2933, %v2937
        %v2940 = vmul.f32 %v635, %v2938
        %v2941 = vmul.f32 %v636, %v2938
        %v2942 = vmul.f32 %v637, %v2938
        %v2943 = vmul.f32 %v638, %v2938
        %v2944 = vmul.f32 %v639, %v2938
        %v2945 = vmul.f32 %v640, %v2938
        %v2946 = vmul.f32 %v641, %v2938
        %v2947 = vmul.f32 %v642, %v2938
        %v2948 = vmul.f32 %v643, %v2938
        %v2949 = vmul.f32 %v644, %v2938
        %v2950 = vmul.f32 %v645, %v2938
        %v2951 = vmul.f32 %v646, %v2938
        %v2952 = vmul.f32 %v647, %v2938
        %v2953 = vmul.f32 %v648, %v2938
        %v2954 = vmul.f32 %v649, %v2938
        %v2955 = vmul.f32 %v650, %v2938
        %v2956 = vmul.f32 %v651, %v2938
        %v2957 = vmul.f32 %v652, %v2938
        %v2958 = vmul.f32 %v653, %v2938
        %v2959 = vmul.f32 %v654, %v2938
        %v2960 = vmul.f32 %v655, %v2938
        %v2961 = vmul.f32 %v656, %v2938
        %v2962 = vmul.f32 %v657, %v2938
        %v2963 = vmul.f32 %v658, %v2938
        %v2964 = vmul.f32 %v659, %v2938
        %v2965 = vmul.f32 %v660, %v2938
        %v2966 = vmul.f32 %v661, %v2938
        %v2967 = vmul.f32 %v662, %v2938
        %v2968 = vmul.f32 %v663, %v2938
        %v2969 = vmul.f32 %v664, %v2938
        %v2970 = vmul.f32 %v665, %v2938
        %v2971 = vmul.f32 %v666, %v2938
        %v2972 = vmul.f32 %v667, %v2938
        %v2973 = vmul.f32 %v668, %v2938
        %v2974 = vmul.f32 %v669, %v2938
        %v2975 = vmul.f32 %v670, %v2938
        %v2976 = vmul.f32 %v671, %v2938
        %v2977 = vmul.f32 %v672, %v2938
        %v2978 = vmul.f32 %v673, %v2938
        %v2979 = vmul.f32 %v674, %v2938
        %v2980 = vmul.f32 %v675, %v2938
        %v2981 = vmul.f32 %v676, %v2938
        %v2982 = vmul.f32 %v677, %v2938
        %v2983 = vmul.f32 %v678, %v2938
        %v2984 = vmul.f32 %v679, %v2938
        %v2985 = vmul.f32 %v680, %v2938
        %v2986 = vmul.f32 %v681, %v2938
        %v2987 = vmul.f32 %v682, %v2938
        %v2988 = vmul.f32 %v683, %v2938
        %v2989 = vmul.f32 %v684, %v2938
        %v2990 = vmul.f32 %v685, %v2938
        %v2991 = vmul.f32 %v686, %v2938
        %v2992 = vmul.f32 %v687, %v2938
        %v2993 = vmul.f32 %v688, %v2938
        %v2994 = vmul.f32 %v689, %v2938
        %v2995 = vmul.f32 %v690, %v2938
        %v2996 = vmul.f32 %v691, %v2938
        %v2997 = vmul.f32 %v692, %v2938
        %v2998 = vmul.f32 %v693, %v2938
        %v2999 = vmul.f32 %v694, %v2938
        %v3000 = vmul.f32 %v695, %v2938
        %v3001 = vmul.f32 %v696, %v2938
        %v3002 = vmul.f32 %v697, %v2938
        %v3003 = vmul.f32 %v698, %v2938
        %v3004 = vld [vmem:[#allocation18] sm:$0x1]
        %v3006 = vlaneseq
        %v3007 = vshrl.u32 %v3006, 7
        %v3008 = vsub.s32 0, %v3007
        %v3009 = vrot.slane %v3004, %v3008
        %v3011 = vadd.f32 %v2940, %v3009
        %v3012 = vadd.f32 %v2941, %v3009
        %v3013 = vadd.f32 %v2942, %v3009
        %v3014 = vadd.f32 %v2943, %v3009
        %v3015 = vadd.f32 %v2944, %v3009
        %v3016 = vadd.f32 %v2945, %v3009
        %v3017 = vadd.f32 %v2946, %v3009
        %v3018 = vadd.f32 %v2947, %v3009
        %v3019 = vadd.f32 %v2948, %v3009
        %v3020 = vadd.f32 %v2949, %v3009
        %v3021 = vadd.f32 %v2950, %v3009
        %v3022 = vadd.f32 %v2951, %v3009
        %v3023 = vadd.f32 %v2952, %v3009
        %v3024 = vadd.f32 %v2953, %v3009
        %v3025 = vadd.f32 %v2954, %v3009
        %v3026 = vadd.f32 %v2955, %v3009
        %v3027 = vadd.f32 %v2956, %v3009
        %v3028 = vadd.f32 %v2957, %v3009
        %v3029 = vadd.f32 %v2958, %v3009
        %v3030 = vadd.f32 %v2959, %v3009
        %v3031 = vadd.f32 %v2960, %v3009
        %v3032 = vadd.f32 %v2961, %v3009
        %v3033 = vadd.f32 %v2962, %v3009
        %v3034 = vadd.f32 %v2963, %v3009
        %v3035 = vadd.f32 %v2964, %v3009
        %v3036 = vadd.f32 %v2965, %v3009
        %v3037 = vadd.f32 %v2966, %v3009
        %v3038 = vadd.f32 %v2967, %v3009
        %v3039 = vadd.f32 %v2968, %v3009
        %v3040 = vadd.f32 %v2969, %v3009
        %v3041 = vadd.f32 %v2970, %v3009
        %v3042 = vadd.f32 %v2971, %v3009
        %v3043 = vadd.f32 %v2972, %v3009
        %v3044 = vadd.f32 %v2973, %v3009
        %v3045 = vadd.f32 %v2974, %v3009
        %v3046 = vadd.f32 %v2975, %v3009
        %v3047 = vadd.f32 %v2976, %v3009
        %v3048 = vadd.f32 %v2977, %v3009
        %v3049 = vadd.f32 %v2978, %v3009
        %v3050 = vadd.f32 %v2979, %v3009
        %v3051 = vadd.f32 %v2980, %v3009
        %v3052 = vadd.f32 %v2981, %v3009
        %v3053 = vadd.f32 %v2982, %v3009
        %v3054 = vadd.f32 %v2983, %v3009
        %v3055 = vadd.f32 %v2984, %v3009
        %v3056 = vadd.f32 %v2985, %v3009
        %v3057 = vadd.f32 %v2986, %v3009
        %v3058 = vadd.f32 %v2987, %v3009
        %v3059 = vadd.f32 %v2988, %v3009
        %v3060 = vadd.f32 %v2989, %v3009
        %v3061 = vadd.f32 %v2990, %v3009
        %v3062 = vadd.f32 %v2991, %v3009
        %v3063 = vadd.f32 %v2992, %v3009
        %v3064 = vadd.f32 %v2993, %v3009
        %v3065 = vadd.f32 %v2994, %v3009
        %v3066 = vadd.f32 %v2995, %v3009
        %v3067 = vadd.f32 %v2996, %v3009
        %v3068 = vadd.f32 %v2997, %v3009
        %v3069 = vadd.f32 %v2998, %v3009
        %v3070 = vadd.f32 %v2999, %v3009
        %v3071 = vadd.f32 %v3000, %v3009
        %v3072 = vadd.f32 %v3001, %v3009
        %v3073 = vadd.f32 %v3002, %v3009
        %v3074 = vadd.f32 %v3003, %v3009
        %vm3075 = vcmp.gt.f32.partialorder %v3011, 0.0
        %vm3076 = vcmp.gt.f32.partialorder %v3012, 0.0
        %vm3077 = vcmp.gt.f32.partialorder %v3013, 0.0
        %vm3078 = vcmp.gt.f32.partialorder %v3014, 0.0
        %vm3079 = vcmp.gt.f32.partialorder %v3015, 0.0
        %vm3080 = vcmp.gt.f32.partialorder %v3016, 0.0
        %vm3081 = vcmp.gt.f32.partialorder %v3017, 0.0
        %vm3082 = vcmp.gt.f32.partialorder %v3018, 0.0
        %vm3083 = vcmp.gt.f32.partialorder %v3019, 0.0
        %vm3084 = vcmp.gt.f32.partialorder %v3020, 0.0
        %vm3085 = vcmp.gt.f32.partialorder %v3021, 0.0
        %vm3086 = vcmp.gt.f32.partialorder %v3022, 0.0
        %vm3087 = vcmp.gt.f32.partialorder %v3023, 0.0
        %vm3088 = vcmp.gt.f32.partialorder %v3024, 0.0
        %vm3089 = vcmp.gt.f32.partialorder %v3025, 0.0
        %vm3090 = vcmp.gt.f32.partialorder %v3026, 0.0
        %vm3091 = vcmp.gt.f32.partialorder %v3027, 0.0
        %vm3092 = vcmp.gt.f32.partialorder %v3028, 0.0
        %vm3093 = vcmp.gt.f32.partialorder %v3029, 0.0
        %vm3094 = vcmp.gt.f32.partialorder %v3030, 0.0
        %vm3095 = vcmp.gt.f32.partialorder %v3031, 0.0
        %vm3096 = vcmp.gt.f32.partialorder %v3032, 0.0
        %vm3097 = vcmp.gt.f32.partialorder %v3033, 0.0
        %vm3098 = vcmp.gt.f32.partialorder %v3034, 0.0
        %vm3099 = vcmp.gt.f32.partialorder %v3035, 0.0
        %vm3100 = vcmp.gt.f32.partialorder %v3036, 0.0
        %vm3101 = vcmp.gt.f32.partialorder %v3037, 0.0
        %vm3102 = vcmp.gt.f32.partialorder %v3038, 0.0
        %vm3103 = vcmp.gt.f32.partialorder %v3039, 0.0
        %vm3104 = vcmp.gt.f32.partialorder %v3040, 0.0
        %vm3105 = vcmp.gt.f32.partialorder %v3041, 0.0
        %vm3106 = vcmp.gt.f32.partialorder %v3042, 0.0
        %vm3107 = vcmp.gt.f32.partialorder %v3043, 0.0
        %vm3108 = vcmp.gt.f32.partialorder %v3044, 0.0
        %vm3109 = vcmp.gt.f32.partialorder %v3045, 0.0
        %vm3110 = vcmp.gt.f32.partialorder %v3046, 0.0
        %vm3111 = vcmp.gt.f32.partialorder %v3047, 0.0
        %vm3112 = vcmp.gt.f32.partialorder %v3048, 0.0
        %vm3113 = vcmp.gt.f32.partialorder %v3049, 0.0
        %vm3114 = vcmp.gt.f32.partialorder %v3050, 0.0
        %vm3115 = vcmp.gt.f32.partialorder %v3051, 0.0
        %vm3116 = vcmp.gt.f32.partialorder %v3052, 0.0
        %vm3117 = vcmp.gt.f32.partialorder %v3053, 0.0
        %vm3118 = vcmp.gt.f32.partialorder %v3054, 0.0
        %vm3119 = vcmp.gt.f32.partialorder %v3055, 0.0
        %vm3120 = vcmp.gt.f32.partialorder %v3056, 0.0
        %vm3121 = vcmp.gt.f32.partialorder %v3057, 0.0
        %vm3122 = vcmp.gt.f32.partialorder %v3058, 0.0
        %vm3123 = vcmp.gt.f32.partialorder %v3059, 0.0
        %vm3124 = vcmp.gt.f32.partialorder %v3060, 0.0
        %vm3125 = vcmp.gt.f32.partialorder %v3061, 0.0
        %vm3126 = vcmp.gt.f32.partialorder %v3062, 0.0
        %vm3127 = vcmp.gt.f32.partialorder %v3063, 0.0
        %vm3128 = vcmp.gt.f32.partialorder %v3064, 0.0
        %vm3129 = vcmp.gt.f32.partialorder %v3065, 0.0
        %vm3130 = vcmp.gt.f32.partialorder %v3066, 0.0
        %vm3131 = vcmp.gt.f32.partialorder %v3067, 0.0
        %vm3132 = vcmp.gt.f32.partialorder %v3068, 0.0
        %vm3133 = vcmp.gt.f32.partialorder %v3069, 0.0
        %vm3134 = vcmp.gt.f32.partialorder %v3070, 0.0
        %vm3135 = vcmp.gt.f32.partialorder %v3071, 0.0
        %vm3136 = vcmp.gt.f32.partialorder %v3072, 0.0
        %vm3137 = vcmp.gt.f32.partialorder %v3073, 0.0
        %vm3138 = vcmp.gt.f32.partialorder %v3074, 0.0
        %s3139 = sld [smem:[#allocation2 + $0x3]]
        %v3140 = vstv %s3139
        %v3141 = vmul.f32 %v3140, %v3011
        %v3142 = vmul.f32 %v3140, %v3012
        %v3143 = vmul.f32 %v3140, %v3013
        %v3144 = vmul.f32 %v3140, %v3014
        %v3145 = vmul.f32 %v3140, %v3015
        %v3146 = vmul.f32 %v3140, %v3016
        %v3147 = vmul.f32 %v3140, %v3017
        %v3148 = vmul.f32 %v3140, %v3018
        %v3149 = vmul.f32 %v3140, %v3019
        %v3150 = vmul.f32 %v3140, %v3020
        %v3151 = vmul.f32 %v3140, %v3021
        %v3152 = vmul.f32 %v3140, %v3022
        %v3153 = vmul.f32 %v3140, %v3023
        %v3154 = vmul.f32 %v3140, %v3024
        %v3155 = vmul.f32 %v3140, %v3025
        %v3156 = vmul.f32 %v3140, %v3026
        %v3157 = vmul.f32 %v3140, %v3027
        %v3158 = vmul.f32 %v3140, %v3028
        %v3159 = vmul.f32 %v3140, %v3029
        %v3160 = vmul.f32 %v3140, %v3030
        %v3161 = vmul.f32 %v3140, %v3031
        %v3162 = vmul.f32 %v3140, %v3032
        %v3163 = vmul.f32 %v3140, %v3033
        %v3164 = vmul.f32 %v3140, %v3034
        %v3165 = vmul.f32 %v3140, %v3035
        %v3166 = vmul.f32 %v3140, %v3036
        %v3167 = vmul.f32 %v3140, %v3037
        %v3168 = vmul.f32 %v3140, %v3038
        %v3169 = vmul.f32 %v3140, %v3039
        %v3170 = vmul.f32 %v3140, %v3040
        %v3171 = vmul.f32 %v3140, %v3041
        %v3172 = vmul.f32 %v3140, %v3042
        %v3173 = vmul.f32 %v3140, %v3043
        %v3174 = vmul.f32 %v3140, %v3044
        %v3175 = vmul.f32 %v3140, %v3045
        %v3176 = vmul.f32 %v3140, %v3046
        %v3177 = vmul.f32 %v3140, %v3047
        %v3178 = vmul.f32 %v3140, %v3048
        %v3179 = vmul.f32 %v3140, %v3049
        %v3180 = vmul.f32 %v3140, %v3050
        %v3181 = vmul.f32 %v3140, %v3051
        %v3182 = vmul.f32 %v3140, %v3052
        %v3183 = vmul.f32 %v3140, %v3053
        %v3184 = vmul.f32 %v3140, %v3054
        %v3185 = vmul.f32 %v3140, %v3055
        %v3186 = vmul.f32 %v3140, %v3056
        %v3187 = vmul.f32 %v3140, %v3057
        %v3188 = vmul.f32 %v3140, %v3058
        %v3189 = vmul.f32 %v3140, %v3059
        %v3190 = vmul.f32 %v3140, %v3060
        %v3191 = vmul.f32 %v3140, %v3061
        %v3192 = vmul.f32 %v3140, %v3062
        %v3193 = vmul.f32 %v3140, %v3063
        %v3194 = vmul.f32 %v3140, %v3064
        %v3195 = vmul.f32 %v3140, %v3065
        %v3196 = vmul.f32 %v3140, %v3066
        %v3197 = vmul.f32 %v3140, %v3067
        %v3198 = vmul.f32 %v3140, %v3068
        %v3199 = vmul.f32 %v3140, %v3069
        %v3200 = vmul.f32 %v3140, %v3070
        %v3201 = vmul.f32 %v3140, %v3071
        %v3202 = vmul.f32 %v3140, %v3072
        %v3203 = vmul.f32 %v3140, %v3073
        %v3204 = vmul.f32 %v3140, %v3074
        %v3205 = vsel %vm3075, %v3011, %v3141
        %v3206 = vsel %vm3076, %v3012, %v3142
        %v3207 = vsel %vm3077, %v3013, %v3143
        %v3208 = vsel %vm3078, %v3014, %v3144
        %v3209 = vsel %vm3079, %v3015, %v3145
        %v3210 = vsel %vm3080, %v3016, %v3146
        %v3211 = vsel %vm3081, %v3017, %v3147
        %v3212 = vsel %vm3082, %v3018, %v3148
        %v3213 = vsel %vm3083, %v3019, %v3149
        %v3214 = vsel %vm3084, %v3020, %v3150
        %v3215 = vsel %vm3085, %v3021, %v3151
        %v3216 = vsel %vm3086, %v3022, %v3152
        %v3217 = vsel %vm3087, %v3023, %v3153
        %v3218 = vsel %vm3088, %v3024, %v3154
        %v3219 = vsel %vm3089, %v3025, %v3155
        %v3220 = vsel %vm3090, %v3026, %v3156
        %v3221 = vsel %vm3091, %v3027, %v3157
        %v3222 = vsel %vm3092, %v3028, %v3158
        %v3223 = vsel %vm3093, %v3029, %v3159
        %v3224 = vsel %vm3094, %v3030, %v3160
        %v3225 = vsel %vm3095, %v3031, %v3161
        %v3226 = vsel %vm3096, %v3032, %v3162
        %v3227 = vsel %vm3097, %v3033, %v3163
        %v3228 = vsel %vm3098, %v3034, %v3164
        %v3229 = vsel %vm3099, %v3035, %v3165
        %v3230 = vsel %vm3100, %v3036, %v3166
        %v3231 = vsel %vm3101, %v3037, %v3167
        %v3232 = vsel %vm3102, %v3038, %v3168
        %v3233 = vsel %vm3103, %v3039, %v3169
        %v3234 = vsel %vm3104, %v3040, %v3170
        %v3235 = vsel %vm3105, %v3041, %v3171
        %v3236 = vsel %vm3106, %v3042, %v3172
        %v3237 = vsel %vm3107, %v3043, %v3173
        %v3238 = vsel %vm3108, %v3044, %v3174
        %v3239 = vsel %vm3109, %v3045, %v3175
        %v3240 = vsel %vm3110, %v3046, %v3176
        %v3241 = vsel %vm3111, %v3047, %v3177
        %v3242 = vsel %vm3112, %v3048, %v3178
        %v3243 = vsel %vm3113, %v3049, %v3179
        %v3244 = vsel %vm3114, %v3050, %v3180
        %v3245 = vsel %vm3115, %v3051, %v3181
        %v3246 = vsel %vm3116, %v3052, %v3182
        %v3247 = vsel %vm3117, %v3053, %v3183
        %v3248 = vsel %vm3118, %v3054, %v3184
        %v3249 = vsel %vm3119, %v3055, %v3185
        %v3250 = vsel %vm3120, %v3056, %v3186
        %v3251 = vsel %vm3121, %v3057, %v3187
        %v3252 = vsel %vm3122, %v3058, %v3188
        %v3253 = vsel %vm3123, %v3059, %v3189
        %v3254 = vsel %vm3124, %v3060, %v3190
        %v3255 = vsel %vm3125, %v3061, %v3191
        %v3256 = vsel %vm3126, %v3062, %v3192
        %v3257 = vsel %vm3127, %v3063, %v3193
        %v3258 = vsel %vm3128, %v3064, %v3194
        %v3259 = vsel %vm3129, %v3065, %v3195
        %v3260 = vsel %vm3130, %v3066, %v3196
        %v3261 = vsel %vm3131, %v3067, %v3197
        %v3262 = vsel %vm3132, %v3068, %v3198
        %v3263 = vsel %vm3133, %v3069, %v3199
        %v3264 = vsel %vm3134, %v3070, %v3200
        %v3265 = vsel %vm3135, %v3071, %v3201
        %v3266 = vsel %vm3136, %v3072, %v3202
        %v3267 = vsel %vm3137, %v3073, %v3203
        %v3268 = vsel %vm3138, %v3074, %v3204
        %v3269 = vld [vmem:[#allocation20] sm:$0xff]
        %v3271 = vsel %vm1036, %v3205, 0
        %v3274 = vsel %vm1036, %v3206, 0
        %v3277 = vsel %vm1036, %v3207, 0
        %v3280 = vsel %vm1036, %v3208, 0
        %v3283 = vsel %vm1036, %v3209, 0
        %v3286 = vsel %vm1036, %v3210, 0
        %v3289 = vsel %vm1036, %v3211, 0
        %v3292 = vsel %vm1036, %v3212, 0
        %v3295 = vsel %vm1036, %v3213, 0
        %v3298 = vsel %vm1036, %v3214, 0
        %v3301 = vsel %vm1036, %v3215, 0
        %v3304 = vsel %vm1036, %v3216, 0
        %v3307 = vsel %vm1036, %v3217, 0
        %v3310 = vsel %vm1036, %v3218, 0
        %v3313 = vsel %vm1036, %v3219, 0
        %v3316 = vsel %vm1036, %v3220, 0
        %v3319 = vsel %vm1036, %v3221, 0
        %v3322 = vsel %vm1036, %v3222, 0
        %v3325 = vsel %vm1036, %v3223, 0
        %v3328 = vsel %vm1036, %v3224, 0
        %v3331 = vsel %vm1036, %v3225, 0
        %v3334 = vsel %vm1036, %v3226, 0
        %v3337 = vsel %vm1036, %v3227, 0
        %v3340 = vsel %vm1036, %v3228, 0
        %v3343 = vsel %vm1036, %v3229, 0
        %v3346 = vsel %vm1036, %v3230, 0
        %v3349 = vsel %vm1036, %v3231, 0
        %v3352 = vsel %vm1036, %v3232, 0
        %v3355 = vsel %vm1036, %v3233, 0
        %v3358 = vsel %vm1036, %v3234, 0
        %v3361 = vsel %vm1036, %v3235, 0
        %v3364 = vsel %vm1036, %v3236, 0
        %v3367 = vsel %vm1036, %v3237, 0
        %v3370 = vsel %vm1036, %v3238, 0
        %v3373 = vsel %vm1036, %v3239, 0
        %v3376 = vsel %vm1036, %v3240, 0
        %v3379 = vsel %vm1036, %v3241, 0
        %v3382 = vsel %vm1036, %v3242, 0
        %v3385 = vsel %vm1036, %v3243, 0
        %v3388 = vsel %vm1036, %v3244, 0
        %v3391 = vsel %vm1036, %v3245, 0
        %v3394 = vsel %vm1036, %v3246, 0
        %v3397 = vsel %vm1036, %v3247, 0
        %v3400 = vsel %vm1036, %v3248, 0
        %v3403 = vsel %vm1036, %v3249, 0
        %v3406 = vsel %vm1036, %v3250, 0
        %v3409 = vsel %vm1036, %v3251, 0
        %v3412 = vsel %vm1036, %v3252, 0
        %v3415 = vsel %vm1036, %v3253, 0
        %v3418 = vsel %vm1036, %v3254, 0
        %v3421 = vsel %vm1036, %v3255, 0
        %v3424 = vsel %vm1036, %v3256, 0
        %v3427 = vsel %vm1036, %v3257, 0
        %v3430 = vsel %vm1036, %v3258, 0
        %v3433 = vsel %vm1036, %v3259, 0
        %v3436 = vsel %vm1036, %v3260, 0
        %v3439 = vsel %vm1036, %v3261, 0
        %v3442 = vsel %vm1036, %v3262, 0
        %v3445 = vsel %vm1036, %v3263, 0
        %v3448 = vsel %vm1036, %v3264, 0
        %v3451 = vsel %vm1036, %v3265, 0
        %v3454 = vsel %vm1036, %v3266, 0
        %v3457 = vsel %vm1036, %v3267, 0
        %v3460 = vsel %vm1036, %v3268, 0
        %3462 = vmatprep.subr.mxu0 0.0
        %3463 = vmatpush1.msra.mxu0 %v3269
        %3464 = vmatprep.subr.mxu0 0.0
        %3465 = vmatpush1.msra.mxu0 0.0
        %3466 = vmatprep.subr.mxu0 0.0
        %3467 = vmatpush1.msra.mxu0 0.0
        %3468 = vmatprep.subr.mxu0 0.0
        %3469 = vmatpush1.msra.mxu0 0.0
        %3470 = vmatprep.subr.mxu0 0.0
        %3471 = vmatpush1.msra.mxu0 0.0
        %3472 = vmatprep.subr.mxu0 0.0
        %3473 = vmatpush1.msra.mxu0 0.0
        %3474 = vmatprep.subr.mxu0 0.0
        %3475 = vmatpush1.msra.mxu0 0.0
        %3476 = vmatprep.subr.mxu0 0.0
        %3477 = vmatpush1.msra.mxu0 0.0
        %3478 = vmatprep.subr.mxu0 0.0
        %3479 = vmatpush1.msra.mxu0 0.0
        %3480 = vmatprep.subr.mxu0 0.0
        %3481 = vmatpush1.msra.mxu0 0.0
        %3482 = vmatprep.subr.mxu0 0.0
        %3483 = vmatpush1.msra.mxu0 0.0
        %3484 = vmatprep.subr.mxu0 0.0
        %3485 = vmatpush1.msra.mxu0 0.0
        %3486 = vmatprep.subr.mxu0 0.0
        %3487 = vmatpush1.msra.mxu0 0.0
        %3488 = vmatprep.subr.mxu0 0.0
        %3489 = vmatpush1.msra.mxu0 0.0
        %3490 = vmatprep.subr.mxu0 0.0
        %3491 = vmatpush1.msra.mxu0 0.0
        %3492 = vmatprep.subr.mxu0 0.0
        %3493 = vmatpush1.msra.mxu0 0.0
        %3494 = vmatprep.subr.mxu0 0.0
        %3495 = vmatpush1.msra.mxu0 0.0
        %3496 = vmatprep.subr.mxu0 0.0
        %3497 = vmatpush1.msra.mxu0 0.0
        %3498 = vmatprep.subr.mxu0 0.0
        %3499 = vmatpush1.msra.mxu0 0.0
        %3500 = vmatprep.subr.mxu0 0.0
        %3501 = vmatpush1.msra.mxu0 0.0
        %3502 = vmatprep.subr.mxu0 0.0
        %3503 = vmatpush1.msra.mxu0 0.0
        %3504 = vmatprep.subr.mxu0 0.0
        %3505 = vmatpush1.msra.mxu0 0.0
        %3506 = vmatprep.subr.mxu0 0.0
        %3507 = vmatpush1.msra.mxu0 0.0
        %3508 = vmatprep.subr.mxu0 0.0
        %3509 = vmatpush1.msra.mxu0 0.0
        %3510 = vmatprep.subr.mxu0 0.0
        %3511 = vmatpush1.msra.mxu0 0.0
        %3512 = vmatprep.subr.mxu0 0.0
        %3513 = vmatpush1.msra.mxu0 0.0
        %3514 = vmatprep.subr.mxu0 0.0
        %3515 = vmatpush1.msra.mxu0 0.0
        %3516 = vmatprep.subr.mxu0 0.0
        %3517 = vmatpush1.msra.mxu0 0.0
        %3518 = vmatprep.subr.mxu0 0.0
        %3519 = vmatpush1.msra.mxu0 0.0
        %3520 = vmatprep.subr.mxu0 0.0
        %3521 = vmatpush1.msra.mxu0 0.0
        %3522 = vmatprep.subr.mxu0 0.0
        %3523 = vmatpush1.msra.mxu0 0.0
        %3524 = vmatprep.subr.mxu0 0.0
        %3525 = vmatpush1.msra.mxu0 0.0
        %3526 = vmatprep.mubr.f32.mxu0 0.0
        %3527 = vmatmul.mubr.f32.gmra.mrb[0].mxu0 %v3271
        %v3528 = vpop.f32.mrb[0].mxu0
        %v3529 = vadd.f32 0.0, %v3528
        %v3530 = vpop.f32.mrb[0].mxu0
        %3531 = vmatprep.mubr.f32.mxu0 0.0
        %3532 = vmatmul.mubr.f32.gmra.mrb[0].mxu0 %v3274
        %v3533 = vpop.f32.mrb[0].mxu0
        %v3534 = vadd.f32 0.0, %v3533
        %v3535 = vpop.f32.mrb[0].mxu0
        %3536 = vmatprep.mubr.f32.mxu0 0.0
        %3537 = vmatmul.mubr.f32.gmra.mrb[0].mxu0 %v3277
        %v3538 = vpop.f32.mrb[0].mxu0
        %v3539 = vadd.f32 0.0, %v3538
        %v3540 = vpop.f32.mrb[0].mxu0
        %3541 = vmatprep.mubr.f32.mxu0 0.0
        %3542 = vmatmul.mubr.f32.gmra.mrb[0].mxu0 %v3280
        %v3543 = vpop.f32.mrb[0].mxu0
        %v3544 = vadd.f32 0.0, %v3543
        %v3545 = vpop.f32.mrb[0].mxu0
        %3546 = vmatprep.mubr.f32.mxu0 0.0
        %3547 = vmatmul.mubr.f32.gmra.mrb[0].mxu0 %v3283
        %v3548 = vpop.f32.mrb[0].mxu0
        %v3549 = vadd.f32 0.0, %v3548
        %v3550 = vpop.f32.mrb[0].mxu0
        %3551 = vmatprep.mubr.f32.mxu0 0.0
        %3552 = vmatmul.mubr.f32.gmra.mrb[0].mxu0 %v3286
        %v3553 = vpop.f32.mrb[0].mxu0
        %v3554 = vadd.f32 0.0, %v3553
        %v3555 = vpop.f32.mrb[0].mxu0
        %3556 = vmatprep.mubr.f32.mxu0 0.0
        %3557 = vmatmul.mubr.f32.gmra.mrb[0].mxu0 %v3289
        %v3558 = vpop.f32.mrb[0].mxu0
        %v3559 = vadd.f32 0.0, %v3558
        %v3560 = vpop.f32.mrb[0].mxu0
        %3561 = vmatprep.mubr.f32.mxu0 0.0
        %3562 = vmatmul.mubr.f32.gmra.mrb[0].mxu0 %v3292
        %v3563 = vpop.f32.mrb[0].mxu0
        %v3564 = vadd.f32 0.0, %v3563
        %v3565 = vpop.f32.mrb[0].mxu0
        %3566 = vmatprep.mubr.f32.mxu0 0.0
        %3567 = vmatmul.mubr.f32.gmra.mrb[0].mxu0 %v3295
        %v3568 = vpop.f32.mrb[0].mxu0
        %v3569 = vadd.f32 0.0, %v3568
        %v3570 = vpop.f32.mrb[0].mxu0
        %3571 = vmatprep.mubr.f32.mxu0 0.0
        %3572 = vmatmul.mubr.f32.gmra.mrb[0].mxu0 %v3298
        %v3573 = vpop.f32.mrb[0].mxu0
        %v3574 = vadd.f32 0.0, %v3573
        %v3575 = vpop.f32.mrb[0].mxu0
        %3576 = vmatprep.mubr.f32.mxu0 0.0
        %3577 = vmatmul.mubr.f32.gmra.mrb[0].mxu0 %v3301
        %v3578 = vpop.f32.mrb[0].mxu0
        %v3579 = vadd.f32 0.0, %v3578
        %v3580 = vpop.f32.mrb[0].mxu0
        %3581 = vmatprep.mubr.f32.mxu0 0.0
        %3582 = vmatmul.mubr.f32.gmra.mrb[0].mxu0 %v3304
        %v3583 = vpop.f32.mrb[0].mxu0
        %v3584 = vadd.f32 0.0, %v3583
        %v3585 = vpop.f32.mrb[0].mxu0
        %3586 = vmatprep.mubr.f32.mxu0 0.0
        %3587 = vmatmul.mubr.f32.gmra.mrb[0].mxu0 %v3307
        %v3588 = vpop.f32.mrb[0].mxu0
        %v3589 = vadd.f32 0.0, %v3588
        %v3590 = vpop.f32.mrb[0].mxu0
        %3591 = vmatprep.mubr.f32.mxu0 0.0
        %3592 = vmatmul.mubr.f32.gmra.mrb[0].mxu0 %v3310
        %v3593 = vpop.f32.mrb[0].mxu0
        %v3594 = vadd.f32 0.0, %v3593
        %v3595 = vpop.f32.mrb[0].mxu0
        %3596 = vmatprep.mubr.f32.mxu0 0.0
        %3597 = vmatmul.mubr.f32.gmra.mrb[0].mxu0 %v3313
        %v3598 = vpop.f32.mrb[0].mxu0
        %v3599 = vadd.f32 0.0, %v3598
        %v3600 = vpop.f32.mrb[0].mxu0
        %3601 = vmatprep.mubr.f32.mxu0 0.0
        %3602 = vmatmul.mubr.f32.gmra.mrb[0].mxu0 %v3316
        %v3603 = vpop.f32.mrb[0].mxu0
        %v3604 = vadd.f32 0.0, %v3603
        %v3605 = vpop.f32.mrb[0].mxu0
        %3606 = vmatprep.mubr.f32.mxu0 0.0
        %3607 = vmatmul.mubr.f32.gmra.mrb[0].mxu0 %v3319
        %v3608 = vpop.f32.mrb[0].mxu0
        %v3609 = vadd.f32 0.0, %v3608
        %v3610 = vpop.f32.mrb[0].mxu0
        %3611 = vmatprep.mubr.f32.mxu0 0.0
        %3612 = vmatmul.mubr.f32.gmra.mrb[0].mxu0 %v3322
        %v3613 = vpop.f32.mrb[0].mxu0
        %v3614 = vadd.f32 0.0, %v3613
        %v3615 = vpop.f32.mrb[0].mxu0
        %3616 = vmatprep.mubr.f32.mxu0 0.0
        %3617 = vmatmul.mubr.f32.gmra.mrb[0].mxu0 %v3325
        %v3618 = vpop.f32.mrb[0].mxu0
        %v3619 = vadd.f32 0.0, %v3618
        %v3620 = vpop.f32.mrb[0].mxu0
        %3621 = vmatprep.mubr.f32.mxu0 0.0
        %3622 = vmatmul.mubr.f32.gmra.mrb[0].mxu0 %v3328
        %v3623 = vpop.f32.mrb[0].mxu0
        %v3624 = vadd.f32 0.0, %v3623
        %v3625 = vpop.f32.mrb[0].mxu0
        %3626 = vmatprep.mubr.f32.mxu0 0.0
        %3627 = vmatmul.mubr.f32.gmra.mrb[0].mxu0 %v3331
        %v3628 = vpop.f32.mrb[0].mxu0
        %v3629 = vadd.f32 0.0, %v3628
        %v3630 = vpop.f32.mrb[0].mxu0
        %3631 = vmatprep.mubr.f32.mxu0 0.0
        %3632 = vmatmul.mubr.f32.gmra.mrb[0].mxu0 %v3334
        %v3633 = vpop.f32.mrb[0].mxu0
        %v3634 = vadd.f32 0.0, %v3633
        %v3635 = vpop.f32.mrb[0].mxu0
        %3636 = vmatprep.mubr.f32.mxu0 0.0
        %3637 = vmatmul.mubr.f32.gmra.mrb[0].mxu0 %v3337
        %v3638 = vpop.f32.mrb[0].mxu0
        %v3639 = vadd.f32 0.0, %v3638
        %v3640 = vpop.f32.mrb[0].mxu0
        %3641 = vmatprep.mubr.f32.mxu0 0.0
        %3642 = vmatmul.mubr.f32.gmra.mrb[0].mxu0 %v3340
        %v3643 = vpop.f32.mrb[0].mxu0
        %v3644 = vadd.f32 0.0, %v3643
        %v3645 = vpop.f32.mrb[0].mxu0
        %3646 = vmatprep.mubr.f32.mxu0 0.0
        %3647 = vmatmul.mubr.f32.gmra.mrb[0].mxu0 %v3343
        %v3648 = vpop.f32.mrb[0].mxu0
        %v3649 = vadd.f32 0.0, %v3648
        %v3650 = vpop.f32.mrb[0].mxu0
        %3651 = vmatprep.mubr.f32.mxu0 0.0
        %3652 = vmatmul.mubr.f32.gmra.mrb[0].mxu0 %v3346
        %v3653 = vpop.f32.mrb[0].mxu0
        %v3654 = vadd.f32 0.0, %v3653
        %v3655 = vpop.f32.mrb[0].mxu0
        %3656 = vmatprep.mubr.f32.mxu0 0.0
        %3657 = vmatmul.mubr.f32.gmra.mrb[0].mxu0 %v3349
        %v3658 = vpop.f32.mrb[0].mxu0
        %v3659 = vadd.f32 0.0, %v3658
        %v3660 = vpop.f32.mrb[0].mxu0
        %3661 = vmatprep.mubr.f32.mxu0 0.0
        %3662 = vmatmul.mubr.f32.gmra.mrb[0].mxu0 %v3352
        %v3663 = vpop.f32.mrb[0].mxu0
        %v3664 = vadd.f32 0.0, %v3663
        %v3665 = vpop.f32.mrb[0].mxu0
        %3666 = vmatprep.mubr.f32.mxu0 0.0
        %3667 = vmatmul.mubr.f32.gmra.mrb[0].mxu0 %v3355
        %v3668 = vpop.f32.mrb[0].mxu0
        %v3669 = vadd.f32 0.0, %v3668
        %v3670 = vpop.f32.mrb[0].mxu0
        %3671 = vmatprep.mubr.f32.mxu0 0.0
        %3672 = vmatmul.mubr.f32.gmra.mrb[0].mxu0 %v3358
        %v3673 = vpop.f32.mrb[0].mxu0
        %v3674 = vadd.f32 0.0, %v3673
        %v3675 = vpop.f32.mrb[0].mxu0
        %3676 = vmatprep.mubr.f32.mxu0 0.0
        %3677 = vmatmul.mubr.f32.gmra.mrb[0].mxu0 %v3361
        %v3678 = vpop.f32.mrb[0].mxu0
        %v3679 = vadd.f32 0.0, %v3678
        %v3680 = vpop.f32.mrb[0].mxu0
        %3681 = vmatprep.mubr.f32.mxu0 0.0
        %3682 = vmatmul.mubr.f32.gmra.mrb[0].mxu0 %v3364
        %v3683 = vpop.f32.mrb[0].mxu0
        %v3684 = vadd.f32 0.0, %v3683
        %v3685 = vpop.f32.mrb[0].mxu0
        %3686 = vmatprep.mubr.f32.mxu0 0.0
        %3687 = vmatmul.mubr.f32.gmra.mrb[0].mxu0 %v3367
        %v3688 = vpop.f32.mrb[0].mxu0
        %v3689 = vadd.f32 0.0, %v3688
        %v3690 = vpop.f32.mrb[0].mxu0
        %3691 = vmatprep.mubr.f32.mxu0 0.0
        %3692 = vmatmul.mubr.f32.gmra.mrb[0].mxu0 %v3370
        %v3693 = vpop.f32.mrb[0].mxu0
        %v3694 = vadd.f32 0.0, %v3693
        %v3695 = vpop.f32.mrb[0].mxu0
        %3696 = vmatprep.mubr.f32.mxu0 0.0
        %3697 = vmatmul.mubr.f32.gmra.mrb[0].mxu0 %v3373
        %v3698 = vpop.f32.mrb[0].mxu0
        %v3699 = vadd.f32 0.0, %v3698
        %v3700 = vpop.f32.mrb[0].mxu0
        %3701 = vmatprep.mubr.f32.mxu0 0.0
        %3702 = vmatmul.mubr.f32.gmra.mrb[0].mxu0 %v3376
        %v3703 = vpop.f32.mrb[0].mxu0
        %v3704 = vadd.f32 0.0, %v3703
        %v3705 = vpop.f32.mrb[0].mxu0
        %3706 = vmatprep.mubr.f32.mxu0 0.0
        %3707 = vmatmul.mubr.f32.gmra.mrb[0].mxu0 %v3379
        %v3708 = vpop.f32.mrb[0].mxu0
        %v3709 = vadd.f32 0.0, %v3708
        %v3710 = vpop.f32.mrb[0].mxu0
        %3711 = vmatprep.mubr.f32.mxu0 0.0
        %3712 = vmatmul.mubr.f32.gmra.mrb[0].mxu0 %v3382
        %v3713 = vpop.f32.mrb[0].mxu0
        %v3714 = vadd.f32 0.0, %v3713
        %v3715 = vpop.f32.mrb[0].mxu0
        %3716 = vmatprep.mubr.f32.mxu0 0.0
        %3717 = vmatmul.mubr.f32.gmra.mrb[0].mxu0 %v3385
        %v3718 = vpop.f32.mrb[0].mxu0
        %v3719 = vadd.f32 0.0, %v3718
        %v3720 = vpop.f32.mrb[0].mxu0
        %3721 = vmatprep.mubr.f32.mxu0 0.0
        %3722 = vmatmul.mubr.f32.gmra.mrb[0].mxu0 %v3388
        %v3723 = vpop.f32.mrb[0].mxu0
        %v3724 = vadd.f32 0.0, %v3723
        %v3725 = vpop.f32.mrb[0].mxu0
        %3726 = vmatprep.mubr.f32.mxu0 0.0
        %3727 = vmatmul.mubr.f32.gmra.mrb[0].mxu0 %v3391
        %v3728 = vpop.f32.mrb[0].mxu0
        %v3729 = vadd.f32 0.0, %v3728
        %v3730 = vpop.f32.mrb[0].mxu0
        %3731 = vmatprep.mubr.f32.mxu0 0.0
        %3732 = vmatmul.mubr.f32.gmra.mrb[0].mxu0 %v3394
        %v3733 = vpop.f32.mrb[0].mxu0
        %v3734 = vadd.f32 0.0, %v3733
        %v3735 = vpop.f32.mrb[0].mxu0
        %3736 = vmatprep.mubr.f32.mxu0 0.0
        %3737 = vmatmul.mubr.f32.gmra.mrb[0].mxu0 %v3397
        %v3738 = vpop.f32.mrb[0].mxu0
        %v3739 = vadd.f32 0.0, %v3738
        %v3740 = vpop.f32.mrb[0].mxu0
        %3741 = vmatprep.mubr.f32.mxu0 0.0
        %3742 = vmatmul.mubr.f32.gmra.mrb[0].mxu0 %v3400
        %v3743 = vpop.f32.mrb[0].mxu0
        %v3744 = vadd.f32 0.0, %v3743
        %v3745 = vpop.f32.mrb[0].mxu0
        %3746 = vmatprep.mubr.f32.mxu0 0.0
        %3747 = vmatmul.mubr.f32.gmra.mrb[0].mxu0 %v3403
        %v3748 = vpop.f32.mrb[0].mxu0
        %v3749 = vadd.f32 0.0, %v3748
        %v3750 = vpop.f32.mrb[0].mxu0
        %3751 = vmatprep.mubr.f32.mxu0 0.0
        %3752 = vmatmul.mubr.f32.gmra.mrb[0].mxu0 %v3406
        %v3753 = vpop.f32.mrb[0].mxu0
        %v3754 = vadd.f32 0.0, %v3753
        %v3755 = vpop.f32.mrb[0].mxu0
        %3756 = vmatprep.mubr.f32.mxu0 0.0
        %3757 = vmatmul.mubr.f32.gmra.mrb[0].mxu0 %v3409
        %v3758 = vpop.f32.mrb[0].mxu0
        %v3759 = vadd.f32 0.0, %v3758
        %v3760 = vpop.f32.mrb[0].mxu0
        %3761 = vmatprep.mubr.f32.mxu0 0.0
        %3762 = vmatmul.mubr.f32.gmra.mrb[0].mxu0 %v3412
        %v3763 = vpop.f32.mrb[0].mxu0
        %v3764 = vadd.f32 0.0, %v3763
        %v3765 = vpop.f32.mrb[0].mxu0
        %3766 = vmatprep.mubr.f32.mxu0 0.0
        %3767 = vmatmul.mubr.f32.gmra.mrb[0].mxu0 %v3415
        %v3768 = vpop.f32.mrb[0].mxu0
        %v3769 = vadd.f32 0.0, %v3768
        %v3770 = vpop.f32.mrb[0].mxu0
        %3771 = vmatprep.mubr.f32.mxu0 0.0
        %3772 = vmatmul.mubr.f32.gmra.mrb[0].mxu0 %v3418
        %v3773 = vpop.f32.mrb[0].mxu0
        %v3774 = vadd.f32 0.0, %v3773
        %v3775 = vpop.f32.mrb[0].mxu0
        %3776 = vmatprep.mubr.f32.mxu0 0.0
        %3777 = vmatmul.mubr.f32.gmra.mrb[0].mxu0 %v3421
        %v3778 = vpop.f32.mrb[0].mxu0
        %v3779 = vadd.f32 0.0, %v3778
        %v3780 = vpop.f32.mrb[0].mxu0
        %3781 = vmatprep.mubr.f32.mxu0 0.0
        %3782 = vmatmul.mubr.f32.gmra.mrb[0].mxu0 %v3424
        %v3783 = vpop.f32.mrb[0].mxu0
        %v3784 = vadd.f32 0.0, %v3783
        %v3785 = vpop.f32.mrb[0].mxu0
        %3786 = vmatprep.mubr.f32.mxu0 0.0
        %3787 = vmatmul.mubr.f32.gmra.mrb[0].mxu0 %v3427
        %v3788 = vpop.f32.mrb[0].mxu0
        %v3789 = vadd.f32 0.0, %v3788
        %v3790 = vpop.f32.mrb[0].mxu0
        %3791 = vmatprep.mubr.f32.mxu0 0.0
        %3792 = vmatmul.mubr.f32.gmra.mrb[0].mxu0 %v3430
        %v3793 = vpop.f32.mrb[0].mxu0
        %v3794 = vadd.f32 0.0, %v3793
        %v3795 = vpop.f32.mrb[0].mxu0
        %3796 = vmatprep.mubr.f32.mxu0 0.0
        %3797 = vmatmul.mubr.f32.gmra.mrb[0].mxu0 %v3433
        %v3798 = vpop.f32.mrb[0].mxu0
        %v3799 = vadd.f32 0.0, %v3798
        %v3800 = vpop.f32.mrb[0].mxu0
        %3801 = vmatprep.mubr.f32.mxu0 0.0
        %3802 = vmatmul.mubr.f32.gmra.mrb[0].mxu0 %v3436
        %v3803 = vpop.f32.mrb[0].mxu0
        %v3804 = vadd.f32 0.0, %v3803
        %v3805 = vpop.f32.mrb[0].mxu0
        %3806 = vmatprep.mubr.f32.mxu0 0.0
        %3807 = vmatmul.mubr.f32.gmra.mrb[0].mxu0 %v3439
        %v3808 = vpop.f32.mrb[0].mxu0
        %v3809 = vadd.f32 0.0, %v3808
        %v3810 = vpop.f32.mrb[0].mxu0
        %3811 = vmatprep.mubr.f32.mxu0 0.0
        %3812 = vmatmul.mubr.f32.gmra.mrb[0].mxu0 %v3442
        %v3813 = vpop.f32.mrb[0].mxu0
        %v3814 = vadd.f32 0.0, %v3813
        %v3815 = vpop.f32.mrb[0].mxu0
        %3816 = vmatprep.mubr.f32.mxu0 0.0
        %3817 = vmatmul.mubr.f32.gmra.mrb[0].mxu0 %v3445
        %v3818 = vpop.f32.mrb[0].mxu0
        %v3819 = vadd.f32 0.0, %v3818
        %v3820 = vpop.f32.mrb[0].mxu0
        %3821 = vmatprep.mubr.f32.mxu0 0.0
        %3822 = vmatmul.mubr.f32.gmra.mrb[0].mxu0 %v3448
        %v3823 = vpop.f32.mrb[0].mxu0
        %v3824 = vadd.f32 0.0, %v3823
        %v3825 = vpop.f32.mrb[0].mxu0
        %3826 = vmatprep.mubr.f32.mxu0 0.0
        %3827 = vmatmul.mubr.f32.gmra.mrb[0].mxu0 %v3451
        %v3828 = vpop.f32.mrb[0].mxu0
        %v3829 = vadd.f32 0.0, %v3828
        %v3830 = vpop.f32.mrb[0].mxu0
        %3831 = vmatprep.mubr.f32.mxu0 0.0
        %3832 = vmatmul.mubr.f32.gmra.mrb[0].mxu0 %v3454
        %v3833 = vpop.f32.mrb[0].mxu0
        %v3834 = vadd.f32 0.0, %v3833
        %v3835 = vpop.f32.mrb[0].mxu0
        %3836 = vmatprep.mubr.f32.mxu0 0.0
        %3837 = vmatmul.mubr.f32.gmra.mrb[0].mxu0 %v3457
        %v3838 = vpop.f32.mrb[0].mxu0
        %v3839 = vadd.f32 0.0, %v3838
        %v3840 = vpop.f32.mrb[0].mxu0
        %3841 = vmatprep.mubr.f32.mxu0 0.0
        %3842 = vmatmul.mubr.f32.gmra.mrb[0].mxu0 %v3460
        %v3843 = vpop.f32.mrb[0].mxu0
        %v3844 = vadd.f32 0.0, %v3843
        %v3845 = vpop.f32.mrb[0].mxu0
        %3846 = vdwg.mxu0
        %vm3847 = vcmask 130048
        %3848 = vst.msk [vmem:[%s633] sm:$0xff] %vm3847, %v3529
        %3849 = vst.msk [vmem:[%s633 + $0x8] sm:$0xff] %vm3847, %v3534
        %3850 = vst.msk [vmem:[%s633 + $0x10] sm:$0xff] %vm3847, %v3539
        %3851 = vst.msk [vmem:[%s633 + $0x18] sm:$0xff] %vm3847, %v3544
        %3852 = vst.msk [vmem:[%s633 + $0x20] sm:$0xff] %vm3847, %v3549
        %3853 = vst.msk [vmem:[%s633 + $0x28] sm:$0xff] %vm3847, %v3554
        %3854 = vst.msk [vmem:[%s633 + $0x30] sm:$0xff] %vm3847, %v3559
        %3855 = vst.msk [vmem:[%s633 + $0x38] sm:$0xff] %vm3847, %v3564
        %3856 = vst.msk [vmem:[%s633 + $0x40] sm:$0xff] %vm3847, %v3569
        %3857 = vst.msk [vmem:[%s633 + $0x48] sm:$0xff] %vm3847, %v3574
        %3858 = vst.msk [vmem:[%s633 + $0x50] sm:$0xff] %vm3847, %v3579
        %3859 = vst.msk [vmem:[%s633 + $0x58] sm:$0xff] %vm3847, %v3584
        %3860 = vst.msk [vmem:[%s633 + $0x60] sm:$0xff] %vm3847, %v3589
        %3861 = vst.msk [vmem:[%s633 + $0x68] sm:$0xff] %vm3847, %v3594
        %3862 = vst.msk [vmem:[%s633 + $0x70] sm:$0xff] %vm3847, %v3599
        %3863 = vst.msk [vmem:[%s633 + $0x78] sm:$0xff] %vm3847, %v3604
        %3864 = vst.msk [vmem:[%s633 + $0x80] sm:$0xff] %vm3847, %v3609
        %3865 = vst.msk [vmem:[%s633 + $0x88] sm:$0xff] %vm3847, %v3614
        %3866 = vst.msk [vmem:[%s633 + $0x90] sm:$0xff] %vm3847, %v3619
        %3867 = vst.msk [vmem:[%s633 + $0x98] sm:$0xff] %vm3847, %v3624
        %3868 = vst.msk [vmem:[%s633 + $0xa0] sm:$0xff] %vm3847, %v3629
        %3869 = vst.msk [vmem:[%s633 + $0xa8] sm:$0xff] %vm3847, %v3634
        %3870 = vst.msk [vmem:[%s633 + $0xb0] sm:$0xff] %vm3847, %v3639
        %3871 = vst.msk [vmem:[%s633 + $0xb8] sm:$0xff] %vm3847, %v3644
        %3872 = vst.msk [vmem:[%s633 + $0xc0] sm:$0xff] %vm3847, %v3649
        %3873 = vst.msk [vmem:[%s633 + $0xc8] sm:$0xff] %vm3847, %v3654
        %3874 = vst.msk [vmem:[%s633 + $0xd0] sm:$0xff] %vm3847, %v3659
        %3875 = vst.msk [vmem:[%s633 + $0xd8] sm:$0xff] %vm3847, %v3664
        %3876 = vst.msk [vmem:[%s633 + $0xe0] sm:$0xff] %vm3847, %v3669
        %3877 = vst.msk [vmem:[%s633 + $0xe8] sm:$0xff] %vm3847, %v3674
        %3878 = vst.msk [vmem:[%s633 + $0xf0] sm:$0xff] %vm3847, %v3679
        %3879 = vst.msk [vmem:[%s633 + $0xf8] sm:$0xff] %vm3847, %v3684
        %3880 = vst.msk [vmem:[%s633 + $0x100] sm:$0xff] %vm3847, %v3689
        %3881 = vst.msk [vmem:[%s633 + $0x108] sm:$0xff] %vm3847, %v3694
        %3882 = vst.msk [vmem:[%s633 + $0x110] sm:$0xff] %vm3847, %v3699
        %3883 = vst.msk [vmem:[%s633 + $0x118] sm:$0xff] %vm3847, %v3704
        %3884 = vst.msk [vmem:[%s633 + $0x120] sm:$0xff] %vm3847, %v3709
        %3885 = vst.msk [vmem:[%s633 + $0x128] sm:$0xff] %vm3847, %v3714
        %3886 = vst.msk [vmem:[%s633 + $0x130] sm:$0xff] %vm3847, %v3719
        %3887 = vst.msk [vmem:[%s633 + $0x138] sm:$0xff] %vm3847, %v3724
        %3888 = vst.msk [vmem:[%s633 + $0x140] sm:$0xff] %vm3847, %v3729
        %3889 = vst.msk [vmem:[%s633 + $0x148] sm:$0xff] %vm3847, %v3734
        %3890 = vst.msk [vmem:[%s633 + $0x150] sm:$0xff] %vm3847, %v3739
        %3891 = vst.msk [vmem:[%s633 + $0x158] sm:$0xff] %vm3847, %v3744
        %3892 = vst.msk [vmem:[%s633 + $0x160] sm:$0xff] %vm3847, %v3749
        %3893 = vst.msk [vmem:[%s633 + $0x168] sm:$0xff] %vm3847, %v3754
        %3894 = vst.msk [vmem:[%s633 + $0x170] sm:$0xff] %vm3847, %v3759
        %3895 = vst.msk [vmem:[%s633 + $0x178] sm:$0xff] %vm3847, %v3764
        %3896 = vst.msk [vmem:[%s633 + $0x180] sm:$0xff] %vm3847, %v3769
        %3897 = vst.msk [vmem:[%s633 + $0x188] sm:$0xff] %vm3847, %v3774
        %3898 = vst.msk [vmem:[%s633 + $0x190] sm:$0xff] %vm3847, %v3779
        %3899 = vst.msk [vmem:[%s633 + $0x198] sm:$0xff] %vm3847, %v3784
        %3900 = vst.msk [vmem:[%s633 + $0x1a0] sm:$0xff] %vm3847, %v3789
        %3901 = vst.msk [vmem:[%s633 + $0x1a8] sm:$0xff] %vm3847, %v3794
        %3902 = vst.msk [vmem:[%s633 + $0x1b0] sm:$0xff] %vm3847, %v3799
        %3903 = vst.msk [vmem:[%s633 + $0x1b8] sm:$0xff] %vm3847, %v3804
        %3904 = vst.msk [vmem:[%s633 + $0x1c0] sm:$0xff] %vm3847, %v3809
        %3905 = vst.msk [vmem:[%s633 + $0x1c8] sm:$0xff] %vm3847, %v3814
        %3906 = vst.msk [vmem:[%s633 + $0x1d0] sm:$0xff] %vm3847, %v3819
        %3907 = vst.msk [vmem:[%s633 + $0x1d8] sm:$0xff] %vm3847, %v3824
        %3908 = vst.msk [vmem:[%s633 + $0x1e0] sm:$0xff] %vm3847, %v3829
        %3909 = vst.msk [vmem:[%s633 + $0x1e8] sm:$0xff] %vm3847, %v3834
        %3910 = vst.msk [vmem:[%s633 + $0x1f0] sm:$0xff] %vm3847, %v3839
        %3911 = vst.msk [vmem:[%s633 + $0x1f8] sm:$0xff] %vm3847, %v3844
        %s3912 = smul.u32 64, %s33
        %p3913 = scmp.lt.s32.totalorder %s3912, 127
        %s3914 = scalar_select %p3913, %s3912, 127
        %s3915 = smul.addr %s3914, 8
        %s3916 = scalar_lea.vmem %s13, %s3915
        %s3917 = smul.u32 64, %s33
        %p3918 = scmp.lt.s32.totalorder %s3917, 127
        %s3919 = scalar_select %p3918, %s3917, 127
        %s3920 = smul.addr %s3919, 8
        %s3921 = scalar_lea.vmem %s14, %s3920
        // Predicated region
        $region121: #{mfunit_forward.3} parent=71 // pred_check
          %p3922 = pneg %p329
        $region122: #{mfunit_forward.3} parent=71 // pred_check_branch
          %3924 = sbr.rel (%p3922) target = $region124
        $region123: #{mfunit_forward.3} parent=71 // pred_region
          %s3925 = smul.u32 64, %s33
        $region124: #{mfunit_forward.3} parent=71 // pred_fallthru
          _
        // Predicated region
        $region125: #{mfunit_forward.3} parent=71 // pred_check
          %p3926 = pneg %p355
        $region126: #{mfunit_forward.3} parent=71 // pred_check_branch
          %3928 = sbr.rel (%p3926) target = $region128
        $region127: #{mfunit_forward.3} parent=71 // pred_region
          %s3929 = smul.u32 64, %s33
        $region128: #{mfunit_forward.3} parent=71 // pred_fallthru
          _
      $region72: #{mfunit_forward.3} parent=5 // pred_fallthru
        _
      %p3930 = scmp.le.s32.totalorder 2, %s28
      // Predicated region
      $region129: #{mfunit_forward.3} parent=5 // pred_check
        %p3931 = pneg %p3930
      $region130: #{mfunit_forward.3} parent=5 // pred_check_branch
        %3933 = sbr.rel (%p3931) target = $region132
      $region131: #{mfunit_forward.3} parent=5 // pred_region
        %s3934 = ssub.s32 %s28, 2
        // Predicated region
        $region133: #{mfunit_forward.3} parent=131 // pred_check
          %p3935 = pneg %p335
        $region134: #{mfunit_forward.3} parent=131 // pred_check_branch
          %3937 = sbr.rel (%p3935) target = $region136
        $region135: #{mfunit_forward.3} parent=131 // pred_region
          %s3938 = smul.u32 64, %s34
          %p3939 = scmp.lt.s32.totalorder %s3938, 127
          %s3940 = scalar_select %p3939, %s3938, 127
          %s3941 = smul.addr %s3940, 8
          %s3942 = scalar_lea.vmem %s13, %s3941
        $region136: #{mfunit_forward.3} parent=131 // pred_fallthru
          _
        // Predicated region
        $region137: #{mfunit_forward.3} parent=131 // pred_check
          %p3943 = pneg %p361
        $region138: #{mfunit_forward.3} parent=131 // pred_check_branch
          %3945 = sbr.rel (%p3943) target = $region140
        $region139: #{mfunit_forward.3} parent=131 // pred_region
          %s3946 = smul.u32 64, %s34
          %p3947 = scmp.lt.s32.totalorder %s3946, 127
          %s3948 = scalar_select %p3947, %s3946, 127
          %s3949 = smul.addr %s3948, 8
          %s3950 = scalar_lea.vmem %s14, %s3949
        $region140: #{mfunit_forward.3} parent=131 // pred_fallthru
          _
      $region132: #{mfunit_forward.3} parent=5 // pred_fallthru
        _
    $region6: #{mfunit_forward.3} parent=1 // loop_footer
      %s32 = sadd.s32 1, %s28
    $region7: #{mfunit_forward.3} parent=1 // loop_footer_branch
      %27 = sbr.rel target = $region3
    $region8: #{mfunit_forward.3} parent=1 // loop_exit
      _
    %3951 = vsyncpa [#allocation3], 1
    %s3952 = scalar_lea.sflag [#allocation3], 1
    %3953 = vsyncpa %s3952, 1
    %3954 = vsyncpa [#allocation7], 1
    %3955 = vsyncpa [#allocation10], 1
    %3956 = vsyncpa [#allocation13], 1
    %3957 = vsyncpa [#allocation16], 1
    %3958 = vsyncpa [#allocation19], 1
    %3959 = vsyncpa [#allocation4], 1
    %s3960 = scalar_lea.sflag [#allocation4], 1
    %3961 = vsyncpa %s3960, 1

// kernel: mfunit_forward.4
$region0: #{mfunit_forward.4}
  #allocation0 [shape = 'u32[]', space=smem, size = 0x4, offset = 0x4, fixed_abs, tag = 'smem constant byte address 0x4 - core index']
  #allocation1 [shape = 'u32[144,128]{1,0:T(1,128)}', space=vmem, size = 0x12000, scoped, tag = 'internal scratch']
  #allocation2 [shape = 'f32[1]{0:T(128)S(6)}', space=smem, size = 0x200, scoped, tag = 'scoped memory for mfunit_forward.4']
  %s0 = inlined_call_operand.<no memory space> [shape: f32[1], index: 0, kind: input, shape index: {}]
  %s1 = inlined_call_operand.vmem [shape: f32[2,10,10,10,8], index: 1, kind: input, shape index: {}, may-alias: {1,2,3}]
  %s2 = inlined_call_operand.vmem [shape: f32[2,10,10,10,8], index: 2, kind: input, shape index: {}, may-alias: {1,2,3}]
  %s3 = inlined_call_operand.vmem [shape: f32[2,10,10,10,8], index: 3, kind: input, shape index: {}, may-alias: {1,2,3}]
  %s4 = inlined_call_operand.vmem [shape: f32[3,3,3,8,16], index: 4, kind: input, shape index: {}]
  %s5 = inlined_call_operand.vmem [shape: f32[1,16], index: 5, kind: input, shape index: {}]
  %s6 = inlined_call_operand.vmem [shape: f32[1,16], index: 6, kind: input, shape index: {}]
  %s7 = inlined_call_operand.vmem [shape: f32[2,8,64,16], index: 7, kind: output, shape index: {}]
  %s8 = sld [smem:[#allocation0]]
  $region61: #{mfunit_forward.4} parent=0
    _
  %s10 = ssub.s32 1, %s8
  %s11 = scalar_select 0, %s10, %s8
  %12 = sst [smem:[#allocation2]] %s0
  loop: start=0, step=1, limit=18
  $region2: #{mfunit_forward.4} parent=0 // loop_pre_header
    _
  $region3: #{mfunit_forward.4} parent=0 // loop_header
    %s14 = sphi 0, %s18
    %p15 = scmp.ge.s32.totalorder %s14, 18
    %s21 = sphi 0, %s33
    %s22 = sphi 0, %s29
    %s23 = sphi 0, %s21
    %s24 = sphi 0, %s22
    %s25 = sphi 0, %s23
    %s26 = sphi 0, %s24
    %s34 = sphi 0, %s34
    %s36 = sphi 0, %s34
    %s37 = sphi 0, %s36
    %s51 = sphi 0, %s37
    %s59 = sphi 0, %s61
    %s62 = sphi 0, %s59
    %s63 = sphi 0, %s62
    %s79 = sphi 0, %s63
    %s89 = sphi 0, %s91
    %s92 = sphi 0, %s89
    %s93 = sphi 0, %s92
    %s109 = sphi 0, %s93
    %s119 = sphi 0, %s121
    %s122 = sphi 0, %s119
    %s123 = sphi 0, %s122
    %s139 = sphi 0, %s123
    %s143 = sphi 0, %s143
    %s145 = sphi 0, %s143
    %s146 = sphi 0, %s145
    %s160 = sphi 0, %s146
    %s164 = sphi 0, %s164
    %s166 = sphi 0, %s164
    %s167 = sphi 0, %s166
    %s181 = sphi 0, %s167
    %s185 = sphi 0, %s185
    %s187 = sphi 0, %s185
    %s188 = sphi 0, %s187
    %s202 = sphi 0, %s188
    %s210 = sphi 0, %s212
    %s213 = sphi 0, %s210
    %s214 = sphi 0, %s213
    %s230 = sphi 0, %s214
  $region4: #{mfunit_forward.4} parent=0 // loop_header_branch
    %17 = sbr.rel (%p15) target = $region8
  $region5: #{mfunit_forward.4} parent=0 // loop_body
    %s19 = ssub.s32 %s14, 1
    %s20 = ssub.s32 %s14, 2
    %s27 = sadd.s32 1, %s22
    %p28 = scmp.ge.s32.totalorder %s27, 8
    %s29 = scalar_select %p28, 0, %s27
    %s30 = sadd.s32 1, %s21
    %s31 = scalar_select %p28, %s30, %s21
    %p32 = scmp.ge.s32.totalorder %s31, 2
    %s33 = scalar_select %p32, 0, %s31
    %s35 = sadd.s32 %s34, 1
    %p38 = scmp.eq.s32.totalorder %s14, 15
    %p39 = scmp.ne.s32.totalorder %s34, %s36
    %p40 = scmp.eq.s32.totalorder %s14, 0
    %p41 = por %p39, %p40
    %p42 = scmp.ne.s32.totalorder %s34, %s36
    %p43 = scmp.eq.s32.totalorder %s19, 15
    %p44 = por %p42, %p43
    %p45 = scmp.ne.s32.totalorder %s36, %s37
    %p46 = scmp.eq.s32.totalorder %s19, 0
    %p47 = por %p45, %p46
    %p48 = scmp.ne.s32.totalorder %s36, %s37
    %p49 = scmp.eq.s32.totalorder %s20, 15
    %p50 = por %p48, %p49
    %p52 = scmp.ne.s32.totalorder %s37, %s51
    %p53 = scmp.eq.s32.totalorder %s20, 0
    %p54 = por %p52, %p53
    %s55 = ssub.s32 %s21, %s33
    %s56 = ssub.s32 %s22, %s29
    %s57 = sor.u32 %s55, %s56
    %p58 = scmp.eq.s32.totalorder %s57, 0
    %s60 = sadd.s32 %s59, 1
    %s61 = scalar_select %p58, %s59, %s60
    %p64 = pneg %p58
    %p65 = scmp.eq.s32.totalorder %s14, 15
    %p66 = por %p64, %p65
    %p67 = scmp.ne.s32.totalorder %s59, %s62
    %p68 = scmp.eq.s32.totalorder %s14, 0
    %p69 = por %p67, %p68
    %p70 = scmp.ne.s32.totalorder %s59, %s62
    %p71 = scmp.eq.s32.totalorder %s19, 15
    %p72 = por %p70, %p71
    %p73 = scmp.ne.s32.totalorder %s62, %s63
    %p74 = scmp.eq.s32.totalorder %s19, 0
    %p75 = por %p73, %p74
    %p76 = scmp.ne.s32.totalorder %s62, %s63
    %p77 = scmp.eq.s32.totalorder %s20, 15
    %p78 = por %p76, %p77
    %p80 = scmp.ne.s32.totalorder %s63, %s79
    %p81 = scmp.eq.s32.totalorder %s20, 0
    %p82 = por %p80, %p81
    %s83 = sadd.s32 %s22, 1
    %s84 = sadd.s32 %s29, 1
    %s85 = ssub.s32 %s21, %s33
    %s86 = ssub.s32 %s83, %s84
    %s87 = sor.u32 %s85, %s86
    %p88 = scmp.eq.s32.totalorder %s87, 0
    %s90 = sadd.s32 %s89, 1
    %s91 = scalar_select %p88, %s89, %s90
    %p94 = pneg %p88
    %p95 = scmp.eq.s32.totalorder %s14, 15
    %p96 = por %p94, %p95
    %p97 = scmp.ne.s32.totalorder %s89, %s92
    %p98 = scmp.eq.s32.totalorder %s14, 0
    %p99 = por %p97, %p98
    %p100 = scmp.ne.s32.totalorder %s89, %s92
    %p101 = scmp.eq.s32.totalorder %s19, 15
    %p102 = por %p100, %p101
    %p103 = scmp.ne.s32.totalorder %s92, %s93
    %p104 = scmp.eq.s32.totalorder %s19, 0
    %p105 = por %p103, %p104
    %p106 = scmp.ne.s32.totalorder %s92, %s93
    %p107 = scmp.eq.s32.totalorder %s20, 15
    %p108 = por %p106, %p107
    %p110 = scmp.ne.s32.totalorder %s93, %s109
    %p111 = scmp.eq.s32.totalorder %s20, 0
    %p112 = por %p110, %p111
    %s113 = sadd.s32 %s22, 2
    %s114 = sadd.s32 %s29, 2
    %s115 = ssub.s32 %s21, %s33
    %s116 = ssub.s32 %s113, %s114
    %s117 = sor.u32 %s115, %s116
    %p118 = scmp.eq.s32.totalorder %s117, 0
    %s120 = sadd.s32 %s119, 1
    %s121 = scalar_select %p118, %s119, %s120
    %p124 = pneg %p118
    %p125 = scmp.eq.s32.totalorder %s14, 15
    %p126 = por %p124, %p125
    %p127 = scmp.ne.s32.totalorder %s119, %s122
    %p128 = scmp.eq.s32.totalorder %s14, 0
    %p129 = por %p127, %p128
    %p130 = scmp.ne.s32.totalorder %s119, %s122
    %p131 = scmp.eq.s32.totalorder %s19, 15
    %p132 = por %p130, %p131
    %p133 = scmp.ne.s32.totalorder %s122, %s123
    %p134 = scmp.eq.s32.totalorder %s19, 0
    %p135 = por %p133, %p134
    %p136 = scmp.ne.s32.totalorder %s122, %s123
    %p137 = scmp.eq.s32.totalorder %s20, 15
    %p138 = por %p136, %p137
    %p140 = scmp.ne.s32.totalorder %s123, %s139
    %p141 = scmp.eq.s32.totalorder %s20, 0
    %p142 = por %p140, %p141
    %s144 = sadd.s32 %s143, 1
    %p147 = scmp.eq.s32.totalorder %s14, 15
    %p148 = scmp.ne.s32.totalorder %s143, %s145
    %p149 = scmp.eq.s32.totalorder %s14, 0
    %p150 = por %p148, %p149
    %p151 = scmp.ne.s32.totalorder %s143, %s145
    %p152 = scmp.eq.s32.totalorder %s19, 15
    %p153 = por %p151, %p152
    %p154 = scmp.ne.s32.totalorder %s145, %s146
    %p155 = scmp.eq.s32.totalorder %s19, 0
    %p156 = por %p154, %p155
    %p157 = scmp.ne.s32.totalorder %s145, %s146
    %p158 = scmp.eq.s32.totalorder %s20, 15
    %p159 = por %p157, %p158
    %p161 = scmp.ne.s32.totalorder %s146, %s160
    %p162 = scmp.eq.s32.totalorder %s20, 0
    %p163 = por %p161, %p162
    %s165 = sadd.s32 %s164, 1
    %p168 = scmp.eq.s32.totalorder %s14, 15
    %p169 = scmp.ne.s32.totalorder %s164, %s166
    %p170 = scmp.eq.s32.totalorder %s14, 0
    %p171 = por %p169, %p170
    %p172 = scmp.ne.s32.totalorder %s164, %s166
    %p173 = scmp.eq.s32.totalorder %s19, 15
    %p174 = por %p172, %p173
    %p175 = scmp.ne.s32.totalorder %s166, %s167
    %p176 = scmp.eq.s32.totalorder %s19, 0
    %p177 = por %p175, %p176
    %p178 = scmp.ne.s32.totalorder %s166, %s167
    %p179 = scmp.eq.s32.totalorder %s20, 15
    %p180 = por %p178, %p179
    %p182 = scmp.ne.s32.totalorder %s167, %s181
    %p183 = scmp.eq.s32.totalorder %s20, 0
    %p184 = por %p182, %p183
    %s186 = sadd.s32 %s185, 1
    %p189 = scmp.eq.s32.totalorder %s14, 15
    %p190 = scmp.ne.s32.totalorder %s185, %s187
    %p191 = scmp.eq.s32.totalorder %s14, 0
    %p192 = por %p190, %p191
    %p193 = scmp.ne.s32.totalorder %s185, %s187
    %p194 = scmp.eq.s32.totalorder %s19, 15
    %p195 = por %p193, %p194
    %p196 = scmp.ne.s32.totalorder %s187, %s188
    %p197 = scmp.eq.s32.totalorder %s19, 0
    %p198 = por %p196, %p197
    %p199 = scmp.ne.s32.totalorder %s187, %s188
    %p200 = scmp.eq.s32.totalorder %s20, 15
    %p201 = por %p199, %p200
    %p203 = scmp.ne.s32.totalorder %s188, %s202
    %p204 = scmp.eq.s32.totalorder %s20, 0
    %p205 = por %p203, %p204
    %s206 = ssub.s32 %s21, %s33
    %s207 = ssub.s32 %s22, %s29
    %s208 = sor.u32 %s206, %s207
    %p209 = scmp.eq.s32.totalorder %s208, 0
    %s211 = sadd.s32 %s210, 1
    %s212 = scalar_select %p209, %s210, %s211
    %p215 = pneg %p209
    %p216 = scmp.eq.s32.totalorder %s14, 15
    %p217 = por %p215, %p216
    %p218 = scmp.ne.s32.totalorder %s210, %s213
    %p219 = scmp.eq.s32.totalorder %s14, 0
    %p220 = por %p218, %p219
    %p221 = scmp.ne.s32.totalorder %s210, %s213
    %p222 = scmp.eq.s32.totalorder %s19, 15
    %p223 = por %p221, %p222
    %p224 = scmp.ne.s32.totalorder %s213, %s214
    %p225 = scmp.eq.s32.totalorder %s19, 0
    %p226 = por %p224, %p225
    %p227 = scmp.ne.s32.totalorder %s213, %s214
    %p228 = scmp.eq.s32.totalorder %s20, 15
    %p229 = por %p227, %p228
    %p231 = scmp.ne.s32.totalorder %s214, %s230
    %p232 = scmp.eq.s32.totalorder %s20, 0
    %p233 = por %p231, %p232
    %p234 = scmp.le.s32.totalorder 1, %s14
    %p235 = scmp.lt.s32.totalorder %s14, 17
    %p236 = pnand %p234, %p235
    %p237 = pneg %p236
    // Predicated region
    $region9: #{mfunit_forward.4} parent=5 // pred_check
      _
    $region10: #{mfunit_forward.4} parent=5 // pred_check_branch
      %239 = sbr.rel (%p236) target = $region12
    $region11: #{mfunit_forward.4} parent=5 // pred_region
      %s240 = ssub.s32 %s14, 1
      // Predicated region
      $region13: #{mfunit_forward.4} parent=11 // pred_check
        %p241 = pneg %p47
      $region14: #{mfunit_forward.4} parent=11 // pred_check_branch
        %243 = sbr.rel (%p241) target = $region16
      $region15: #{mfunit_forward.4} parent=11 // pred_region
        _
      $region16: #{mfunit_forward.4} parent=11 // pred_fallthru
        _
      // Predicated region
      $region17: #{mfunit_forward.4} parent=11 // pred_check
        %p244 = pneg %p156
      $region18: #{mfunit_forward.4} parent=11 // pred_check_branch
        %246 = sbr.rel (%p244) target = $region20
      $region19: #{mfunit_forward.4} parent=11 // pred_region
        _
      $region20: #{mfunit_forward.4} parent=11 // pred_fallthru
        _
      // Predicated region
      $region21: #{mfunit_forward.4} parent=11 // pred_check
        %p247 = pneg %p177
      $region22: #{mfunit_forward.4} parent=11 // pred_check_branch
        %249 = sbr.rel (%p247) target = $region24
      $region23: #{mfunit_forward.4} parent=11 // pred_region
        _
      $region24: #{mfunit_forward.4} parent=11 // pred_fallthru
        _
      // Predicated region
      $region25: #{mfunit_forward.4} parent=11 // pred_check
        %p250 = pneg %p198
      $region26: #{mfunit_forward.4} parent=11 // pred_check_branch
        %252 = sbr.rel (%p250) target = $region28
      $region27: #{mfunit_forward.4} parent=11 // pred_region
        _
      $region28: #{mfunit_forward.4} parent=11 // pred_fallthru
        _
    $region12: #{mfunit_forward.4} parent=5 // pred_fallthru
      _
    %p253 = scmp.lt.s32.totalorder %s14, 16
    // Predicated region
    $region29: #{mfunit_forward.4} parent=5 // pred_check
      %p254 = pneg %p253
    $region30: #{mfunit_forward.4} parent=5 // pred_check_branch
      %256 = sbr.rel (%p254) target = $region32
    $region31: #{mfunit_forward.4} parent=5 // pred_region
      // Predicated region
      $region33: #{mfunit_forward.4} parent=31 // pred_check
        %p257 = pneg %p69
      $region34: #{mfunit_forward.4} parent=31 // pred_check_branch
        %259 = sbr.rel (%p257) target = $region36
      $region35: #{mfunit_forward.4} parent=31 // pred_region
        %p260 = scmp.lt.s32.totalorder %s21, 1
        %s261 = scalar_select %p260, %s21, 1
        %p262 = scmp.lt.s32.totalorder %s22, 9
        %s263 = scalar_select %p262, %s22, 9
        %s264 = smul.addr %s263, 20
        %s265 = smul.addr %s261, 200
        %s266 = sadd.s32 %s264, %s265
        %s267 = smul.addr %s266, 8
        %s268 = scalar_lea.vmem %s1, %s267
      $region36: #{mfunit_forward.4} parent=31 // pred_fallthru
        _
      // Predicated region
      $region37: #{mfunit_forward.4} parent=31 // pred_check
        %p269 = pneg %p99
      $region38: #{mfunit_forward.4} parent=31 // pred_check_branch
        %271 = sbr.rel (%p269) target = $region40
      $region39: #{mfunit_forward.4} parent=31 // pred_region
        %s272 = sadd.s32 %s22, 1
        %p273 = scmp.lt.s32.totalorder %s21, 1
        %s274 = scalar_select %p273, %s21, 1
        %p275 = scmp.lt.s32.totalorder %s272, 9
        %s276 = scalar_select %p275, %s272, 9
        %s277 = smul.addr %s276, 20
        %s278 = smul.addr %s274, 200
        %s279 = sadd.s32 %s277, %s278
        %s280 = smul.addr %s279, 8
        %s281 = scalar_lea.vmem %s2, %s280
        %s282 = sadd.s32 %s22, 1
      $region40: #{mfunit_forward.4} parent=31 // pred_fallthru
        _
      // Predicated region
      $region41: #{mfunit_forward.4} parent=31 // pred_check
        %p283 = pneg %p129
      $region42: #{mfunit_forward.4} parent=31 // pred_check_branch
        %285 = sbr.rel (%p283) target = $region44
      $region43: #{mfunit_forward.4} parent=31 // pred_region
        %s286 = sadd.s32 %s22, 2
        %p287 = scmp.lt.s32.totalorder %s21, 1
        %s288 = scalar_select %p287, %s21, 1
        %p289 = scmp.lt.s32.totalorder %s286, 9
        %s290 = scalar_select %p289, %s286, 9
        %s291 = smul.addr %s290, 20
        %s292 = smul.addr %s288, 200
        %s293 = sadd.s32 %s291, %s292
        %s294 = smul.addr %s293, 8
        %s295 = scalar_lea.vmem %s3, %s294
        %s296 = sadd.s32 %s22, 2
      $region44: #{mfunit_forward.4} parent=31 // pred_fallthru
        _
    $region32: #{mfunit_forward.4} parent=5 // pred_fallthru
      _
    %p297 = scmp.le.s32.totalorder 1, %s14
    %p298 = scmp.lt.s32.totalorder %s14, 17
    %p299 = pnand %p297, %p298
    %p300 = pneg %p299
    // Predicated region
    $region45: #{mfunit_forward.4} parent=5 // pred_check
      _
    $region46: #{mfunit_forward.4} parent=5 // pred_check_branch
      %302 = sbr.rel (%p299) target = $region48
    $region47: #{mfunit_forward.4} parent=5 // pred_region
      %s303 = ssub.s32 %s14, 1
      %p304 = pneg %p47
      %p305 = pneg %p44
      %p306 = scmp.lt.s32.totalorder %s23, 1
      %s307 = scalar_select %p306, %s23, 1
      %p308 = scmp.lt.s32.totalorder %s24, 9
      %s309 = scalar_select %p308, %s24, 9
      %s310 = smul.addr %s309, 20
      %s311 = smul.addr %s307, 200
      %s312 = sadd.s32 %s310, %s311
      %s313 = smul.addr %s312, 8
      %s314 = scalar_lea.vmem %s1, %s313
      %p315 = pneg %p75
      %p316 = pneg %p72
      %s317 = sadd.s32 %s24, 1
      %p318 = scmp.lt.s32.totalorder %s23, 1
      %s319 = scalar_select %p318, %s23, 1
      %p320 = scmp.lt.s32.totalorder %s317, 9
      %s321 = scalar_select %p320, %s317, 9
      %s322 = smul.addr %s321, 20
      %s323 = smul.addr %s319, 200
      %s324 = sadd.s32 %s322, %s323
      %s325 = smul.addr %s324, 8
      %s326 = scalar_lea.vmem %s2, %s325
      %p327 = pneg %p105
      %p328 = pneg %p102
      %s329 = sadd.s32 %s24, 2
      %p330 = scmp.lt.s32.totalorder %s23, 1
      %s331 = scalar_select %p330, %s23, 1
      %p332 = scmp.lt.s32.totalorder %s329, 9
      %s333 = scalar_select %p332, %s329, 9
      %s334 = smul.addr %s333, 20
      %s335 = smul.addr %s331, 200
      %s336 = sadd.s32 %s334, %s335
      %s337 = smul.addr %s336, 8
      %s338 = scalar_lea.vmem %s3, %s337
      %p339 = pneg %p135
      %p340 = pneg %p132
      %p341 = pneg %p156
      %p342 = pneg %p153
      %p343 = pneg %p177
      %p344 = pneg %p174
      %p345 = pneg %p198
      %p346 = pneg %p195
      %p347 = pneg %p226
      %p348 = pneg %p223
      %p349 = scmp.lt.s32.totalorder %s23, 1
      %s350 = scalar_select %p349, %s23, 1
      %p351 = scmp.lt.s32.totalorder %s24, 7
      %s352 = scalar_select %p351, %s24, 7
      %s353 = smul.addr %s352, 8
      %s354 = smul.addr %s350, 64
      %s355 = sadd.s32 %s353, %s354
      %s356 = smul.addr %s355, 8
      %s357 = scalar_lea.vmem %s7, %s356
      %p358 = scmp.lt.s32.totalorder %s23, 1
      %s359 = scalar_select %p358, %s23, 1
      %p360 = scmp.lt.s32.totalorder %s24, 9
      %s361 = scalar_select %p360, %s24, 9
      %s362 = smul.addr %s361, 20
      %s363 = smul.addr %s359, 200
      %s364 = sadd.s32 %s362, %s363
      %s365 = smul.addr %s364, 8
      %s366 = scalar_lea.vmem %s1, %s365
      %s367 = sadd.s32 %s24, 1
      %p368 = scmp.lt.s32.totalorder %s23, 1
      %s369 = scalar_select %p368, %s23, 1
      %p370 = scmp.lt.s32.totalorder %s367, 9
      %s371 = scalar_select %p370, %s367, 9
      %s372 = smul.addr %s371, 20
      %s373 = smul.addr %s369, 200
      %s374 = sadd.s32 %s372, %s373
      %s375 = smul.addr %s374, 8
      %s376 = scalar_lea.vmem %s2, %s375
      %s377 = sadd.s32 %s24, 1
      %s378 = sadd.s32 %s24, 2
      %p379 = scmp.lt.s32.totalorder %s23, 1
      %s380 = scalar_select %p379, %s23, 1
      %p381 = scmp.lt.s32.totalorder %s378, 9
      %s382 = scalar_select %p381, %s378, 9
      %s383 = smul.addr %s382, 20
      %s384 = smul.addr %s380, 200
      %s385 = sadd.s32 %s383, %s384
      %s386 = smul.addr %s385, 8
      %s387 = scalar_lea.vmem %s3, %s386
      %s388 = sadd.s32 %s24, 2
      %p389 = scmp.lt.s32.totalorder %s23, 1
      %s390 = scalar_select %p389, %s23, 1
      %p391 = scmp.lt.s32.totalorder %s24, 7
      %s392 = scalar_select %p391, %s24, 7
      %s393 = smul.addr %s392, 8
      %s394 = smul.addr %s390, 64
      %s395 = sadd.s32 %s393, %s394
      %s396 = smul.addr %s395, 8
      %s397 = scalar_lea.vmem %s7, %s396
      %v398 = vld [vmem:[%s366] sm:$0xff]
      %v399 = vld [vmem:[%s366 + $0x10] sm:$0xff]
      %v400 = vld [vmem:[%s366 + $0x20] sm:$0xff]
      %v401 = vld [vmem:[%s366 + $0x30] sm:$0xff]
      %v402 = vld [vmem:[%s366 + $0x40] sm:$0xff]
      %v403 = vld [vmem:[%s366 + $0x50] sm:$0xff]
      %v404 = vld [vmem:[%s366 + $0x60] sm:$0xff]
      %v405 = vld [vmem:[%s366 + $0x70] sm:$0xff]
      %v406 = vld [vmem:[%s4] sm:$0xff]
      %v407 = vld [vmem:[%s366 + $0x1] sm:$0xff]
      %v408 = vld [vmem:[%s366 + $0x11] sm:$0xff]
      %v409 = vld [vmem:[%s366 + $0x21] sm:$0xff]
      %v410 = vld [vmem:[%s366 + $0x31] sm:$0xff]
      %v411 = vld [vmem:[%s366 + $0x41] sm:$0xff]
      %v412 = vld [vmem:[%s366 + $0x51] sm:$0xff]
      %v413 = vld [vmem:[%s366 + $0x61] sm:$0xff]
      %v414 = vld [vmem:[%s366 + $0x71] sm:$0xff]
      %s415 = scalar_lea.vmem %s4, 8
      %v416 = vld [vmem:[%s415] sm:$0xff]
      %vm417 = vcmask 64512
      %v419 = vsel %vm417, %v407, 0
      %v422 = vsel %vm417, %v408, 0
      %v425 = vsel %vm417, %v409, 0
      %v428 = vsel %vm417, %v410, 0
      %v431 = vsel %vm417, %v411, 0
      %v434 = vsel %vm417, %v412, 0
      %v437 = vsel %vm417, %v413, 0
      %v440 = vsel %vm417, %v414, 0
      %442 = vmatprep.subr.mxu0 0.0
      %443 = vmatpush1.msra.mxu0 %v416
      %444 = vmatprep.subr.mxu0 0.0
      %445 = vmatpush1.msra.mxu0 0.0
      %446 = vmatprep.subr.mxu0 0.0
      %447 = vmatpush1.msra.mxu0 0.0
      %448 = vmatprep.subr.mxu0 0.0
      %449 = vmatpush1.msra.mxu0 0.0
      %450 = vmatprep.subr.mxu0 0.0
      %451 = vmatpush1.msra.mxu0 0.0
      %452 = vmatprep.subr.mxu0 0.0
      %453 = vmatpush1.msra.mxu0 0.0
      %454 = vmatprep.subr.mxu0 0.0
      %455 = vmatpush1.msra.mxu0 0.0
      %456 = vmatprep.subr.mxu0 0.0
      %457 = vmatpush1.msra.mxu0 0.0
      %458 = vmatprep.subr.mxu0 0.0
      %459 = vmatpush1.msra.mxu0 0.0
      %460 = vmatprep.subr.mxu0 0.0
      %461 = vmatpush1.msra.mxu0 0.0
      %462 = vmatprep.subr.mxu0 0.0
      %463 = vmatpush1.msra.mxu0 0.0
      %464 = vmatprep.subr.mxu0 0.0
      %465 = vmatpush1.msra.mxu0 0.0
      %466 = vmatprep.subr.mxu0 0.0
      %467 = vmatpush1.msra.mxu0 0.0
      %468 = vmatprep.subr.mxu0 0.0
      %469 = vmatpush1.msra.mxu0 0.0
      %470 = vmatprep.subr.mxu0 0.0
      %471 = vmatpush1.msra.mxu0 0.0
      %472 = vmatprep.subr.mxu0 0.0
      %473 = vmatpush1.msra.mxu0 0.0
      %474 = vmatprep.subr.mxu0 0.0
      %475 = vmatpush1.msra.mxu0 0.0
      %476 = vmatprep.subr.mxu0 0.0
      %477 = vmatpush1.msra.mxu0 0.0
      %478 = vmatprep.subr.mxu0 0.0
      %479 = vmatpush1.msra.mxu0 0.0
      %480 = vmatprep.subr.mxu0 0.0
      %481 = vmatpush1.msra.mxu0 0.0
      %482 = vmatprep.subr.mxu0 0.0
      %483 = vmatpush1.msra.mxu0 0.0
      %484 = vmatprep.subr.mxu0 0.0
      %485 = vmatpush1.msra.mxu0 0.0
      %486 = vmatprep.subr.mxu0 0.0
      %487 = vmatpush1.msra.mxu0 0.0
      %488 = vmatprep.subr.mxu0 0.0
      %489 = vmatpush1.msra.mxu0 0.0
      %490 = vmatprep.subr.mxu0 0.0
      %491 = vmatpush1.msra.mxu0 0.0
      %492 = vmatprep.subr.mxu0 0.0
      %493 = vmatpush1.msra.mxu0 0.0
      %494 = vmatprep.subr.mxu0 0.0
      %495 = vmatpush1.msra.mxu0 0.0
      %496 = vmatprep.subr.mxu0 0.0
      %497 = vmatpush1.msra.mxu0 0.0
      %498 = vmatprep.subr.mxu0 0.0
      %499 = vmatpush1.msra.mxu0 0.0
      %500 = vmatprep.subr.mxu0 0.0
      %501 = vmatpush1.msra.mxu0 0.0
      %502 = vmatprep.subr.mxu0 0.0
      %503 = vmatpush1.msra.mxu0 0.0
      %504 = vmatprep.subr.mxu0 0.0
      %505 = vmatpush1.msra.mxu0 0.0
      %506 = vmatprep.mubr.f32.mxu0 0.0
      %507 = vmatmul.mubr.f32.gmra.mrb[0].mxu0 %v419
      %v508 = vpop.f32.mrb[0].mxu0
      %v509 = vadd.f32 0.0, %v508
      %v510 = vpop.f32.mrb[0].mxu0
      %511 = vmatprep.mubr.f32.mxu0 0.0
      %512 = vmatmul.mubr.f32.gmra.mrb[0].mxu0 %v422
      %v513 = vpop.f32.mrb[0].mxu0
      %v514 = vadd.f32 0.0, %v513
      %v515 = vpop.f32.mrb[0].mxu0
      %516 = vmatprep.mubr.f32.mxu0 0.0
      %517 = vmatmul.mubr.f32.gmra.mrb[0].mxu0 %v425
      %v518 = vpop.f32.mrb[0].mxu0
      %v519 = vadd.f32 0.0, %v518
      %v520 = vpop.f32.mrb[0].mxu0
      %521 = vmatprep.mubr.f32.mxu0 0.0
      %522 = vmatmul.mubr.f32.gmra.mrb[0].mxu0 %v428
      %v523 = vpop.f32.mrb[0].mxu0
      %v524 = vadd.f32 0.0, %v523
      %v525 = vpop.f32.mrb[0].mxu0
      %526 = vmatprep.mubr.f32.mxu0 0.0
      %527 = vmatmul.mubr.f32.gmra.mrb[0].mxu0 %v431
      %v528 = vpop.f32.mrb[0].mxu0
      %v529 = vadd.f32 0.0, %v528
      %v530 = vpop.f32.mrb[0].mxu0
      %531 = vmatprep.mubr.f32.mxu0 0.0
      %532 = vmatmul.mubr.f32.gmra.mrb[0].mxu0 %v434
      %v533 = vpop.f32.mrb[0].mxu0
      %v534 = vadd.f32 0.0, %v533
      %v535 = vpop.f32.mrb[0].mxu0
      %536 = vmatprep.mubr.f32.mxu0 0.0
      %537 = vmatmul.mubr.f32.gmra.mrb[0].mxu0 %v437
      %v538 = vpop.f32.mrb[0].mxu0
      %v539 = vadd.f32 0.0, %v538
      %v540 = vpop.f32.mrb[0].mxu0
      %541 = vmatprep.mubr.f32.mxu0 0.0
      %542 = vmatmul.mubr.f32.gmra.mrb[0].mxu0 %v440
      %v543 = vpop.f32.mrb[0].mxu0
      %v544 = vadd.f32 0.0, %v543
      %v545 = vpop.f32.mrb[0].mxu0
      %546 = vdwg.mxu0
      %v548 = vsel %vm417, %v398, 0
      %v551 = vsel %vm417, %v399, 0
      %v554 = vsel %vm417, %v400, 0
      %v557 = vsel %vm417, %v401, 0
      %v560 = vsel %vm417, %v402, 0
      %v563 = vsel %vm417, %v403, 0
      %v566 = vsel %vm417, %v404, 0
      %v569 = vsel %vm417, %v405, 0
      %571 = vmatprep.subr.mxu0 0.0
      %572 = vmatpush1.msra.mxu0 %v406
      %573 = vmatprep.subr.mxu0 0.0
      %574 = vmatpush1.msra.mxu0 0.0
      %575 = vmatprep.subr.mxu0 0.0
      %576 = vmatpush1.msra.mxu0 0.0
      %577 = vmatprep.subr.mxu0 0.0
      %578 = vmatpush1.msra.mxu0 0.0
      %579 = vmatprep.subr.mxu0 0.0
      %580 = vmatpush1.msra.mxu0 0.0
      %581 = vmatprep.subr.mxu0 0.0
      %582 = vmatpush1.msra.mxu0 0.0
      %583 = vmatprep.subr.mxu0 0.0
      %584 = vmatpush1.msra.mxu0 0.0
      %585 = vmatprep.subr.mxu0 0.0
      %586 = vmatpush1.msra.mxu0 0.0
      %587 = vmatprep.subr.mxu0 0.0
      %588 = vmatpush1.msra.mxu0 0.0
      %589 = vmatprep.subr.mxu0 0.0
      %590 = vmatpush1.msra.mxu0 0.0
      %591 = vmatprep.subr.mxu0 0.0
      %592 = vmatpush1.msra.mxu0 0.0
      %593 = vmatprep.subr.mxu0 0.0
      %594 = vmatpush1.msra.mxu0 0.0
      %595 = vmatprep.subr.mxu0 0.0
      %596 = vmatpush1.msra.mxu0 0.0
      %597 = vmatprep.subr.mxu0 0.0
      %598 = vmatpush1.msra.mxu0 0.0
      %599 = vmatprep.subr.mxu0 0.0
      %600 = vmatpush1.msra.mxu0 0.0
      %601 = vmatprep.subr.mxu0 0.0
      %602 = vmatpush1.msra.mxu0 0.0
      %603 = vmatprep.subr.mxu0 0.0
      %604 = vmatpush1.msra.mxu0 0.0
      %605 = vmatprep.subr.mxu0 0.0
      %606 = vmatpush1.msra.mxu0 0.0
      %607 = vmatprep.subr.mxu0 0.0
      %608 = vmatpush1.msra.mxu0 0.0
      %609 = vmatprep.subr.mxu0 0.0
      %610 = vmatpush1.msra.mxu0 0.0
      %611 = vmatprep.subr.mxu0 0.0
      %612 = vmatpush1.msra.mxu0 0.0
      %613 = vmatprep.subr.mxu0 0.0
      %614 = vmatpush1.msra.mxu0 0.0
      %615 = vmatprep.subr.mxu0 0.0
      %616 = vmatpush1.msra.mxu0 0.0
      %617 = vmatprep.subr.mxu0 0.0
      %618 = vmatpush1.msra.mxu0 0.0
      %619 = vmatprep.subr.mxu0 0.0
      %620 = vmatpush1.msra.mxu0 0.0
      %621 = vmatprep.subr.mxu0 0.0
      %622 = vmatpush1.msra.mxu0 0.0
      %623 = vmatprep.subr.mxu0 0.0
      %624 = vmatpush1.msra.mxu0 0.0
      %625 = vmatprep.subr.mxu0 0.0
      %626 = vmatpush1.msra.mxu0 0.0
      %627 = vmatprep.subr.mxu0 0.0
      %628 = vmatpush1.msra.mxu0 0.0
      %629 = vmatprep.subr.mxu0 0.0
      %630 = vmatpush1.msra.mxu0 0.0
      %631 = vmatprep.subr.mxu0 0.0
      %632 = vmatpush1.msra.mxu0 0.0
      %633 = vmatprep.subr.mxu0 0.0
      %634 = vmatpush1.msra.mxu0 0.0
      %635 = vmatprep.mubr.f32.mxu0 0.0
      %636 = vmatmul.mubr.f32.gmra.mrb[0].mxu0 %v548
      %v637 = vpop.f32.mrb[0].mxu0
      %v638 = vadd.f32 %v509, %v637
      %v639 = vpop.f32.mrb[0].mxu0
      %640 = vmatprep.mubr.f32.mxu0 0.0
      %641 = vmatmul.mubr.f32.gmra.mrb[0].mxu0 %v551
      %v642 = vpop.f32.mrb[0].mxu0
      %v643 = vadd.f32 %v514, %v642
      %v644 = vpop.f32.mrb[0].mxu0
      %645 = vmatprep.mubr.f32.mxu0 0.0
      %646 = vmatmul.mubr.f32.gmra.mrb[0].mxu0 %v554
      %v647 = vpop.f32.mrb[0].mxu0
      %v648 = vadd.f32 %v519, %v647
      %v649 = vpop.f32.mrb[0].mxu0
      %650 = vmatprep.mubr.f32.mxu0 0.0
      %651 = vmatmul.mubr.f32.gmra.mrb[0].mxu0 %v557
      %v652 = vpop.f32.mrb[0].mxu0
      %v653 = vadd.f32 %v524, %v652
      %v654 = vpop.f32.mrb[0].mxu0
      %655 = vmatprep.mubr.f32.mxu0 0.0
      %656 = vmatmul.mubr.f32.gmra.mrb[0].mxu0 %v560
      %v657 = vpop.f32.mrb[0].mxu0
      %v658 = vadd.f32 %v529, %v657
      %v659 = vpop.f32.mrb[0].mxu0
      %660 = vmatprep.mubr.f32.mxu0 0.0
      %661 = vmatmul.mubr.f32.gmra.mrb[0].mxu0 %v563
      %v662 = vpop.f32.mrb[0].mxu0
      %v663 = vadd.f32 %v534, %v662
      %v664 = vpop.f32.mrb[0].mxu0
      %665 = vmatprep.mubr.f32.mxu0 0.0
      %666 = vmatmul.mubr.f32.gmra.mrb[0].mxu0 %v566
      %v667 = vpop.f32.mrb[0].mxu0
      %v668 = vadd.f32 %v539, %v667
      %v669 = vpop.f32.mrb[0].mxu0
      %670 = vmatprep.mubr.f32.mxu0 0.0
      %671 = vmatmul.mubr.f32.gmra.mrb[0].mxu0 %v569
      %v672 = vpop.f32.mrb[0].mxu0
      %v673 = vadd.f32 %v544, %v672
      %v674 = vpop.f32.mrb[0].mxu0
      %675 = vdwg.mxu0
      %v676 = vld [vmem:[%s366 + $0x2] sm:$0xff]
      %v677 = vld [vmem:[%s366 + $0x12] sm:$0xff]
      %v678 = vld [vmem:[%s366 + $0x22] sm:$0xff]
      %v679 = vld [vmem:[%s366 + $0x32] sm:$0xff]
      %v680 = vld [vmem:[%s366 + $0x42] sm:$0xff]
      %v681 = vld [vmem:[%s366 + $0x52] sm:$0xff]
      %v682 = vld [vmem:[%s366 + $0x62] sm:$0xff]
      %v683 = vld [vmem:[%s366 + $0x72] sm:$0xff]
      %s684 = scalar_lea.vmem %s4, 16
      %v685 = vld [vmem:[%s684] sm:$0xff]
      %v687 = vsel %vm417, %v676, 0
      %v690 = vsel %vm417, %v677, 0
      %v693 = vsel %vm417, %v678, 0
      %v696 = vsel %vm417, %v679, 0
      %v699 = vsel %vm417, %v680, 0
      %v702 = vsel %vm417, %v681, 0
      %v705 = vsel %vm417, %v682, 0
      %v708 = vsel %vm417, %v683, 0
      %710 = vmatprep.subr.mxu0 0.0
      %711 = vmatpush1.msra.mxu0 %v685
      %712 = vmatprep.subr.mxu0 0.0
      %713 = vmatpush1.msra.mxu0 0.0
      %714 = vmatprep.subr.mxu0 0.0
      %715 = vmatpush1.msra.mxu0 0.0
      %716 = vmatprep.subr.mxu0 0.0
      %717 = vmatpush1.msra.mxu0 0.0
      %718 = vmatprep.subr.mxu0 0.0
      %719 = vmatpush1.msra.mxu0 0.0
      %720 = vmatprep.subr.mxu0 0.0
      %721 = vmatpush1.msra.mxu0 0.0
      %722 = vmatprep.subr.mxu0 0.0
      %723 = vmatpush1.msra.mxu0 0.0
      %724 = vmatprep.subr.mxu0 0.0
      %725 = vmatpush1.msra.mxu0 0.0
      %726 = vmatprep.subr.mxu0 0.0
      %727 = vmatpush1.msra.mxu0 0.0
      %728 = vmatprep.subr.mxu0 0.0
      %729 = vmatpush1.msra.mxu0 0.0
      %730 = vmatprep.subr.mxu0 0.0
      %731 = vmatpush1.msra.mxu0 0.0
      %732 = vmatprep.subr.mxu0 0.0
      %733 = vmatpush1.msra.mxu0 0.0
      %734 = vmatprep.subr.mxu0 0.0
      %735 = vmatpush1.msra.mxu0 0.0
      %736 = vmatprep.subr.mxu0 0.0
      %737 = vmatpush1.msra.mxu0 0.0
      %738 = vmatprep.subr.mxu0 0.0
      %739 = vmatpush1.msra.mxu0 0.0
      %740 = vmatprep.subr.mxu0 0.0
      %741 = vmatpush1.msra.mxu0 0.0
      %742 = vmatprep.subr.mxu0 0.0
      %743 = vmatpush1.msra.mxu0 0.0
      %744 = vmatprep.subr.mxu0 0.0
      %745 = vmatpush1.msra.mxu0 0.0
      %746 = vmatprep.subr.mxu0 0.0
      %747 = vmatpush1.msra.mxu0 0.0
      %748 = vmatprep.subr.mxu0 0.0
      %749 = vmatpush1.msra.mxu0 0.0
      %750 = vmatprep.subr.mxu0 0.0
      %751 = vmatpush1.msra.mxu0 0.0
      %752 = vmatprep.subr.mxu0 0.0
      %753 = vmatpush1.msra.mxu0 0.0
      %754 = vmatprep.subr.mxu0 0.0
      %755 = vmatpush1.msra.mxu0 0.0
      %756 = vmatprep.subr.mxu0 0.0
      %757 = vmatpush1.msra.mxu0 0.0
      %758 = vmatprep.subr.mxu0 0.0
      %759 = vmatpush1.msra.mxu0 0.0
      %760 = vmatprep.subr.mxu0 0.0
      %761 = vmatpush1.msra.mxu0 0.0
      %762 = vmatprep.subr.mxu0 0.0
      %763 = vmatpush1.msra.mxu0 0.0
      %764 = vmatprep.subr.mxu0 0.0
      %765 = vmatpush1.msra.mxu0 0.0
      %766 = vmatprep.subr.mxu0 0.0
      %767 = vmatpush1.msra.mxu0 0.0
      %768 = vmatprep.subr.mxu0 0.0
      %769 = vmatpush1.msra.mxu0 0.0
      %770 = vmatprep.subr.mxu0 0.0
      %771 = vmatpush1.msra.mxu0 0.0
      %772 = vmatprep.subr.mxu0 0.0
      %773 = vmatpush1.msra.mxu0 0.0
      %774 = vmatprep.mubr.f32.mxu0 0.0
      %775 = vmatmul.mubr.f32.gmra.mrb[0].mxu0 %v687
      %v776 = vpop.f32.mrb[0].mxu0
      %v777 = vadd.f32 0.0, %v776
      %v778 = vpop.f32.mrb[0].mxu0
      %779 = vmatprep.mubr.f32.mxu0 0.0
      %780 = vmatmul.mubr.f32.gmra.mrb[0].mxu0 %v690
      %v781 = vpop.f32.mrb[0].mxu0
      %v782 = vadd.f32 0.0, %v781
      %v783 = vpop.f32.mrb[0].mxu0
      %784 = vmatprep.mubr.f32.mxu0 0.0
      %785 = vmatmul.mubr.f32.gmra.mrb[0].mxu0 %v693
      %v786 = vpop.f32.mrb[0].mxu0
      %v787 = vadd.f32 0.0, %v786
      %v788 = vpop.f32.mrb[0].mxu0
      %789 = vmatprep.mubr.f32.mxu0 0.0
      %790 = vmatmul.mubr.f32.gmra.mrb[0].mxu0 %v696
      %v791 = vpop.f32.mrb[0].mxu0
      %v792 = vadd.f32 0.0, %v791
      %v793 = vpop.f32.mrb[0].mxu0
      %794 = vmatprep.mubr.f32.mxu0 0.0
      %795 = vmatmul.mubr.f32.gmra.mrb[0].mxu0 %v699
      %v796 = vpop.f32.mrb[0].mxu0
      %v797 = vadd.f32 0.0, %v796
      %v798 = vpop.f32.mrb[0].mxu0
      %799 = vmatprep.mubr.f32.mxu0 0.0
      %800 = vmatmul.mubr.f32.gmra.mrb[0].mxu0 %v702
      %v801 = vpop.f32.mrb[0].mxu0
      %v802 = vadd.f32 0.0, %v801
      %v803 = vpop.f32.mrb[0].mxu0
      %804 = vmatprep.mubr.f32.mxu0 0.0
      %805 = vmatmul.mubr.f32.gmra.mrb[0].mxu0 %v705
      %v806 = vpop.f32.mrb[0].mxu0
      %v807 = vadd.f32 0.0, %v806
      %v808 = vpop.f32.mrb[0].mxu0
      %809 = vmatprep.mubr.f32.mxu0 0.0
      %810 = vmatmul.mubr.f32.gmra.mrb[0].mxu0 %v708
      %v811 = vpop.f32.mrb[0].mxu0
      %v812 = vadd.f32 0.0, %v811
      %v813 = vpop.f32.mrb[0].mxu0
      %814 = vdwg.mxu0
      %v815 = vadd.f32 %v638, %v777
      %v816 = vadd.f32 %v643, %v782
      %v817 = vadd.f32 %v648, %v787
      %v818 = vadd.f32 %v653, %v792
      %v819 = vadd.f32 %v658, %v797
      %v820 = vadd.f32 %v663, %v802
      %v821 = vadd.f32 %v668, %v807
      %v822 = vadd.f32 %v673, %v812
      %s823 = scalar_lea.vmem %s366, 16
      %v824 = vld [vmem:[%s823] sm:$0xff]
      %v825 = vld [vmem:[%s823 + $0x10] sm:$0xff]
      %v826 = vld [vmem:[%s823 + $0x20] sm:$0xff]
      %v827 = vld [vmem:[%s823 + $0x30] sm:$0xff]
      %v828 = vld [vmem:[%s823 + $0x40] sm:$0xff]
      %v829 = vld [vmem:[%s823 + $0x50] sm:$0xff]
      %v830 = vld [vmem:[%s823 + $0x60] sm:$0xff]
      %v831 = vld [vmem:[%s823 + $0x70] sm:$0xff]
      %s832 = scalar_lea.vmem %s4, 24
      %v833 = vld [vmem:[%s832] sm:$0xff]
      %v835 = vsel %vm417, %v824, 0
      %v838 = vsel %vm417, %v825, 0
      %v841 = vsel %vm417, %v826, 0
      %v844 = vsel %vm417, %v827, 0
      %v847 = vsel %vm417, %v828, 0
      %v850 = vsel %vm417, %v829, 0
      %v853 = vsel %vm417, %v830, 0
      %v856 = vsel %vm417, %v831, 0
      %858 = vmatprep.subr.mxu0 0.0
      %859 = vmatpush1.msra.mxu0 %v833
      %860 = vmatprep.subr.mxu0 0.0
      %861 = vmatpush1.msra.mxu0 0.0
      %862 = vmatprep.subr.mxu0 0.0
      %863 = vmatpush1.msra.mxu0 0.0
      %864 = vmatprep.subr.mxu0 0.0
      %865 = vmatpush1.msra.mxu0 0.0
      %866 = vmatprep.subr.mxu0 0.0
      %867 = vmatpush1.msra.mxu0 0.0
      %868 = vmatprep.subr.mxu0 0.0
      %869 = vmatpush1.msra.mxu0 0.0
      %870 = vmatprep.subr.mxu0 0.0
      %871 = vmatpush1.msra.mxu0 0.0
      %872 = vmatprep.subr.mxu0 0.0
      %873 = vmatpush1.msra.mxu0 0.0
      %874 = vmatprep.subr.mxu0 0.0
      %875 = vmatpush1.msra.mxu0 0.0
      %876 = vmatprep.subr.mxu0 0.0
      %877 = vmatpush1.msra.mxu0 0.0
      %878 = vmatprep.subr.mxu0 0.0
      %879 = vmatpush1.msra.mxu0 0.0
      %880 = vmatprep.subr.mxu0 0.0
      %881 = vmatpush1.msra.mxu0 0.0
      %882 = vmatprep.subr.mxu0 0.0
      %883 = vmatpush1.msra.mxu0 0.0
      %884 = vmatprep.subr.mxu0 0.0
      %885 = vmatpush1.msra.mxu0 0.0
      %886 = vmatprep.subr.mxu0 0.0
      %887 = vmatpush1.msra.mxu0 0.0
      %888 = vmatprep.subr.mxu0 0.0
      %889 = vmatpush1.msra.mxu0 0.0
      %890 = vmatprep.subr.mxu0 0.0
      %891 = vmatpush1.msra.mxu0 0.0
      %892 = vmatprep.subr.mxu0 0.0
      %893 = vmatpush1.msra.mxu0 0.0
      %894 = vmatprep.subr.mxu0 0.0
      %895 = vmatpush1.msra.mxu0 0.0
      %896 = vmatprep.subr.mxu0 0.0
      %897 = vmatpush1.msra.mxu0 0.0
      %898 = vmatprep.subr.mxu0 0.0
      %899 = vmatpush1.msra.mxu0 0.0
      %900 = vmatprep.subr.mxu0 0.0
      %901 = vmatpush1.msra.mxu0 0.0
      %902 = vmatprep.subr.mxu0 0.0
      %903 = vmatpush1.msra.mxu0 0.0
      %904 = vmatprep.subr.mxu0 0.0
      %905 = vmatpush1.msra.mxu0 0.0
      %906 = vmatprep.subr.mxu0 0.0
      %907 = vmatpush1.msra.mxu0 0.0
      %908 = vmatprep.subr.mxu0 0.0
      %909 = vmatpush1.msra.mxu0 0.0
      %910 = vmatprep.subr.mxu0 0.0
      %911 = vmatpush1.msra.mxu0 0.0
      %912 = vmatprep.subr.mxu0 0.0
      %913 = vmatpush1.msra.mxu0 0.0
      %914 = vmatprep.subr.mxu0 0.0
      %915 = vmatpush1.msra.mxu0 0.0
      %916 = vmatprep.subr.mxu0 0.0
      %917 = vmatpush1.msra.mxu0 0.0
      %918 = vmatprep.subr.mxu0 0.0
      %919 = vmatpush1.msra.mxu0 0.0
      %920 = vmatprep.subr.mxu0 0.0
      %921 = vmatpush1.msra.mxu0 0.0
      %922 = vmatprep.mubr.f32.mxu0 0.0
      %923 = vmatmul.mubr.f32.gmra.mrb[0].mxu0 %v835
      %v924 = vpop.f32.mrb[0].mxu0
      %v925 = vadd.f32 0.0, %v924
      %v926 = vpop.f32.mrb[0].mxu0
      %927 = vmatprep.mubr.f32.mxu0 0.0
      %928 = vmatmul.mubr.f32.gmra.mrb[0].mxu0 %v838
      %v929 = vpop.f32.mrb[0].mxu0
      %v930 = vadd.f32 0.0, %v929
      %v931 = vpop.f32.mrb[0].mxu0
      %932 = vmatprep.mubr.f32.mxu0 0.0
      %933 = vmatmul.mubr.f32.gmra.mrb[0].mxu0 %v841
      %v934 = vpop.f32.mrb[0].mxu0
      %v935 = vadd.f32 0.0, %v934
      %v936 = vpop.f32.mrb[0].mxu0
      %937 = vmatprep.mubr.f32.mxu0 0.0
      %938 = vmatmul.mubr.f32.gmra.mrb[0].mxu0 %v844
      %v939 = vpop.f32.mrb[0].mxu0
      %v940 = vadd.f32 0.0, %v939
      %v941 = vpop.f32.mrb[0].mxu0
      %942 = vmatprep.mubr.f32.mxu0 0.0
      %943 = vmatmul.mubr.f32.gmra.mrb[0].mxu0 %v847
      %v944 = vpop.f32.mrb[0].mxu0
      %v945 = vadd.f32 0.0, %v944
      %v946 = vpop.f32.mrb[0].mxu0
      %947 = vmatprep.mubr.f32.mxu0 0.0
      %948 = vmatmul.mubr.f32.gmra.mrb[0].mxu0 %v850
      %v949 = vpop.f32.mrb[0].mxu0
      %v950 = vadd.f32 0.0, %v949
      %v951 = vpop.f32.mrb[0].mxu0
      %952 = vmatprep.mubr.f32.mxu0 0.0
      %953 = vmatmul.mubr.f32.gmra.mrb[0].mxu0 %v853
      %v954 = vpop.f32.mrb[0].mxu0
      %v955 = vadd.f32 0.0, %v954
      %v956 = vpop.f32.mrb[0].mxu0
      %957 = vmatprep.mubr.f32.mxu0 0.0
      %958 = vmatmul.mubr.f32.gmra.mrb[0].mxu0 %v856
      %v959 = vpop.f32.mrb[0].mxu0
      %v960 = vadd.f32 0.0, %v959
      %v961 = vpop.f32.mrb[0].mxu0
      %962 = vdwg.mxu0
      %v963 = vadd.f32 %v815, %v925
      %v964 = vadd.f32 %v816, %v930
      %v965 = vadd.f32 %v817, %v935
      %v966 = vadd.f32 %v818, %v940
      %v967 = vadd.f32 %v819, %v945
      %v968 = vadd.f32 %v820, %v950
      %v969 = vadd.f32 %v821, %v955
      %v970 = vadd.f32 %v822, %v960
      %v971 = vld [vmem:[%s823 + $0x1] sm:$0xff]
      %v972 = vld [vmem:[%s823 + $0x11] sm:$0xff]
      %v973 = vld [vmem:[%s823 + $0x21] sm:$0xff]
      %v974 = vld [vmem:[%s823 + $0x31] sm:$0xff]
      %v975 = vld [vmem:[%s823 + $0x41] sm:$0xff]
      %v976 = vld [vmem:[%s823 + $0x51] sm:$0xff]
      %v977 = vld [vmem:[%s823 + $0x61] sm:$0xff]
      %v978 = vld [vmem:[%s823 + $0x71] sm:$0xff]
      %s979 = scalar_lea.vmem %s4, 32
      %v980 = vld [vmem:[%s979] sm:$0xff]
      %v982 = vsel %vm417, %v971, 0
      %v985 = vsel %vm417, %v972, 0
      %v988 = vsel %vm417, %v973, 0
      %v991 = vsel %vm417, %v974, 0
      %v994 = vsel %vm417, %v975, 0
      %v997 = vsel %vm417, %v976, 0
      %v1000 = vsel %vm417, %v977, 0
      %v1003 = vsel %vm417, %v978, 0
      %1005 = vmatprep.subr.mxu0 0.0
      %1006 = vmatpush1.msra.mxu0 %v980
      %1007 = vmatprep.subr.mxu0 0.0
      %1008 = vmatpush1.msra.mxu0 0.0
      %1009 = vmatprep.subr.mxu0 0.0
      %1010 = vmatpush1.msra.mxu0 0.0
      %1011 = vmatprep.subr.mxu0 0.0
      %1012 = vmatpush1.msra.mxu0 0.0
      %1013 = vmatprep.subr.mxu0 0.0
      %1014 = vmatpush1.msra.mxu0 0.0
      %1015 = vmatprep.subr.mxu0 0.0
      %1016 = vmatpush1.msra.mxu0 0.0
      %1017 = vmatprep.subr.mxu0 0.0
      %1018 = vmatpush1.msra.mxu0 0.0
      %1019 = vmatprep.subr.mxu0 0.0
      %1020 = vmatpush1.msra.mxu0 0.0
      %1021 = vmatprep.subr.mxu0 0.0
      %1022 = vmatpush1.msra.mxu0 0.0
      %1023 = vmatprep.subr.mxu0 0.0
      %1024 = vmatpush1.msra.mxu0 0.0
      %1025 = vmatprep.subr.mxu0 0.0
      %1026 = vmatpush1.msra.mxu0 0.0
      %1027 = vmatprep.subr.mxu0 0.0
      %1028 = vmatpush1.msra.mxu0 0.0
      %1029 = vmatprep.subr.mxu0 0.0
      %1030 = vmatpush1.msra.mxu0 0.0
      %1031 = vmatprep.subr.mxu0 0.0
      %1032 = vmatpush1.msra.mxu0 0.0
      %1033 = vmatprep.subr.mxu0 0.0
      %1034 = vmatpush1.msra.mxu0 0.0
      %1035 = vmatprep.subr.mxu0 0.0
      %1036 = vmatpush1.msra.mxu0 0.0
      %1037 = vmatprep.subr.mxu0 0.0
      %1038 = vmatpush1.msra.mxu0 0.0
      %1039 = vmatprep.subr.mxu0 0.0
      %1040 = vmatpush1.msra.mxu0 0.0
      %1041 = vmatprep.subr.mxu0 0.0
      %1042 = vmatpush1.msra.mxu0 0.0
      %1043 = vmatprep.subr.mxu0 0.0
      %1044 = vmatpush1.msra.mxu0 0.0
      %1045 = vmatprep.subr.mxu0 0.0
      %1046 = vmatpush1.msra.mxu0 0.0
      %1047 = vmatprep.subr.mxu0 0.0
      %1048 = vmatpush1.msra.mxu0 0.0
      %1049 = vmatprep.subr.mxu0 0.0
      %1050 = vmatpush1.msra.mxu0 0.0
      %1051 = vmatprep.subr.mxu0 0.0
      %1052 = vmatpush1.msra.mxu0 0.0
      %1053 = vmatprep.subr.mxu0 0.0
      %1054 = vmatpush1.msra.mxu0 0.0
      %1055 = vmatprep.subr.mxu0 0.0
      %1056 = vmatpush1.msra.mxu0 0.0
      %1057 = vmatprep.subr.mxu0 0.0
      %1058 = vmatpush1.msra.mxu0 0.0
      %1059 = vmatprep.subr.mxu0 0.0
      %1060 = vmatpush1.msra.mxu0 0.0
      %1061 = vmatprep.subr.mxu0 0.0
      %1062 = vmatpush1.msra.mxu0 0.0
      %1063 = vmatprep.subr.mxu0 0.0
      %1064 = vmatpush1.msra.mxu0 0.0
      %1065 = vmatprep.subr.mxu0 0.0
      %1066 = vmatpush1.msra.mxu0 0.0
      %1067 = vmatprep.subr.mxu0 0.0
      %1068 = vmatpush1.msra.mxu0 0.0
      %1069 = vmatprep.mubr.f32.mxu0 0.0
      %1070 = vmatmul.mubr.f32.gmra.mrb[0].mxu0 %v982
      %v1071 = vpop.f32.mrb[0].mxu0
      %v1072 = vadd.f32 0.0, %v1071
      %v1073 = vpop.f32.mrb[0].mxu0
      %1074 = vmatprep.mubr.f32.mxu0 0.0
      %1075 = vmatmul.mubr.f32.gmra.mrb[0].mxu0 %v985
      %v1076 = vpop.f32.mrb[0].mxu0
      %v1077 = vadd.f32 0.0, %v1076
      %v1078 = vpop.f32.mrb[0].mxu0
      %1079 = vmatprep.mubr.f32.mxu0 0.0
      %1080 = vmatmul.mubr.f32.gmra.mrb[0].mxu0 %v988
      %v1081 = vpop.f32.mrb[0].mxu0
      %v1082 = vadd.f32 0.0, %v1081
      %v1083 = vpop.f32.mrb[0].mxu0
      %1084 = vmatprep.mubr.f32.mxu0 0.0
      %1085 = vmatmul.mubr.f32.gmra.mrb[0].mxu0 %v991
      %v1086 = vpop.f32.mrb[0].mxu0
      %v1087 = vadd.f32 0.0, %v1086
      %v1088 = vpop.f32.mrb[0].mxu0
      %1089 = vmatprep.mubr.f32.mxu0 0.0
      %1090 = vmatmul.mubr.f32.gmra.mrb[0].mxu0 %v994
      %v1091 = vpop.f32.mrb[0].mxu0
      %v1092 = vadd.f32 0.0, %v1091
      %v1093 = vpop.f32.mrb[0].mxu0
      %1094 = vmatprep.mubr.f32.mxu0 0.0
      %1095 = vmatmul.mubr.f32.gmra.mrb[0].mxu0 %v997
      %v1096 = vpop.f32.mrb[0].mxu0
      %v1097 = vadd.f32 0.0, %v1096
      %v1098 = vpop.f32.mrb[0].mxu0
      %1099 = vmatprep.mubr.f32.mxu0 0.0
      %1100 = vmatmul.mubr.f32.gmra.mrb[0].mxu0 %v1000
      %v1101 = vpop.f32.mrb[0].mxu0
      %v1102 = vadd.f32 0.0, %v1101
      %v1103 = vpop.f32.mrb[0].mxu0
      %1104 = vmatprep.mubr.f32.mxu0 0.0
      %1105 = vmatmul.mubr.f32.gmra.mrb[0].mxu0 %v1003
      %v1106 = vpop.f32.mrb[0].mxu0
      %v1107 = vadd.f32 0.0, %v1106
      %v1108 = vpop.f32.mrb[0].mxu0
      %1109 = vdwg.mxu0
      %v1110 = vadd.f32 %v963, %v1072
      %v1111 = vadd.f32 %v964, %v1077
      %v1112 = vadd.f32 %v965, %v1082
      %v1113 = vadd.f32 %v966, %v1087
      %v1114 = vadd.f32 %v967, %v1092
      %v1115 = vadd.f32 %v968, %v1097
      %v1116 = vadd.f32 %v969, %v1102
      %v1117 = vadd.f32 %v970, %v1107
      %v1118 = vld [vmem:[%s823 + $0x2] sm:$0xff]
      %v1119 = vld [vmem:[%s823 + $0x12] sm:$0xff]
      %v1120 = vld [vmem:[%s823 + $0x22] sm:$0xff]
      %v1121 = vld [vmem:[%s823 + $0x32] sm:$0xff]
      %v1122 = vld [vmem:[%s823 + $0x42] sm:$0xff]
      %v1123 = vld [vmem:[%s823 + $0x52] sm:$0xff]
      %v1124 = vld [vmem:[%s823 + $0x62] sm:$0xff]
      %v1125 = vld [vmem:[%s823 + $0x72] sm:$0xff]
      %s1126 = scalar_lea.vmem %s4, 40
      %v1127 = vld [vmem:[%s1126] sm:$0xff]
      %v1129 = vsel %vm417, %v1118, 0
      %v1132 = vsel %vm417, %v1119, 0
      %v1135 = vsel %vm417, %v1120, 0
      %v1138 = vsel %vm417, %v1121, 0
      %v1141 = vsel %vm417, %v1122, 0
      %v1144 = vsel %vm417, %v1123, 0
      %v1147 = vsel %vm417, %v1124, 0
      %v1150 = vsel %vm417, %v1125, 0
      %1152 = vmatprep.subr.mxu0 0.0
      %1153 = vmatpush1.msra.mxu0 %v1127
      %1154 = vmatprep.subr.mxu0 0.0
      %1155 = vmatpush1.msra.mxu0 0.0
      %1156 = vmatprep.subr.mxu0 0.0
      %1157 = vmatpush1.msra.mxu0 0.0
      %1158 = vmatprep.subr.mxu0 0.0
      %1159 = vmatpush1.msra.mxu0 0.0
      %1160 = vmatprep.subr.mxu0 0.0
      %1161 = vmatpush1.msra.mxu0 0.0
      %1162 = vmatprep.subr.mxu0 0.0
      %1163 = vmatpush1.msra.mxu0 0.0
      %1164 = vmatprep.subr.mxu0 0.0
      %1165 = vmatpush1.msra.mxu0 0.0
      %1166 = vmatprep.subr.mxu0 0.0
      %1167 = vmatpush1.msra.mxu0 0.0
      %1168 = vmatprep.subr.mxu0 0.0
      %1169 = vmatpush1.msra.mxu0 0.0
      %1170 = vmatprep.subr.mxu0 0.0
      %1171 = vmatpush1.msra.mxu0 0.0
      %1172 = vmatprep.subr.mxu0 0.0
      %1173 = vmatpush1.msra.mxu0 0.0
      %1174 = vmatprep.subr.mxu0 0.0
      %1175 = vmatpush1.msra.mxu0 0.0
      %1176 = vmatprep.subr.mxu0 0.0
      %1177 = vmatpush1.msra.mxu0 0.0
      %1178 = vmatprep.subr.mxu0 0.0
      %1179 = vmatpush1.msra.mxu0 0.0
      %1180 = vmatprep.subr.mxu0 0.0
      %1181 = vmatpush1.msra.mxu0 0.0
      %1182 = vmatprep.subr.mxu0 0.0
      %1183 = vmatpush1.msra.mxu0 0.0
      %1184 = vmatprep.subr.mxu0 0.0
      %1185 = vmatpush1.msra.mxu0 0.0
      %1186 = vmatprep.subr.mxu0 0.0
      %1187 = vmatpush1.msra.mxu0 0.0
      %1188 = vmatprep.subr.mxu0 0.0
      %1189 = vmatpush1.msra.mxu0 0.0
      %1190 = vmatprep.subr.mxu0 0.0
      %1191 = vmatpush1.msra.mxu0 0.0
      %1192 = vmatprep.subr.mxu0 0.0
      %1193 = vmatpush1.msra.mxu0 0.0
      %1194 = vmatprep.subr.mxu0 0.0
      %1195 = vmatpush1.msra.mxu0 0.0
      %1196 = vmatprep.subr.mxu0 0.0
      %1197 = vmatpush1.msra.mxu0 0.0
      %1198 = vmatprep.subr.mxu0 0.0
      %1199 = vmatpush1.msra.mxu0 0.0
      %1200 = vmatprep.subr.mxu0 0.0
      %1201 = vmatpush1.msra.mxu0 0.0
      %1202 = vmatprep.subr.mxu0 0.0
      %1203 = vmatpush1.msra.mxu0 0.0
      %1204 = vmatprep.subr.mxu0 0.0
      %1205 = vmatpush1.msra.mxu0 0.0
      %1206 = vmatprep.subr.mxu0 0.0
      %1207 = vmatpush1.msra.mxu0 0.0
      %1208 = vmatprep.subr.mxu0 0.0
      %1209 = vmatpush1.msra.mxu0 0.0
      %1210 = vmatprep.subr.mxu0 0.0
      %1211 = vmatpush1.msra.mxu0 0.0
      %1212 = vmatprep.subr.mxu0 0.0
      %1213 = vmatpush1.msra.mxu0 0.0
      %1214 = vmatprep.subr.mxu0 0.0
      %1215 = vmatpush1.msra.mxu0 0.0
      %1216 = vmatprep.mubr.f32.mxu0 0.0
      %1217 = vmatmul.mubr.f32.gmra.mrb[0].mxu0 %v1129
      %v1218 = vpop.f32.mrb[0].mxu0
      %v1219 = vadd.f32 0.0, %v1218
      %v1220 = vpop.f32.mrb[0].mxu0
      %1221 = vmatprep.mubr.f32.mxu0 0.0
      %1222 = vmatmul.mubr.f32.gmra.mrb[0].mxu0 %v1132
      %v1223 = vpop.f32.mrb[0].mxu0
      %v1224 = vadd.f32 0.0, %v1223
      %v1225 = vpop.f32.mrb[0].mxu0
      %1226 = vmatprep.mubr.f32.mxu0 0.0
      %1227 = vmatmul.mubr.f32.gmra.mrb[0].mxu0 %v1135
      %v1228 = vpop.f32.mrb[0].mxu0
      %v1229 = vadd.f32 0.0, %v1228
      %v1230 = vpop.f32.mrb[0].mxu0
      %1231 = vmatprep.mubr.f32.mxu0 0.0
      %1232 = vmatmul.mubr.f32.gmra.mrb[0].mxu0 %v1138
      %v1233 = vpop.f32.mrb[0].mxu0
      %v1234 = vadd.f32 0.0, %v1233
      %v1235 = vpop.f32.mrb[0].mxu0
      %1236 = vmatprep.mubr.f32.mxu0 0.0
      %1237 = vmatmul.mubr.f32.gmra.mrb[0].mxu0 %v1141
      %v1238 = vpop.f32.mrb[0].mxu0
      %v1239 = vadd.f32 0.0, %v1238
      %v1240 = vpop.f32.mrb[0].mxu0
      %1241 = vmatprep.mubr.f32.mxu0 0.0
      %1242 = vmatmul.mubr.f32.gmra.mrb[0].mxu0 %v1144
      %v1243 = vpop.f32.mrb[0].mxu0
      %v1244 = vadd.f32 0.0, %v1243
      %v1245 = vpop.f32.mrb[0].mxu0
      %1246 = vmatprep.mubr.f32.mxu0 0.0
      %1247 = vmatmul.mubr.f32.gmra.mrb[0].mxu0 %v1147
      %v1248 = vpop.f32.mrb[0].mxu0
      %v1249 = vadd.f32 0.0, %v1248
      %v1250 = vpop.f32.mrb[0].mxu0
      %1251 = vmatprep.mubr.f32.mxu0 0.0
      %1252 = vmatmul.mubr.f32.gmra.mrb[0].mxu0 %v1150
      %v1253 = vpop.f32.mrb[0].mxu0
      %v1254 = vadd.f32 0.0, %v1253
      %v1255 = vpop.f32.mrb[0].mxu0
      %1256 = vdwg.mxu0
      %v1257 = vadd.f32 %v1110, %v1219
      %v1258 = vadd.f32 %v1111, %v1224
      %v1259 = vadd.f32 %v1112, %v1229
      %v1260 = vadd.f32 %v1113, %v1234
      %v1261 = vadd.f32 %v1114, %v1239
      %v1262 = vadd.f32 %v1115, %v1244
      %v1263 = vadd.f32 %v1116, %v1249
      %v1264 = vadd.f32 %v1117, %v1254
      %s1265 = scalar_lea.vmem %s366, 32
      %v1266 = vld [vmem:[%s1265] sm:$0xff]
      %v1267 = vld [vmem:[%s1265 + $0x10] sm:$0xff]
      %v1268 = vld [vmem:[%s1265 + $0x20] sm:$0xff]
      %v1269 = vld [vmem:[%s1265 + $0x30] sm:$0xff]
      %v1270 = vld [vmem:[%s1265 + $0x40] sm:$0xff]
      %v1271 = vld [vmem:[%s1265 + $0x50] sm:$0xff]
      %v1272 = vld [vmem:[%s1265 + $0x60] sm:$0xff]
      %v1273 = vld [vmem:[%s1265 + $0x70] sm:$0xff]
      %s1274 = scalar_lea.vmem %s4, 48
      %v1275 = vld [vmem:[%s1274] sm:$0xff]
      %v1277 = vsel %vm417, %v1266, 0
      %v1280 = vsel %vm417, %v1267, 0
      %v1283 = vsel %vm417, %v1268, 0
      %v1286 = vsel %vm417, %v1269, 0
      %v1289 = vsel %vm417, %v1270, 0
      %v1292 = vsel %vm417, %v1271, 0
      %v1295 = vsel %vm417, %v1272, 0
      %v1298 = vsel %vm417, %v1273, 0
      %1300 = vmatprep.subr.mxu0 0.0
      %1301 = vmatpush1.msra.mxu0 %v1275
      %1302 = vmatprep.subr.mxu0 0.0
      %1303 = vmatpush1.msra.mxu0 0.0
      %1304 = vmatprep.subr.mxu0 0.0
      %1305 = vmatpush1.msra.mxu0 0.0
      %1306 = vmatprep.subr.mxu0 0.0
      %1307 = vmatpush1.msra.mxu0 0.0
      %1308 = vmatprep.subr.mxu0 0.0
      %1309 = vmatpush1.msra.mxu0 0.0
      %1310 = vmatprep.subr.mxu0 0.0
      %1311 = vmatpush1.msra.mxu0 0.0
      %1312 = vmatprep.subr.mxu0 0.0
      %1313 = vmatpush1.msra.mxu0 0.0
      %1314 = vmatprep.subr.mxu0 0.0
      %1315 = vmatpush1.msra.mxu0 0.0
      %1316 = vmatprep.subr.mxu0 0.0
      %1317 = vmatpush1.msra.mxu0 0.0
      %1318 = vmatprep.subr.mxu0 0.0
      %1319 = vmatpush1.msra.mxu0 0.0
      %1320 = vmatprep.subr.mxu0 0.0
      %1321 = vmatpush1.msra.mxu0 0.0
      %1322 = vmatprep.subr.mxu0 0.0
      %1323 = vmatpush1.msra.mxu0 0.0
      %1324 = vmatprep.subr.mxu0 0.0
      %1325 = vmatpush1.msra.mxu0 0.0
      %1326 = vmatprep.subr.mxu0 0.0
      %1327 = vmatpush1.msra.mxu0 0.0
      %1328 = vmatprep.subr.mxu0 0.0
      %1329 = vmatpush1.msra.mxu0 0.0
      %1330 = vmatprep.subr.mxu0 0.0
      %1331 = vmatpush1.msra.mxu0 0.0
      %1332 = vmatprep.subr.mxu0 0.0
      %1333 = vmatpush1.msra.mxu0 0.0
      %1334 = vmatprep.subr.mxu0 0.0
      %1335 = vmatpush1.msra.mxu0 0.0
      %1336 = vmatprep.subr.mxu0 0.0
      %1337 = vmatpush1.msra.mxu0 0.0
      %1338 = vmatprep.subr.mxu0 0.0
      %1339 = vmatpush1.msra.mxu0 0.0
      %1340 = vmatprep.subr.mxu0 0.0
      %1341 = vmatpush1.msra.mxu0 0.0
      %1342 = vmatprep.subr.mxu0 0.0
      %1343 = vmatpush1.msra.mxu0 0.0
      %1344 = vmatprep.subr.mxu0 0.0
      %1345 = vmatpush1.msra.mxu0 0.0
      %1346 = vmatprep.subr.mxu0 0.0
      %1347 = vmatpush1.msra.mxu0 0.0
      %1348 = vmatprep.subr.mxu0 0.0
      %1349 = vmatpush1.msra.mxu0 0.0
      %1350 = vmatprep.subr.mxu0 0.0
      %1351 = vmatpush1.msra.mxu0 0.0
      %1352 = vmatprep.subr.mxu0 0.0
      %1353 = vmatpush1.msra.mxu0 0.0
      %1354 = vmatprep.subr.mxu0 0.0
      %1355 = vmatpush1.msra.mxu0 0.0
      %1356 = vmatprep.subr.mxu0 0.0
      %1357 = vmatpush1.msra.mxu0 0.0
      %1358 = vmatprep.subr.mxu0 0.0
      %1359 = vmatpush1.msra.mxu0 0.0
      %1360 = vmatprep.subr.mxu0 0.0
      %1361 = vmatpush1.msra.mxu0 0.0
      %1362 = vmatprep.subr.mxu0 0.0
      %1363 = vmatpush1.msra.mxu0 0.0
      %1364 = vmatprep.mubr.f32.mxu0 0.0
      %1365 = vmatmul.mubr.f32.gmra.mrb[0].mxu0 %v1277
      %v1366 = vpop.f32.mrb[0].mxu0
      %v1367 = vadd.f32 0.0, %v1366
      %v1368 = vpop.f32.mrb[0].mxu0
      %1369 = vmatprep.mubr.f32.mxu0 0.0
      %1370 = vmatmul.mubr.f32.gmra.mrb[0].mxu0 %v1280
      %v1371 = vpop.f32.mrb[0].mxu0
      %v1372 = vadd.f32 0.0, %v1371
      %v1373 = vpop.f32.mrb[0].mxu0
      %1374 = vmatprep.mubr.f32.mxu0 0.0
      %1375 = vmatmul.mubr.f32.gmra.mrb[0].mxu0 %v1283
      %v1376 = vpop.f32.mrb[0].mxu0
      %v1377 = vadd.f32 0.0, %v1376
      %v1378 = vpop.f32.mrb[0].mxu0
      %1379 = vmatprep.mubr.f32.mxu0 0.0
      %1380 = vmatmul.mubr.f32.gmra.mrb[0].mxu0 %v1286
      %v1381 = vpop.f32.mrb[0].mxu0
      %v1382 = vadd.f32 0.0, %v1381
      %v1383 = vpop.f32.mrb[0].mxu0
      %1384 = vmatprep.mubr.f32.mxu0 0.0
      %1385 = vmatmul.mubr.f32.gmra.mrb[0].mxu0 %v1289
      %v1386 = vpop.f32.mrb[0].mxu0
      %v1387 = vadd.f32 0.0, %v1386
      %v1388 = vpop.f32.mrb[0].mxu0
      %1389 = vmatprep.mubr.f32.mxu0 0.0
      %1390 = vmatmul.mubr.f32.gmra.mrb[0].mxu0 %v1292
      %v1391 = vpop.f32.mrb[0].mxu0
      %v1392 = vadd.f32 0.0, %v1391
      %v1393 = vpop.f32.mrb[0].mxu0
      %1394 = vmatprep.mubr.f32.mxu0 0.0
      %1395 = vmatmul.mubr.f32.gmra.mrb[0].mxu0 %v1295
      %v1396 = vpop.f32.mrb[0].mxu0
      %v1397 = vadd.f32 0.0, %v1396
      %v1398 = vpop.f32.mrb[0].mxu0
      %1399 = vmatprep.mubr.f32.mxu0 0.0
      %1400 = vmatmul.mubr.f32.gmra.mrb[0].mxu0 %v1298
      %v1401 = vpop.f32.mrb[0].mxu0
      %v1402 = vadd.f32 0.0, %v1401
      %v1403 = vpop.f32.mrb[0].mxu0
      %1404 = vdwg.mxu0
      %v1405 = vadd.f32 %v1257, %v1367
      %v1406 = vadd.f32 %v1258, %v1372
      %v1407 = vadd.f32 %v1259, %v1377
      %v1408 = vadd.f32 %v1260, %v1382
      %v1409 = vadd.f32 %v1261, %v1387
      %v1410 = vadd.f32 %v1262, %v1392
      %v1411 = vadd.f32 %v1263, %v1397
      %v1412 = vadd.f32 %v1264, %v1402
      %v1413 = vld [vmem:[%s1265 + $0x1] sm:$0xff]
      %v1414 = vld [vmem:[%s1265 + $0x11] sm:$0xff]
      %v1415 = vld [vmem:[%s1265 + $0x21] sm:$0xff]
      %v1416 = vld [vmem:[%s1265 + $0x31] sm:$0xff]
      %v1417 = vld [vmem:[%s1265 + $0x41] sm:$0xff]
      %v1418 = vld [vmem:[%s1265 + $0x51] sm:$0xff]
      %v1419 = vld [vmem:[%s1265 + $0x61] sm:$0xff]
      %v1420 = vld [vmem:[%s1265 + $0x71] sm:$0xff]
      %s1421 = scalar_lea.vmem %s4, 56
      %v1422 = vld [vmem:[%s1421] sm:$0xff]
      %v1424 = vsel %vm417, %v1413, 0
      %v1427 = vsel %vm417, %v1414, 0
      %v1430 = vsel %vm417, %v1415, 0
      %v1433 = vsel %vm417, %v1416, 0
      %v1436 = vsel %vm417, %v1417, 0
      %v1439 = vsel %vm417, %v1418, 0
      %v1442 = vsel %vm417, %v1419, 0
      %v1445 = vsel %vm417, %v1420, 0
      %1447 = vmatprep.subr.mxu0 0.0
      %1448 = vmatpush1.msra.mxu0 %v1422
      %1449 = vmatprep.subr.mxu0 0.0
      %1450 = vmatpush1.msra.mxu0 0.0
      %1451 = vmatprep.subr.mxu0 0.0
      %1452 = vmatpush1.msra.mxu0 0.0
      %1453 = vmatprep.subr.mxu0 0.0
      %1454 = vmatpush1.msra.mxu0 0.0
      %1455 = vmatprep.subr.mxu0 0.0
      %1456 = vmatpush1.msra.mxu0 0.0
      %1457 = vmatprep.subr.mxu0 0.0
      %1458 = vmatpush1.msra.mxu0 0.0
      %1459 = vmatprep.subr.mxu0 0.0
      %1460 = vmatpush1.msra.mxu0 0.0
      %1461 = vmatprep.subr.mxu0 0.0
      %1462 = vmatpush1.msra.mxu0 0.0
      %1463 = vmatprep.subr.mxu0 0.0
      %1464 = vmatpush1.msra.mxu0 0.0
      %1465 = vmatprep.subr.mxu0 0.0
      %1466 = vmatpush1.msra.mxu0 0.0
      %1467 = vmatprep.subr.mxu0 0.0
      %1468 = vmatpush1.msra.mxu0 0.0
      %1469 = vmatprep.subr.mxu0 0.0
      %1470 = vmatpush1.msra.mxu0 0.0
      %1471 = vmatprep.subr.mxu0 0.0
      %1472 = vmatpush1.msra.mxu0 0.0
      %1473 = vmatprep.subr.mxu0 0.0
      %1474 = vmatpush1.msra.mxu0 0.0
      %1475 = vmatprep.subr.mxu0 0.0
      %1476 = vmatpush1.msra.mxu0 0.0
      %1477 = vmatprep.subr.mxu0 0.0
      %1478 = vmatpush1.msra.mxu0 0.0
      %1479 = vmatprep.subr.mxu0 0.0
      %1480 = vmatpush1.msra.mxu0 0.0
      %1481 = vmatprep.subr.mxu0 0.0
      %1482 = vmatpush1.msra.mxu0 0.0
      %1483 = vmatprep.subr.mxu0 0.0
      %1484 = vmatpush1.msra.mxu0 0.0
      %1485 = vmatprep.subr.mxu0 0.0
      %1486 = vmatpush1.msra.mxu0 0.0
      %1487 = vmatprep.subr.mxu0 0.0
      %1488 = vmatpush1.msra.mxu0 0.0
      %1489 = vmatprep.subr.mxu0 0.0
      %1490 = vmatpush1.msra.mxu0 0.0
      %1491 = vmatprep.subr.mxu0 0.0
      %1492 = vmatpush1.msra.mxu0 0.0
      %1493 = vmatprep.subr.mxu0 0.0
      %1494 = vmatpush1.msra.mxu0 0.0
      %1495 = vmatprep.subr.mxu0 0.0
      %1496 = vmatpush1.msra.mxu0 0.0
      %1497 = vmatprep.subr.mxu0 0.0
      %1498 = vmatpush1.msra.mxu0 0.0
      %1499 = vmatprep.subr.mxu0 0.0
      %1500 = vmatpush1.msra.mxu0 0.0
      %1501 = vmatprep.subr.mxu0 0.0
      %1502 = vmatpush1.msra.mxu0 0.0
      %1503 = vmatprep.subr.mxu0 0.0
      %1504 = vmatpush1.msra.mxu0 0.0
      %1505 = vmatprep.subr.mxu0 0.0
      %1506 = vmatpush1.msra.mxu0 0.0
      %1507 = vmatprep.subr.mxu0 0.0
      %1508 = vmatpush1.msra.mxu0 0.0
      %1509 = vmatprep.subr.mxu0 0.0
      %1510 = vmatpush1.msra.mxu0 0.0
      %1511 = vmatprep.mubr.f32.mxu0 0.0
      %1512 = vmatmul.mubr.f32.gmra.mrb[0].mxu0 %v1424
      %v1513 = vpop.f32.mrb[0].mxu0
      %v1514 = vadd.f32 0.0, %v1513
      %v1515 = vpop.f32.mrb[0].mxu0
      %1516 = vmatprep.mubr.f32.mxu0 0.0
      %1517 = vmatmul.mubr.f32.gmra.mrb[0].mxu0 %v1427
      %v1518 = vpop.f32.mrb[0].mxu0
      %v1519 = vadd.f32 0.0, %v1518
      %v1520 = vpop.f32.mrb[0].mxu0
      %1521 = vmatprep.mubr.f32.mxu0 0.0
      %1522 = vmatmul.mubr.f32.gmra.mrb[0].mxu0 %v1430
      %v1523 = vpop.f32.mrb[0].mxu0
      %v1524 = vadd.f32 0.0, %v1523
      %v1525 = vpop.f32.mrb[0].mxu0
      %1526 = vmatprep.mubr.f32.mxu0 0.0
      %1527 = vmatmul.mubr.f32.gmra.mrb[0].mxu0 %v1433
      %v1528 = vpop.f32.mrb[0].mxu0
      %v1529 = vadd.f32 0.0, %v1528
      %v1530 = vpop.f32.mrb[0].mxu0
      %1531 = vmatprep.mubr.f32.mxu0 0.0
      %1532 = vmatmul.mubr.f32.gmra.mrb[0].mxu0 %v1436
      %v1533 = vpop.f32.mrb[0].mxu0
      %v1534 = vadd.f32 0.0, %v1533
      %v1535 = vpop.f32.mrb[0].mxu0
      %1536 = vmatprep.mubr.f32.mxu0 0.0
      %1537 = vmatmul.mubr.f32.gmra.mrb[0].mxu0 %v1439
      %v1538 = vpop.f32.mrb[0].mxu0
      %v1539 = vadd.f32 0.0, %v1538
      %v1540 = vpop.f32.mrb[0].mxu0
      %1541 = vmatprep.mubr.f32.mxu0 0.0
      %1542 = vmatmul.mubr.f32.gmra.mrb[0].mxu0 %v1442
      %v1543 = vpop.f32.mrb[0].mxu0
      %v1544 = vadd.f32 0.0, %v1543
      %v1545 = vpop.f32.mrb[0].mxu0
      %1546 = vmatprep.mubr.f32.mxu0 0.0
      %1547 = vmatmul.mubr.f32.gmra.mrb[0].mxu0 %v1445
      %v1548 = vpop.f32.mrb[0].mxu0
      %v1549 = vadd.f32 0.0, %v1548
      %v1550 = vpop.f32.mrb[0].mxu0
      %1551 = vdwg.mxu0
      %v1552 = vadd.f32 %v1405, %v1514
      %v1553 = vadd.f32 %v1406, %v1519
      %v1554 = vadd.f32 %v1407, %v1524
      %v1555 = vadd.f32 %v1408, %v1529
      %v1556 = vadd.f32 %v1409, %v1534
      %v1557 = vadd.f32 %v1410, %v1539
      %v1558 = vadd.f32 %v1411, %v1544
      %v1559 = vadd.f32 %v1412, %v1549
      %v1560 = vld [vmem:[%s1265 + $0x2] sm:$0xff]
      %v1561 = vld [vmem:[%s1265 + $0x12] sm:$0xff]
      %v1562 = vld [vmem:[%s1265 + $0x22] sm:$0xff]
      %v1563 = vld [vmem:[%s1265 + $0x32] sm:$0xff]
      %v1564 = vld [vmem:[%s1265 + $0x42] sm:$0xff]
      %v1565 = vld [vmem:[%s1265 + $0x52] sm:$0xff]
      %v1566 = vld [vmem:[%s1265 + $0x62] sm:$0xff]
      %v1567 = vld [vmem:[%s1265 + $0x72] sm:$0xff]
      %s1568 = scalar_lea.vmem %s4, 64
      %v1569 = vld [vmem:[%s1568] sm:$0xff]
      %v1571 = vsel %vm417, %v1560, 0
      %v1574 = vsel %vm417, %v1561, 0
      %v1577 = vsel %vm417, %v1562, 0
      %v1580 = vsel %vm417, %v1563, 0
      %v1583 = vsel %vm417, %v1564, 0
      %v1586 = vsel %vm417, %v1565, 0
      %v1589 = vsel %vm417, %v1566, 0
      %v1592 = vsel %vm417, %v1567, 0
      %1594 = vmatprep.subr.mxu0 0.0
      %1595 = vmatpush1.msra.mxu0 %v1569
      %1596 = vmatprep.subr.mxu0 0.0
      %1597 = vmatpush1.msra.mxu0 0.0
      %1598 = vmatprep.subr.mxu0 0.0
      %1599 = vmatpush1.msra.mxu0 0.0
      %1600 = vmatprep.subr.mxu0 0.0
      %1601 = vmatpush1.msra.mxu0 0.0
      %1602 = vmatprep.subr.mxu0 0.0
      %1603 = vmatpush1.msra.mxu0 0.0
      %1604 = vmatprep.subr.mxu0 0.0
      %1605 = vmatpush1.msra.mxu0 0.0
      %1606 = vmatprep.subr.mxu0 0.0
      %1607 = vmatpush1.msra.mxu0 0.0
      %1608 = vmatprep.subr.mxu0 0.0
      %1609 = vmatpush1.msra.mxu0 0.0
      %1610 = vmatprep.subr.mxu0 0.0
      %1611 = vmatpush1.msra.mxu0 0.0
      %1612 = vmatprep.subr.mxu0 0.0
      %1613 = vmatpush1.msra.mxu0 0.0
      %1614 = vmatprep.subr.mxu0 0.0
      %1615 = vmatpush1.msra.mxu0 0.0
      %1616 = vmatprep.subr.mxu0 0.0
      %1617 = vmatpush1.msra.mxu0 0.0
      %1618 = vmatprep.subr.mxu0 0.0
      %1619 = vmatpush1.msra.mxu0 0.0
      %1620 = vmatprep.subr.mxu0 0.0
      %1621 = vmatpush1.msra.mxu0 0.0
      %1622 = vmatprep.subr.mxu0 0.0
      %1623 = vmatpush1.msra.mxu0 0.0
      %1624 = vmatprep.subr.mxu0 0.0
      %1625 = vmatpush1.msra.mxu0 0.0
      %1626 = vmatprep.subr.mxu0 0.0
      %1627 = vmatpush1.msra.mxu0 0.0
      %1628 = vmatprep.subr.mxu0 0.0
      %1629 = vmatpush1.msra.mxu0 0.0
      %1630 = vmatprep.subr.mxu0 0.0
      %1631 = vmatpush1.msra.mxu0 0.0
      %1632 = vmatprep.subr.mxu0 0.0
      %1633 = vmatpush1.msra.mxu0 0.0
      %1634 = vmatprep.subr.mxu0 0.0
      %1635 = vmatpush1.msra.mxu0 0.0
      %1636 = vmatprep.subr.mxu0 0.0
      %1637 = vmatpush1.msra.mxu0 0.0
      %1638 = vmatprep.subr.mxu0 0.0
      %1639 = vmatpush1.msra.mxu0 0.0
      %1640 = vmatprep.subr.mxu0 0.0
      %1641 = vmatpush1.msra.mxu0 0.0
      %1642 = vmatprep.subr.mxu0 0.0
      %1643 = vmatpush1.msra.mxu0 0.0
      %1644 = vmatprep.subr.mxu0 0.0
      %1645 = vmatpush1.msra.mxu0 0.0
      %1646 = vmatprep.subr.mxu0 0.0
      %1647 = vmatpush1.msra.mxu0 0.0
      %1648 = vmatprep.subr.mxu0 0.0
      %1649 = vmatpush1.msra.mxu0 0.0
      %1650 = vmatprep.subr.mxu0 0.0
      %1651 = vmatpush1.msra.mxu0 0.0
      %1652 = vmatprep.subr.mxu0 0.0
      %1653 = vmatpush1.msra.mxu0 0.0
      %1654 = vmatprep.subr.mxu0 0.0
      %1655 = vmatpush1.msra.mxu0 0.0
      %1656 = vmatprep.subr.mxu0 0.0
      %1657 = vmatpush1.msra.mxu0 0.0
      %1658 = vmatprep.mubr.f32.mxu0 0.0
      %1659 = vmatmul.mubr.f32.gmra.mrb[0].mxu0 %v1571
      %v1660 = vpop.f32.mrb[0].mxu0
      %v1661 = vadd.f32 0.0, %v1660
      %v1662 = vpop.f32.mrb[0].mxu0
      %1663 = vmatprep.mubr.f32.mxu0 0.0
      %1664 = vmatmul.mubr.f32.gmra.mrb[0].mxu0 %v1574
      %v1665 = vpop.f32.mrb[0].mxu0
      %v1666 = vadd.f32 0.0, %v1665
      %v1667 = vpop.f32.mrb[0].mxu0
      %1668 = vmatprep.mubr.f32.mxu0 0.0
      %1669 = vmatmul.mubr.f32.gmra.mrb[0].mxu0 %v1577
      %v1670 = vpop.f32.mrb[0].mxu0
      %v1671 = vadd.f32 0.0, %v1670
      %v1672 = vpop.f32.mrb[0].mxu0
      %1673 = vmatprep.mubr.f32.mxu0 0.0
      %1674 = vmatmul.mubr.f32.gmra.mrb[0].mxu0 %v1580
      %v1675 = vpop.f32.mrb[0].mxu0
      %v1676 = vadd.f32 0.0, %v1675
      %v1677 = vpop.f32.mrb[0].mxu0
      %1678 = vmatprep.mubr.f32.mxu0 0.0
      %1679 = vmatmul.mubr.f32.gmra.mrb[0].mxu0 %v1583
      %v1680 = vpop.f32.mrb[0].mxu0
      %v1681 = vadd.f32 0.0, %v1680
      %v1682 = vpop.f32.mrb[0].mxu0
      %1683 = vmatprep.mubr.f32.mxu0 0.0
      %1684 = vmatmul.mubr.f32.gmra.mrb[0].mxu0 %v1586
      %v1685 = vpop.f32.mrb[0].mxu0
      %v1686 = vadd.f32 0.0, %v1685
      %v1687 = vpop.f32.mrb[0].mxu0
      %1688 = vmatprep.mubr.f32.mxu0 0.0
      %1689 = vmatmul.mubr.f32.gmra.mrb[0].mxu0 %v1589
      %v1690 = vpop.f32.mrb[0].mxu0
      %v1691 = vadd.f32 0.0, %v1690
      %v1692 = vpop.f32.mrb[0].mxu0
      %1693 = vmatprep.mubr.f32.mxu0 0.0
      %1694 = vmatmul.mubr.f32.gmra.mrb[0].mxu0 %v1592
      %v1695 = vpop.f32.mrb[0].mxu0
      %v1696 = vadd.f32 0.0, %v1695
      %v1697 = vpop.f32.mrb[0].mxu0
      %1698 = vdwg.mxu0
      %v1699 = vadd.f32 %v1552, %v1661
      %v1700 = vadd.f32 %v1553, %v1666
      %v1701 = vadd.f32 %v1554, %v1671
      %v1702 = vadd.f32 %v1555, %v1676
      %v1703 = vadd.f32 %v1556, %v1681
      %v1704 = vadd.f32 %v1557, %v1686
      %v1705 = vadd.f32 %v1558, %v1691
      %v1706 = vadd.f32 %v1559, %v1696
      %v1707 = vld [vmem:[%s376] sm:$0xff]
      %v1708 = vld [vmem:[%s376 + $0x10] sm:$0xff]
      %v1709 = vld [vmem:[%s376 + $0x20] sm:$0xff]
      %v1710 = vld [vmem:[%s376 + $0x30] sm:$0xff]
      %v1711 = vld [vmem:[%s376 + $0x40] sm:$0xff]
      %v1712 = vld [vmem:[%s376 + $0x50] sm:$0xff]
      %v1713 = vld [vmem:[%s376 + $0x60] sm:$0xff]
      %v1714 = vld [vmem:[%s376 + $0x70] sm:$0xff]
      %s1715 = scalar_lea.vmem %s4, 72
      %v1716 = vld [vmem:[%s1715] sm:$0xff]
      %v1718 = vsel %vm417, %v1707, 0
      %v1721 = vsel %vm417, %v1708, 0
      %v1724 = vsel %vm417, %v1709, 0
      %v1727 = vsel %vm417, %v1710, 0
      %v1730 = vsel %vm417, %v1711, 0
      %v1733 = vsel %vm417, %v1712, 0
      %v1736 = vsel %vm417, %v1713, 0
      %v1739 = vsel %vm417, %v1714, 0
      %1741 = vmatprep.subr.mxu0 0.0
      %1742 = vmatpush1.msra.mxu0 %v1716
      %1743 = vmatprep.subr.mxu0 0.0
      %1744 = vmatpush1.msra.mxu0 0.0
      %1745 = vmatprep.subr.mxu0 0.0
      %1746 = vmatpush1.msra.mxu0 0.0
      %1747 = vmatprep.subr.mxu0 0.0
      %1748 = vmatpush1.msra.mxu0 0.0
      %1749 = vmatprep.subr.mxu0 0.0
      %1750 = vmatpush1.msra.mxu0 0.0
      %1751 = vmatprep.subr.mxu0 0.0
      %1752 = vmatpush1.msra.mxu0 0.0
      %1753 = vmatprep.subr.mxu0 0.0
      %1754 = vmatpush1.msra.mxu0 0.0
      %1755 = vmatprep.subr.mxu0 0.0
      %1756 = vmatpush1.msra.mxu0 0.0
      %1757 = vmatprep.subr.mxu0 0.0
      %1758 = vmatpush1.msra.mxu0 0.0
      %1759 = vmatprep.subr.mxu0 0.0
      %1760 = vmatpush1.msra.mxu0 0.0
      %1761 = vmatprep.subr.mxu0 0.0
      %1762 = vmatpush1.msra.mxu0 0.0
      %1763 = vmatprep.subr.mxu0 0.0
      %1764 = vmatpush1.msra.mxu0 0.0
      %1765 = vmatprep.subr.mxu0 0.0
      %1766 = vmatpush1.msra.mxu0 0.0
      %1767 = vmatprep.subr.mxu0 0.0
      %1768 = vmatpush1.msra.mxu0 0.0
      %1769 = vmatprep.subr.mxu0 0.0
      %1770 = vmatpush1.msra.mxu0 0.0
      %1771 = vmatprep.subr.mxu0 0.0
      %1772 = vmatpush1.msra.mxu0 0.0
      %1773 = vmatprep.subr.mxu0 0.0
      %1774 = vmatpush1.msra.mxu0 0.0
      %1775 = vmatprep.subr.mxu0 0.0
      %1776 = vmatpush1.msra.mxu0 0.0
      %1777 = vmatprep.subr.mxu0 0.0
      %1778 = vmatpush1.msra.mxu0 0.0
      %1779 = vmatprep.subr.mxu0 0.0
      %1780 = vmatpush1.msra.mxu0 0.0
      %1781 = vmatprep.subr.mxu0 0.0
      %1782 = vmatpush1.msra.mxu0 0.0
      %1783 = vmatprep.subr.mxu0 0.0
      %1784 = vmatpush1.msra.mxu0 0.0
      %1785 = vmatprep.subr.mxu0 0.0
      %1786 = vmatpush1.msra.mxu0 0.0
      %1787 = vmatprep.subr.mxu0 0.0
      %1788 = vmatpush1.msra.mxu0 0.0
      %1789 = vmatprep.subr.mxu0 0.0
      %1790 = vmatpush1.msra.mxu0 0.0
      %1791 = vmatprep.subr.mxu0 0.0
      %1792 = vmatpush1.msra.mxu0 0.0
      %1793 = vmatprep.subr.mxu0 0.0
      %1794 = vmatpush1.msra.mxu0 0.0
      %1795 = vmatprep.subr.mxu0 0.0
      %1796 = vmatpush1.msra.mxu0 0.0
      %1797 = vmatprep.subr.mxu0 0.0
      %1798 = vmatpush1.msra.mxu0 0.0
      %1799 = vmatprep.subr.mxu0 0.0
      %1800 = vmatpush1.msra.mxu0 0.0
      %1801 = vmatprep.subr.mxu0 0.0
      %1802 = vmatpush1.msra.mxu0 0.0
      %1803 = vmatprep.subr.mxu0 0.0
      %1804 = vmatpush1.msra.mxu0 0.0
      %1805 = vmatprep.mubr.f32.mxu0 0.0
      %1806 = vmatmul.mubr.f32.gmra.mrb[0].mxu0 %v1718
      %v1807 = vpop.f32.mrb[0].mxu0
      %v1808 = vadd.f32 0.0, %v1807
      %v1809 = vpop.f32.mrb[0].mxu0
      %1810 = vmatprep.mubr.f32.mxu0 0.0
      %1811 = vmatmul.mubr.f32.gmra.mrb[0].mxu0 %v1721
      %v1812 = vpop.f32.mrb[0].mxu0
      %v1813 = vadd.f32 0.0, %v1812
      %v1814 = vpop.f32.mrb[0].mxu0
      %1815 = vmatprep.mubr.f32.mxu0 0.0
      %1816 = vmatmul.mubr.f32.gmra.mrb[0].mxu0 %v1724
      %v1817 = vpop.f32.mrb[0].mxu0
      %v1818 = vadd.f32 0.0, %v1817
      %v1819 = vpop.f32.mrb[0].mxu0
      %1820 = vmatprep.mubr.f32.mxu0 0.0
      %1821 = vmatmul.mubr.f32.gmra.mrb[0].mxu0 %v1727
      %v1822 = vpop.f32.mrb[0].mxu0
      %v1823 = vadd.f32 0.0, %v1822
      %v1824 = vpop.f32.mrb[0].mxu0
      %1825 = vmatprep.mubr.f32.mxu0 0.0
      %1826 = vmatmul.mubr.f32.gmra.mrb[0].mxu0 %v1730
      %v1827 = vpop.f32.mrb[0].mxu0
      %v1828 = vadd.f32 0.0, %v1827
      %v1829 = vpop.f32.mrb[0].mxu0
      %1830 = vmatprep.mubr.f32.mxu0 0.0
      %1831 = vmatmul.mubr.f32.gmra.mrb[0].mxu0 %v1733
      %v1832 = vpop.f32.mrb[0].mxu0
      %v1833 = vadd.f32 0.0, %v1832
      %v1834 = vpop.f32.mrb[0].mxu0
      %1835 = vmatprep.mubr.f32.mxu0 0.0
      %1836 = vmatmul.mubr.f32.gmra.mrb[0].mxu0 %v1736
      %v1837 = vpop.f32.mrb[0].mxu0
      %v1838 = vadd.f32 0.0, %v1837
      %v1839 = vpop.f32.mrb[0].mxu0
      %1840 = vmatprep.mubr.f32.mxu0 0.0
      %1841 = vmatmul.mubr.f32.gmra.mrb[0].mxu0 %v1739
      %v1842 = vpop.f32.mrb[0].mxu0
      %v1843 = vadd.f32 0.0, %v1842
      %v1844 = vpop.f32.mrb[0].mxu0
      %1845 = vdwg.mxu0
      %v1846 = vadd.f32 %v1699, %v1808
      %v1847 = vadd.f32 %v1700, %v1813
      %v1848 = vadd.f32 %v1701, %v1818
      %v1849 = vadd.f32 %v1702, %v1823
      %v1850 = vadd.f32 %v1703, %v1828
      %v1851 = vadd.f32 %v1704, %v1833
      %v1852 = vadd.f32 %v1705, %v1838
      %v1853 = vadd.f32 %v1706, %v1843
      %v1854 = vld [vmem:[%s376 + $0x1] sm:$0xff]
      %v1855 = vld [vmem:[%s376 + $0x11] sm:$0xff]
      %v1856 = vld [vmem:[%s376 + $0x21] sm:$0xff]
      %v1857 = vld [vmem:[%s376 + $0x31] sm:$0xff]
      %v1858 = vld [vmem:[%s376 + $0x41] sm:$0xff]
      %v1859 = vld [vmem:[%s376 + $0x51] sm:$0xff]
      %v1860 = vld [vmem:[%s376 + $0x61] sm:$0xff]
      %v1861 = vld [vmem:[%s376 + $0x71] sm:$0xff]
      %s1862 = scalar_lea.vmem %s4, 80
      %v1863 = vld [vmem:[%s1862] sm:$0xff]
      %v1865 = vsel %vm417, %v1854, 0
      %v1868 = vsel %vm417, %v1855, 0
      %v1871 = vsel %vm417, %v1856, 0
      %v1874 = vsel %vm417, %v1857, 0
      %v1877 = vsel %vm417, %v1858, 0
      %v1880 = vsel %vm417, %v1859, 0
      %v1883 = vsel %vm417, %v1860, 0
      %v1886 = vsel %vm417, %v1861, 0
      %1888 = vmatprep.subr.mxu0 0.0
      %1889 = vmatpush1.msra.mxu0 %v1863
      %1890 = vmatprep.subr.mxu0 0.0
      %1891 = vmatpush1.msra.mxu0 0.0
      %1892 = vmatprep.subr.mxu0 0.0
      %1893 = vmatpush1.msra.mxu0 0.0
      %1894 = vmatprep.subr.mxu0 0.0
      %1895 = vmatpush1.msra.mxu0 0.0
      %1896 = vmatprep.subr.mxu0 0.0
      %1897 = vmatpush1.msra.mxu0 0.0
      %1898 = vmatprep.subr.mxu0 0.0
      %1899 = vmatpush1.msra.mxu0 0.0
      %1900 = vmatprep.subr.mxu0 0.0
      %1901 = vmatpush1.msra.mxu0 0.0
      %1902 = vmatprep.subr.mxu0 0.0
      %1903 = vmatpush1.msra.mxu0 0.0
      %1904 = vmatprep.subr.mxu0 0.0
      %1905 = vmatpush1.msra.mxu0 0.0
      %1906 = vmatprep.subr.mxu0 0.0
      %1907 = vmatpush1.msra.mxu0 0.0
      %1908 = vmatprep.subr.mxu0 0.0
      %1909 = vmatpush1.msra.mxu0 0.0
      %1910 = vmatprep.subr.mxu0 0.0
      %1911 = vmatpush1.msra.mxu0 0.0
      %1912 = vmatprep.subr.mxu0 0.0
      %1913 = vmatpush1.msra.mxu0 0.0
      %1914 = vmatprep.subr.mxu0 0.0
      %1915 = vmatpush1.msra.mxu0 0.0
      %1916 = vmatprep.subr.mxu0 0.0
      %1917 = vmatpush1.msra.mxu0 0.0
      %1918 = vmatprep.subr.mxu0 0.0
      %1919 = vmatpush1.msra.mxu0 0.0
      %1920 = vmatprep.subr.mxu0 0.0
      %1921 = vmatpush1.msra.mxu0 0.0
      %1922 = vmatprep.subr.mxu0 0.0
      %1923 = vmatpush1.msra.mxu0 0.0
      %1924 = vmatprep.subr.mxu0 0.0
      %1925 = vmatpush1.msra.mxu0 0.0
      %1926 = vmatprep.subr.mxu0 0.0
      %1927 = vmatpush1.msra.mxu0 0.0
      %1928 = vmatprep.subr.mxu0 0.0
      %1929 = vmatpush1.msra.mxu0 0.0
      %1930 = vmatprep.subr.mxu0 0.0
      %1931 = vmatpush1.msra.mxu0 0.0
      %1932 = vmatprep.subr.mxu0 0.0
      %1933 = vmatpush1.msra.mxu0 0.0
      %1934 = vmatprep.subr.mxu0 0.0
      %1935 = vmatpush1.msra.mxu0 0.0
      %1936 = vmatprep.subr.mxu0 0.0
      %1937 = vmatpush1.msra.mxu0 0.0
      %1938 = vmatprep.subr.mxu0 0.0
      %1939 = vmatpush1.msra.mxu0 0.0
      %1940 = vmatprep.subr.mxu0 0.0
      %1941 = vmatpush1.msra.mxu0 0.0
      %1942 = vmatprep.subr.mxu0 0.0
      %1943 = vmatpush1.msra.mxu0 0.0
      %1944 = vmatprep.subr.mxu0 0.0
      %1945 = vmatpush1.msra.mxu0 0.0
      %1946 = vmatprep.subr.mxu0 0.0
      %1947 = vmatpush1.msra.mxu0 0.0
      %1948 = vmatprep.subr.mxu0 0.0
      %1949 = vmatpush1.msra.mxu0 0.0
      %1950 = vmatprep.subr.mxu0 0.0
      %1951 = vmatpush1.msra.mxu0 0.0
      %1952 = vmatprep.mubr.f32.mxu0 0.0
      %1953 = vmatmul.mubr.f32.gmra.mrb[0].mxu0 %v1865
      %v1954 = vpop.f32.mrb[0].mxu0
      %v1955 = vadd.f32 0.0, %v1954
      %v1956 = vpop.f32.mrb[0].mxu0
      %1957 = vmatprep.mubr.f32.mxu0 0.0
      %1958 = vmatmul.mubr.f32.gmra.mrb[0].mxu0 %v1868
      %v1959 = vpop.f32.mrb[0].mxu0
      %v1960 = vadd.f32 0.0, %v1959
      %v1961 = vpop.f32.mrb[0].mxu0
      %1962 = vmatprep.mubr.f32.mxu0 0.0
      %1963 = vmatmul.mubr.f32.gmra.mrb[0].mxu0 %v1871
      %v1964 = vpop.f32.mrb[0].mxu0
      %v1965 = vadd.f32 0.0, %v1964
      %v1966 = vpop.f32.mrb[0].mxu0
      %1967 = vmatprep.mubr.f32.mxu0 0.0
      %1968 = vmatmul.mubr.f32.gmra.mrb[0].mxu0 %v1874
      %v1969 = vpop.f32.mrb[0].mxu0
      %v1970 = vadd.f32 0.0, %v1969
      %v1971 = vpop.f32.mrb[0].mxu0
      %1972 = vmatprep.mubr.f32.mxu0 0.0
      %1973 = vmatmul.mubr.f32.gmra.mrb[0].mxu0 %v1877
      %v1974 = vpop.f32.mrb[0].mxu0
      %v1975 = vadd.f32 0.0, %v1974
      %v1976 = vpop.f32.mrb[0].mxu0
      %1977 = vmatprep.mubr.f32.mxu0 0.0
      %1978 = vmatmul.mubr.f32.gmra.mrb[0].mxu0 %v1880
      %v1979 = vpop.f32.mrb[0].mxu0
      %v1980 = vadd.f32 0.0, %v1979
      %v1981 = vpop.f32.mrb[0].mxu0
      %1982 = vmatprep.mubr.f32.mxu0 0.0
      %1983 = vmatmul.mubr.f32.gmra.mrb[0].mxu0 %v1883
      %v1984 = vpop.f32.mrb[0].mxu0
      %v1985 = vadd.f32 0.0, %v1984
      %v1986 = vpop.f32.mrb[0].mxu0
      %1987 = vmatprep.mubr.f32.mxu0 0.0
      %1988 = vmatmul.mubr.f32.gmra.mrb[0].mxu0 %v1886
      %v1989 = vpop.f32.mrb[0].mxu0
      %v1990 = vadd.f32 0.0, %v1989
      %v1991 = vpop.f32.mrb[0].mxu0
      %1992 = vdwg.mxu0
      %v1993 = vadd.f32 %v1846, %v1955
      %v1994 = vadd.f32 %v1847, %v1960
      %v1995 = vadd.f32 %v1848, %v1965
      %v1996 = vadd.f32 %v1849, %v1970
      %v1997 = vadd.f32 %v1850, %v1975
      %v1998 = vadd.f32 %v1851, %v1980
      %v1999 = vadd.f32 %v1852, %v1985
      %v2000 = vadd.f32 %v1853, %v1990
      %v2001 = vld [vmem:[%s376 + $0x2] sm:$0xff]
      %v2002 = vld [vmem:[%s376 + $0x12] sm:$0xff]
      %v2003 = vld [vmem:[%s376 + $0x22] sm:$0xff]
      %v2004 = vld [vmem:[%s376 + $0x32] sm:$0xff]
      %v2005 = vld [vmem:[%s376 + $0x42] sm:$0xff]
      %v2006 = vld [vmem:[%s376 + $0x52] sm:$0xff]
      %v2007 = vld [vmem:[%s376 + $0x62] sm:$0xff]
      %v2008 = vld [vmem:[%s376 + $0x72] sm:$0xff]
      %s2009 = scalar_lea.vmem %s4, 88
      %v2010 = vld [vmem:[%s2009] sm:$0xff]
      %v2012 = vsel %vm417, %v2001, 0
      %v2015 = vsel %vm417, %v2002, 0
      %v2018 = vsel %vm417, %v2003, 0
      %v2021 = vsel %vm417, %v2004, 0
      %v2024 = vsel %vm417, %v2005, 0
      %v2027 = vsel %vm417, %v2006, 0
      %v2030 = vsel %vm417, %v2007, 0
      %v2033 = vsel %vm417, %v2008, 0
      %2035 = vmatprep.subr.mxu0 0.0
      %2036 = vmatpush1.msra.mxu0 %v2010
      %2037 = vmatprep.subr.mxu0 0.0
      %2038 = vmatpush1.msra.mxu0 0.0
      %2039 = vmatprep.subr.mxu0 0.0
      %2040 = vmatpush1.msra.mxu0 0.0
      %2041 = vmatprep.subr.mxu0 0.0
      %2042 = vmatpush1.msra.mxu0 0.0
      %2043 = vmatprep.subr.mxu0 0.0
      %2044 = vmatpush1.msra.mxu0 0.0
      %2045 = vmatprep.subr.mxu0 0.0
      %2046 = vmatpush1.msra.mxu0 0.0
      %2047 = vmatprep.subr.mxu0 0.0
      %2048 = vmatpush1.msra.mxu0 0.0
      %2049 = vmatprep.subr.mxu0 0.0
      %2050 = vmatpush1.msra.mxu0 0.0
      %2051 = vmatprep.subr.mxu0 0.0
      %2052 = vmatpush1.msra.mxu0 0.0
      %2053 = vmatprep.subr.mxu0 0.0
      %2054 = vmatpush1.msra.mxu0 0.0
      %2055 = vmatprep.subr.mxu0 0.0
      %2056 = vmatpush1.msra.mxu0 0.0
      %2057 = vmatprep.subr.mxu0 0.0
      %2058 = vmatpush1.msra.mxu0 0.0
      %2059 = vmatprep.subr.mxu0 0.0
      %2060 = vmatpush1.msra.mxu0 0.0
      %2061 = vmatprep.subr.mxu0 0.0
      %2062 = vmatpush1.msra.mxu0 0.0
      %2063 = vmatprep.subr.mxu0 0.0
      %2064 = vmatpush1.msra.mxu0 0.0
      %2065 = vmatprep.subr.mxu0 0.0
      %2066 = vmatpush1.msra.mxu0 0.0
      %2067 = vmatprep.subr.mxu0 0.0
      %2068 = vmatpush1.msra.mxu0 0.0
      %2069 = vmatprep.subr.mxu0 0.0
      %2070 = vmatpush1.msra.mxu0 0.0
      %2071 = vmatprep.subr.mxu0 0.0
      %2072 = vmatpush1.msra.mxu0 0.0
      %2073 = vmatprep.subr.mxu0 0.0
      %2074 = vmatpush1.msra.mxu0 0.0
      %2075 = vmatprep.subr.mxu0 0.0
      %2076 = vmatpush1.msra.mxu0 0.0
      %2077 = vmatprep.subr.mxu0 0.0
      %2078 = vmatpush1.msra.mxu0 0.0
      %2079 = vmatprep.subr.mxu0 0.0
      %2080 = vmatpush1.msra.mxu0 0.0
      %2081 = vmatprep.subr.mxu0 0.0
      %2082 = vmatpush1.msra.mxu0 0.0
      %2083 = vmatprep.subr.mxu0 0.0
      %2084 = vmatpush1.msra.mxu0 0.0
      %2085 = vmatprep.subr.mxu0 0.0
      %2086 = vmatpush1.msra.mxu0 0.0
      %2087 = vmatprep.subr.mxu0 0.0
      %2088 = vmatpush1.msra.mxu0 0.0
      %2089 = vmatprep.subr.mxu0 0.0
      %2090 = vmatpush1.msra.mxu0 0.0
      %2091 = vmatprep.subr.mxu0 0.0
      %2092 = vmatpush1.msra.mxu0 0.0
      %2093 = vmatprep.subr.mxu0 0.0
      %2094 = vmatpush1.msra.mxu0 0.0
      %2095 = vmatprep.subr.mxu0 0.0
      %2096 = vmatpush1.msra.mxu0 0.0
      %2097 = vmatprep.subr.mxu0 0.0
      %2098 = vmatpush1.msra.mxu0 0.0
      %2099 = vmatprep.mubr.f32.mxu0 0.0
      %2100 = vmatmul.mubr.f32.gmra.mrb[0].mxu0 %v2012
      %v2101 = vpop.f32.mrb[0].mxu0
      %v2102 = vadd.f32 0.0, %v2101
      %v2103 = vpop.f32.mrb[0].mxu0
      %2104 = vmatprep.mubr.f32.mxu0 0.0
      %2105 = vmatmul.mubr.f32.gmra.mrb[0].mxu0 %v2015
      %v2106 = vpop.f32.mrb[0].mxu0
      %v2107 = vadd.f32 0.0, %v2106
      %v2108 = vpop.f32.mrb[0].mxu0
      %2109 = vmatprep.mubr.f32.mxu0 0.0
      %2110 = vmatmul.mubr.f32.gmra.mrb[0].mxu0 %v2018
      %v2111 = vpop.f32.mrb[0].mxu0
      %v2112 = vadd.f32 0.0, %v2111
      %v2113 = vpop.f32.mrb[0].mxu0
      %2114 = vmatprep.mubr.f32.mxu0 0.0
      %2115 = vmatmul.mubr.f32.gmra.mrb[0].mxu0 %v2021
      %v2116 = vpop.f32.mrb[0].mxu0
      %v2117 = vadd.f32 0.0, %v2116
      %v2118 = vpop.f32.mrb[0].mxu0
      %2119 = vmatprep.mubr.f32.mxu0 0.0
      %2120 = vmatmul.mubr.f32.gmra.mrb[0].mxu0 %v2024
      %v2121 = vpop.f32.mrb[0].mxu0
      %v2122 = vadd.f32 0.0, %v2121
      %v2123 = vpop.f32.mrb[0].mxu0
      %2124 = vmatprep.mubr.f32.mxu0 0.0
      %2125 = vmatmul.mubr.f32.gmra.mrb[0].mxu0 %v2027
      %v2126 = vpop.f32.mrb[0].mxu0
      %v2127 = vadd.f32 0.0, %v2126
      %v2128 = vpop.f32.mrb[0].mxu0
      %2129 = vmatprep.mubr.f32.mxu0 0.0
      %2130 = vmatmul.mubr.f32.gmra.mrb[0].mxu0 %v2030
      %v2131 = vpop.f32.mrb[0].mxu0
      %v2132 = vadd.f32 0.0, %v2131
      %v2133 = vpop.f32.mrb[0].mxu0
      %2134 = vmatprep.mubr.f32.mxu0 0.0
      %2135 = vmatmul.mubr.f32.gmra.mrb[0].mxu0 %v2033
      %v2136 = vpop.f32.mrb[0].mxu0
      %v2137 = vadd.f32 0.0, %v2136
      %v2138 = vpop.f32.mrb[0].mxu0
      %2139 = vdwg.mxu0
      %v2140 = vadd.f32 %v1993, %v2102
      %v2141 = vadd.f32 %v1994, %v2107
      %v2142 = vadd.f32 %v1995, %v2112
      %v2143 = vadd.f32 %v1996, %v2117
      %v2144 = vadd.f32 %v1997, %v2122
      %v2145 = vadd.f32 %v1998, %v2127
      %v2146 = vadd.f32 %v1999, %v2132
      %v2147 = vadd.f32 %v2000, %v2137
      %s2148 = scalar_lea.vmem %s376, 16
      %v2149 = vld [vmem:[%s2148] sm:$0xff]
      %v2150 = vld [vmem:[%s2148 + $0x10] sm:$0xff]
      %v2151 = vld [vmem:[%s2148 + $0x20] sm:$0xff]
      %v2152 = vld [vmem:[%s2148 + $0x30] sm:$0xff]
      %v2153 = vld [vmem:[%s2148 + $0x40] sm:$0xff]
      %v2154 = vld [vmem:[%s2148 + $0x50] sm:$0xff]
      %v2155 = vld [vmem:[%s2148 + $0x60] sm:$0xff]
      %v2156 = vld [vmem:[%s2148 + $0x70] sm:$0xff]
      %s2157 = scalar_lea.vmem %s4, 96
      %v2158 = vld [vmem:[%s2157] sm:$0xff]
      %v2160 = vsel %vm417, %v2149, 0
      %v2163 = vsel %vm417, %v2150, 0
      %v2166 = vsel %vm417, %v2151, 0
      %v2169 = vsel %vm417, %v2152, 0
      %v2172 = vsel %vm417, %v2153, 0
      %v2175 = vsel %vm417, %v2154, 0
      %v2178 = vsel %vm417, %v2155, 0
      %v2181 = vsel %vm417, %v2156, 0
      %2183 = vmatprep.subr.mxu0 0.0
      %2184 = vmatpush1.msra.mxu0 %v2158
      %2185 = vmatprep.subr.mxu0 0.0
      %2186 = vmatpush1.msra.mxu0 0.0
      %2187 = vmatprep.subr.mxu0 0.0
      %2188 = vmatpush1.msra.mxu0 0.0
      %2189 = vmatprep.subr.mxu0 0.0
      %2190 = vmatpush1.msra.mxu0 0.0
      %2191 = vmatprep.subr.mxu0 0.0
      %2192 = vmatpush1.msra.mxu0 0.0
      %2193 = vmatprep.subr.mxu0 0.0
      %2194 = vmatpush1.msra.mxu0 0.0
      %2195 = vmatprep.subr.mxu0 0.0
      %2196 = vmatpush1.msra.mxu0 0.0
      %2197 = vmatprep.subr.mxu0 0.0
      %2198 = vmatpush1.msra.mxu0 0.0
      %2199 = vmatprep.subr.mxu0 0.0
      %2200 = vmatpush1.msra.mxu0 0.0
      %2201 = vmatprep.subr.mxu0 0.0
      %2202 = vmatpush1.msra.mxu0 0.0
      %2203 = vmatprep.subr.mxu0 0.0
      %2204 = vmatpush1.msra.mxu0 0.0
      %2205 = vmatprep.subr.mxu0 0.0
      %2206 = vmatpush1.msra.mxu0 0.0
      %2207 = vmatprep.subr.mxu0 0.0
      %2208 = vmatpush1.msra.mxu0 0.0
      %2209 = vmatprep.subr.mxu0 0.0
      %2210 = vmatpush1.msra.mxu0 0.0
      %2211 = vmatprep.subr.mxu0 0.0
      %2212 = vmatpush1.msra.mxu0 0.0
      %2213 = vmatprep.subr.mxu0 0.0
      %2214 = vmatpush1.msra.mxu0 0.0
      %2215 = vmatprep.subr.mxu0 0.0
      %2216 = vmatpush1.msra.mxu0 0.0
      %2217 = vmatprep.subr.mxu0 0.0
      %2218 = vmatpush1.msra.mxu0 0.0
      %2219 = vmatprep.subr.mxu0 0.0
      %2220 = vmatpush1.msra.mxu0 0.0
      %2221 = vmatprep.subr.mxu0 0.0
      %2222 = vmatpush1.msra.mxu0 0.0
      %2223 = vmatprep.subr.mxu0 0.0
      %2224 = vmatpush1.msra.mxu0 0.0
      %2225 = vmatprep.subr.mxu0 0.0
      %2226 = vmatpush1.msra.mxu0 0.0
      %2227 = vmatprep.subr.mxu0 0.0
      %2228 = vmatpush1.msra.mxu0 0.0
      %2229 = vmatprep.subr.mxu0 0.0
      %2230 = vmatpush1.msra.mxu0 0.0
      %2231 = vmatprep.subr.mxu0 0.0
      %2232 = vmatpush1.msra.mxu0 0.0
      %2233 = vmatprep.subr.mxu0 0.0
      %2234 = vmatpush1.msra.mxu0 0.0
      %2235 = vmatprep.subr.mxu0 0.0
      %2236 = vmatpush1.msra.mxu0 0.0
      %2237 = vmatprep.subr.mxu0 0.0
      %2238 = vmatpush1.msra.mxu0 0.0
      %2239 = vmatprep.subr.mxu0 0.0
      %2240 = vmatpush1.msra.mxu0 0.0
      %2241 = vmatprep.subr.mxu0 0.0
      %2242 = vmatpush1.msra.mxu0 0.0
      %2243 = vmatprep.subr.mxu0 0.0
      %2244 = vmatpush1.msra.mxu0 0.0
      %2245 = vmatprep.subr.mxu0 0.0
      %2246 = vmatpush1.msra.mxu0 0.0
      %2247 = vmatprep.mubr.f32.mxu0 0.0
      %2248 = vmatmul.mubr.f32.gmra.mrb[0].mxu0 %v2160
      %v2249 = vpop.f32.mrb[0].mxu0
      %v2250 = vadd.f32 0.0, %v2249
      %v2251 = vpop.f32.mrb[0].mxu0
      %2252 = vmatprep.mubr.f32.mxu0 0.0
      %2253 = vmatmul.mubr.f32.gmra.mrb[0].mxu0 %v2163
      %v2254 = vpop.f32.mrb[0].mxu0
      %v2255 = vadd.f32 0.0, %v2254
      %v2256 = vpop.f32.mrb[0].mxu0
      %2257 = vmatprep.mubr.f32.mxu0 0.0
      %2258 = vmatmul.mubr.f32.gmra.mrb[0].mxu0 %v2166
      %v2259 = vpop.f32.mrb[0].mxu0
      %v2260 = vadd.f32 0.0, %v2259
      %v2261 = vpop.f32.mrb[0].mxu0
      %2262 = vmatprep.mubr.f32.mxu0 0.0
      %2263 = vmatmul.mubr.f32.gmra.mrb[0].mxu0 %v2169
      %v2264 = vpop.f32.mrb[0].mxu0
      %v2265 = vadd.f32 0.0, %v2264
      %v2266 = vpop.f32.mrb[0].mxu0
      %2267 = vmatprep.mubr.f32.mxu0 0.0
      %2268 = vmatmul.mubr.f32.gmra.mrb[0].mxu0 %v2172
      %v2269 = vpop.f32.mrb[0].mxu0
      %v2270 = vadd.f32 0.0, %v2269
      %v2271 = vpop.f32.mrb[0].mxu0
      %2272 = vmatprep.mubr.f32.mxu0 0.0
      %2273 = vmatmul.mubr.f32.gmra.mrb[0].mxu0 %v2175
      %v2274 = vpop.f32.mrb[0].mxu0
      %v2275 = vadd.f32 0.0, %v2274
      %v2276 = vpop.f32.mrb[0].mxu0
      %2277 = vmatprep.mubr.f32.mxu0 0.0
      %2278 = vmatmul.mubr.f32.gmra.mrb[0].mxu0 %v2178
      %v2279 = vpop.f32.mrb[0].mxu0
      %v2280 = vadd.f32 0.0, %v2279
      %v2281 = vpop.f32.mrb[0].mxu0
      %2282 = vmatprep.mubr.f32.mxu0 0.0
      %2283 = vmatmul.mubr.f32.gmra.mrb[0].mxu0 %v2181
      %v2284 = vpop.f32.mrb[0].mxu0
      %v2285 = vadd.f32 0.0, %v2284
      %v2286 = vpop.f32.mrb[0].mxu0
      %2287 = vdwg.mxu0
      %v2288 = vadd.f32 %v2140, %v2250
      %v2289 = vadd.f32 %v2141, %v2255
      %v2290 = vadd.f32 %v2142, %v2260
      %v2291 = vadd.f32 %v2143, %v2265
      %v2292 = vadd.f32 %v2144, %v2270
      %v2293 = vadd.f32 %v2145, %v2275
      %v2294 = vadd.f32 %v2146, %v2280
      %v2295 = vadd.f32 %v2147, %v2285
      %v2296 = vld [vmem:[%s2148 + $0x1] sm:$0xff]
      %v2297 = vld [vmem:[%s2148 + $0x11] sm:$0xff]
      %v2298 = vld [vmem:[%s2148 + $0x21] sm:$0xff]
      %v2299 = vld [vmem:[%s2148 + $0x31] sm:$0xff]
      %v2300 = vld [vmem:[%s2148 + $0x41] sm:$0xff]
      %v2301 = vld [vmem:[%s2148 + $0x51] sm:$0xff]
      %v2302 = vld [vmem:[%s2148 + $0x61] sm:$0xff]
      %v2303 = vld [vmem:[%s2148 + $0x71] sm:$0xff]
      %s2304 = scalar_lea.vmem %s4, 104
      %v2305 = vld [vmem:[%s2304] sm:$0xff]
      %v2307 = vsel %vm417, %v2296, 0
      %v2310 = vsel %vm417, %v2297, 0
      %v2313 = vsel %vm417, %v2298, 0
      %v2316 = vsel %vm417, %v2299, 0
      %v2319 = vsel %vm417, %v2300, 0
      %v2322 = vsel %vm417, %v2301, 0
      %v2325 = vsel %vm417, %v2302, 0
      %v2328 = vsel %vm417, %v2303, 0
      %2330 = vmatprep.subr.mxu0 0.0
      %2331 = vmatpush1.msra.mxu0 %v2305
      %2332 = vmatprep.subr.mxu0 0.0
      %2333 = vmatpush1.msra.mxu0 0.0
      %2334 = vmatprep.subr.mxu0 0.0
      %2335 = vmatpush1.msra.mxu0 0.0
      %2336 = vmatprep.subr.mxu0 0.0
      %2337 = vmatpush1.msra.mxu0 0.0
      %2338 = vmatprep.subr.mxu0 0.0
      %2339 = vmatpush1.msra.mxu0 0.0
      %2340 = vmatprep.subr.mxu0 0.0
      %2341 = vmatpush1.msra.mxu0 0.0
      %2342 = vmatprep.subr.mxu0 0.0
      %2343 = vmatpush1.msra.mxu0 0.0
      %2344 = vmatprep.subr.mxu0 0.0
      %2345 = vmatpush1.msra.mxu0 0.0
      %2346 = vmatprep.subr.mxu0 0.0
      %2347 = vmatpush1.msra.mxu0 0.0
      %2348 = vmatprep.subr.mxu0 0.0
      %2349 = vmatpush1.msra.mxu0 0.0
      %2350 = vmatprep.subr.mxu0 0.0
      %2351 = vmatpush1.msra.mxu0 0.0
      %2352 = vmatprep.subr.mxu0 0.0
      %2353 = vmatpush1.msra.mxu0 0.0
      %2354 = vmatprep.subr.mxu0 0.0
      %2355 = vmatpush1.msra.mxu0 0.0
      %2356 = vmatprep.subr.mxu0 0.0
      %2357 = vmatpush1.msra.mxu0 0.0
      %2358 = vmatprep.subr.mxu0 0.0
      %2359 = vmatpush1.msra.mxu0 0.0
      %2360 = vmatprep.subr.mxu0 0.0
      %2361 = vmatpush1.msra.mxu0 0.0
      %2362 = vmatprep.subr.mxu0 0.0
      %2363 = vmatpush1.msra.mxu0 0.0
      %2364 = vmatprep.subr.mxu0 0.0
      %2365 = vmatpush1.msra.mxu0 0.0
      %2366 = vmatprep.subr.mxu0 0.0
      %2367 = vmatpush1.msra.mxu0 0.0
      %2368 = vmatprep.subr.mxu0 0.0
      %2369 = vmatpush1.msra.mxu0 0.0
      %2370 = vmatprep.subr.mxu0 0.0
      %2371 = vmatpush1.msra.mxu0 0.0
      %2372 = vmatprep.subr.mxu0 0.0
      %2373 = vmatpush1.msra.mxu0 0.0
      %2374 = vmatprep.subr.mxu0 0.0
      %2375 = vmatpush1.msra.mxu0 0.0
      %2376 = vmatprep.subr.mxu0 0.0
      %2377 = vmatpush1.msra.mxu0 0.0
      %2378 = vmatprep.subr.mxu0 0.0
      %2379 = vmatpush1.msra.mxu0 0.0
      %2380 = vmatprep.subr.mxu0 0.0
      %2381 = vmatpush1.msra.mxu0 0.0
      %2382 = vmatprep.subr.mxu0 0.0
      %2383 = vmatpush1.msra.mxu0 0.0
      %2384 = vmatprep.subr.mxu0 0.0
      %2385 = vmatpush1.msra.mxu0 0.0
      %2386 = vmatprep.subr.mxu0 0.0
      %2387 = vmatpush1.msra.mxu0 0.0
      %2388 = vmatprep.subr.mxu0 0.0
      %2389 = vmatpush1.msra.mxu0 0.0
      %2390 = vmatprep.subr.mxu0 0.0
      %2391 = vmatpush1.msra.mxu0 0.0
      %2392 = vmatprep.subr.mxu0 0.0
      %2393 = vmatpush1.msra.mxu0 0.0
      %2394 = vmatprep.mubr.f32.mxu0 0.0
      %2395 = vmatmul.mubr.f32.gmra.mrb[0].mxu0 %v2307
      %v2396 = vpop.f32.mrb[0].mxu0
      %v2397 = vadd.f32 0.0, %v2396
      %v2398 = vpop.f32.mrb[0].mxu0
      %2399 = vmatprep.mubr.f32.mxu0 0.0
      %2400 = vmatmul.mubr.f32.gmra.mrb[0].mxu0 %v2310
      %v2401 = vpop.f32.mrb[0].mxu0
      %v2402 = vadd.f32 0.0, %v2401
      %v2403 = vpop.f32.mrb[0].mxu0
      %2404 = vmatprep.mubr.f32.mxu0 0.0
      %2405 = vmatmul.mubr.f32.gmra.mrb[0].mxu0 %v2313
      %v2406 = vpop.f32.mrb[0].mxu0
      %v2407 = vadd.f32 0.0, %v2406
      %v2408 = vpop.f32.mrb[0].mxu0
      %2409 = vmatprep.mubr.f32.mxu0 0.0
      %2410 = vmatmul.mubr.f32.gmra.mrb[0].mxu0 %v2316
      %v2411 = vpop.f32.mrb[0].mxu0
      %v2412 = vadd.f32 0.0, %v2411
      %v2413 = vpop.f32.mrb[0].mxu0
      %2414 = vmatprep.mubr.f32.mxu0 0.0
      %2415 = vmatmul.mubr.f32.gmra.mrb[0].mxu0 %v2319
      %v2416 = vpop.f32.mrb[0].mxu0
      %v2417 = vadd.f32 0.0, %v2416
      %v2418 = vpop.f32.mrb[0].mxu0
      %2419 = vmatprep.mubr.f32.mxu0 0.0
      %2420 = vmatmul.mubr.f32.gmra.mrb[0].mxu0 %v2322
      %v2421 = vpop.f32.mrb[0].mxu0
      %v2422 = vadd.f32 0.0, %v2421
      %v2423 = vpop.f32.mrb[0].mxu0
      %2424 = vmatprep.mubr.f32.mxu0 0.0
      %2425 = vmatmul.mubr.f32.gmra.mrb[0].mxu0 %v2325
      %v2426 = vpop.f32.mrb[0].mxu0
      %v2427 = vadd.f32 0.0, %v2426
      %v2428 = vpop.f32.mrb[0].mxu0
      %2429 = vmatprep.mubr.f32.mxu0 0.0
      %2430 = vmatmul.mubr.f32.gmra.mrb[0].mxu0 %v2328
      %v2431 = vpop.f32.mrb[0].mxu0
      %v2432 = vadd.f32 0.0, %v2431
      %v2433 = vpop.f32.mrb[0].mxu0
      %2434 = vdwg.mxu0
      %v2435 = vadd.f32 %v2288, %v2397
      %v2436 = vadd.f32 %v2289, %v2402
      %v2437 = vadd.f32 %v2290, %v2407
      %v2438 = vadd.f32 %v2291, %v2412
      %v2439 = vadd.f32 %v2292, %v2417
      %v2440 = vadd.f32 %v2293, %v2422
      %v2441 = vadd.f32 %v2294, %v2427
      %v2442 = vadd.f32 %v2295, %v2432
      %v2443 = vld [vmem:[%s2148 + $0x2] sm:$0xff]
      %v2444 = vld [vmem:[%s2148 + $0x12] sm:$0xff]
      %v2445 = vld [vmem:[%s2148 + $0x22] sm:$0xff]
      %v2446 = vld [vmem:[%s2148 + $0x32] sm:$0xff]
      %v2447 = vld [vmem:[%s2148 + $0x42] sm:$0xff]
      %v2448 = vld [vmem:[%s2148 + $0x52] sm:$0xff]
      %v2449 = vld [vmem:[%s2148 + $0x62] sm:$0xff]
      %v2450 = vld [vmem:[%s2148 + $0x72] sm:$0xff]
      %s2451 = scalar_lea.vmem %s4, 112
      %v2452 = vld [vmem:[%s2451] sm:$0xff]
      %v2454 = vsel %vm417, %v2443, 0
      %v2457 = vsel %vm417, %v2444, 0
      %v2460 = vsel %vm417, %v2445, 0
      %v2463 = vsel %vm417, %v2446, 0
      %v2466 = vsel %vm417, %v2447, 0
      %v2469 = vsel %vm417, %v2448, 0
      %v2472 = vsel %vm417, %v2449, 0
      %v2475 = vsel %vm417, %v2450, 0
      %2477 = vmatprep.subr.mxu0 0.0
      %2478 = vmatpush1.msra.mxu0 %v2452
      %2479 = vmatprep.subr.mxu0 0.0
      %2480 = vmatpush1.msra.mxu0 0.0
      %2481 = vmatprep.subr.mxu0 0.0
      %2482 = vmatpush1.msra.mxu0 0.0
      %2483 = vmatprep.subr.mxu0 0.0
      %2484 = vmatpush1.msra.mxu0 0.0
      %2485 = vmatprep.subr.mxu0 0.0
      %2486 = vmatpush1.msra.mxu0 0.0
      %2487 = vmatprep.subr.mxu0 0.0
      %2488 = vmatpush1.msra.mxu0 0.0
      %2489 = vmatprep.subr.mxu0 0.0
      %2490 = vmatpush1.msra.mxu0 0.0
      %2491 = vmatprep.subr.mxu0 0.0
      %2492 = vmatpush1.msra.mxu0 0.0
      %2493 = vmatprep.subr.mxu0 0.0
      %2494 = vmatpush1.msra.mxu0 0.0
      %2495 = vmatprep.subr.mxu0 0.0
      %2496 = vmatpush1.msra.mxu0 0.0
      %2497 = vmatprep.subr.mxu0 0.0
      %2498 = vmatpush1.msra.mxu0 0.0
      %2499 = vmatprep.subr.mxu0 0.0
      %2500 = vmatpush1.msra.mxu0 0.0
      %2501 = vmatprep.subr.mxu0 0.0
      %2502 = vmatpush1.msra.mxu0 0.0
      %2503 = vmatprep.subr.mxu0 0.0
      %2504 = vmatpush1.msra.mxu0 0.0
      %2505 = vmatprep.subr.mxu0 0.0
      %2506 = vmatpush1.msra.mxu0 0.0
      %2507 = vmatprep.subr.mxu0 0.0
      %2508 = vmatpush1.msra.mxu0 0.0
      %2509 = vmatprep.subr.mxu0 0.0
      %2510 = vmatpush1.msra.mxu0 0.0
      %2511 = vmatprep.subr.mxu0 0.0
      %2512 = vmatpush1.msra.mxu0 0.0
      %2513 = vmatprep.subr.mxu0 0.0
      %2514 = vmatpush1.msra.mxu0 0.0
      %2515 = vmatprep.subr.mxu0 0.0
      %2516 = vmatpush1.msra.mxu0 0.0
      %2517 = vmatprep.subr.mxu0 0.0
      %2518 = vmatpush1.msra.mxu0 0.0
      %2519 = vmatprep.subr.mxu0 0.0
      %2520 = vmatpush1.msra.mxu0 0.0
      %2521 = vmatprep.subr.mxu0 0.0
      %2522 = vmatpush1.msra.mxu0 0.0
      %2523 = vmatprep.subr.mxu0 0.0
      %2524 = vmatpush1.msra.mxu0 0.0
      %2525 = vmatprep.subr.mxu0 0.0
      %2526 = vmatpush1.msra.mxu0 0.0
      %2527 = vmatprep.subr.mxu0 0.0
      %2528 = vmatpush1.msra.mxu0 0.0
      %2529 = vmatprep.subr.mxu0 0.0
      %2530 = vmatpush1.msra.mxu0 0.0
      %2531 = vmatprep.subr.mxu0 0.0
      %2532 = vmatpush1.msra.mxu0 0.0
      %2533 = vmatprep.subr.mxu0 0.0
      %2534 = vmatpush1.msra.mxu0 0.0
      %2535 = vmatprep.subr.mxu0 0.0
      %2536 = vmatpush1.msra.mxu0 0.0
      %2537 = vmatprep.subr.mxu0 0.0
      %2538 = vmatpush1.msra.mxu0 0.0
      %2539 = vmatprep.subr.mxu0 0.0
      %2540 = vmatpush1.msra.mxu0 0.0
      %2541 = vmatprep.mubr.f32.mxu0 0.0
      %2542 = vmatmul.mubr.f32.gmra.mrb[0].mxu0 %v2454
      %v2543 = vpop.f32.mrb[0].mxu0
      %v2544 = vadd.f32 0.0, %v2543
      %v2545 = vpop.f32.mrb[0].mxu0
      %2546 = vmatprep.mubr.f32.mxu0 0.0
      %2547 = vmatmul.mubr.f32.gmra.mrb[0].mxu0 %v2457
      %v2548 = vpop.f32.mrb[0].mxu0
      %v2549 = vadd.f32 0.0, %v2548
      %v2550 = vpop.f32.mrb[0].mxu0
      %2551 = vmatprep.mubr.f32.mxu0 0.0
      %2552 = vmatmul.mubr.f32.gmra.mrb[0].mxu0 %v2460
      %v2553 = vpop.f32.mrb[0].mxu0
      %v2554 = vadd.f32 0.0, %v2553
      %v2555 = vpop.f32.mrb[0].mxu0
      %2556 = vmatprep.mubr.f32.mxu0 0.0
      %2557 = vmatmul.mubr.f32.gmra.mrb[0].mxu0 %v2463
      %v2558 = vpop.f32.mrb[0].mxu0
      %v2559 = vadd.f32 0.0, %v2558
      %v2560 = vpop.f32.mrb[0].mxu0
      %2561 = vmatprep.mubr.f32.mxu0 0.0
      %2562 = vmatmul.mubr.f32.gmra.mrb[0].mxu0 %v2466
      %v2563 = vpop.f32.mrb[0].mxu0
      %v2564 = vadd.f32 0.0, %v2563
      %v2565 = vpop.f32.mrb[0].mxu0
      %2566 = vmatprep.mubr.f32.mxu0 0.0
      %2567 = vmatmul.mubr.f32.gmra.mrb[0].mxu0 %v2469
      %v2568 = vpop.f32.mrb[0].mxu0
      %v2569 = vadd.f32 0.0, %v2568
      %v2570 = vpop.f32.mrb[0].mxu0
      %2571 = vmatprep.mubr.f32.mxu0 0.0
      %2572 = vmatmul.mubr.f32.gmra.mrb[0].mxu0 %v2472
      %v2573 = vpop.f32.mrb[0].mxu0
      %v2574 = vadd.f32 0.0, %v2573
      %v2575 = vpop.f32.mrb[0].mxu0
      %2576 = vmatprep.mubr.f32.mxu0 0.0
      %2577 = vmatmul.mubr.f32.gmra.mrb[0].mxu0 %v2475
      %v2578 = vpop.f32.mrb[0].mxu0
      %v2579 = vadd.f32 0.0, %v2578
      %v2580 = vpop.f32.mrb[0].mxu0
      %2581 = vdwg.mxu0
      %v2582 = vadd.f32 %v2435, %v2544
      %v2583 = vadd.f32 %v2436, %v2549
      %v2584 = vadd.f32 %v2437, %v2554
      %v2585 = vadd.f32 %v2438, %v2559
      %v2586 = vadd.f32 %v2439, %v2564
      %v2587 = vadd.f32 %v2440, %v2569
      %v2588 = vadd.f32 %v2441, %v2574
      %v2589 = vadd.f32 %v2442, %v2579
      %s2590 = scalar_lea.vmem %s376, 32
      %v2591 = vld [vmem:[%s2590] sm:$0xff]
      %v2592 = vld [vmem:[%s2590 + $0x10] sm:$0xff]
      %v2593 = vld [vmem:[%s2590 + $0x20] sm:$0xff]
      %v2594 = vld [vmem:[%s2590 + $0x30] sm:$0xff]
      %v2595 = vld [vmem:[%s2590 + $0x40] sm:$0xff]
      %v2596 = vld [vmem:[%s2590 + $0x50] sm:$0xff]
      %v2597 = vld [vmem:[%s2590 + $0x60] sm:$0xff]
      %v2598 = vld [vmem:[%s2590 + $0x70] sm:$0xff]
      %s2599 = scalar_lea.vmem %s4, 120
      %v2600 = vld [vmem:[%s2599] sm:$0xff]
      %v2602 = vsel %vm417, %v2591, 0
      %v2605 = vsel %vm417, %v2592, 0
      %v2608 = vsel %vm417, %v2593, 0
      %v2611 = vsel %vm417, %v2594, 0
      %v2614 = vsel %vm417, %v2595, 0
      %v2617 = vsel %vm417, %v2596, 0
      %v2620 = vsel %vm417, %v2597, 0
      %v2623 = vsel %vm417, %v2598, 0
      %2625 = vmatprep.subr.mxu0 0.0
      %2626 = vmatpush1.msra.mxu0 %v2600
      %2627 = vmatprep.subr.mxu0 0.0
      %2628 = vmatpush1.msra.mxu0 0.0
      %2629 = vmatprep.subr.mxu0 0.0
      %2630 = vmatpush1.msra.mxu0 0.0
      %2631 = vmatprep.subr.mxu0 0.0
      %2632 = vmatpush1.msra.mxu0 0.0
      %2633 = vmatprep.subr.mxu0 0.0
      %2634 = vmatpush1.msra.mxu0 0.0
      %2635 = vmatprep.subr.mxu0 0.0
      %2636 = vmatpush1.msra.mxu0 0.0
      %2637 = vmatprep.subr.mxu0 0.0
      %2638 = vmatpush1.msra.mxu0 0.0
      %2639 = vmatprep.subr.mxu0 0.0
      %2640 = vmatpush1.msra.mxu0 0.0
      %2641 = vmatprep.subr.mxu0 0.0
      %2642 = vmatpush1.msra.mxu0 0.0
      %2643 = vmatprep.subr.mxu0 0.0
      %2644 = vmatpush1.msra.mxu0 0.0
      %2645 = vmatprep.subr.mxu0 0.0
      %2646 = vmatpush1.msra.mxu0 0.0
      %2647 = vmatprep.subr.mxu0 0.0
      %2648 = vmatpush1.msra.mxu0 0.0
      %2649 = vmatprep.subr.mxu0 0.0
      %2650 = vmatpush1.msra.mxu0 0.0
      %2651 = vmatprep.subr.mxu0 0.0
      %2652 = vmatpush1.msra.mxu0 0.0
      %2653 = vmatprep.subr.mxu0 0.0
      %2654 = vmatpush1.msra.mxu0 0.0
      %2655 = vmatprep.subr.mxu0 0.0
      %2656 = vmatpush1.msra.mxu0 0.0
      %2657 = vmatprep.subr.mxu0 0.0
      %2658 = vmatpush1.msra.mxu0 0.0
      %2659 = vmatprep.subr.mxu0 0.0
      %2660 = vmatpush1.msra.mxu0 0.0
      %2661 = vmatprep.subr.mxu0 0.0
      %2662 = vmatpush1.msra.mxu0 0.0
      %2663 = vmatprep.subr.mxu0 0.0
      %2664 = vmatpush1.msra.mxu0 0.0
      %2665 = vmatprep.subr.mxu0 0.0
      %2666 = vmatpush1.msra.mxu0 0.0
      %2667 = vmatprep.subr.mxu0 0.0
      %2668 = vmatpush1.msra.mxu0 0.0
      %2669 = vmatprep.subr.mxu0 0.0
      %2670 = vmatpush1.msra.mxu0 0.0
      %2671 = vmatprep.subr.mxu0 0.0
      %2672 = vmatpush1.msra.mxu0 0.0
      %2673 = vmatprep.subr.mxu0 0.0
      %2674 = vmatpush1.msra.mxu0 0.0
      %2675 = vmatprep.subr.mxu0 0.0
      %2676 = vmatpush1.msra.mxu0 0.0
      %2677 = vmatprep.subr.mxu0 0.0
      %2678 = vmatpush1.msra.mxu0 0.0
      %2679 = vmatprep.subr.mxu0 0.0
      %2680 = vmatpush1.msra.mxu0 0.0
      %2681 = vmatprep.subr.mxu0 0.0
      %2682 = vmatpush1.msra.mxu0 0.0
      %2683 = vmatprep.subr.mxu0 0.0
      %2684 = vmatpush1.msra.mxu0 0.0
      %2685 = vmatprep.subr.mxu0 0.0
      %2686 = vmatpush1.msra.mxu0 0.0
      %2687 = vmatprep.subr.mxu0 0.0
      %2688 = vmatpush1.msra.mxu0 0.0
      %2689 = vmatprep.mubr.f32.mxu0 0.0
      %2690 = vmatmul.mubr.f32.gmra.mrb[0].mxu0 %v2602
      %v2691 = vpop.f32.mrb[0].mxu0
      %v2692 = vadd.f32 0.0, %v2691
      %v2693 = vpop.f32.mrb[0].mxu0
      %2694 = vmatprep.mubr.f32.mxu0 0.0
      %2695 = vmatmul.mubr.f32.gmra.mrb[0].mxu0 %v2605
      %v2696 = vpop.f32.mrb[0].mxu0
      %v2697 = vadd.f32 0.0, %v2696
      %v2698 = vpop.f32.mrb[0].mxu0
      %2699 = vmatprep.mubr.f32.mxu0 0.0
      %2700 = vmatmul.mubr.f32.gmra.mrb[0].mxu0 %v2608
      %v2701 = vpop.f32.mrb[0].mxu0
      %v2702 = vadd.f32 0.0, %v2701
      %v2703 = vpop.f32.mrb[0].mxu0
      %2704 = vmatprep.mubr.f32.mxu0 0.0
      %2705 = vmatmul.mubr.f32.gmra.mrb[0].mxu0 %v2611
      %v2706 = vpop.f32.mrb[0].mxu0
      %v2707 = vadd.f32 0.0, %v2706
      %v2708 = vpop.f32.mrb[0].mxu0
      %2709 = vmatprep.mubr.f32.mxu0 0.0
      %2710 = vmatmul.mubr.f32.gmra.mrb[0].mxu0 %v2614
      %v2711 = vpop.f32.mrb[0].mxu0
      %v2712 = vadd.f32 0.0, %v2711
      %v2713 = vpop.f32.mrb[0].mxu0
      %2714 = vmatprep.mubr.f32.mxu0 0.0
      %2715 = vmatmul.mubr.f32.gmra.mrb[0].mxu0 %v2617
      %v2716 = vpop.f32.mrb[0].mxu0
      %v2717 = vadd.f32 0.0, %v2716
      %v2718 = vpop.f32.mrb[0].mxu0
      %2719 = vmatprep.mubr.f32.mxu0 0.0
      %2720 = vmatmul.mubr.f32.gmra.mrb[0].mxu0 %v2620
      %v2721 = vpop.f32.mrb[0].mxu0
      %v2722 = vadd.f32 0.0, %v2721
      %v2723 = vpop.f32.mrb[0].mxu0
      %2724 = vmatprep.mubr.f32.mxu0 0.0
      %2725 = vmatmul.mubr.f32.gmra.mrb[0].mxu0 %v2623
      %v2726 = vpop.f32.mrb[0].mxu0
      %v2727 = vadd.f32 0.0, %v2726
      %v2728 = vpop.f32.mrb[0].mxu0
      %2729 = vdwg.mxu0
      %v2730 = vadd.f32 %v2582, %v2692
      %v2731 = vadd.f32 %v2583, %v2697
      %v2732 = vadd.f32 %v2584, %v2702
      %v2733 = vadd.f32 %v2585, %v2707
      %v2734 = vadd.f32 %v2586, %v2712
      %v2735 = vadd.f32 %v2587, %v2717
      %v2736 = vadd.f32 %v2588, %v2722
      %v2737 = vadd.f32 %v2589, %v2727
      %v2738 = vld [vmem:[%s2590 + $0x1] sm:$0xff]
      %v2739 = vld [vmem:[%s2590 + $0x11] sm:$0xff]
      %v2740 = vld [vmem:[%s2590 + $0x21] sm:$0xff]
      %v2741 = vld [vmem:[%s2590 + $0x31] sm:$0xff]
      %v2742 = vld [vmem:[%s2590 + $0x41] sm:$0xff]
      %v2743 = vld [vmem:[%s2590 + $0x51] sm:$0xff]
      %v2744 = vld [vmem:[%s2590 + $0x61] sm:$0xff]
      %v2745 = vld [vmem:[%s2590 + $0x71] sm:$0xff]
      %s2746 = scalar_lea.vmem %s4, 128
      %v2747 = vld [vmem:[%s2746] sm:$0xff]
      %v2749 = vsel %vm417, %v2738, 0
      %v2752 = vsel %vm417, %v2739, 0
      %v2755 = vsel %vm417, %v2740, 0
      %v2758 = vsel %vm417, %v2741, 0
      %v2761 = vsel %vm417, %v2742, 0
      %v2764 = vsel %vm417, %v2743, 0
      %v2767 = vsel %vm417, %v2744, 0
      %v2770 = vsel %vm417, %v2745, 0
      %2772 = vmatprep.subr.mxu0 0.0
      %2773 = vmatpush1.msra.mxu0 %v2747
      %2774 = vmatprep.subr.mxu0 0.0
      %2775 = vmatpush1.msra.mxu0 0.0
      %2776 = vmatprep.subr.mxu0 0.0
      %2777 = vmatpush1.msra.mxu0 0.0
      %2778 = vmatprep.subr.mxu0 0.0
      %2779 = vmatpush1.msra.mxu0 0.0
      %2780 = vmatprep.subr.mxu0 0.0
      %2781 = vmatpush1.msra.mxu0 0.0
      %2782 = vmatprep.subr.mxu0 0.0
      %2783 = vmatpush1.msra.mxu0 0.0
      %2784 = vmatprep.subr.mxu0 0.0
      %2785 = vmatpush1.msra.mxu0 0.0
      %2786 = vmatprep.subr.mxu0 0.0
      %2787 = vmatpush1.msra.mxu0 0.0
      %2788 = vmatprep.subr.mxu0 0.0
      %2789 = vmatpush1.msra.mxu0 0.0
      %2790 = vmatprep.subr.mxu0 0.0
      %2791 = vmatpush1.msra.mxu0 0.0
      %2792 = vmatprep.subr.mxu0 0.0
      %2793 = vmatpush1.msra.mxu0 0.0
      %2794 = vmatprep.subr.mxu0 0.0
      %2795 = vmatpush1.msra.mxu0 0.0
      %2796 = vmatprep.subr.mxu0 0.0
      %2797 = vmatpush1.msra.mxu0 0.0
      %2798 = vmatprep.subr.mxu0 0.0
      %2799 = vmatpush1.msra.mxu0 0.0
      %2800 = vmatprep.subr.mxu0 0.0
      %2801 = vmatpush1.msra.mxu0 0.0
      %2802 = vmatprep.subr.mxu0 0.0
      %2803 = vmatpush1.msra.mxu0 0.0
      %2804 = vmatprep.subr.mxu0 0.0
      %2805 = vmatpush1.msra.mxu0 0.0
      %2806 = vmatprep.subr.mxu0 0.0
      %2807 = vmatpush1.msra.mxu0 0.0
      %2808 = vmatprep.subr.mxu0 0.0
      %2809 = vmatpush1.msra.mxu0 0.0
      %2810 = vmatprep.subr.mxu0 0.0
      %2811 = vmatpush1.msra.mxu0 0.0
      %2812 = vmatprep.subr.mxu0 0.0
      %2813 = vmatpush1.msra.mxu0 0.0
      %2814 = vmatprep.subr.mxu0 0.0
      %2815 = vmatpush1.msra.mxu0 0.0
      %2816 = vmatprep.subr.mxu0 0.0
      %2817 = vmatpush1.msra.mxu0 0.0
      %2818 = vmatprep.subr.mxu0 0.0
      %2819 = vmatpush1.msra.mxu0 0.0
      %2820 = vmatprep.subr.mxu0 0.0
      %2821 = vmatpush1.msra.mxu0 0.0
      %2822 = vmatprep.subr.mxu0 0.0
      %2823 = vmatpush1.msra.mxu0 0.0
      %2824 = vmatprep.subr.mxu0 0.0
      %2825 = vmatpush1.msra.mxu0 0.0
      %2826 = vmatprep.subr.mxu0 0.0
      %2827 = vmatpush1.msra.mxu0 0.0
      %2828 = vmatprep.subr.mxu0 0.0
      %2829 = vmatpush1.msra.mxu0 0.0
      %2830 = vmatprep.subr.mxu0 0.0
      %2831 = vmatpush1.msra.mxu0 0.0
      %2832 = vmatprep.subr.mxu0 0.0
      %2833 = vmatpush1.msra.mxu0 0.0
      %2834 = vmatprep.subr.mxu0 0.0
      %2835 = vmatpush1.msra.mxu0 0.0
      %2836 = vmatprep.mubr.f32.mxu0 0.0
      %2837 = vmatmul.mubr.f32.gmra.mrb[0].mxu0 %v2749
      %v2838 = vpop.f32.mrb[0].mxu0
      %v2839 = vadd.f32 0.0, %v2838
      %v2840 = vpop.f32.mrb[0].mxu0
      %2841 = vmatprep.mubr.f32.mxu0 0.0
      %2842 = vmatmul.mubr.f32.gmra.mrb[0].mxu0 %v2752
      %v2843 = vpop.f32.mrb[0].mxu0
      %v2844 = vadd.f32 0.0, %v2843
      %v2845 = vpop.f32.mrb[0].mxu0
      %2846 = vmatprep.mubr.f32.mxu0 0.0
      %2847 = vmatmul.mubr.f32.gmra.mrb[0].mxu0 %v2755
      %v2848 = vpop.f32.mrb[0].mxu0
      %v2849 = vadd.f32 0.0, %v2848
      %v2850 = vpop.f32.mrb[0].mxu0
      %2851 = vmatprep.mubr.f32.mxu0 0.0
      %2852 = vmatmul.mubr.f32.gmra.mrb[0].mxu0 %v2758
      %v2853 = vpop.f32.mrb[0].mxu0
      %v2854 = vadd.f32 0.0, %v2853
      %v2855 = vpop.f32.mrb[0].mxu0
      %2856 = vmatprep.mubr.f32.mxu0 0.0
      %2857 = vmatmul.mubr.f32.gmra.mrb[0].mxu0 %v2761
      %v2858 = vpop.f32.mrb[0].mxu0
      %v2859 = vadd.f32 0.0, %v2858
      %v2860 = vpop.f32.mrb[0].mxu0
      %2861 = vmatprep.mubr.f32.mxu0 0.0
      %2862 = vmatmul.mubr.f32.gmra.mrb[0].mxu0 %v2764
      %v2863 = vpop.f32.mrb[0].mxu0
      %v2864 = vadd.f32 0.0, %v2863
      %v2865 = vpop.f32.mrb[0].mxu0
      %2866 = vmatprep.mubr.f32.mxu0 0.0
      %2867 = vmatmul.mubr.f32.gmra.mrb[0].mxu0 %v2767
      %v2868 = vpop.f32.mrb[0].mxu0
      %v2869 = vadd.f32 0.0, %v2868
      %v2870 = vpop.f32.mrb[0].mxu0
      %2871 = vmatprep.mubr.f32.mxu0 0.0
      %2872 = vmatmul.mubr.f32.gmra.mrb[0].mxu0 %v2770
      %v2873 = vpop.f32.mrb[0].mxu0
      %v2874 = vadd.f32 0.0, %v2873
      %v2875 = vpop.f32.mrb[0].mxu0
      %2876 = vdwg.mxu0
      %v2877 = vadd.f32 %v2730, %v2839
      %v2878 = vadd.f32 %v2731, %v2844
      %v2879 = vadd.f32 %v2732, %v2849
      %v2880 = vadd.f32 %v2733, %v2854
      %v2881 = vadd.f32 %v2734, %v2859
      %v2882 = vadd.f32 %v2735, %v2864
      %v2883 = vadd.f32 %v2736, %v2869
      %v2884 = vadd.f32 %v2737, %v2874
      %v2885 = vld [vmem:[%s2590 + $0x2] sm:$0xff]
      %v2886 = vld [vmem:[%s2590 + $0x12] sm:$0xff]
      %v2887 = vld [vmem:[%s2590 + $0x22] sm:$0xff]
      %v2888 = vld [vmem:[%s2590 + $0x32] sm:$0xff]
      %v2889 = vld [vmem:[%s2590 + $0x42] sm:$0xff]
      %v2890 = vld [vmem:[%s2590 + $0x52] sm:$0xff]
      %v2891 = vld [vmem:[%s2590 + $0x62] sm:$0xff]
      %v2892 = vld [vmem:[%s2590 + $0x72] sm:$0xff]
      %s2893 = scalar_lea.vmem %s4, 136
      %v2894 = vld [vmem:[%s2893] sm:$0xff]
      %v2896 = vsel %vm417, %v2885, 0
      %v2899 = vsel %vm417, %v2886, 0
      %v2902 = vsel %vm417, %v2887, 0
      %v2905 = vsel %vm417, %v2888, 0
      %v2908 = vsel %vm417, %v2889, 0
      %v2911 = vsel %vm417, %v2890, 0
      %v2914 = vsel %vm417, %v2891, 0
      %v2917 = vsel %vm417, %v2892, 0
      %2919 = vmatprep.subr.mxu0 0.0
      %2920 = vmatpush1.msra.mxu0 %v2894
      %2921 = vmatprep.subr.mxu0 0.0
      %2922 = vmatpush1.msra.mxu0 0.0
      %2923 = vmatprep.subr.mxu0 0.0
      %2924 = vmatpush1.msra.mxu0 0.0
      %2925 = vmatprep.subr.mxu0 0.0
      %2926 = vmatpush1.msra.mxu0 0.0
      %2927 = vmatprep.subr.mxu0 0.0
      %2928 = vmatpush1.msra.mxu0 0.0
      %2929 = vmatprep.subr.mxu0 0.0
      %2930 = vmatpush1.msra.mxu0 0.0
      %2931 = vmatprep.subr.mxu0 0.0
      %2932 = vmatpush1.msra.mxu0 0.0
      %2933 = vmatprep.subr.mxu0 0.0
      %2934 = vmatpush1.msra.mxu0 0.0
      %2935 = vmatprep.subr.mxu0 0.0
      %2936 = vmatpush1.msra.mxu0 0.0
      %2937 = vmatprep.subr.mxu0 0.0
      %2938 = vmatpush1.msra.mxu0 0.0
      %2939 = vmatprep.subr.mxu0 0.0
      %2940 = vmatpush1.msra.mxu0 0.0
      %2941 = vmatprep.subr.mxu0 0.0
      %2942 = vmatpush1.msra.mxu0 0.0
      %2943 = vmatprep.subr.mxu0 0.0
      %2944 = vmatpush1.msra.mxu0 0.0
      %2945 = vmatprep.subr.mxu0 0.0
      %2946 = vmatpush1.msra.mxu0 0.0
      %2947 = vmatprep.subr.mxu0 0.0
      %2948 = vmatpush1.msra.mxu0 0.0
      %2949 = vmatprep.subr.mxu0 0.0
      %2950 = vmatpush1.msra.mxu0 0.0
      %2951 = vmatprep.subr.mxu0 0.0
      %2952 = vmatpush1.msra.mxu0 0.0
      %2953 = vmatprep.subr.mxu0 0.0
      %2954 = vmatpush1.msra.mxu0 0.0
      %2955 = vmatprep.subr.mxu0 0.0
      %2956 = vmatpush1.msra.mxu0 0.0
      %2957 = vmatprep.subr.mxu0 0.0
      %2958 = vmatpush1.msra.mxu0 0.0
      %2959 = vmatprep.subr.mxu0 0.0
      %2960 = vmatpush1.msra.mxu0 0.0
      %2961 = vmatprep.subr.mxu0 0.0
      %2962 = vmatpush1.msra.mxu0 0.0
      %2963 = vmatprep.subr.mxu0 0.0
      %2964 = vmatpush1.msra.mxu0 0.0
      %2965 = vmatprep.subr.mxu0 0.0
      %2966 = vmatpush1.msra.mxu0 0.0
      %2967 = vmatprep.subr.mxu0 0.0
      %2968 = vmatpush1.msra.mxu0 0.0
      %2969 = vmatprep.subr.mxu0 0.0
      %2970 = vmatpush1.msra.mxu0 0.0
      %2971 = vmatprep.subr.mxu0 0.0
      %2972 = vmatpush1.msra.mxu0 0.0
      %2973 = vmatprep.subr.mxu0 0.0
      %2974 = vmatpush1.msra.mxu0 0.0
      %2975 = vmatprep.subr.mxu0 0.0
      %2976 = vmatpush1.msra.mxu0 0.0
      %2977 = vmatprep.subr.mxu0 0.0
      %2978 = vmatpush1.msra.mxu0 0.0
      %2979 = vmatprep.subr.mxu0 0.0
      %2980 = vmatpush1.msra.mxu0 0.0
      %2981 = vmatprep.subr.mxu0 0.0
      %2982 = vmatpush1.msra.mxu0 0.0
      %2983 = vmatprep.mubr.f32.mxu0 0.0
      %2984 = vmatmul.mubr.f32.gmra.mrb[0].mxu0 %v2896
      %v2985 = vpop.f32.mrb[0].mxu0
      %v2986 = vadd.f32 0.0, %v2985
      %v2987 = vpop.f32.mrb[0].mxu0
      %2988 = vmatprep.mubr.f32.mxu0 0.0
      %2989 = vmatmul.mubr.f32.gmra.mrb[0].mxu0 %v2899
      %v2990 = vpop.f32.mrb[0].mxu0
      %v2991 = vadd.f32 0.0, %v2990
      %v2992 = vpop.f32.mrb[0].mxu0
      %2993 = vmatprep.mubr.f32.mxu0 0.0
      %2994 = vmatmul.mubr.f32.gmra.mrb[0].mxu0 %v2902
      %v2995 = vpop.f32.mrb[0].mxu0
      %v2996 = vadd.f32 0.0, %v2995
      %v2997 = vpop.f32.mrb[0].mxu0
      %2998 = vmatprep.mubr.f32.mxu0 0.0
      %2999 = vmatmul.mubr.f32.gmra.mrb[0].mxu0 %v2905
      %v3000 = vpop.f32.mrb[0].mxu0
      %v3001 = vadd.f32 0.0, %v3000
      %v3002 = vpop.f32.mrb[0].mxu0
      %3003 = vmatprep.mubr.f32.mxu0 0.0
      %3004 = vmatmul.mubr.f32.gmra.mrb[0].mxu0 %v2908
      %v3005 = vpop.f32.mrb[0].mxu0
      %v3006 = vadd.f32 0.0, %v3005
      %v3007 = vpop.f32.mrb[0].mxu0
      %3008 = vmatprep.mubr.f32.mxu0 0.0
      %3009 = vmatmul.mubr.f32.gmra.mrb[0].mxu0 %v2911
      %v3010 = vpop.f32.mrb[0].mxu0
      %v3011 = vadd.f32 0.0, %v3010
      %v3012 = vpop.f32.mrb[0].mxu0
      %3013 = vmatprep.mubr.f32.mxu0 0.0
      %3014 = vmatmul.mubr.f32.gmra.mrb[0].mxu0 %v2914
      %v3015 = vpop.f32.mrb[0].mxu0
      %v3016 = vadd.f32 0.0, %v3015
      %v3017 = vpop.f32.mrb[0].mxu0
      %3018 = vmatprep.mubr.f32.mxu0 0.0
      %3019 = vmatmul.mubr.f32.gmra.mrb[0].mxu0 %v2917
      %v3020 = vpop.f32.mrb[0].mxu0
      %v3021 = vadd.f32 0.0, %v3020
      %v3022 = vpop.f32.mrb[0].mxu0
      %3023 = vdwg.mxu0
      %v3024 = vadd.f32 %v2877, %v2986
      %v3025 = vadd.f32 %v2878, %v2991
      %v3026 = vadd.f32 %v2879, %v2996
      %v3027 = vadd.f32 %v2880, %v3001
      %v3028 = vadd.f32 %v2881, %v3006
      %v3029 = vadd.f32 %v2882, %v3011
      %v3030 = vadd.f32 %v2883, %v3016
      %v3031 = vadd.f32 %v2884, %v3021
      %v3032 = vld [vmem:[%s387] sm:$0xff]
      %v3033 = vld [vmem:[%s387 + $0x10] sm:$0xff]
      %v3034 = vld [vmem:[%s387 + $0x20] sm:$0xff]
      %v3035 = vld [vmem:[%s387 + $0x30] sm:$0xff]
      %v3036 = vld [vmem:[%s387 + $0x40] sm:$0xff]
      %v3037 = vld [vmem:[%s387 + $0x50] sm:$0xff]
      %v3038 = vld [vmem:[%s387 + $0x60] sm:$0xff]
      %v3039 = vld [vmem:[%s387 + $0x70] sm:$0xff]
      %s3040 = scalar_lea.vmem %s4, 144
      %v3041 = vld [vmem:[%s3040] sm:$0xff]
      %v3043 = vsel %vm417, %v3032, 0
      %v3046 = vsel %vm417, %v3033, 0
      %v3049 = vsel %vm417, %v3034, 0
      %v3052 = vsel %vm417, %v3035, 0
      %v3055 = vsel %vm417, %v3036, 0
      %v3058 = vsel %vm417, %v3037, 0
      %v3061 = vsel %vm417, %v3038, 0
      %v3064 = vsel %vm417, %v3039, 0
      %3066 = vmatprep.subr.mxu0 0.0
      %3067 = vmatpush1.msra.mxu0 %v3041
      %3068 = vmatprep.subr.mxu0 0.0
      %3069 = vmatpush1.msra.mxu0 0.0
      %3070 = vmatprep.subr.mxu0 0.0
      %3071 = vmatpush1.msra.mxu0 0.0
      %3072 = vmatprep.subr.mxu0 0.0
      %3073 = vmatpush1.msra.mxu0 0.0
      %3074 = vmatprep.subr.mxu0 0.0
      %3075 = vmatpush1.msra.mxu0 0.0
      %3076 = vmatprep.subr.mxu0 0.0
      %3077 = vmatpush1.msra.mxu0 0.0
      %3078 = vmatprep.subr.mxu0 0.0
      %3079 = vmatpush1.msra.mxu0 0.0
      %3080 = vmatprep.subr.mxu0 0.0
      %3081 = vmatpush1.msra.mxu0 0.0
      %3082 = vmatprep.subr.mxu0 0.0
      %3083 = vmatpush1.msra.mxu0 0.0
      %3084 = vmatprep.subr.mxu0 0.0
      %3085 = vmatpush1.msra.mxu0 0.0
      %3086 = vmatprep.subr.mxu0 0.0
      %3087 = vmatpush1.msra.mxu0 0.0
      %3088 = vmatprep.subr.mxu0 0.0
      %3089 = vmatpush1.msra.mxu0 0.0
      %3090 = vmatprep.subr.mxu0 0.0
      %3091 = vmatpush1.msra.mxu0 0.0
      %3092 = vmatprep.subr.mxu0 0.0
      %3093 = vmatpush1.msra.mxu0 0.0
      %3094 = vmatprep.subr.mxu0 0.0
      %3095 = vmatpush1.msra.mxu0 0.0
      %3096 = vmatprep.subr.mxu0 0.0
      %3097 = vmatpush1.msra.mxu0 0.0
      %3098 = vmatprep.subr.mxu0 0.0
      %3099 = vmatpush1.msra.mxu0 0.0
      %3100 = vmatprep.subr.mxu0 0.0
      %3101 = vmatpush1.msra.mxu0 0.0
      %3102 = vmatprep.subr.mxu0 0.0
      %3103 = vmatpush1.msra.mxu0 0.0
      %3104 = vmatprep.subr.mxu0 0.0
      %3105 = vmatpush1.msra.mxu0 0.0
      %3106 = vmatprep.subr.mxu0 0.0
      %3107 = vmatpush1.msra.mxu0 0.0
      %3108 = vmatprep.subr.mxu0 0.0
      %3109 = vmatpush1.msra.mxu0 0.0
      %3110 = vmatprep.subr.mxu0 0.0
      %3111 = vmatpush1.msra.mxu0 0.0
      %3112 = vmatprep.subr.mxu0 0.0
      %3113 = vmatpush1.msra.mxu0 0.0
      %3114 = vmatprep.subr.mxu0 0.0
      %3115 = vmatpush1.msra.mxu0 0.0
      %3116 = vmatprep.subr.mxu0 0.0
      %3117 = vmatpush1.msra.mxu0 0.0
      %3118 = vmatprep.subr.mxu0 0.0
      %3119 = vmatpush1.msra.mxu0 0.0
      %3120 = vmatprep.subr.mxu0 0.0
      %3121 = vmatpush1.msra.mxu0 0.0
      %3122 = vmatprep.subr.mxu0 0.0
      %3123 = vmatpush1.msra.mxu0 0.0
      %3124 = vmatprep.subr.mxu0 0.0
      %3125 = vmatpush1.msra.mxu0 0.0
      %3126 = vmatprep.subr.mxu0 0.0
      %3127 = vmatpush1.msra.mxu0 0.0
      %3128 = vmatprep.subr.mxu0 0.0
      %3129 = vmatpush1.msra.mxu0 0.0
      %3130 = vmatprep.mubr.f32.mxu0 0.0
      %3131 = vmatmul.mubr.f32.gmra.mrb[0].mxu0 %v3043
      %v3132 = vpop.f32.mrb[0].mxu0
      %v3133 = vadd.f32 0.0, %v3132
      %v3134 = vpop.f32.mrb[0].mxu0
      %3135 = vmatprep.mubr.f32.mxu0 0.0
      %3136 = vmatmul.mubr.f32.gmra.mrb[0].mxu0 %v3046
      %v3137 = vpop.f32.mrb[0].mxu0
      %v3138 = vadd.f32 0.0, %v3137
      %v3139 = vpop.f32.mrb[0].mxu0
      %3140 = vmatprep.mubr.f32.mxu0 0.0
      %3141 = vmatmul.mubr.f32.gmra.mrb[0].mxu0 %v3049
      %v3142 = vpop.f32.mrb[0].mxu0
      %v3143 = vadd.f32 0.0, %v3142
      %v3144 = vpop.f32.mrb[0].mxu0
      %3145 = vmatprep.mubr.f32.mxu0 0.0
      %3146 = vmatmul.mubr.f32.gmra.mrb[0].mxu0 %v3052
      %v3147 = vpop.f32.mrb[0].mxu0
      %v3148 = vadd.f32 0.0, %v3147
      %v3149 = vpop.f32.mrb[0].mxu0
      %3150 = vmatprep.mubr.f32.mxu0 0.0
      %3151 = vmatmul.mubr.f32.gmra.mrb[0].mxu0 %v3055
      %v3152 = vpop.f32.mrb[0].mxu0
      %v3153 = vadd.f32 0.0, %v3152
      %v3154 = vpop.f32.mrb[0].mxu0
      %3155 = vmatprep.mubr.f32.mxu0 0.0
      %3156 = vmatmul.mubr.f32.gmra.mrb[0].mxu0 %v3058
      %v3157 = vpop.f32.mrb[0].mxu0
      %v3158 = vadd.f32 0.0, %v3157
      %v3159 = vpop.f32.mrb[0].mxu0
      %3160 = vmatprep.mubr.f32.mxu0 0.0
      %3161 = vmatmul.mubr.f32.gmra.mrb[0].mxu0 %v3061
      %v3162 = vpop.f32.mrb[0].mxu0
      %v3163 = vadd.f32 0.0, %v3162
      %v3164 = vpop.f32.mrb[0].mxu0
      %3165 = vmatprep.mubr.f32.mxu0 0.0
      %3166 = vmatmul.mubr.f32.gmra.mrb[0].mxu0 %v3064
      %v3167 = vpop.f32.mrb[0].mxu0
      %v3168 = vadd.f32 0.0, %v3167
      %v3169 = vpop.f32.mrb[0].mxu0
      %3170 = vdwg.mxu0
      %v3171 = vadd.f32 %v3024, %v3133
      %v3172 = vadd.f32 %v3025, %v3138
      %v3173 = vadd.f32 %v3026, %v3143
      %v3174 = vadd.f32 %v3027, %v3148
      %v3175 = vadd.f32 %v3028, %v3153
      %v3176 = vadd.f32 %v3029, %v3158
      %v3177 = vadd.f32 %v3030, %v3163
      %v3178 = vadd.f32 %v3031, %v3168
      %v3179 = vld [vmem:[%s387 + $0x1] sm:$0xff]
      %v3180 = vld [vmem:[%s387 + $0x11] sm:$0xff]
      %v3181 = vld [vmem:[%s387 + $0x21] sm:$0xff]
      %v3182 = vld [vmem:[%s387 + $0x31] sm:$0xff]
      %v3183 = vld [vmem:[%s387 + $0x41] sm:$0xff]
      %v3184 = vld [vmem:[%s387 + $0x51] sm:$0xff]
      %v3185 = vld [vmem:[%s387 + $0x61] sm:$0xff]
      %v3186 = vld [vmem:[%s387 + $0x71] sm:$0xff]
      %s3187 = scalar_lea.vmem %s4, 152
      %v3188 = vld [vmem:[%s3187] sm:$0xff]
      %v3190 = vsel %vm417, %v3179, 0
      %v3193 = vsel %vm417, %v3180, 0
      %v3196 = vsel %vm417, %v3181, 0
      %v3199 = vsel %vm417, %v3182, 0
      %v3202 = vsel %vm417, %v3183, 0
      %v3205 = vsel %vm417, %v3184, 0
      %v3208 = vsel %vm417, %v3185, 0
      %v3211 = vsel %vm417, %v3186, 0
      %3213 = vmatprep.subr.mxu0 0.0
      %3214 = vmatpush1.msra.mxu0 %v3188
      %3215 = vmatprep.subr.mxu0 0.0
      %3216 = vmatpush1.msra.mxu0 0.0
      %3217 = vmatprep.subr.mxu0 0.0
      %3218 = vmatpush1.msra.mxu0 0.0
      %3219 = vmatprep.subr.mxu0 0.0
      %3220 = vmatpush1.msra.mxu0 0.0
      %3221 = vmatprep.subr.mxu0 0.0
      %3222 = vmatpush1.msra.mxu0 0.0
      %3223 = vmatprep.subr.mxu0 0.0
      %3224 = vmatpush1.msra.mxu0 0.0
      %3225 = vmatprep.subr.mxu0 0.0
      %3226 = vmatpush1.msra.mxu0 0.0
      %3227 = vmatprep.subr.mxu0 0.0
      %3228 = vmatpush1.msra.mxu0 0.0
      %3229 = vmatprep.subr.mxu0 0.0
      %3230 = vmatpush1.msra.mxu0 0.0
      %3231 = vmatprep.subr.mxu0 0.0
      %3232 = vmatpush1.msra.mxu0 0.0
      %3233 = vmatprep.subr.mxu0 0.0
      %3234 = vmatpush1.msra.mxu0 0.0
      %3235 = vmatprep.subr.mxu0 0.0
      %3236 = vmatpush1.msra.mxu0 0.0
      %3237 = vmatprep.subr.mxu0 0.0
      %3238 = vmatpush1.msra.mxu0 0.0
      %3239 = vmatprep.subr.mxu0 0.0
      %3240 = vmatpush1.msra.mxu0 0.0
      %3241 = vmatprep.subr.mxu0 0.0
      %3242 = vmatpush1.msra.mxu0 0.0
      %3243 = vmatprep.subr.mxu0 0.0
      %3244 = vmatpush1.msra.mxu0 0.0
      %3245 = vmatprep.subr.mxu0 0.0
      %3246 = vmatpush1.msra.mxu0 0.0
      %3247 = vmatprep.subr.mxu0 0.0
      %3248 = vmatpush1.msra.mxu0 0.0
      %3249 = vmatprep.subr.mxu0 0.0
      %3250 = vmatpush1.msra.mxu0 0.0
      %3251 = vmatprep.subr.mxu0 0.0
      %3252 = vmatpush1.msra.mxu0 0.0
      %3253 = vmatprep.subr.mxu0 0.0
      %3254 = vmatpush1.msra.mxu0 0.0
      %3255 = vmatprep.subr.mxu0 0.0
      %3256 = vmatpush1.msra.mxu0 0.0
      %3257 = vmatprep.subr.mxu0 0.0
      %3258 = vmatpush1.msra.mxu0 0.0
      %3259 = vmatprep.subr.mxu0 0.0
      %3260 = vmatpush1.msra.mxu0 0.0
      %3261 = vmatprep.subr.mxu0 0.0
      %3262 = vmatpush1.msra.mxu0 0.0
      %3263 = vmatprep.subr.mxu0 0.0
      %3264 = vmatpush1.msra.mxu0 0.0
      %3265 = vmatprep.subr.mxu0 0.0
      %3266 = vmatpush1.msra.mxu0 0.0
      %3267 = vmatprep.subr.mxu0 0.0
      %3268 = vmatpush1.msra.mxu0 0.0
      %3269 = vmatprep.subr.mxu0 0.0
      %3270 = vmatpush1.msra.mxu0 0.0
      %3271 = vmatprep.subr.mxu0 0.0
      %3272 = vmatpush1.msra.mxu0 0.0
      %3273 = vmatprep.subr.mxu0 0.0
      %3274 = vmatpush1.msra.mxu0 0.0
      %3275 = vmatprep.subr.mxu0 0.0
      %3276 = vmatpush1.msra.mxu0 0.0
      %3277 = vmatprep.mubr.f32.mxu0 0.0
      %3278 = vmatmul.mubr.f32.gmra.mrb[0].mxu0 %v3190
      %v3279 = vpop.f32.mrb[0].mxu0
      %v3280 = vadd.f32 0.0, %v3279
      %v3281 = vpop.f32.mrb[0].mxu0
      %3282 = vmatprep.mubr.f32.mxu0 0.0
      %3283 = vmatmul.mubr.f32.gmra.mrb[0].mxu0 %v3193
      %v3284 = vpop.f32.mrb[0].mxu0
      %v3285 = vadd.f32 0.0, %v3284
      %v3286 = vpop.f32.mrb[0].mxu0
      %3287 = vmatprep.mubr.f32.mxu0 0.0
      %3288 = vmatmul.mubr.f32.gmra.mrb[0].mxu0 %v3196
      %v3289 = vpop.f32.mrb[0].mxu0
      %v3290 = vadd.f32 0.0, %v3289
      %v3291 = vpop.f32.mrb[0].mxu0
      %3292 = vmatprep.mubr.f32.mxu0 0.0
      %3293 = vmatmul.mubr.f32.gmra.mrb[0].mxu0 %v3199
      %v3294 = vpop.f32.mrb[0].mxu0
      %v3295 = vadd.f32 0.0, %v3294
      %v3296 = vpop.f32.mrb[0].mxu0
      %3297 = vmatprep.mubr.f32.mxu0 0.0
      %3298 = vmatmul.mubr.f32.gmra.mrb[0].mxu0 %v3202
      %v3299 = vpop.f32.mrb[0].mxu0
      %v3300 = vadd.f32 0.0, %v3299
      %v3301 = vpop.f32.mrb[0].mxu0
      %3302 = vmatprep.mubr.f32.mxu0 0.0
      %3303 = vmatmul.mubr.f32.gmra.mrb[0].mxu0 %v3205
      %v3304 = vpop.f32.mrb[0].mxu0
      %v3305 = vadd.f32 0.0, %v3304
      %v3306 = vpop.f32.mrb[0].mxu0
      %3307 = vmatprep.mubr.f32.mxu0 0.0
      %3308 = vmatmul.mubr.f32.gmra.mrb[0].mxu0 %v3208
      %v3309 = vpop.f32.mrb[0].mxu0
      %v3310 = vadd.f32 0.0, %v3309
      %v3311 = vpop.f32.mrb[0].mxu0
      %3312 = vmatprep.mubr.f32.mxu0 0.0
      %3313 = vmatmul.mubr.f32.gmra.mrb[0].mxu0 %v3211
      %v3314 = vpop.f32.mrb[0].mxu0
      %v3315 = vadd.f32 0.0, %v3314
      %v3316 = vpop.f32.mrb[0].mxu0
      %3317 = vdwg.mxu0
      %v3318 = vadd.f32 %v3171, %v3280
      %v3319 = vadd.f32 %v3172, %v3285
      %v3320 = vadd.f32 %v3173, %v3290
      %v3321 = vadd.f32 %v3174, %v3295
      %v3322 = vadd.f32 %v3175, %v3300
      %v3323 = vadd.f32 %v3176, %v3305
      %v3324 = vadd.f32 %v3177, %v3310
      %v3325 = vadd.f32 %v3178, %v3315
      %v3326 = vld [vmem:[%s387 + $0x2] sm:$0xff]
      %v3327 = vld [vmem:[%s387 + $0x12] sm:$0xff]
      %v3328 = vld [vmem:[%s387 + $0x22] sm:$0xff]
      %v3329 = vld [vmem:[%s387 + $0x32] sm:$0xff]
      %v3330 = vld [vmem:[%s387 + $0x42] sm:$0xff]
      %v3331 = vld [vmem:[%s387 + $0x52] sm:$0xff]
      %v3332 = vld [vmem:[%s387 + $0x62] sm:$0xff]
      %v3333 = vld [vmem:[%s387 + $0x72] sm:$0xff]
      %s3334 = scalar_lea.vmem %s4, 160
      %v3335 = vld [vmem:[%s3334] sm:$0xff]
      %v3337 = vsel %vm417, %v3326, 0
      %v3340 = vsel %vm417, %v3327, 0
      %v3343 = vsel %vm417, %v3328, 0
      %v3346 = vsel %vm417, %v3329, 0
      %v3349 = vsel %vm417, %v3330, 0
      %v3352 = vsel %vm417, %v3331, 0
      %v3355 = vsel %vm417, %v3332, 0
      %v3358 = vsel %vm417, %v3333, 0
      %3360 = vmatprep.subr.mxu0 0.0
      %3361 = vmatpush1.msra.mxu0 %v3335
      %3362 = vmatprep.subr.mxu0 0.0
      %3363 = vmatpush1.msra.mxu0 0.0
      %3364 = vmatprep.subr.mxu0 0.0
      %3365 = vmatpush1.msra.mxu0 0.0
      %3366 = vmatprep.subr.mxu0 0.0
      %3367 = vmatpush1.msra.mxu0 0.0
      %3368 = vmatprep.subr.mxu0 0.0
      %3369 = vmatpush1.msra.mxu0 0.0
      %3370 = vmatprep.subr.mxu0 0.0
      %3371 = vmatpush1.msra.mxu0 0.0
      %3372 = vmatprep.subr.mxu0 0.0
      %3373 = vmatpush1.msra.mxu0 0.0
      %3374 = vmatprep.subr.mxu0 0.0
      %3375 = vmatpush1.msra.mxu0 0.0
      %3376 = vmatprep.subr.mxu0 0.0
      %3377 = vmatpush1.msra.mxu0 0.0
      %3378 = vmatprep.subr.mxu0 0.0
      %3379 = vmatpush1.msra.mxu0 0.0
      %3380 = vmatprep.subr.mxu0 0.0
      %3381 = vmatpush1.msra.mxu0 0.0
      %3382 = vmatprep.subr.mxu0 0.0
      %3383 = vmatpush1.msra.mxu0 0.0
      %3384 = vmatprep.subr.mxu0 0.0
      %3385 = vmatpush1.msra.mxu0 0.0
      %3386 = vmatprep.subr.mxu0 0.0
      %3387 = vmatpush1.msra.mxu0 0.0
      %3388 = vmatprep.subr.mxu0 0.0
      %3389 = vmatpush1.msra.mxu0 0.0
      %3390 = vmatprep.subr.mxu0 0.0
      %3391 = vmatpush1.msra.mxu0 0.0
      %3392 = vmatprep.subr.mxu0 0.0
      %3393 = vmatpush1.msra.mxu0 0.0
      %3394 = vmatprep.subr.mxu0 0.0
      %3395 = vmatpush1.msra.mxu0 0.0
      %3396 = vmatprep.subr.mxu0 0.0
      %3397 = vmatpush1.msra.mxu0 0.0
      %3398 = vmatprep.subr.mxu0 0.0
      %3399 = vmatpush1.msra.mxu0 0.0
      %3400 = vmatprep.subr.mxu0 0.0
      %3401 = vmatpush1.msra.mxu0 0.0
      %3402 = vmatprep.subr.mxu0 0.0
      %3403 = vmatpush1.msra.mxu0 0.0
      %3404 = vmatprep.subr.mxu0 0.0
      %3405 = vmatpush1.msra.mxu0 0.0
      %3406 = vmatprep.subr.mxu0 0.0
      %3407 = vmatpush1.msra.mxu0 0.0
      %3408 = vmatprep.subr.mxu0 0.0
      %3409 = vmatpush1.msra.mxu0 0.0
      %3410 = vmatprep.subr.mxu0 0.0
      %3411 = vmatpush1.msra.mxu0 0.0
      %3412 = vmatprep.subr.mxu0 0.0
      %3413 = vmatpush1.msra.mxu0 0.0
      %3414 = vmatprep.subr.mxu0 0.0
      %3415 = vmatpush1.msra.mxu0 0.0
      %3416 = vmatprep.subr.mxu0 0.0
      %3417 = vmatpush1.msra.mxu0 0.0
      %3418 = vmatprep.subr.mxu0 0.0
      %3419 = vmatpush1.msra.mxu0 0.0
      %3420 = vmatprep.subr.mxu0 0.0
      %3421 = vmatpush1.msra.mxu0 0.0
      %3422 = vmatprep.subr.mxu0 0.0
      %3423 = vmatpush1.msra.mxu0 0.0
      %3424 = vmatprep.mubr.f32.mxu0 0.0
      %3425 = vmatmul.mubr.f32.gmra.mrb[0].mxu0 %v3337
      %v3426 = vpop.f32.mrb[0].mxu0
      %v3427 = vadd.f32 0.0, %v3426
      %v3428 = vpop.f32.mrb[0].mxu0
      %3429 = vmatprep.mubr.f32.mxu0 0.0
      %3430 = vmatmul.mubr.f32.gmra.mrb[0].mxu0 %v3340
      %v3431 = vpop.f32.mrb[0].mxu0
      %v3432 = vadd.f32 0.0, %v3431
      %v3433 = vpop.f32.mrb[0].mxu0
      %3434 = vmatprep.mubr.f32.mxu0 0.0
      %3435 = vmatmul.mubr.f32.gmra.mrb[0].mxu0 %v3343
      %v3436 = vpop.f32.mrb[0].mxu0
      %v3437 = vadd.f32 0.0, %v3436
      %v3438 = vpop.f32.mrb[0].mxu0
      %3439 = vmatprep.mubr.f32.mxu0 0.0
      %3440 = vmatmul.mubr.f32.gmra.mrb[0].mxu0 %v3346
      %v3441 = vpop.f32.mrb[0].mxu0
      %v3442 = vadd.f32 0.0, %v3441
      %v3443 = vpop.f32.mrb[0].mxu0
      %3444 = vmatprep.mubr.f32.mxu0 0.0
      %3445 = vmatmul.mubr.f32.gmra.mrb[0].mxu0 %v3349
      %v3446 = vpop.f32.mrb[0].mxu0
      %v3447 = vadd.f32 0.0, %v3446
      %v3448 = vpop.f32.mrb[0].mxu0
      %3449 = vmatprep.mubr.f32.mxu0 0.0
      %3450 = vmatmul.mubr.f32.gmra.mrb[0].mxu0 %v3352
      %v3451 = vpop.f32.mrb[0].mxu0
      %v3452 = vadd.f32 0.0, %v3451
      %v3453 = vpop.f32.mrb[0].mxu0
      %3454 = vmatprep.mubr.f32.mxu0 0.0
      %3455 = vmatmul.mubr.f32.gmra.mrb[0].mxu0 %v3355
      %v3456 = vpop.f32.mrb[0].mxu0
      %v3457 = vadd.f32 0.0, %v3456
      %v3458 = vpop.f32.mrb[0].mxu0
      %3459 = vmatprep.mubr.f32.mxu0 0.0
      %3460 = vmatmul.mubr.f32.gmra.mrb[0].mxu0 %v3358
      %v3461 = vpop.f32.mrb[0].mxu0
      %v3462 = vadd.f32 0.0, %v3461
      %v3463 = vpop.f32.mrb[0].mxu0
      %3464 = vdwg.mxu0
      %v3465 = vadd.f32 %v3318, %v3427
      %v3466 = vadd.f32 %v3319, %v3432
      %v3467 = vadd.f32 %v3320, %v3437
      %v3468 = vadd.f32 %v3321, %v3442
      %v3469 = vadd.f32 %v3322, %v3447
      %v3470 = vadd.f32 %v3323, %v3452
      %v3471 = vadd.f32 %v3324, %v3457
      %v3472 = vadd.f32 %v3325, %v3462
      %s3473 = scalar_lea.vmem %s387, 16
      %v3474 = vld [vmem:[%s3473] sm:$0xff]
      %v3475 = vld [vmem:[%s3473 + $0x10] sm:$0xff]
      %v3476 = vld [vmem:[%s3473 + $0x20] sm:$0xff]
      %v3477 = vld [vmem:[%s3473 + $0x30] sm:$0xff]
      %v3478 = vld [vmem:[%s3473 + $0x40] sm:$0xff]
      %v3479 = vld [vmem:[%s3473 + $0x50] sm:$0xff]
      %v3480 = vld [vmem:[%s3473 + $0x60] sm:$0xff]
      %v3481 = vld [vmem:[%s3473 + $0x70] sm:$0xff]
      %s3482 = scalar_lea.vmem %s4, 168
      %v3483 = vld [vmem:[%s3482] sm:$0xff]
      %v3485 = vsel %vm417, %v3474, 0
      %v3488 = vsel %vm417, %v3475, 0
      %v3491 = vsel %vm417, %v3476, 0
      %v3494 = vsel %vm417, %v3477, 0
      %v3497 = vsel %vm417, %v3478, 0
      %v3500 = vsel %vm417, %v3479, 0
      %v3503 = vsel %vm417, %v3480, 0
      %v3506 = vsel %vm417, %v3481, 0
      %3508 = vmatprep.subr.mxu0 0.0
      %3509 = vmatpush1.msra.mxu0 %v3483
      %3510 = vmatprep.subr.mxu0 0.0
      %3511 = vmatpush1.msra.mxu0 0.0
      %3512 = vmatprep.subr.mxu0 0.0
      %3513 = vmatpush1.msra.mxu0 0.0
      %3514 = vmatprep.subr.mxu0 0.0
      %3515 = vmatpush1.msra.mxu0 0.0
      %3516 = vmatprep.subr.mxu0 0.0
      %3517 = vmatpush1.msra.mxu0 0.0
      %3518 = vmatprep.subr.mxu0 0.0
      %3519 = vmatpush1.msra.mxu0 0.0
      %3520 = vmatprep.subr.mxu0 0.0
      %3521 = vmatpush1.msra.mxu0 0.0
      %3522 = vmatprep.subr.mxu0 0.0
      %3523 = vmatpush1.msra.mxu0 0.0
      %3524 = vmatprep.subr.mxu0 0.0
      %3525 = vmatpush1.msra.mxu0 0.0
      %3526 = vmatprep.subr.mxu0 0.0
      %3527 = vmatpush1.msra.mxu0 0.0
      %3528 = vmatprep.subr.mxu0 0.0
      %3529 = vmatpush1.msra.mxu0 0.0
      %3530 = vmatprep.subr.mxu0 0.0
      %3531 = vmatpush1.msra.mxu0 0.0
      %3532 = vmatprep.subr.mxu0 0.0
      %3533 = vmatpush1.msra.mxu0 0.0
      %3534 = vmatprep.subr.mxu0 0.0
      %3535 = vmatpush1.msra.mxu0 0.0
      %3536 = vmatprep.subr.mxu0 0.0
      %3537 = vmatpush1.msra.mxu0 0.0
      %3538 = vmatprep.subr.mxu0 0.0
      %3539 = vmatpush1.msra.mxu0 0.0
      %3540 = vmatprep.subr.mxu0 0.0
      %3541 = vmatpush1.msra.mxu0 0.0
      %3542 = vmatprep.subr.mxu0 0.0
      %3543 = vmatpush1.msra.mxu0 0.0
      %3544 = vmatprep.subr.mxu0 0.0
      %3545 = vmatpush1.msra.mxu0 0.0
      %3546 = vmatprep.subr.mxu0 0.0
      %3547 = vmatpush1.msra.mxu0 0.0
      %3548 = vmatprep.subr.mxu0 0.0
      %3549 = vmatpush1.msra.mxu0 0.0
      %3550 = vmatprep.subr.mxu0 0.0
      %3551 = vmatpush1.msra.mxu0 0.0
      %3552 = vmatprep.subr.mxu0 0.0
      %3553 = vmatpush1.msra.mxu0 0.0
      %3554 = vmatprep.subr.mxu0 0.0
      %3555 = vmatpush1.msra.mxu0 0.0
      %3556 = vmatprep.subr.mxu0 0.0
      %3557 = vmatpush1.msra.mxu0 0.0
      %3558 = vmatprep.subr.mxu0 0.0
      %3559 = vmatpush1.msra.mxu0 0.0
      %3560 = vmatprep.subr.mxu0 0.0
      %3561 = vmatpush1.msra.mxu0 0.0
      %3562 = vmatprep.subr.mxu0 0.0
      %3563 = vmatpush1.msra.mxu0 0.0
      %3564 = vmatprep.subr.mxu0 0.0
      %3565 = vmatpush1.msra.mxu0 0.0
      %3566 = vmatprep.subr.mxu0 0.0
      %3567 = vmatpush1.msra.mxu0 0.0
      %3568 = vmatprep.subr.mxu0 0.0
      %3569 = vmatpush1.msra.mxu0 0.0
      %3570 = vmatprep.subr.mxu0 0.0
      %3571 = vmatpush1.msra.mxu0 0.0
      %3572 = vmatprep.mubr.f32.mxu0 0.0
      %3573 = vmatmul.mubr.f32.gmra.mrb[0].mxu0 %v3485
      %v3574 = vpop.f32.mrb[0].mxu0
      %v3575 = vadd.f32 0.0, %v3574
      %v3576 = vpop.f32.mrb[0].mxu0
      %3577 = vmatprep.mubr.f32.mxu0 0.0
      %3578 = vmatmul.mubr.f32.gmra.mrb[0].mxu0 %v3488
      %v3579 = vpop.f32.mrb[0].mxu0
      %v3580 = vadd.f32 0.0, %v3579
      %v3581 = vpop.f32.mrb[0].mxu0
      %3582 = vmatprep.mubr.f32.mxu0 0.0
      %3583 = vmatmul.mubr.f32.gmra.mrb[0].mxu0 %v3491
      %v3584 = vpop.f32.mrb[0].mxu0
      %v3585 = vadd.f32 0.0, %v3584
      %v3586 = vpop.f32.mrb[0].mxu0
      %3587 = vmatprep.mubr.f32.mxu0 0.0
      %3588 = vmatmul.mubr.f32.gmra.mrb[0].mxu0 %v3494
      %v3589 = vpop.f32.mrb[0].mxu0
      %v3590 = vadd.f32 0.0, %v3589
      %v3591 = vpop.f32.mrb[0].mxu0
      %3592 = vmatprep.mubr.f32.mxu0 0.0
      %3593 = vmatmul.mubr.f32.gmra.mrb[0].mxu0 %v3497
      %v3594 = vpop.f32.mrb[0].mxu0
      %v3595 = vadd.f32 0.0, %v3594
      %v3596 = vpop.f32.mrb[0].mxu0
      %3597 = vmatprep.mubr.f32.mxu0 0.0
      %3598 = vmatmul.mubr.f32.gmra.mrb[0].mxu0 %v3500
      %v3599 = vpop.f32.mrb[0].mxu0
      %v3600 = vadd.f32 0.0, %v3599
      %v3601 = vpop.f32.mrb[0].mxu0
      %3602 = vmatprep.mubr.f32.mxu0 0.0
      %3603 = vmatmul.mubr.f32.gmra.mrb[0].mxu0 %v3503
      %v3604 = vpop.f32.mrb[0].mxu0
      %v3605 = vadd.f32 0.0, %v3604
      %v3606 = vpop.f32.mrb[0].mxu0
      %3607 = vmatprep.mubr.f32.mxu0 0.0
      %3608 = vmatmul.mubr.f32.gmra.mrb[0].mxu0 %v3506
      %v3609 = vpop.f32.mrb[0].mxu0
      %v3610 = vadd.f32 0.0, %v3609
      %v3611 = vpop.f32.mrb[0].mxu0
      %3612 = vdwg.mxu0
      %v3613 = vadd.f32 %v3465, %v3575
      %v3614 = vadd.f32 %v3466, %v3580
      %v3615 = vadd.f32 %v3467, %v3585
      %v3616 = vadd.f32 %v3468, %v3590
      %v3617 = vadd.f32 %v3469, %v3595
      %v3618 = vadd.f32 %v3470, %v3600
      %v3619 = vadd.f32 %v3471, %v3605
      %v3620 = vadd.f32 %v3472, %v3610
      %v3621 = vld [vmem:[%s3473 + $0x1] sm:$0xff]
      %v3622 = vld [vmem:[%s3473 + $0x11] sm:$0xff]
      %v3623 = vld [vmem:[%s3473 + $0x21] sm:$0xff]
      %v3624 = vld [vmem:[%s3473 + $0x31] sm:$0xff]
      %v3625 = vld [vmem:[%s3473 + $0x41] sm:$0xff]
      %v3626 = vld [vmem:[%s3473 + $0x51] sm:$0xff]
      %v3627 = vld [vmem:[%s3473 + $0x61] sm:$0xff]
      %v3628 = vld [vmem:[%s3473 + $0x71] sm:$0xff]
      %s3629 = scalar_lea.vmem %s4, 176
      %v3630 = vld [vmem:[%s3629] sm:$0xff]
      %v3632 = vsel %vm417, %v3621, 0
      %v3635 = vsel %vm417, %v3622, 0
      %v3638 = vsel %vm417, %v3623, 0
      %v3641 = vsel %vm417, %v3624, 0
      %v3644 = vsel %vm417, %v3625, 0
      %v3647 = vsel %vm417, %v3626, 0
      %v3650 = vsel %vm417, %v3627, 0
      %v3653 = vsel %vm417, %v3628, 0
      %3655 = vmatprep.subr.mxu0 0.0
      %3656 = vmatpush1.msra.mxu0 %v3630
      %3657 = vmatprep.subr.mxu0 0.0
      %3658 = vmatpush1.msra.mxu0 0.0
      %3659 = vmatprep.subr.mxu0 0.0
      %3660 = vmatpush1.msra.mxu0 0.0
      %3661 = vmatprep.subr.mxu0 0.0
      %3662 = vmatpush1.msra.mxu0 0.0
      %3663 = vmatprep.subr.mxu0 0.0
      %3664 = vmatpush1.msra.mxu0 0.0
      %3665 = vmatprep.subr.mxu0 0.0
      %3666 = vmatpush1.msra.mxu0 0.0
      %3667 = vmatprep.subr.mxu0 0.0
      %3668 = vmatpush1.msra.mxu0 0.0
      %3669 = vmatprep.subr.mxu0 0.0
      %3670 = vmatpush1.msra.mxu0 0.0
      %3671 = vmatprep.subr.mxu0 0.0
      %3672 = vmatpush1.msra.mxu0 0.0
      %3673 = vmatprep.subr.mxu0 0.0
      %3674 = vmatpush1.msra.mxu0 0.0
      %3675 = vmatprep.subr.mxu0 0.0
      %3676 = vmatpush1.msra.mxu0 0.0
      %3677 = vmatprep.subr.mxu0 0.0
      %3678 = vmatpush1.msra.mxu0 0.0
      %3679 = vmatprep.subr.mxu0 0.0
      %3680 = vmatpush1.msra.mxu0 0.0
      %3681 = vmatprep.subr.mxu0 0.0
      %3682 = vmatpush1.msra.mxu0 0.0
      %3683 = vmatprep.subr.mxu0 0.0
      %3684 = vmatpush1.msra.mxu0 0.0
      %3685 = vmatprep.subr.mxu0 0.0
      %3686 = vmatpush1.msra.mxu0 0.0
      %3687 = vmatprep.subr.mxu0 0.0
      %3688 = vmatpush1.msra.mxu0 0.0
      %3689 = vmatprep.subr.mxu0 0.0
      %3690 = vmatpush1.msra.mxu0 0.0
      %3691 = vmatprep.subr.mxu0 0.0
      %3692 = vmatpush1.msra.mxu0 0.0
      %3693 = vmatprep.subr.mxu0 0.0
      %3694 = vmatpush1.msra.mxu0 0.0
      %3695 = vmatprep.subr.mxu0 0.0
      %3696 = vmatpush1.msra.mxu0 0.0
      %3697 = vmatprep.subr.mxu0 0.0
      %3698 = vmatpush1.msra.mxu0 0.0
      %3699 = vmatprep.subr.mxu0 0.0
      %3700 = vmatpush1.msra.mxu0 0.0
      %3701 = vmatprep.subr.mxu0 0.0
      %3702 = vmatpush1.msra.mxu0 0.0
      %3703 = vmatprep.subr.mxu0 0.0
      %3704 = vmatpush1.msra.mxu0 0.0
      %3705 = vmatprep.subr.mxu0 0.0
      %3706 = vmatpush1.msra.mxu0 0.0
      %3707 = vmatprep.subr.mxu0 0.0
      %3708 = vmatpush1.msra.mxu0 0.0
      %3709 = vmatprep.subr.mxu0 0.0
      %3710 = vmatpush1.msra.mxu0 0.0
      %3711 = vmatprep.subr.mxu0 0.0
      %3712 = vmatpush1.msra.mxu0 0.0
      %3713 = vmatprep.subr.mxu0 0.0
      %3714 = vmatpush1.msra.mxu0 0.0
      %3715 = vmatprep.subr.mxu0 0.0
      %3716 = vmatpush1.msra.mxu0 0.0
      %3717 = vmatprep.subr.mxu0 0.0
      %3718 = vmatpush1.msra.mxu0 0.0
      %3719 = vmatprep.mubr.f32.mxu0 0.0
      %3720 = vmatmul.mubr.f32.gmra.mrb[0].mxu0 %v3632
      %v3721 = vpop.f32.mrb[0].mxu0
      %v3722 = vadd.f32 0.0, %v3721
      %v3723 = vpop.f32.mrb[0].mxu0
      %3724 = vmatprep.mubr.f32.mxu0 0.0
      %3725 = vmatmul.mubr.f32.gmra.mrb[0].mxu0 %v3635
      %v3726 = vpop.f32.mrb[0].mxu0
      %v3727 = vadd.f32 0.0, %v3726
      %v3728 = vpop.f32.mrb[0].mxu0
      %3729 = vmatprep.mubr.f32.mxu0 0.0
      %3730 = vmatmul.mubr.f32.gmra.mrb[0].mxu0 %v3638
      %v3731 = vpop.f32.mrb[0].mxu0
      %v3732 = vadd.f32 0.0, %v3731
      %v3733 = vpop.f32.mrb[0].mxu0
      %3734 = vmatprep.mubr.f32.mxu0 0.0
      %3735 = vmatmul.mubr.f32.gmra.mrb[0].mxu0 %v3641
      %v3736 = vpop.f32.mrb[0].mxu0
      %v3737 = vadd.f32 0.0, %v3736
      %v3738 = vpop.f32.mrb[0].mxu0
      %3739 = vmatprep.mubr.f32.mxu0 0.0
      %3740 = vmatmul.mubr.f32.gmra.mrb[0].mxu0 %v3644
      %v3741 = vpop.f32.mrb[0].mxu0
      %v3742 = vadd.f32 0.0, %v3741
      %v3743 = vpop.f32.mrb[0].mxu0
      %3744 = vmatprep.mubr.f32.mxu0 0.0
      %3745 = vmatmul.mubr.f32.gmra.mrb[0].mxu0 %v3647
      %v3746 = vpop.f32.mrb[0].mxu0
      %v3747 = vadd.f32 0.0, %v3746
      %v3748 = vpop.f32.mrb[0].mxu0
      %3749 = vmatprep.mubr.f32.mxu0 0.0
      %3750 = vmatmul.mubr.f32.gmra.mrb[0].mxu0 %v3650
      %v3751 = vpop.f32.mrb[0].mxu0
      %v3752 = vadd.f32 0.0, %v3751
      %v3753 = vpop.f32.mrb[0].mxu0
      %3754 = vmatprep.mubr.f32.mxu0 0.0
      %3755 = vmatmul.mubr.f32.gmra.mrb[0].mxu0 %v3653
      %v3756 = vpop.f32.mrb[0].mxu0
      %v3757 = vadd.f32 0.0, %v3756
      %v3758 = vpop.f32.mrb[0].mxu0
      %3759 = vdwg.mxu0
      %v3760 = vadd.f32 %v3613, %v3722
      %v3761 = vadd.f32 %v3614, %v3727
      %v3762 = vadd.f32 %v3615, %v3732
      %v3763 = vadd.f32 %v3616, %v3737
      %v3764 = vadd.f32 %v3617, %v3742
      %v3765 = vadd.f32 %v3618, %v3747
      %v3766 = vadd.f32 %v3619, %v3752
      %v3767 = vadd.f32 %v3620, %v3757
      %v3768 = vld [vmem:[%s3473 + $0x2] sm:$0xff]
      %v3769 = vld [vmem:[%s3473 + $0x12] sm:$0xff]
      %v3770 = vld [vmem:[%s3473 + $0x22] sm:$0xff]
      %v3771 = vld [vmem:[%s3473 + $0x32] sm:$0xff]
      %v3772 = vld [vmem:[%s3473 + $0x42] sm:$0xff]
      %v3773 = vld [vmem:[%s3473 + $0x52] sm:$0xff]
      %v3774 = vld [vmem:[%s3473 + $0x62] sm:$0xff]
      %v3775 = vld [vmem:[%s3473 + $0x72] sm:$0xff]
      %s3776 = scalar_lea.vmem %s4, 184
      %v3777 = vld [vmem:[%s3776] sm:$0xff]
      %v3779 = vsel %vm417, %v3768, 0
      %v3782 = vsel %vm417, %v3769, 0
      %v3785 = vsel %vm417, %v3770, 0
      %v3788 = vsel %vm417, %v3771, 0
      %v3791 = vsel %vm417, %v3772, 0
      %v3794 = vsel %vm417, %v3773, 0
      %v3797 = vsel %vm417, %v3774, 0
      %v3800 = vsel %vm417, %v3775, 0
      %3802 = vmatprep.subr.mxu0 0.0
      %3803 = vmatpush1.msra.mxu0 %v3777
      %3804 = vmatprep.subr.mxu0 0.0
      %3805 = vmatpush1.msra.mxu0 0.0
      %3806 = vmatprep.subr.mxu0 0.0
      %3807 = vmatpush1.msra.mxu0 0.0
      %3808 = vmatprep.subr.mxu0 0.0
      %3809 = vmatpush1.msra.mxu0 0.0
      %3810 = vmatprep.subr.mxu0 0.0
      %3811 = vmatpush1.msra.mxu0 0.0
      %3812 = vmatprep.subr.mxu0 0.0
      %3813 = vmatpush1.msra.mxu0 0.0
      %3814 = vmatprep.subr.mxu0 0.0
      %3815 = vmatpush1.msra.mxu0 0.0
      %3816 = vmatprep.subr.mxu0 0.0
      %3817 = vmatpush1.msra.mxu0 0.0
      %3818 = vmatprep.subr.mxu0 0.0
      %3819 = vmatpush1.msra.mxu0 0.0
      %3820 = vmatprep.subr.mxu0 0.0
      %3821 = vmatpush1.msra.mxu0 0.0
      %3822 = vmatprep.subr.mxu0 0.0
      %3823 = vmatpush1.msra.mxu0 0.0
      %3824 = vmatprep.subr.mxu0 0.0
      %3825 = vmatpush1.msra.mxu0 0.0
      %3826 = vmatprep.subr.mxu0 0.0
      %3827 = vmatpush1.msra.mxu0 0.0
      %3828 = vmatprep.subr.mxu0 0.0
      %3829 = vmatpush1.msra.mxu0 0.0
      %3830 = vmatprep.subr.mxu0 0.0
      %3831 = vmatpush1.msra.mxu0 0.0
      %3832 = vmatprep.subr.mxu0 0.0
      %3833 = vmatpush1.msra.mxu0 0.0
      %3834 = vmatprep.subr.mxu0 0.0
      %3835 = vmatpush1.msra.mxu0 0.0
      %3836 = vmatprep.subr.mxu0 0.0
      %3837 = vmatpush1.msra.mxu0 0.0
      %3838 = vmatprep.subr.mxu0 0.0
      %3839 = vmatpush1.msra.mxu0 0.0
      %3840 = vmatprep.subr.mxu0 0.0
      %3841 = vmatpush1.msra.mxu0 0.0
      %3842 = vmatprep.subr.mxu0 0.0
      %3843 = vmatpush1.msra.mxu0 0.0
      %3844 = vmatprep.subr.mxu0 0.0
      %3845 = vmatpush1.msra.mxu0 0.0
      %3846 = vmatprep.subr.mxu0 0.0
      %3847 = vmatpush1.msra.mxu0 0.0
      %3848 = vmatprep.subr.mxu0 0.0
      %3849 = vmatpush1.msra.mxu0 0.0
      %3850 = vmatprep.subr.mxu0 0.0
      %3851 = vmatpush1.msra.mxu0 0.0
      %3852 = vmatprep.subr.mxu0 0.0
      %3853 = vmatpush1.msra.mxu0 0.0
      %3854 = vmatprep.subr.mxu0 0.0
      %3855 = vmatpush1.msra.mxu0 0.0
      %3856 = vmatprep.subr.mxu0 0.0
      %3857 = vmatpush1.msra.mxu0 0.0
      %3858 = vmatprep.subr.mxu0 0.0
      %3859 = vmatpush1.msra.mxu0 0.0
      %3860 = vmatprep.subr.mxu0 0.0
      %3861 = vmatpush1.msra.mxu0 0.0
      %3862 = vmatprep.subr.mxu0 0.0
      %3863 = vmatpush1.msra.mxu0 0.0
      %3864 = vmatprep.subr.mxu0 0.0
      %3865 = vmatpush1.msra.mxu0 0.0
      %3866 = vmatprep.mubr.f32.mxu0 0.0
      %3867 = vmatmul.mubr.f32.gmra.mrb[0].mxu0 %v3779
      %v3868 = vpop.f32.mrb[0].mxu0
      %v3869 = vadd.f32 0.0, %v3868
      %v3870 = vpop.f32.mrb[0].mxu0
      %3871 = vmatprep.mubr.f32.mxu0 0.0
      %3872 = vmatmul.mubr.f32.gmra.mrb[0].mxu0 %v3782
      %v3873 = vpop.f32.mrb[0].mxu0
      %v3874 = vadd.f32 0.0, %v3873
      %v3875 = vpop.f32.mrb[0].mxu0
      %3876 = vmatprep.mubr.f32.mxu0 0.0
      %3877 = vmatmul.mubr.f32.gmra.mrb[0].mxu0 %v3785
      %v3878 = vpop.f32.mrb[0].mxu0
      %v3879 = vadd.f32 0.0, %v3878
      %v3880 = vpop.f32.mrb[0].mxu0
      %3881 = vmatprep.mubr.f32.mxu0 0.0
      %3882 = vmatmul.mubr.f32.gmra.mrb[0].mxu0 %v3788
      %v3883 = vpop.f32.mrb[0].mxu0
      %v3884 = vadd.f32 0.0, %v3883
      %v3885 = vpop.f32.mrb[0].mxu0
      %3886 = vmatprep.mubr.f32.mxu0 0.0
      %3887 = vmatmul.mubr.f32.gmra.mrb[0].mxu0 %v3791
      %v3888 = vpop.f32.mrb[0].mxu0
      %v3889 = vadd.f32 0.0, %v3888
      %v3890 = vpop.f32.mrb[0].mxu0
      %3891 = vmatprep.mubr.f32.mxu0 0.0
      %3892 = vmatmul.mubr.f32.gmra.mrb[0].mxu0 %v3794
      %v3893 = vpop.f32.mrb[0].mxu0
      %v3894 = vadd.f32 0.0, %v3893
      %v3895 = vpop.f32.mrb[0].mxu0
      %3896 = vmatprep.mubr.f32.mxu0 0.0
      %3897 = vmatmul.mubr.f32.gmra.mrb[0].mxu0 %v3797
      %v3898 = vpop.f32.mrb[0].mxu0
      %v3899 = vadd.f32 0.0, %v3898
      %v3900 = vpop.f32.mrb[0].mxu0
      %3901 = vmatprep.mubr.f32.mxu0 0.0
      %3902 = vmatmul.mubr.f32.gmra.mrb[0].mxu0 %v3800
      %v3903 = vpop.f32.mrb[0].mxu0
      %v3904 = vadd.f32 0.0, %v3903
      %v3905 = vpop.f32.mrb[0].mxu0
      %3906 = vdwg.mxu0
      %v3907 = vadd.f32 %v3760, %v3869
      %v3908 = vadd.f32 %v3761, %v3874
      %v3909 = vadd.f32 %v3762, %v3879
      %v3910 = vadd.f32 %v3763, %v3884
      %v3911 = vadd.f32 %v3764, %v3889
      %v3912 = vadd.f32 %v3765, %v3894
      %v3913 = vadd.f32 %v3766, %v3899
      %v3914 = vadd.f32 %v3767, %v3904
      %s3915 = scalar_lea.vmem %s387, 32
      %v3916 = vld [vmem:[%s3915] sm:$0xff]
      %v3917 = vld [vmem:[%s3915 + $0x10] sm:$0xff]
      %v3918 = vld [vmem:[%s3915 + $0x20] sm:$0xff]
      %v3919 = vld [vmem:[%s3915 + $0x30] sm:$0xff]
      %v3920 = vld [vmem:[%s3915 + $0x40] sm:$0xff]
      %v3921 = vld [vmem:[%s3915 + $0x50] sm:$0xff]
      %v3922 = vld [vmem:[%s3915 + $0x60] sm:$0xff]
      %v3923 = vld [vmem:[%s3915 + $0x70] sm:$0xff]
      %s3924 = scalar_lea.vmem %s4, 192
      %v3925 = vld [vmem:[%s3924] sm:$0xff]
      %v3927 = vsel %vm417, %v3916, 0
      %v3930 = vsel %vm417, %v3917, 0
      %v3933 = vsel %vm417, %v3918, 0
      %v3936 = vsel %vm417, %v3919, 0
      %v3939 = vsel %vm417, %v3920, 0
      %v3942 = vsel %vm417, %v3921, 0
      %v3945 = vsel %vm417, %v3922, 0
      %v3948 = vsel %vm417, %v3923, 0
      %3950 = vmatprep.subr.mxu0 0.0
      %3951 = vmatpush1.msra.mxu0 %v3925
      %3952 = vmatprep.subr.mxu0 0.0
      %3953 = vmatpush1.msra.mxu0 0.0
      %3954 = vmatprep.subr.mxu0 0.0
      %3955 = vmatpush1.msra.mxu0 0.0
      %3956 = vmatprep.subr.mxu0 0.0
      %3957 = vmatpush1.msra.mxu0 0.0
      %3958 = vmatprep.subr.mxu0 0.0
      %3959 = vmatpush1.msra.mxu0 0.0
      %3960 = vmatprep.subr.mxu0 0.0
      %3961 = vmatpush1.msra.mxu0 0.0
      %3962 = vmatprep.subr.mxu0 0.0
      %3963 = vmatpush1.msra.mxu0 0.0
      %3964 = vmatprep.subr.mxu0 0.0
      %3965 = vmatpush1.msra.mxu0 0.0
      %3966 = vmatprep.subr.mxu0 0.0
      %3967 = vmatpush1.msra.mxu0 0.0
      %3968 = vmatprep.subr.mxu0 0.0
      %3969 = vmatpush1.msra.mxu0 0.0
      %3970 = vmatprep.subr.mxu0 0.0
      %3971 = vmatpush1.msra.mxu0 0.0
      %3972 = vmatprep.subr.mxu0 0.0
      %3973 = vmatpush1.msra.mxu0 0.0
      %3974 = vmatprep.subr.mxu0 0.0
      %3975 = vmatpush1.msra.mxu0 0.0
      %3976 = vmatprep.subr.mxu0 0.0
      %3977 = vmatpush1.msra.mxu0 0.0
      %3978 = vmatprep.subr.mxu0 0.0
      %3979 = vmatpush1.msra.mxu0 0.0
      %3980 = vmatprep.subr.mxu0 0.0
      %3981 = vmatpush1.msra.mxu0 0.0
      %3982 = vmatprep.subr.mxu0 0.0
      %3983 = vmatpush1.msra.mxu0 0.0
      %3984 = vmatprep.subr.mxu0 0.0
      %3985 = vmatpush1.msra.mxu0 0.0
      %3986 = vmatprep.subr.mxu0 0.0
      %3987 = vmatpush1.msra.mxu0 0.0
      %3988 = vmatprep.subr.mxu0 0.0
      %3989 = vmatpush1.msra.mxu0 0.0
      %3990 = vmatprep.subr.mxu0 0.0
      %3991 = vmatpush1.msra.mxu0 0.0
      %3992 = vmatprep.subr.mxu0 0.0
      %3993 = vmatpush1.msra.mxu0 0.0
      %3994 = vmatprep.subr.mxu0 0.0
      %3995 = vmatpush1.msra.mxu0 0.0
      %3996 = vmatprep.subr.mxu0 0.0
      %3997 = vmatpush1.msra.mxu0 0.0
      %3998 = vmatprep.subr.mxu0 0.0
      %3999 = vmatpush1.msra.mxu0 0.0
      %4000 = vmatprep.subr.mxu0 0.0
      %4001 = vmatpush1.msra.mxu0 0.0
      %4002 = vmatprep.subr.mxu0 0.0
      %4003 = vmatpush1.msra.mxu0 0.0
      %4004 = vmatprep.subr.mxu0 0.0
      %4005 = vmatpush1.msra.mxu0 0.0
      %4006 = vmatprep.subr.mxu0 0.0
      %4007 = vmatpush1.msra.mxu0 0.0
      %4008 = vmatprep.subr.mxu0 0.0
      %4009 = vmatpush1.msra.mxu0 0.0
      %4010 = vmatprep.subr.mxu0 0.0
      %4011 = vmatpush1.msra.mxu0 0.0
      %4012 = vmatprep.subr.mxu0 0.0
      %4013 = vmatpush1.msra.mxu0 0.0
      %4014 = vmatprep.mubr.f32.mxu0 0.0
      %4015 = vmatmul.mubr.f32.gmra.mrb[0].mxu0 %v3927
      %v4016 = vpop.f32.mrb[0].mxu0
      %v4017 = vadd.f32 0.0, %v4016
      %v4018 = vpop.f32.mrb[0].mxu0
      %4019 = vmatprep.mubr.f32.mxu0 0.0
      %4020 = vmatmul.mubr.f32.gmra.mrb[0].mxu0 %v3930
      %v4021 = vpop.f32.mrb[0].mxu0
      %v4022 = vadd.f32 0.0, %v4021
      %v4023 = vpop.f32.mrb[0].mxu0
      %4024 = vmatprep.mubr.f32.mxu0 0.0
      %4025 = vmatmul.mubr.f32.gmra.mrb[0].mxu0 %v3933
      %v4026 = vpop.f32.mrb[0].mxu0
      %v4027 = vadd.f32 0.0, %v4026
      %v4028 = vpop.f32.mrb[0].mxu0
      %4029 = vmatprep.mubr.f32.mxu0 0.0
      %4030 = vmatmul.mubr.f32.gmra.mrb[0].mxu0 %v3936
      %v4031 = vpop.f32.mrb[0].mxu0
      %v4032 = vadd.f32 0.0, %v4031
      %v4033 = vpop.f32.mrb[0].mxu0
      %4034 = vmatprep.mubr.f32.mxu0 0.0
      %4035 = vmatmul.mubr.f32.gmra.mrb[0].mxu0 %v3939
      %v4036 = vpop.f32.mrb[0].mxu0
      %v4037 = vadd.f32 0.0, %v4036
      %v4038 = vpop.f32.mrb[0].mxu0
      %4039 = vmatprep.mubr.f32.mxu0 0.0
      %4040 = vmatmul.mubr.f32.gmra.mrb[0].mxu0 %v3942
      %v4041 = vpop.f32.mrb[0].mxu0
      %v4042 = vadd.f32 0.0, %v4041
      %v4043 = vpop.f32.mrb[0].mxu0
      %4044 = vmatprep.mubr.f32.mxu0 0.0
      %4045 = vmatmul.mubr.f32.gmra.mrb[0].mxu0 %v3945
      %v4046 = vpop.f32.mrb[0].mxu0
      %v4047 = vadd.f32 0.0, %v4046
      %v4048 = vpop.f32.mrb[0].mxu0
      %4049 = vmatprep.mubr.f32.mxu0 0.0
      %4050 = vmatmul.mubr.f32.gmra.mrb[0].mxu0 %v3948
      %v4051 = vpop.f32.mrb[0].mxu0
      %v4052 = vadd.f32 0.0, %v4051
      %v4053 = vpop.f32.mrb[0].mxu0
      %4054 = vdwg.mxu0
      %v4055 = vadd.f32 %v3907, %v4017
      %v4056 = vadd.f32 %v3908, %v4022
      %v4057 = vadd.f32 %v3909, %v4027
      %v4058 = vadd.f32 %v3910, %v4032
      %v4059 = vadd.f32 %v3911, %v4037
      %v4060 = vadd.f32 %v3912, %v4042
      %v4061 = vadd.f32 %v3913, %v4047
      %v4062 = vadd.f32 %v3914, %v4052
      %v4063 = vld [vmem:[%s3915 + $0x1] sm:$0xff]
      %v4064 = vld [vmem:[%s3915 + $0x11] sm:$0xff]
      %v4065 = vld [vmem:[%s3915 + $0x21] sm:$0xff]
      %v4066 = vld [vmem:[%s3915 + $0x31] sm:$0xff]
      %v4067 = vld [vmem:[%s3915 + $0x41] sm:$0xff]
      %v4068 = vld [vmem:[%s3915 + $0x51] sm:$0xff]
      %v4069 = vld [vmem:[%s3915 + $0x61] sm:$0xff]
      %v4070 = vld [vmem:[%s3915 + $0x71] sm:$0xff]
      %s4071 = scalar_lea.vmem %s4, 200
      %v4072 = vld [vmem:[%s4071] sm:$0xff]
      %v4074 = vsel %vm417, %v4063, 0
      %v4077 = vsel %vm417, %v4064, 0
      %v4080 = vsel %vm417, %v4065, 0
      %v4083 = vsel %vm417, %v4066, 0
      %v4086 = vsel %vm417, %v4067, 0
      %v4089 = vsel %vm417, %v4068, 0
      %v4092 = vsel %vm417, %v4069, 0
      %v4095 = vsel %vm417, %v4070, 0
      %4097 = vmatprep.subr.mxu0 0.0
      %4098 = vmatpush1.msra.mxu0 %v4072
      %4099 = vmatprep.subr.mxu0 0.0
      %4100 = vmatpush1.msra.mxu0 0.0
      %4101 = vmatprep.subr.mxu0 0.0
      %4102 = vmatpush1.msra.mxu0 0.0
      %4103 = vmatprep.subr.mxu0 0.0
      %4104 = vmatpush1.msra.mxu0 0.0
      %4105 = vmatprep.subr.mxu0 0.0
      %4106 = vmatpush1.msra.mxu0 0.0
      %4107 = vmatprep.subr.mxu0 0.0
      %4108 = vmatpush1.msra.mxu0 0.0
      %4109 = vmatprep.subr.mxu0 0.0
      %4110 = vmatpush1.msra.mxu0 0.0
      %4111 = vmatprep.subr.mxu0 0.0
      %4112 = vmatpush1.msra.mxu0 0.0
      %4113 = vmatprep.subr.mxu0 0.0
      %4114 = vmatpush1.msra.mxu0 0.0
      %4115 = vmatprep.subr.mxu0 0.0
      %4116 = vmatpush1.msra.mxu0 0.0
      %4117 = vmatprep.subr.mxu0 0.0
      %4118 = vmatpush1.msra.mxu0 0.0
      %4119 = vmatprep.subr.mxu0 0.0
      %4120 = vmatpush1.msra.mxu0 0.0
      %4121 = vmatprep.subr.mxu0 0.0
      %4122 = vmatpush1.msra.mxu0 0.0
      %4123 = vmatprep.subr.mxu0 0.0
      %4124 = vmatpush1.msra.mxu0 0.0
      %4125 = vmatprep.subr.mxu0 0.0
      %4126 = vmatpush1.msra.mxu0 0.0
      %4127 = vmatprep.subr.mxu0 0.0
      %4128 = vmatpush1.msra.mxu0 0.0
      %4129 = vmatprep.subr.mxu0 0.0
      %4130 = vmatpush1.msra.mxu0 0.0
      %4131 = vmatprep.subr.mxu0 0.0
      %4132 = vmatpush1.msra.mxu0 0.0
      %4133 = vmatprep.subr.mxu0 0.0
      %4134 = vmatpush1.msra.mxu0 0.0
      %4135 = vmatprep.subr.mxu0 0.0
      %4136 = vmatpush1.msra.mxu0 0.0
      %4137 = vmatprep.subr.mxu0 0.0
      %4138 = vmatpush1.msra.mxu0 0.0
      %4139 = vmatprep.subr.mxu0 0.0
      %4140 = vmatpush1.msra.mxu0 0.0
      %4141 = vmatprep.subr.mxu0 0.0
      %4142 = vmatpush1.msra.mxu0 0.0
      %4143 = vmatprep.subr.mxu0 0.0
      %4144 = vmatpush1.msra.mxu0 0.0
      %4145 = vmatprep.subr.mxu0 0.0
      %4146 = vmatpush1.msra.mxu0 0.0
      %4147 = vmatprep.subr.mxu0 0.0
      %4148 = vmatpush1.msra.mxu0 0.0
      %4149 = vmatprep.subr.mxu0 0.0
      %4150 = vmatpush1.msra.mxu0 0.0
      %4151 = vmatprep.subr.mxu0 0.0
      %4152 = vmatpush1.msra.mxu0 0.0
      %4153 = vmatprep.subr.mxu0 0.0
      %4154 = vmatpush1.msra.mxu0 0.0
      %4155 = vmatprep.subr.mxu0 0.0
      %4156 = vmatpush1.msra.mxu0 0.0
      %4157 = vmatprep.subr.mxu0 0.0
      %4158 = vmatpush1.msra.mxu0 0.0
      %4159 = vmatprep.subr.mxu0 0.0
      %4160 = vmatpush1.msra.mxu0 0.0
      %4161 = vmatprep.mubr.f32.mxu0 0.0
      %4162 = vmatmul.mubr.f32.gmra.mrb[0].mxu0 %v4074
      %v4163 = vpop.f32.mrb[0].mxu0
      %v4164 = vadd.f32 0.0, %v4163
      %v4165 = vpop.f32.mrb[0].mxu0
      %4166 = vmatprep.mubr.f32.mxu0 0.0
      %4167 = vmatmul.mubr.f32.gmra.mrb[0].mxu0 %v4077
      %v4168 = vpop.f32.mrb[0].mxu0
      %v4169 = vadd.f32 0.0, %v4168
      %v4170 = vpop.f32.mrb[0].mxu0
      %4171 = vmatprep.mubr.f32.mxu0 0.0
      %4172 = vmatmul.mubr.f32.gmra.mrb[0].mxu0 %v4080
      %v4173 = vpop.f32.mrb[0].mxu0
      %v4174 = vadd.f32 0.0, %v4173
      %v4175 = vpop.f32.mrb[0].mxu0
      %4176 = vmatprep.mubr.f32.mxu0 0.0
      %4177 = vmatmul.mubr.f32.gmra.mrb[0].mxu0 %v4083
      %v4178 = vpop.f32.mrb[0].mxu0
      %v4179 = vadd.f32 0.0, %v4178
      %v4180 = vpop.f32.mrb[0].mxu0
      %4181 = vmatprep.mubr.f32.mxu0 0.0
      %4182 = vmatmul.mubr.f32.gmra.mrb[0].mxu0 %v4086
      %v4183 = vpop.f32.mrb[0].mxu0
      %v4184 = vadd.f32 0.0, %v4183
      %v4185 = vpop.f32.mrb[0].mxu0
      %4186 = vmatprep.mubr.f32.mxu0 0.0
      %4187 = vmatmul.mubr.f32.gmra.mrb[0].mxu0 %v4089
      %v4188 = vpop.f32.mrb[0].mxu0
      %v4189 = vadd.f32 0.0, %v4188
      %v4190 = vpop.f32.mrb[0].mxu0
      %4191 = vmatprep.mubr.f32.mxu0 0.0
      %4192 = vmatmul.mubr.f32.gmra.mrb[0].mxu0 %v4092
      %v4193 = vpop.f32.mrb[0].mxu0
      %v4194 = vadd.f32 0.0, %v4193
      %v4195 = vpop.f32.mrb[0].mxu0
      %4196 = vmatprep.mubr.f32.mxu0 0.0
      %4197 = vmatmul.mubr.f32.gmra.mrb[0].mxu0 %v4095
      %v4198 = vpop.f32.mrb[0].mxu0
      %v4199 = vadd.f32 0.0, %v4198
      %v4200 = vpop.f32.mrb[0].mxu0
      %4201 = vdwg.mxu0
      %v4202 = vadd.f32 %v4055, %v4164
      %v4203 = vadd.f32 %v4056, %v4169
      %v4204 = vadd.f32 %v4057, %v4174
      %v4205 = vadd.f32 %v4058, %v4179
      %v4206 = vadd.f32 %v4059, %v4184
      %v4207 = vadd.f32 %v4060, %v4189
      %v4208 = vadd.f32 %v4061, %v4194
      %v4209 = vadd.f32 %v4062, %v4199
      %v4210 = vld [vmem:[%s3915 + $0x2] sm:$0xff]
      %v4211 = vld [vmem:[%s3915 + $0x12] sm:$0xff]
      %v4212 = vld [vmem:[%s3915 + $0x22] sm:$0xff]
      %v4213 = vld [vmem:[%s3915 + $0x32] sm:$0xff]
      %v4214 = vld [vmem:[%s3915 + $0x42] sm:$0xff]
      %v4215 = vld [vmem:[%s3915 + $0x52] sm:$0xff]
      %v4216 = vld [vmem:[%s3915 + $0x62] sm:$0xff]
      %v4217 = vld [vmem:[%s3915 + $0x72] sm:$0xff]
      %s4218 = scalar_lea.vmem %s4, 208
      %v4219 = vld [vmem:[%s4218] sm:$0xff]
      %v4221 = vsel %vm417, %v4210, 0
      %v4224 = vsel %vm417, %v4211, 0
      %v4227 = vsel %vm417, %v4212, 0
      %v4230 = vsel %vm417, %v4213, 0
      %v4233 = vsel %vm417, %v4214, 0
      %v4236 = vsel %vm417, %v4215, 0
      %v4239 = vsel %vm417, %v4216, 0
      %v4242 = vsel %vm417, %v4217, 0
      %4244 = vmatprep.subr.mxu0 0.0
      %4245 = vmatpush1.msra.mxu0 %v4219
      %4246 = vmatprep.subr.mxu0 0.0
      %4247 = vmatpush1.msra.mxu0 0.0
      %4248 = vmatprep.subr.mxu0 0.0
      %4249 = vmatpush1.msra.mxu0 0.0
      %4250 = vmatprep.subr.mxu0 0.0
      %4251 = vmatpush1.msra.mxu0 0.0
      %4252 = vmatprep.subr.mxu0 0.0
      %4253 = vmatpush1.msra.mxu0 0.0
      %4254 = vmatprep.subr.mxu0 0.0
      %4255 = vmatpush1.msra.mxu0 0.0
      %4256 = vmatprep.subr.mxu0 0.0
      %4257 = vmatpush1.msra.mxu0 0.0
      %4258 = vmatprep.subr.mxu0 0.0
      %4259 = vmatpush1.msra.mxu0 0.0
      %4260 = vmatprep.subr.mxu0 0.0
      %4261 = vmatpush1.msra.mxu0 0.0
      %4262 = vmatprep.subr.mxu0 0.0
      %4263 = vmatpush1.msra.mxu0 0.0
      %4264 = vmatprep.subr.mxu0 0.0
      %4265 = vmatpush1.msra.mxu0 0.0
      %4266 = vmatprep.subr.mxu0 0.0
      %4267 = vmatpush1.msra.mxu0 0.0
      %4268 = vmatprep.subr.mxu0 0.0
      %4269 = vmatpush1.msra.mxu0 0.0
      %4270 = vmatprep.subr.mxu0 0.0
      %4271 = vmatpush1.msra.mxu0 0.0
      %4272 = vmatprep.subr.mxu0 0.0
      %4273 = vmatpush1.msra.mxu0 0.0
      %4274 = vmatprep.subr.mxu0 0.0
      %4275 = vmatpush1.msra.mxu0 0.0
      %4276 = vmatprep.subr.mxu0 0.0
      %4277 = vmatpush1.msra.mxu0 0.0
      %4278 = vmatprep.subr.mxu0 0.0
      %4279 = vmatpush1.msra.mxu0 0.0
      %4280 = vmatprep.subr.mxu0 0.0
      %4281 = vmatpush1.msra.mxu0 0.0
      %4282 = vmatprep.subr.mxu0 0.0
      %4283 = vmatpush1.msra.mxu0 0.0
      %4284 = vmatprep.subr.mxu0 0.0
      %4285 = vmatpush1.msra.mxu0 0.0
      %4286 = vmatprep.subr.mxu0 0.0
      %4287 = vmatpush1.msra.mxu0 0.0
      %4288 = vmatprep.subr.mxu0 0.0
      %4289 = vmatpush1.msra.mxu0 0.0
      %4290 = vmatprep.subr.mxu0 0.0
      %4291 = vmatpush1.msra.mxu0 0.0
      %4292 = vmatprep.subr.mxu0 0.0
      %4293 = vmatpush1.msra.mxu0 0.0
      %4294 = vmatprep.subr.mxu0 0.0
      %4295 = vmatpush1.msra.mxu0 0.0
      %4296 = vmatprep.subr.mxu0 0.0
      %4297 = vmatpush1.msra.mxu0 0.0
      %4298 = vmatprep.subr.mxu0 0.0
      %4299 = vmatpush1.msra.mxu0 0.0
      %4300 = vmatprep.subr.mxu0 0.0
      %4301 = vmatpush1.msra.mxu0 0.0
      %4302 = vmatprep.subr.mxu0 0.0
      %4303 = vmatpush1.msra.mxu0 0.0
      %4304 = vmatprep.subr.mxu0 0.0
      %4305 = vmatpush1.msra.mxu0 0.0
      %4306 = vmatprep.subr.mxu0 0.0
      %4307 = vmatpush1.msra.mxu0 0.0
      %4308 = vmatprep.mubr.f32.mxu0 0.0
      %4309 = vmatmul.mubr.f32.gmra.mrb[0].mxu0 %v4221
      %v4310 = vpop.f32.mrb[0].mxu0
      %v4311 = vadd.f32 0.0, %v4310
      %v4312 = vpop.f32.mrb[0].mxu0
      %4313 = vmatprep.mubr.f32.mxu0 0.0
      %4314 = vmatmul.mubr.f32.gmra.mrb[0].mxu0 %v4224
      %v4315 = vpop.f32.mrb[0].mxu0
      %v4316 = vadd.f32 0.0, %v4315
      %v4317 = vpop.f32.mrb[0].mxu0
      %4318 = vmatprep.mubr.f32.mxu0 0.0
      %4319 = vmatmul.mubr.f32.gmra.mrb[0].mxu0 %v4227
      %v4320 = vpop.f32.mrb[0].mxu0
      %v4321 = vadd.f32 0.0, %v4320
      %v4322 = vpop.f32.mrb[0].mxu0
      %4323 = vmatprep.mubr.f32.mxu0 0.0
      %4324 = vmatmul.mubr.f32.gmra.mrb[0].mxu0 %v4230
      %v4325 = vpop.f32.mrb[0].mxu0
      %v4326 = vadd.f32 0.0, %v4325
      %v4327 = vpop.f32.mrb[0].mxu0
      %4328 = vmatprep.mubr.f32.mxu0 0.0
      %4329 = vmatmul.mubr.f32.gmra.mrb[0].mxu0 %v4233
      %v4330 = vpop.f32.mrb[0].mxu0
      %v4331 = vadd.f32 0.0, %v4330
      %v4332 = vpop.f32.mrb[0].mxu0
      %4333 = vmatprep.mubr.f32.mxu0 0.0
      %4334 = vmatmul.mubr.f32.gmra.mrb[0].mxu0 %v4236
      %v4335 = vpop.f32.mrb[0].mxu0
      %v4336 = vadd.f32 0.0, %v4335
      %v4337 = vpop.f32.mrb[0].mxu0
      %4338 = vmatprep.mubr.f32.mxu0 0.0
      %4339 = vmatmul.mubr.f32.gmra.mrb[0].mxu0 %v4239
      %v4340 = vpop.f32.mrb[0].mxu0
      %v4341 = vadd.f32 0.0, %v4340
      %v4342 = vpop.f32.mrb[0].mxu0
      %4343 = vmatprep.mubr.f32.mxu0 0.0
      %4344 = vmatmul.mubr.f32.gmra.mrb[0].mxu0 %v4242
      %v4345 = vpop.f32.mrb[0].mxu0
      %v4346 = vadd.f32 0.0, %v4345
      %v4347 = vpop.f32.mrb[0].mxu0
      %4348 = vdwg.mxu0
      %v4349 = vadd.f32 %v4202, %v4311
      %v4350 = vadd.f32 %v4203, %v4316
      %v4351 = vadd.f32 %v4204, %v4321
      %v4352 = vadd.f32 %v4205, %v4326
      %v4353 = vadd.f32 %v4206, %v4331
      %v4354 = vadd.f32 %v4207, %v4336
      %v4355 = vadd.f32 %v4208, %v4341
      %v4356 = vadd.f32 %v4209, %v4346
      %v4357 = vld [vmem:[%s5] sm:$0x1]
      %v4359 = vlaneseq
      %v4360 = vshrl.u32 %v4359, 7
      %v4361 = vsub.s32 0, %v4360
      %v4362 = vrot.slane %v4357, %v4361
      %v4364 = vmul.f32 %v4349, %v4362
      %v4365 = vmul.f32 %v4350, %v4362
      %v4366 = vmul.f32 %v4351, %v4362
      %v4367 = vmul.f32 %v4352, %v4362
      %v4368 = vmul.f32 %v4353, %v4362
      %v4369 = vmul.f32 %v4354, %v4362
      %v4370 = vmul.f32 %v4355, %v4362
      %v4371 = vmul.f32 %v4356, %v4362
      %v4372 = vld [vmem:[%s6] sm:$0x1]
      %v4374 = vlaneseq
      %v4375 = vshrl.u32 %v4374, 7
      %v4376 = vsub.s32 0, %v4375
      %v4377 = vrot.slane %v4372, %v4376
      %v4379 = vadd.f32 %v4364, %v4377
      %v4380 = vadd.f32 %v4365, %v4377
      %v4381 = vadd.f32 %v4366, %v4377
      %v4382 = vadd.f32 %v4367, %v4377
      %v4383 = vadd.f32 %v4368, %v4377
      %v4384 = vadd.f32 %v4369, %v4377
      %v4385 = vadd.f32 %v4370, %v4377
      %v4386 = vadd.f32 %v4371, %v4377
      %vm4387 = vcmp.gt.f32.partialorder %v4379, 0.0
      %vm4388 = vcmp.gt.f32.partialorder %v4380, 0.0
      %vm4389 = vcmp.gt.f32.partialorder %v4381, 0.0
      %vm4390 = vcmp.gt.f32.partialorder %v4382, 0.0
      %vm4391 = vcmp.gt.f32.partialorder %v4383, 0.0
      %vm4392 = vcmp.gt.f32.partialorder %v4384, 0.0
      %vm4393 = vcmp.gt.f32.partialorder %v4385, 0.0
      %vm4394 = vcmp.gt.f32.partialorder %v4386, 0.0
      %s4395 = sld [smem:[#allocation2]]
      %v4396 = vstv %s4395
      %v4397 = vmul.f32 %v4396, %v4379
      %v4398 = vmul.f32 %v4396, %v4380
      %v4399 = vmul.f32 %v4396, %v4381
      %v4400 = vmul.f32 %v4396, %v4382
      %v4401 = vmul.f32 %v4396, %v4383
      %v4402 = vmul.f32 %v4396, %v4384
      %v4403 = vmul.f32 %v4396, %v4385
      %v4404 = vmul.f32 %v4396, %v4386
      %v4405 = vsel %vm4387, %v4379, %v4397
      %v4406 = vsel %vm4388, %v4380, %v4398
      %v4407 = vsel %vm4389, %v4381, %v4399
      %v4408 = vsel %vm4390, %v4382, %v4400
      %v4409 = vsel %vm4391, %v4383, %v4401
      %v4410 = vsel %vm4392, %v4384, %v4402
      %v4411 = vsel %vm4393, %v4385, %v4403
      %v4412 = vsel %vm4394, %v4386, %v4404
      %vm4413 = vcmask 130048
      %4414 = vst.msk [vmem:[%s397] sm:$0xff] %vm4413, %v4405
      %4415 = vst.msk [vmem:[%s397 + $0x8] sm:$0xff] %vm4413, %v4406
      %4416 = vst.msk [vmem:[%s397 + $0x10] sm:$0xff] %vm4413, %v4407
      %4417 = vst.msk [vmem:[%s397 + $0x18] sm:$0xff] %vm4413, %v4408
      %4418 = vst.msk [vmem:[%s397 + $0x20] sm:$0xff] %vm4413, %v4409
      %4419 = vst.msk [vmem:[%s397 + $0x28] sm:$0xff] %vm4413, %v4410
      %4420 = vst.msk [vmem:[%s397 + $0x30] sm:$0xff] %vm4413, %v4411
      %4421 = vst.msk [vmem:[%s397 + $0x38] sm:$0xff] %vm4413, %v4412
      %p4422 = scmp.lt.s32.totalorder %s23, 1
      %s4423 = scalar_select %p4422, %s23, 1
      %p4424 = scmp.lt.s32.totalorder %s24, 7
      %s4425 = scalar_select %p4424, %s24, 7
      %s4426 = smul.addr %s4425, 8
      %s4427 = smul.addr %s4423, 64
      %s4428 = sadd.s32 %s4426, %s4427
      %s4429 = smul.addr %s4428, 8
      %s4430 = scalar_lea.vmem %s7, %s4429
      // Predicated region
      $region49: #{mfunit_forward.4} parent=47 // pred_check
        %p4431 = pneg %p223
      $region50: #{mfunit_forward.4} parent=47 // pred_check_branch
        %4433 = sbr.rel (%p4431) target = $region52
      $region51: #{mfunit_forward.4} parent=47 // pred_region
        _
      $region52: #{mfunit_forward.4} parent=47 // pred_fallthru
        _
    $region48: #{mfunit_forward.4} parent=5 // pred_fallthru
      _
    %p4434 = scmp.le.s32.totalorder 2, %s14
    // Predicated region
    $region53: #{mfunit_forward.4} parent=5 // pred_check
      %p4435 = pneg %p4434
    $region54: #{mfunit_forward.4} parent=5 // pred_check_branch
      %4437 = sbr.rel (%p4435) target = $region56
    $region55: #{mfunit_forward.4} parent=5 // pred_region
      %s4438 = ssub.s32 %s14, 2
      // Predicated region
      $region57: #{mfunit_forward.4} parent=55 // pred_check
        %p4439 = pneg %p229
      $region58: #{mfunit_forward.4} parent=55 // pred_check_branch
        %4441 = sbr.rel (%p4439) target = $region60
      $region59: #{mfunit_forward.4} parent=55 // pred_region
        %p4442 = scmp.lt.s32.totalorder %s25, 1
        %s4443 = scalar_select %p4442, %s25, 1
        %p4444 = scmp.lt.s32.totalorder %s26, 7
        %s4445 = scalar_select %p4444, %s26, 7
        %s4446 = smul.addr %s4445, 8
        %s4447 = smul.addr %s4443, 64
        %s4448 = sadd.s32 %s4446, %s4447
        %s4449 = smul.addr %s4448, 8
        %s4450 = scalar_lea.vmem %s7, %s4449
      $region60: #{mfunit_forward.4} parent=55 // pred_fallthru
        _
    $region56: #{mfunit_forward.4} parent=5 // pred_fallthru
      _
  $region6: #{mfunit_forward.4} parent=0 // loop_footer
    %s18 = sadd.s32 1, %s14
  $region7: #{mfunit_forward.4} parent=0 // loop_footer_branch
    %13 = sbr.rel target = $region3
  $region8: #{mfunit_forward.4} parent=0 // loop_exit
    _

// kernel: mfunit_forward.5
$region0: #{mfunit_forward.5}
  #allocation0 [shape = 'u32[]', space=smem, size = 0x4, offset = 0x4, fixed_abs, tag = 'smem constant byte address 0x4 - core index']
  #allocation1 [shape = 'u32[144,128]{1,0:T(1,128)}', space=vmem, size = 0x12000, scoped, tag = 'internal scratch']
  %s0 = inlined_call_operand.vmem [shape: f32[2,10,10,8,16], index: 0, kind: input, shape index: {}, may-alias: {0,1,2}]
  %s1 = inlined_call_operand.vmem [shape: f32[2,10,10,8,16], index: 1, kind: input, shape index: {}, may-alias: {0,1,2}]
  %s2 = inlined_call_operand.vmem [shape: f32[2,10,10,8,16], index: 2, kind: input, shape index: {}, may-alias: {0,1,2}]
  %s3 = inlined_call_operand.vmem [shape: f32[2,8,64,16], index: 3, kind: input, shape index: {}]
  %s4 = inlined_call_operand.vmem [shape: f32[3,3,16,16], index: 4, kind: input, shape index: {}]
  %s5 = inlined_call_operand.hbm [shape: f32[2,8,64,16], index: 5, kind: output, shape index: {}]
  %s6 = sld [smem:[#allocation0]]
  $region53: #{mfunit_forward.5} parent=0
    _
  %s8 = ssub.s32 1, %s6
  %s9 = scalar_select 0, %s8, %s6
  $region1: #{mfunit_forward.5} parent=0
    #allocation2 [shape = 'u8[65536]{0}', space=vmem, size = 0x10000, scoped, tag = 'output window, operand 0']
    #allocation3 [shape = 's32[2]{0}', space=sflag, size = 0x8, scoped, tag = 'scoped memory for mfunit_forward.5']
    %10 = vsyncpa [#allocation3], 0
    %s11 = scalar_lea.sflag [#allocation3], 1
    %12 = vsyncpa %s11, 0
    loop: start=0, step=1, limit=18
    $region2: #{mfunit_forward.5} parent=1 // loop_pre_header
      _
    $region3: #{mfunit_forward.5} parent=1 // loop_header
      %s14 = sphi 0, %s18
      %p15 = scmp.ge.s32.totalorder %s14, 18
      %s21 = sphi 0, %s33
      %s22 = sphi 0, %s29
      %s23 = sphi 0, %s21
      %s24 = sphi 0, %s22
      %s25 = sphi 0, %s23
      %s26 = sphi 0, %s24
      %s38 = sphi 0, %s40
      %s41 = sphi 0, %s38
      %s42 = sphi 0, %s41
      %s58 = sphi 0, %s42
      %s68 = sphi 0, %s70
      %s71 = sphi 0, %s68
      %s72 = sphi 0, %s71
      %s88 = sphi 0, %s72
      %s98 = sphi 0, %s100
      %s101 = sphi 0, %s98
      %s102 = sphi 0, %s101
      %s118 = sphi 0, %s102
      %s126 = sphi 0, %s128
      %s129 = sphi 0, %s126
      %s130 = sphi 0, %s129
      %s146 = sphi 0, %s130
      %s150 = sphi 0, %s150
      %s152 = sphi 0, %s150
      %s153 = sphi 0, %s152
      %s167 = sphi 0, %s153
      %s175 = sphi 0, %s177
      %s178 = sphi 0, %s175
      %s179 = sphi 0, %s178
      %s195 = sphi 0, %s179
    $region4: #{mfunit_forward.5} parent=1 // loop_header_branch
      %17 = sbr.rel (%p15) target = $region8
    $region5: #{mfunit_forward.5} parent=1 // loop_body
      %s19 = ssub.s32 %s14, 1
      %s20 = ssub.s32 %s14, 2
      %s27 = sadd.s32 1, %s22
      %p28 = scmp.ge.s32.totalorder %s27, 8
      %s29 = scalar_select %p28, 0, %s27
      %s30 = sadd.s32 1, %s21
      %s31 = scalar_select %p28, %s30, %s21
      %p32 = scmp.ge.s32.totalorder %s31, 2
      %s33 = scalar_select %p32, 0, %s31
      %s34 = ssub.s32 %s21, %s33
      %s35 = ssub.s32 %s22, %s29
      %s36 = sor.u32 %s34, %s35
      %p37 = scmp.eq.s32.totalorder %s36, 0
      %s39 = sadd.s32 %s38, 1
      %s40 = scalar_select %p37, %s38, %s39
      %p43 = pneg %p37
      %p44 = scmp.eq.s32.totalorder %s14, 15
      %p45 = por %p43, %p44
      %p46 = scmp.ne.s32.totalorder %s38, %s41
      %p47 = scmp.eq.s32.totalorder %s14, 0
      %p48 = por %p46, %p47
      %p49 = scmp.ne.s32.totalorder %s38, %s41
      %p50 = scmp.eq.s32.totalorder %s19, 15
      %p51 = por %p49, %p50
      %p52 = scmp.ne.s32.totalorder %s41, %s42
      %p53 = scmp.eq.s32.totalorder %s19, 0
      %p54 = por %p52, %p53
      %p55 = scmp.ne.s32.totalorder %s41, %s42
      %p56 = scmp.eq.s32.totalorder %s20, 15
      %p57 = por %p55, %p56
      %p59 = scmp.ne.s32.totalorder %s42, %s58
      %p60 = scmp.eq.s32.totalorder %s20, 0
      %p61 = por %p59, %p60
      %s62 = sadd.s32 %s22, 1
      %s63 = sadd.s32 %s29, 1
      %s64 = ssub.s32 %s21, %s33
      %s65 = ssub.s32 %s62, %s63
      %s66 = sor.u32 %s64, %s65
      %p67 = scmp.eq.s32.totalorder %s66, 0
      %s69 = sadd.s32 %s68, 1
      %s70 = scalar_select %p67, %s68, %s69
      %p73 = pneg %p67
      %p74 = scmp.eq.s32.totalorder %s14, 15
      %p75 = por %p73, %p74
      %p76 = scmp.ne.s32.totalorder %s68, %s71
      %p77 = scmp.eq.s32.totalorder %s14, 0
      %p78 = por %p76, %p77
      %p79 = scmp.ne.s32.totalorder %s68, %s71
      %p80 = scmp.eq.s32.totalorder %s19, 15
      %p81 = por %p79, %p80
      %p82 = scmp.ne.s32.totalorder %s71, %s72
      %p83 = scmp.eq.s32.totalorder %s19, 0
      %p84 = por %p82, %p83
      %p85 = scmp.ne.s32.totalorder %s71, %s72
      %p86 = scmp.eq.s32.totalorder %s20, 15
      %p87 = por %p85, %p86
      %p89 = scmp.ne.s32.totalorder %s72, %s88
      %p90 = scmp.eq.s32.totalorder %s20, 0
      %p91 = por %p89, %p90
      %s92 = sadd.s32 %s22, 2
      %s93 = sadd.s32 %s29, 2
      %s94 = ssub.s32 %s21, %s33
      %s95 = ssub.s32 %s92, %s93
      %s96 = sor.u32 %s94, %s95
      %p97 = scmp.eq.s32.totalorder %s96, 0
      %s99 = sadd.s32 %s98, 1
      %s100 = scalar_select %p97, %s98, %s99
      %p103 = pneg %p97
      %p104 = scmp.eq.s32.totalorder %s14, 15
      %p105 = por %p103, %p104
      %p106 = scmp.ne.s32.totalorder %s98, %s101
      %p107 = scmp.eq.s32.totalorder %s14, 0
      %p108 = por %p106, %p107
      %p109 = scmp.ne.s32.totalorder %s98, %s101
      %p110 = scmp.eq.s32.totalorder %s19, 15
      %p111 = por %p109, %p110
      %p112 = scmp.ne.s32.totalorder %s101, %s102
      %p113 = scmp.eq.s32.totalorder %s19, 0
      %p114 = por %p112, %p113
      %p115 = scmp.ne.s32.totalorder %s101, %s102
      %p116 = scmp.eq.s32.totalorder %s20, 15
      %p117 = por %p115, %p116
      %p119 = scmp.ne.s32.totalorder %s102, %s118
      %p120 = scmp.eq.s32.totalorder %s20, 0
      %p121 = por %p119, %p120
      %s122 = ssub.s32 %s21, %s33
      %s123 = ssub.s32 %s22, %s29
      %s124 = sor.u32 %s122, %s123
      %p125 = scmp.eq.s32.totalorder %s124, 0
      %s127 = sadd.s32 %s126, 1
      %s128 = scalar_select %p125, %s126, %s127
      %p131 = pneg %p125
      %p132 = scmp.eq.s32.totalorder %s14, 15
      %p133 = por %p131, %p132
      %p134 = scmp.ne.s32.totalorder %s126, %s129
      %p135 = scmp.eq.s32.totalorder %s14, 0
      %p136 = por %p134, %p135
      %p137 = scmp.ne.s32.totalorder %s126, %s129
      %p138 = scmp.eq.s32.totalorder %s19, 15
      %p139 = por %p137, %p138
      %p140 = scmp.ne.s32.totalorder %s129, %s130
      %p141 = scmp.eq.s32.totalorder %s19, 0
      %p142 = por %p140, %p141
      %p143 = scmp.ne.s32.totalorder %s129, %s130
      %p144 = scmp.eq.s32.totalorder %s20, 15
      %p145 = por %p143, %p144
      %p147 = scmp.ne.s32.totalorder %s130, %s146
      %p148 = scmp.eq.s32.totalorder %s20, 0
      %p149 = por %p147, %p148
      %s151 = sadd.s32 %s150, 1
      %p154 = scmp.eq.s32.totalorder %s14, 15
      %p155 = scmp.ne.s32.totalorder %s150, %s152
      %p156 = scmp.eq.s32.totalorder %s14, 0
      %p157 = por %p155, %p156
      %p158 = scmp.ne.s32.totalorder %s150, %s152
      %p159 = scmp.eq.s32.totalorder %s19, 15
      %p160 = por %p158, %p159
      %p161 = scmp.ne.s32.totalorder %s152, %s153
      %p162 = scmp.eq.s32.totalorder %s19, 0
      %p163 = por %p161, %p162
      %p164 = scmp.ne.s32.totalorder %s152, %s153
      %p165 = scmp.eq.s32.totalorder %s20, 15
      %p166 = por %p164, %p165
      %p168 = scmp.ne.s32.totalorder %s153, %s167
      %p169 = scmp.eq.s32.totalorder %s20, 0
      %p170 = por %p168, %p169
      %s171 = ssub.s32 %s21, %s33
      %s172 = ssub.s32 %s22, %s29
      %s173 = sor.u32 %s171, %s172
      %p174 = scmp.eq.s32.totalorder %s173, 0
      %s176 = sadd.s32 %s175, 1
      %s177 = scalar_select %p174, %s175, %s176
      %p180 = pneg %p174
      %p181 = scmp.eq.s32.totalorder %s14, 15
      %p182 = por %p180, %p181
      %p183 = scmp.ne.s32.totalorder %s175, %s178
      %p184 = scmp.eq.s32.totalorder %s14, 0
      %p185 = por %p183, %p184
      %p186 = scmp.ne.s32.totalorder %s175, %s178
      %p187 = scmp.eq.s32.totalorder %s19, 15
      %p188 = por %p186, %p187
      %p189 = scmp.ne.s32.totalorder %s178, %s179
      %p190 = scmp.eq.s32.totalorder %s19, 0
      %p191 = por %p189, %p190
      %p192 = scmp.ne.s32.totalorder %s178, %s179
      %p193 = scmp.eq.s32.totalorder %s20, 15
      %p194 = por %p192, %p193
      %p196 = scmp.ne.s32.totalorder %s179, %s195
      %p197 = scmp.eq.s32.totalorder %s20, 0
      %p198 = por %p196, %p197
      %p199 = scmp.le.s32.totalorder 1, %s14
      %p200 = scmp.lt.s32.totalorder %s14, 17
      %p201 = pnand %p199, %p200
      %p202 = pneg %p201
      // Predicated region
      $region9: #{mfunit_forward.5} parent=5 // pred_check
        _
      $region10: #{mfunit_forward.5} parent=5 // pred_check_branch
        %204 = sbr.rel (%p201) target = $region12
      $region11: #{mfunit_forward.5} parent=5 // pred_region
        %s205 = ssub.s32 %s14, 1
        // Predicated region
        $region13: #{mfunit_forward.5} parent=11 // pred_check
          %p206 = pneg %p163
        $region14: #{mfunit_forward.5} parent=11 // pred_check_branch
          %208 = sbr.rel (%p206) target = $region16
        $region15: #{mfunit_forward.5} parent=11 // pred_region
          _
        $region16: #{mfunit_forward.5} parent=11 // pred_fallthru
          _
      $region12: #{mfunit_forward.5} parent=5 // pred_fallthru
        _
      %p209 = scmp.lt.s32.totalorder %s14, 16
      // Predicated region
      $region17: #{mfunit_forward.5} parent=5 // pred_check
        %p210 = pneg %p209
      $region18: #{mfunit_forward.5} parent=5 // pred_check_branch
        %212 = sbr.rel (%p210) target = $region20
      $region19: #{mfunit_forward.5} parent=5 // pred_region
        // Predicated region
        $region21: #{mfunit_forward.5} parent=19 // pred_check
          %p213 = pneg %p48
        $region22: #{mfunit_forward.5} parent=19 // pred_check_branch
          %215 = sbr.rel (%p213) target = $region24
        $region23: #{mfunit_forward.5} parent=19 // pred_region
          %p216 = scmp.lt.s32.totalorder %s21, 1
          %s217 = scalar_select %p216, %s21, 1
          %p218 = scmp.lt.s32.totalorder %s22, 9
          %s219 = scalar_select %p218, %s22, 9
          %s220 = smul.addr %s219, 10
          %s221 = smul.addr %s217, 100
          %s222 = sadd.s32 %s220, %s221
          %s223 = smul.addr %s222, 8
          %s224 = scalar_lea.vmem %s0, %s223
        $region24: #{mfunit_forward.5} parent=19 // pred_fallthru
          _
        // Predicated region
        $region25: #{mfunit_forward.5} parent=19 // pred_check
          %p225 = pneg %p78
        $region26: #{mfunit_forward.5} parent=19 // pred_check_branch
          %227 = sbr.rel (%p225) target = $region28
        $region27: #{mfunit_forward.5} parent=19 // pred_region
          %s228 = sadd.s32 %s22, 1
          %p229 = scmp.lt.s32.totalorder %s21, 1
          %s230 = scalar_select %p229, %s21, 1
          %p231 = scmp.lt.s32.totalorder %s228, 9
          %s232 = scalar_select %p231, %s228, 9
          %s233 = smul.addr %s232, 10
          %s234 = smul.addr %s230, 100
          %s235 = sadd.s32 %s233, %s234
          %s236 = smul.addr %s235, 8
          %s237 = scalar_lea.vmem %s1, %s236
          %s238 = sadd.s32 %s22, 1
        $region28: #{mfunit_forward.5} parent=19 // pred_fallthru
          _
        // Predicated region
        $region29: #{mfunit_forward.5} parent=19 // pred_check
          %p239 = pneg %p108
        $region30: #{mfunit_forward.5} parent=19 // pred_check_branch
          %241 = sbr.rel (%p239) target = $region32
        $region31: #{mfunit_forward.5} parent=19 // pred_region
          %s242 = sadd.s32 %s22, 2
          %p243 = scmp.lt.s32.totalorder %s21, 1
          %s244 = scalar_select %p243, %s21, 1
          %p245 = scmp.lt.s32.totalorder %s242, 9
          %s246 = scalar_select %p245, %s242, 9
          %s247 = smul.addr %s246, 10
          %s248 = smul.addr %s244, 100
          %s249 = sadd.s32 %s247, %s248
          %s250 = smul.addr %s249, 8
          %s251 = scalar_lea.vmem %s2, %s250
          %s252 = sadd.s32 %s22, 2
        $region32: #{mfunit_forward.5} parent=19 // pred_fallthru
          _
        // Predicated region
        $region33: #{mfunit_forward.5} parent=19 // pred_check
          %p253 = pneg %p136
        $region34: #{mfunit_forward.5} parent=19 // pred_check_branch
          %255 = sbr.rel (%p253) target = $region36
        $region35: #{mfunit_forward.5} parent=19 // pred_region
          %p256 = scmp.lt.s32.totalorder %s21, 1
          %s257 = scalar_select %p256, %s21, 1
          %p258 = scmp.lt.s32.totalorder %s22, 7
          %s259 = scalar_select %p258, %s22, 7
          %s260 = smul.addr %s259, 8
          %s261 = smul.addr %s257, 64
          %s262 = sadd.s32 %s260, %s261
          %s263 = smul.addr %s262, 8
          %s264 = scalar_lea.vmem %s3, %s263
        $region36: #{mfunit_forward.5} parent=19 // pred_fallthru
          _
      $region20: #{mfunit_forward.5} parent=5 // pred_fallthru
        _
      %p265 = scmp.le.s32.totalorder 1, %s14
      %p266 = scmp.lt.s32.totalorder %s14, 17
      %p267 = pnand %p265, %p266
      %p268 = pneg %p267
      // Predicated region
      $region37: #{mfunit_forward.5} parent=5 // pred_check
        _
      $region38: #{mfunit_forward.5} parent=5 // pred_check_branch
        %270 = sbr.rel (%p267) target = $region40
      $region39: #{mfunit_forward.5} parent=5 // pred_region
        %s271 = ssub.s32 %s14, 1
        %p272 = scmp.lt.s32.totalorder %s23, 1
        %s273 = scalar_select %p272, %s23, 1
        %p274 = scmp.lt.s32.totalorder %s24, 9
        %s275 = scalar_select %p274, %s24, 9
        %s276 = smul.addr %s275, 10
        %s277 = smul.addr %s273, 100
        %s278 = sadd.s32 %s276, %s277
        %s279 = smul.addr %s278, 8
        %s280 = scalar_lea.vmem %s0, %s279
        %p281 = pneg %p54
        %p282 = pneg %p51
        %s283 = sadd.s32 %s24, 1
        %p284 = scmp.lt.s32.totalorder %s23, 1
        %s285 = scalar_select %p284, %s23, 1
        %p286 = scmp.lt.s32.totalorder %s283, 9
        %s287 = scalar_select %p286, %s283, 9
        %s288 = smul.addr %s287, 10
        %s289 = smul.addr %s285, 100
        %s290 = sadd.s32 %s288, %s289
        %s291 = smul.addr %s290, 8
        %s292 = scalar_lea.vmem %s1, %s291
        %p293 = pneg %p84
        %p294 = pneg %p81
        %s295 = sadd.s32 %s24, 2
        %p296 = scmp.lt.s32.totalorder %s23, 1
        %s297 = scalar_select %p296, %s23, 1
        %p298 = scmp.lt.s32.totalorder %s295, 9
        %s299 = scalar_select %p298, %s295, 9
        %s300 = smul.addr %s299, 10
        %s301 = smul.addr %s297, 100
        %s302 = sadd.s32 %s300, %s301
        %s303 = smul.addr %s302, 8
        %s304 = scalar_lea.vmem %s2, %s303
        %p305 = pneg %p114
        %p306 = pneg %p111
        %p307 = scmp.lt.s32.totalorder %s23, 1
        %s308 = scalar_select %p307, %s23, 1
        %p309 = scmp.lt.s32.totalorder %s24, 7
        %s310 = scalar_select %p309, %s24, 7
        %s311 = smul.addr %s310, 8
        %s312 = smul.addr %s308, 64
        %s313 = sadd.s32 %s311, %s312
        %s314 = smul.addr %s313, 8
        %s315 = scalar_lea.vmem %s3, %s314
        %p316 = pneg %p142
        %p317 = pneg %p139
        %p318 = pneg %p163
        %p319 = pneg %p160
        %p320 = pneg %p191
        %p321 = pneg %p188
        %s322 = sand.u32 %s178, 1
        %s323 = scalar_lea.sflag [#allocation3], %s322
        %s324 = sand.u32 %s178, 1
        %s325 = smul.addr %s324, 64
        %s326 = scalar_lea.vmem [#allocation2], %s325
        %p327 = scmp.lt.s32.totalorder %s23, 1
        %s328 = scalar_select %p327, %s23, 1
        %p329 = scmp.lt.s32.totalorder %s24, 9
        %s330 = scalar_select %p329, %s24, 9
        %s331 = smul.addr %s330, 10
        %s332 = smul.addr %s328, 100
        %s333 = sadd.s32 %s331, %s332
        %s334 = smul.addr %s333, 8
        %s335 = scalar_lea.vmem %s0, %s334
        %s336 = sadd.s32 %s24, 1
        %p337 = scmp.lt.s32.totalorder %s23, 1
        %s338 = scalar_select %p337, %s23, 1
        %p339 = scmp.lt.s32.totalorder %s336, 9
        %s340 = scalar_select %p339, %s336, 9
        %s341 = smul.addr %s340, 10
        %s342 = smul.addr %s338, 100
        %s343 = sadd.s32 %s341, %s342
        %s344 = smul.addr %s343, 8
        %s345 = scalar_lea.vmem %s1, %s344
        %s346 = sadd.s32 %s24, 1
        %s347 = sadd.s32 %s24, 2
        %p348 = scmp.lt.s32.totalorder %s23, 1
        %s349 = scalar_select %p348, %s23, 1
        %p350 = scmp.lt.s32.totalorder %s347, 9
        %s351 = scalar_select %p350, %s347, 9
        %s352 = smul.addr %s351, 10
        %s353 = smul.addr %s349, 100
        %s354 = sadd.s32 %s352, %s353
        %s355 = smul.addr %s354, 8
        %s356 = scalar_lea.vmem %s2, %s355
        %s357 = sadd.s32 %s24, 2
        %p358 = scmp.lt.s32.totalorder %s23, 1
        %s359 = scalar_select %p358, %s23, 1
        %p360 = scmp.lt.s32.totalorder %s24, 7
        %s361 = scalar_select %p360, %s24, 7
        %s362 = smul.addr %s361, 8
        %s363 = smul.addr %s359, 64
        %s364 = sadd.s32 %s362, %s363
        %s365 = smul.addr %s364, 8
        %s366 = scalar_lea.vmem %s3, %s365
        %v367 = vld [vmem:[%s366] sm:$0xff]
        %v368 = vld [vmem:[%s366 + $0x8] sm:$0xff]
        %v369 = vld [vmem:[%s366 + $0x10] sm:$0xff]
        %v370 = vld [vmem:[%s366 + $0x18] sm:$0xff]
        %v371 = vld [vmem:[%s366 + $0x20] sm:$0xff]
        %v372 = vld [vmem:[%s366 + $0x28] sm:$0xff]
        %v373 = vld [vmem:[%s366 + $0x30] sm:$0xff]
        %v374 = vld [vmem:[%s366 + $0x38] sm:$0xff]
        %v375 = vld [vmem:[%s335] sm:$0xff]
        %v376 = vld [vmem:[%s335 + $0x8] sm:$0xff]
        %v377 = vld [vmem:[%s335 + $0x10] sm:$0xff]
        %v378 = vld [vmem:[%s335 + $0x18] sm:$0xff]
        %v379 = vld [vmem:[%s335 + $0x20] sm:$0xff]
        %v380 = vld [vmem:[%s335 + $0x28] sm:$0xff]
        %v381 = vld [vmem:[%s335 + $0x30] sm:$0xff]
        %v382 = vld [vmem:[%s335 + $0x38] sm:$0xff]
        %v383 = vld [vmem:[%s4] sm:$0xff]
        %v384 = vld [vmem:[%s4 + $0x8] sm:$0xff]
        %vm385 = vcmask 130048
        %v387 = vsel %vm385, %v375, 0
        %v390 = vsel %vm385, %v376, 0
        %v393 = vsel %vm385, %v377, 0
        %v396 = vsel %vm385, %v378, 0
        %v399 = vsel %vm385, %v379, 0
        %v402 = vsel %vm385, %v380, 0
        %v405 = vsel %vm385, %v381, 0
        %v408 = vsel %vm385, %v382, 0
        %410 = vmatprep.subr.mxu0 0.0
        %411 = vmatpush1.msra.mxu0 %v383
        %412 = vmatprep.subr.mxu0 0.0
        %413 = vmatpush1.msra.mxu0 %v384
        %414 = vmatprep.subr.mxu0 0.0
        %415 = vmatpush1.msra.mxu0 0.0
        %416 = vmatprep.subr.mxu0 0.0
        %417 = vmatpush1.msra.mxu0 0.0
        %418 = vmatprep.subr.mxu0 0.0
        %419 = vmatpush1.msra.mxu0 0.0
        %420 = vmatprep.subr.mxu0 0.0
        %421 = vmatpush1.msra.mxu0 0.0
        %422 = vmatprep.subr.mxu0 0.0
        %423 = vmatpush1.msra.mxu0 0.0
        %424 = vmatprep.subr.mxu0 0.0
        %425 = vmatpush1.msra.mxu0 0.0
        %426 = vmatprep.subr.mxu0 0.0
        %427 = vmatpush1.msra.mxu0 0.0
        %428 = vmatprep.subr.mxu0 0.0
        %429 = vmatpush1.msra.mxu0 0.0
        %430 = vmatprep.subr.mxu0 0.0
        %431 = vmatpush1.msra.mxu0 0.0
        %432 = vmatprep.subr.mxu0 0.0
        %433 = vmatpush1.msra.mxu0 0.0
        %434 = vmatprep.subr.mxu0 0.0
        %435 = vmatpush1.msra.mxu0 0.0
        %436 = vmatprep.subr.mxu0 0.0
        %437 = vmatpush1.msra.mxu0 0.0
        %438 = vmatprep.subr.mxu0 0.0
        %439 = vmatpush1.msra.mxu0 0.0
        %440 = vmatprep.subr.mxu0 0.0
        %441 = vmatpush1.msra.mxu0 0.0
        %442 = vmatprep.subr.mxu0 0.0
        %443 = vmatpush1.msra.mxu0 0.0
        %444 = vmatprep.subr.mxu0 0.0
        %445 = vmatpush1.msra.mxu0 0.0
        %446 = vmatprep.subr.mxu0 0.0
        %447 = vmatpush1.msra.mxu0 0.0
        %448 = vmatprep.subr.mxu0 0.0
        %449 = vmatpush1.msra.mxu0 0.0
        %450 = vmatprep.subr.mxu0 0.0
        %451 = vmatpush1.msra.mxu0 0.0
        %452 = vmatprep.subr.mxu0 0.0
        %453 = vmatpush1.msra.mxu0 0.0
        %454 = vmatprep.subr.mxu0 0.0
        %455 = vmatpush1.msra.mxu0 0.0
        %456 = vmatprep.subr.mxu0 0.0
        %457 = vmatpush1.msra.mxu0 0.0
        %458 = vmatprep.subr.mxu0 0.0
        %459 = vmatpush1.msra.mxu0 0.0
        %460 = vmatprep.subr.mxu0 0.0
        %461 = vmatpush1.msra.mxu0 0.0
        %462 = vmatprep.subr.mxu0 0.0
        %463 = vmatpush1.msra.mxu0 0.0
        %464 = vmatprep.subr.mxu0 0.0
        %465 = vmatpush1.msra.mxu0 0.0
        %466 = vmatprep.subr.mxu0 0.0
        %467 = vmatpush1.msra.mxu0 0.0
        %468 = vmatprep.subr.mxu0 0.0
        %469 = vmatpush1.msra.mxu0 0.0
        %470 = vmatprep.subr.mxu0 0.0
        %471 = vmatpush1.msra.mxu0 0.0
        %472 = vmatprep.subr.mxu0 0.0
        %473 = vmatpush1.msra.mxu0 0.0
        %474 = vmatprep.mubr.f32.mxu0 0.0
        %475 = vmatmul.mubr.f32.gmra.mrb[0].mxu0 %v387
        %v476 = vpop.f32.mrb[0].mxu0
        %v477 = vadd.f32 0.0, %v476
        %v478 = vpop.f32.mrb[0].mxu0
        %479 = vmatprep.mubr.f32.mxu0 0.0
        %480 = vmatmul.mubr.f32.gmra.mrb[0].mxu0 %v390
        %v481 = vpop.f32.mrb[0].mxu0
        %v482 = vadd.f32 0.0, %v481
        %v483 = vpop.f32.mrb[0].mxu0
        %484 = vmatprep.mubr.f32.mxu0 0.0
        %485 = vmatmul.mubr.f32.gmra.mrb[0].mxu0 %v393
        %v486 = vpop.f32.mrb[0].mxu0
        %v487 = vadd.f32 0.0, %v486
        %v488 = vpop.f32.mrb[0].mxu0
        %489 = vmatprep.mubr.f32.mxu0 0.0
        %490 = vmatmul.mubr.f32.gmra.mrb[0].mxu0 %v396
        %v491 = vpop.f32.mrb[0].mxu0
        %v492 = vadd.f32 0.0, %v491
        %v493 = vpop.f32.mrb[0].mxu0
        %494 = vmatprep.mubr.f32.mxu0 0.0
        %495 = vmatmul.mubr.f32.gmra.mrb[0].mxu0 %v399
        %v496 = vpop.f32.mrb[0].mxu0
        %v497 = vadd.f32 0.0, %v496
        %v498 = vpop.f32.mrb[0].mxu0
        %499 = vmatprep.mubr.f32.mxu0 0.0
        %500 = vmatmul.mubr.f32.gmra.mrb[0].mxu0 %v402
        %v501 = vpop.f32.mrb[0].mxu0
        %v502 = vadd.f32 0.0, %v501
        %v503 = vpop.f32.mrb[0].mxu0
        %504 = vmatprep.mubr.f32.mxu0 0.0
        %505 = vmatmul.mubr.f32.gmra.mrb[0].mxu0 %v405
        %v506 = vpop.f32.mrb[0].mxu0
        %v507 = vadd.f32 0.0, %v506
        %v508 = vpop.f32.mrb[0].mxu0
        %509 = vmatprep.mubr.f32.mxu0 0.0
        %510 = vmatmul.mubr.f32.gmra.mrb[0].mxu0 %v408
        %v511 = vpop.f32.mrb[0].mxu0
        %v512 = vadd.f32 0.0, %v511
        %v513 = vpop.f32.mrb[0].mxu0
        %514 = vdwg.mxu0
        %v515 = vadd.f32 %v367, %v477
        %v516 = vadd.f32 %v368, %v482
        %v517 = vadd.f32 %v369, %v487
        %v518 = vadd.f32 %v370, %v492
        %v519 = vadd.f32 %v371, %v497
        %v520 = vadd.f32 %v372, %v502
        %v521 = vadd.f32 %v373, %v507
        %v522 = vadd.f32 %v374, %v512
        %s523 = scalar_lea.vmem %s335, 8
        %v524 = vld [vmem:[%s523] sm:$0xff]
        %v525 = vld [vmem:[%s523 + $0x8] sm:$0xff]
        %v526 = vld [vmem:[%s523 + $0x10] sm:$0xff]
        %v527 = vld [vmem:[%s523 + $0x18] sm:$0xff]
        %v528 = vld [vmem:[%s523 + $0x20] sm:$0xff]
        %v529 = vld [vmem:[%s523 + $0x28] sm:$0xff]
        %v530 = vld [vmem:[%s523 + $0x30] sm:$0xff]
        %v531 = vld [vmem:[%s523 + $0x38] sm:$0xff]
        %s532 = scalar_lea.vmem %s4, 16
        %v533 = vld [vmem:[%s532] sm:$0xff]
        %v534 = vld [vmem:[%s532 + $0x8] sm:$0xff]
        %v536 = vsel %vm385, %v524, 0
        %v539 = vsel %vm385, %v525, 0
        %v542 = vsel %vm385, %v526, 0
        %v545 = vsel %vm385, %v527, 0
        %v548 = vsel %vm385, %v528, 0
        %v551 = vsel %vm385, %v529, 0
        %v554 = vsel %vm385, %v530, 0
        %v557 = vsel %vm385, %v531, 0
        %559 = vmatprep.subr.mxu0 0.0
        %560 = vmatpush1.msra.mxu0 %v533
        %561 = vmatprep.subr.mxu0 0.0
        %562 = vmatpush1.msra.mxu0 %v534
        %563 = vmatprep.subr.mxu0 0.0
        %564 = vmatpush1.msra.mxu0 0.0
        %565 = vmatprep.subr.mxu0 0.0
        %566 = vmatpush1.msra.mxu0 0.0
        %567 = vmatprep.subr.mxu0 0.0
        %568 = vmatpush1.msra.mxu0 0.0
        %569 = vmatprep.subr.mxu0 0.0
        %570 = vmatpush1.msra.mxu0 0.0
        %571 = vmatprep.subr.mxu0 0.0
        %572 = vmatpush1.msra.mxu0 0.0
        %573 = vmatprep.subr.mxu0 0.0
        %574 = vmatpush1.msra.mxu0 0.0
        %575 = vmatprep.subr.mxu0 0.0
        %576 = vmatpush1.msra.mxu0 0.0
        %577 = vmatprep.subr.mxu0 0.0
        %578 = vmatpush1.msra.mxu0 0.0
        %579 = vmatprep.subr.mxu0 0.0
        %580 = vmatpush1.msra.mxu0 0.0
        %581 = vmatprep.subr.mxu0 0.0
        %582 = vmatpush1.msra.mxu0 0.0
        %583 = vmatprep.subr.mxu0 0.0
        %584 = vmatpush1.msra.mxu0 0.0
        %585 = vmatprep.subr.mxu0 0.0
        %586 = vmatpush1.msra.mxu0 0.0
        %587 = vmatprep.subr.mxu0 0.0
        %588 = vmatpush1.msra.mxu0 0.0
        %589 = vmatprep.subr.mxu0 0.0
        %590 = vmatpush1.msra.mxu0 0.0
        %591 = vmatprep.subr.mxu0 0.0
        %592 = vmatpush1.msra.mxu0 0.0
        %593 = vmatprep.subr.mxu0 0.0
        %594 = vmatpush1.msra.mxu0 0.0
        %595 = vmatprep.subr.mxu0 0.0
        %596 = vmatpush1.msra.mxu0 0.0
        %597 = vmatprep.subr.mxu0 0.0
        %598 = vmatpush1.msra.mxu0 0.0
        %599 = vmatprep.subr.mxu0 0.0
        %600 = vmatpush1.msra.mxu0 0.0
        %601 = vmatprep.subr.mxu0 0.0
        %602 = vmatpush1.msra.mxu0 0.0
        %603 = vmatprep.subr.mxu0 0.0
        %604 = vmatpush1.msra.mxu0 0.0
        %605 = vmatprep.subr.mxu0 0.0
        %606 = vmatpush1.msra.mxu0 0.0
        %607 = vmatprep.subr.mxu0 0.0
        %608 = vmatpush1.msra.mxu0 0.0
        %609 = vmatprep.subr.mxu0 0.0
        %610 = vmatpush1.msra.mxu0 0.0
        %611 = vmatprep.subr.mxu0 0.0
        %612 = vmatpush1.msra.mxu0 0.0
        %613 = vmatprep.subr.mxu0 0.0
        %614 = vmatpush1.msra.mxu0 0.0
        %615 = vmatprep.subr.mxu0 0.0
        %616 = vmatpush1.msra.mxu0 0.0
        %617 = vmatprep.subr.mxu0 0.0
        %618 = vmatpush1.msra.mxu0 0.0
        %619 = vmatprep.subr.mxu0 0.0
        %620 = vmatpush1.msra.mxu0 0.0
        %621 = vmatprep.subr.mxu0 0.0
        %622 = vmatpush1.msra.mxu0 0.0
        %623 = vmatprep.mubr.f32.mxu0 0.0
        %624 = vmatmul.mubr.f32.gmra.mrb[0].mxu0 %v536
        %v625 = vpop.f32.mrb[0].mxu0
        %v626 = vadd.f32 0.0, %v625
        %v627 = vpop.f32.mrb[0].mxu0
        %628 = vmatprep.mubr.f32.mxu0 0.0
        %629 = vmatmul.mubr.f32.gmra.mrb[0].mxu0 %v539
        %v630 = vpop.f32.mrb[0].mxu0
        %v631 = vadd.f32 0.0, %v630
        %v632 = vpop.f32.mrb[0].mxu0
        %633 = vmatprep.mubr.f32.mxu0 0.0
        %634 = vmatmul.mubr.f32.gmra.mrb[0].mxu0 %v542
        %v635 = vpop.f32.mrb[0].mxu0
        %v636 = vadd.f32 0.0, %v635
        %v637 = vpop.f32.mrb[0].mxu0
        %638 = vmatprep.mubr.f32.mxu0 0.0
        %639 = vmatmul.mubr.f32.gmra.mrb[0].mxu0 %v545
        %v640 = vpop.f32.mrb[0].mxu0
        %v641 = vadd.f32 0.0, %v640
        %v642 = vpop.f32.mrb[0].mxu0
        %643 = vmatprep.mubr.f32.mxu0 0.0
        %644 = vmatmul.mubr.f32.gmra.mrb[0].mxu0 %v548
        %v645 = vpop.f32.mrb[0].mxu0
        %v646 = vadd.f32 0.0, %v645
        %v647 = vpop.f32.mrb[0].mxu0
        %648 = vmatprep.mubr.f32.mxu0 0.0
        %649 = vmatmul.mubr.f32.gmra.mrb[0].mxu0 %v551
        %v650 = vpop.f32.mrb[0].mxu0
        %v651 = vadd.f32 0.0, %v650
        %v652 = vpop.f32.mrb[0].mxu0
        %653 = vmatprep.mubr.f32.mxu0 0.0
        %654 = vmatmul.mubr.f32.gmra.mrb[0].mxu0 %v554
        %v655 = vpop.f32.mrb[0].mxu0
        %v656 = vadd.f32 0.0, %v655
        %v657 = vpop.f32.mrb[0].mxu0
        %658 = vmatprep.mubr.f32.mxu0 0.0
        %659 = vmatmul.mubr.f32.gmra.mrb[0].mxu0 %v557
        %v660 = vpop.f32.mrb[0].mxu0
        %v661 = vadd.f32 0.0, %v660
        %v662 = vpop.f32.mrb[0].mxu0
        %663 = vdwg.mxu0
        %v664 = vadd.f32 %v515, %v626
        %v665 = vadd.f32 %v516, %v631
        %v666 = vadd.f32 %v517, %v636
        %v667 = vadd.f32 %v518, %v641
        %v668 = vadd.f32 %v519, %v646
        %v669 = vadd.f32 %v520, %v651
        %v670 = vadd.f32 %v521, %v656
        %v671 = vadd.f32 %v522, %v661
        %s672 = scalar_lea.vmem %s335, 16
        %v673 = vld [vmem:[%s672] sm:$0xff]
        %v674 = vld [vmem:[%s672 + $0x8] sm:$0xff]
        %v675 = vld [vmem:[%s672 + $0x10] sm:$0xff]
        %v676 = vld [vmem:[%s672 + $0x18] sm:$0xff]
        %v677 = vld [vmem:[%s672 + $0x20] sm:$0xff]
        %v678 = vld [vmem:[%s672 + $0x28] sm:$0xff]
        %v679 = vld [vmem:[%s672 + $0x30] sm:$0xff]
        %v680 = vld [vmem:[%s672 + $0x38] sm:$0xff]
        %s681 = scalar_lea.vmem %s4, 32
        %v682 = vld [vmem:[%s681] sm:$0xff]
        %v683 = vld [vmem:[%s681 + $0x8] sm:$0xff]
        %v685 = vsel %vm385, %v673, 0
        %v688 = vsel %vm385, %v674, 0
        %v691 = vsel %vm385, %v675, 0
        %v694 = vsel %vm385, %v676, 0
        %v697 = vsel %vm385, %v677, 0
        %v700 = vsel %vm385, %v678, 0
        %v703 = vsel %vm385, %v679, 0
        %v706 = vsel %vm385, %v680, 0
        %708 = vmatprep.subr.mxu0 0.0
        %709 = vmatpush1.msra.mxu0 %v682
        %710 = vmatprep.subr.mxu0 0.0
        %711 = vmatpush1.msra.mxu0 %v683
        %712 = vmatprep.subr.mxu0 0.0
        %713 = vmatpush1.msra.mxu0 0.0
        %714 = vmatprep.subr.mxu0 0.0
        %715 = vmatpush1.msra.mxu0 0.0
        %716 = vmatprep.subr.mxu0 0.0
        %717 = vmatpush1.msra.mxu0 0.0
        %718 = vmatprep.subr.mxu0 0.0
        %719 = vmatpush1.msra.mxu0 0.0
        %720 = vmatprep.subr.mxu0 0.0
        %721 = vmatpush1.msra.mxu0 0.0
        %722 = vmatprep.subr.mxu0 0.0
        %723 = vmatpush1.msra.mxu0 0.0
        %724 = vmatprep.subr.mxu0 0.0
        %725 = vmatpush1.msra.mxu0 0.0
        %726 = vmatprep.subr.mxu0 0.0
        %727 = vmatpush1.msra.mxu0 0.0
        %728 = vmatprep.subr.mxu0 0.0
        %729 = vmatpush1.msra.mxu0 0.0
        %730 = vmatprep.subr.mxu0 0.0
        %731 = vmatpush1.msra.mxu0 0.0
        %732 = vmatprep.subr.mxu0 0.0
        %733 = vmatpush1.msra.mxu0 0.0
        %734 = vmatprep.subr.mxu0 0.0
        %735 = vmatpush1.msra.mxu0 0.0
        %736 = vmatprep.subr.mxu0 0.0
        %737 = vmatpush1.msra.mxu0 0.0
        %738 = vmatprep.subr.mxu0 0.0
        %739 = vmatpush1.msra.mxu0 0.0
        %740 = vmatprep.subr.mxu0 0.0
        %741 = vmatpush1.msra.mxu0 0.0
        %742 = vmatprep.subr.mxu0 0.0
        %743 = vmatpush1.msra.mxu0 0.0
        %744 = vmatprep.subr.mxu0 0.0
        %745 = vmatpush1.msra.mxu0 0.0
        %746 = vmatprep.subr.mxu0 0.0
        %747 = vmatpush1.msra.mxu0 0.0
        %748 = vmatprep.subr.mxu0 0.0
        %749 = vmatpush1.msra.mxu0 0.0
        %750 = vmatprep.subr.mxu0 0.0
        %751 = vmatpush1.msra.mxu0 0.0
        %752 = vmatprep.subr.mxu0 0.0
        %753 = vmatpush1.msra.mxu0 0.0
        %754 = vmatprep.subr.mxu0 0.0
        %755 = vmatpush1.msra.mxu0 0.0
        %756 = vmatprep.subr.mxu0 0.0
        %757 = vmatpush1.msra.mxu0 0.0
        %758 = vmatprep.subr.mxu0 0.0
        %759 = vmatpush1.msra.mxu0 0.0
        %760 = vmatprep.subr.mxu0 0.0
        %761 = vmatpush1.msra.mxu0 0.0
        %762 = vmatprep.subr.mxu0 0.0
        %763 = vmatpush1.msra.mxu0 0.0
        %764 = vmatprep.subr.mxu0 0.0
        %765 = vmatpush1.msra.mxu0 0.0
        %766 = vmatprep.subr.mxu0 0.0
        %767 = vmatpush1.msra.mxu0 0.0
        %768 = vmatprep.subr.mxu0 0.0
        %769 = vmatpush1.msra.mxu0 0.0
        %770 = vmatprep.subr.mxu0 0.0
        %771 = vmatpush1.msra.mxu0 0.0
        %772 = vmatprep.mubr.f32.mxu0 0.0
        %773 = vmatmul.mubr.f32.gmra.mrb[0].mxu0 %v685
        %v774 = vpop.f32.mrb[0].mxu0
        %v775 = vadd.f32 0.0, %v774
        %v776 = vpop.f32.mrb[0].mxu0
        %777 = vmatprep.mubr.f32.mxu0 0.0
        %778 = vmatmul.mubr.f32.gmra.mrb[0].mxu0 %v688
        %v779 = vpop.f32.mrb[0].mxu0
        %v780 = vadd.f32 0.0, %v779
        %v781 = vpop.f32.mrb[0].mxu0
        %782 = vmatprep.mubr.f32.mxu0 0.0
        %783 = vmatmul.mubr.f32.gmra.mrb[0].mxu0 %v691
        %v784 = vpop.f32.mrb[0].mxu0
        %v785 = vadd.f32 0.0, %v784
        %v786 = vpop.f32.mrb[0].mxu0
        %787 = vmatprep.mubr.f32.mxu0 0.0
        %788 = vmatmul.mubr.f32.gmra.mrb[0].mxu0 %v694
        %v789 = vpop.f32.mrb[0].mxu0
        %v790 = vadd.f32 0.0, %v789
        %v791 = vpop.f32.mrb[0].mxu0
        %792 = vmatprep.mubr.f32.mxu0 0.0
        %793 = vmatmul.mubr.f32.gmra.mrb[0].mxu0 %v697
        %v794 = vpop.f32.mrb[0].mxu0
        %v795 = vadd.f32 0.0, %v794
        %v796 = vpop.f32.mrb[0].mxu0
        %797 = vmatprep.mubr.f32.mxu0 0.0
        %798 = vmatmul.mubr.f32.gmra.mrb[0].mxu0 %v700
        %v799 = vpop.f32.mrb[0].mxu0
        %v800 = vadd.f32 0.0, %v799
        %v801 = vpop.f32.mrb[0].mxu0
        %802 = vmatprep.mubr.f32.mxu0 0.0
        %803 = vmatmul.mubr.f32.gmra.mrb[0].mxu0 %v703
        %v804 = vpop.f32.mrb[0].mxu0
        %v805 = vadd.f32 0.0, %v804
        %v806 = vpop.f32.mrb[0].mxu0
        %807 = vmatprep.mubr.f32.mxu0 0.0
        %808 = vmatmul.mubr.f32.gmra.mrb[0].mxu0 %v706
        %v809 = vpop.f32.mrb[0].mxu0
        %v810 = vadd.f32 0.0, %v809
        %v811 = vpop.f32.mrb[0].mxu0
        %812 = vdwg.mxu0
        %v813 = vadd.f32 %v664, %v775
        %v814 = vadd.f32 %v665, %v780
        %v815 = vadd.f32 %v666, %v785
        %v816 = vadd.f32 %v667, %v790
        %v817 = vadd.f32 %v668, %v795
        %v818 = vadd.f32 %v669, %v800
        %v819 = vadd.f32 %v670, %v805
        %v820 = vadd.f32 %v671, %v810
        %v821 = vld [vmem:[%s345] sm:$0xff]
        %v822 = vld [vmem:[%s345 + $0x8] sm:$0xff]
        %v823 = vld [vmem:[%s345 + $0x10] sm:$0xff]
        %v824 = vld [vmem:[%s345 + $0x18] sm:$0xff]
        %v825 = vld [vmem:[%s345 + $0x20] sm:$0xff]
        %v826 = vld [vmem:[%s345 + $0x28] sm:$0xff]
        %v827 = vld [vmem:[%s345 + $0x30] sm:$0xff]
        %v828 = vld [vmem:[%s345 + $0x38] sm:$0xff]
        %s829 = scalar_lea.vmem %s4, 48
        %v830 = vld [vmem:[%s829] sm:$0xff]
        %v831 = vld [vmem:[%s829 + $0x8] sm:$0xff]
        %v833 = vsel %vm385, %v821, 0
        %v836 = vsel %vm385, %v822, 0
        %v839 = vsel %vm385, %v823, 0
        %v842 = vsel %vm385, %v824, 0
        %v845 = vsel %vm385, %v825, 0
        %v848 = vsel %vm385, %v826, 0
        %v851 = vsel %vm385, %v827, 0
        %v854 = vsel %vm385, %v828, 0
        %856 = vmatprep.subr.mxu0 0.0
        %857 = vmatpush1.msra.mxu0 %v830
        %858 = vmatprep.subr.mxu0 0.0
        %859 = vmatpush1.msra.mxu0 %v831
        %860 = vmatprep.subr.mxu0 0.0
        %861 = vmatpush1.msra.mxu0 0.0
        %862 = vmatprep.subr.mxu0 0.0
        %863 = vmatpush1.msra.mxu0 0.0
        %864 = vmatprep.subr.mxu0 0.0
        %865 = vmatpush1.msra.mxu0 0.0
        %866 = vmatprep.subr.mxu0 0.0
        %867 = vmatpush1.msra.mxu0 0.0
        %868 = vmatprep.subr.mxu0 0.0
        %869 = vmatpush1.msra.mxu0 0.0
        %870 = vmatprep.subr.mxu0 0.0
        %871 = vmatpush1.msra.mxu0 0.0
        %872 = vmatprep.subr.mxu0 0.0
        %873 = vmatpush1.msra.mxu0 0.0
        %874 = vmatprep.subr.mxu0 0.0
        %875 = vmatpush1.msra.mxu0 0.0
        %876 = vmatprep.subr.mxu0 0.0
        %877 = vmatpush1.msra.mxu0 0.0
        %878 = vmatprep.subr.mxu0 0.0
        %879 = vmatpush1.msra.mxu0 0.0
        %880 = vmatprep.subr.mxu0 0.0
        %881 = vmatpush1.msra.mxu0 0.0
        %882 = vmatprep.subr.mxu0 0.0
        %883 = vmatpush1.msra.mxu0 0.0
        %884 = vmatprep.subr.mxu0 0.0
        %885 = vmatpush1.msra.mxu0 0.0
        %886 = vmatprep.subr.mxu0 0.0
        %887 = vmatpush1.msra.mxu0 0.0
        %888 = vmatprep.subr.mxu0 0.0
        %889 = vmatpush1.msra.mxu0 0.0
        %890 = vmatprep.subr.mxu0 0.0
        %891 = vmatpush1.msra.mxu0 0.0
        %892 = vmatprep.subr.mxu0 0.0
        %893 = vmatpush1.msra.mxu0 0.0
        %894 = vmatprep.subr.mxu0 0.0
        %895 = vmatpush1.msra.mxu0 0.0
        %896 = vmatprep.subr.mxu0 0.0
        %897 = vmatpush1.msra.mxu0 0.0
        %898 = vmatprep.subr.mxu0 0.0
        %899 = vmatpush1.msra.mxu0 0.0
        %900 = vmatprep.subr.mxu0 0.0
        %901 = vmatpush1.msra.mxu0 0.0
        %902 = vmatprep.subr.mxu0 0.0
        %903 = vmatpush1.msra.mxu0 0.0
        %904 = vmatprep.subr.mxu0 0.0
        %905 = vmatpush1.msra.mxu0 0.0
        %906 = vmatprep.subr.mxu0 0.0
        %907 = vmatpush1.msra.mxu0 0.0
        %908 = vmatprep.subr.mxu0 0.0
        %909 = vmatpush1.msra.mxu0 0.0
        %910 = vmatprep.subr.mxu0 0.0
        %911 = vmatpush1.msra.mxu0 0.0
        %912 = vmatprep.subr.mxu0 0.0
        %913 = vmatpush1.msra.mxu0 0.0
        %914 = vmatprep.subr.mxu0 0.0
        %915 = vmatpush1.msra.mxu0 0.0
        %916 = vmatprep.subr.mxu0 0.0
        %917 = vmatpush1.msra.mxu0 0.0
        %918 = vmatprep.subr.mxu0 0.0
        %919 = vmatpush1.msra.mxu0 0.0
        %920 = vmatprep.mubr.f32.mxu0 0.0
        %921 = vmatmul.mubr.f32.gmra.mrb[0].mxu0 %v833
        %v922 = vpop.f32.mrb[0].mxu0
        %v923 = vadd.f32 0.0, %v922
        %v924 = vpop.f32.mrb[0].mxu0
        %925 = vmatprep.mubr.f32.mxu0 0.0
        %926 = vmatmul.mubr.f32.gmra.mrb[0].mxu0 %v836
        %v927 = vpop.f32.mrb[0].mxu0
        %v928 = vadd.f32 0.0, %v927
        %v929 = vpop.f32.mrb[0].mxu0
        %930 = vmatprep.mubr.f32.mxu0 0.0
        %931 = vmatmul.mubr.f32.gmra.mrb[0].mxu0 %v839
        %v932 = vpop.f32.mrb[0].mxu0
        %v933 = vadd.f32 0.0, %v932
        %v934 = vpop.f32.mrb[0].mxu0
        %935 = vmatprep.mubr.f32.mxu0 0.0
        %936 = vmatmul.mubr.f32.gmra.mrb[0].mxu0 %v842
        %v937 = vpop.f32.mrb[0].mxu0
        %v938 = vadd.f32 0.0, %v937
        %v939 = vpop.f32.mrb[0].mxu0
        %940 = vmatprep.mubr.f32.mxu0 0.0
        %941 = vmatmul.mubr.f32.gmra.mrb[0].mxu0 %v845
        %v942 = vpop.f32.mrb[0].mxu0
        %v943 = vadd.f32 0.0, %v942
        %v944 = vpop.f32.mrb[0].mxu0
        %945 = vmatprep.mubr.f32.mxu0 0.0
        %946 = vmatmul.mubr.f32.gmra.mrb[0].mxu0 %v848
        %v947 = vpop.f32.mrb[0].mxu0
        %v948 = vadd.f32 0.0, %v947
        %v949 = vpop.f32.mrb[0].mxu0
        %950 = vmatprep.mubr.f32.mxu0 0.0
        %951 = vmatmul.mubr.f32.gmra.mrb[0].mxu0 %v851
        %v952 = vpop.f32.mrb[0].mxu0
        %v953 = vadd.f32 0.0, %v952
        %v954 = vpop.f32.mrb[0].mxu0
        %955 = vmatprep.mubr.f32.mxu0 0.0
        %956 = vmatmul.mubr.f32.gmra.mrb[0].mxu0 %v854
        %v957 = vpop.f32.mrb[0].mxu0
        %v958 = vadd.f32 0.0, %v957
        %v959 = vpop.f32.mrb[0].mxu0
        %960 = vdwg.mxu0
        %v961 = vadd.f32 %v813, %v923
        %v962 = vadd.f32 %v814, %v928
        %v963 = vadd.f32 %v815, %v933
        %v964 = vadd.f32 %v816, %v938
        %v965 = vadd.f32 %v817, %v943
        %v966 = vadd.f32 %v818, %v948
        %v967 = vadd.f32 %v819, %v953
        %v968 = vadd.f32 %v820, %v958
        %s969 = scalar_lea.vmem %s345, 8
        %v970 = vld [vmem:[%s969] sm:$0xff]
        %v971 = vld [vmem:[%s969 + $0x8] sm:$0xff]
        %v972 = vld [vmem:[%s969 + $0x10] sm:$0xff]
        %v973 = vld [vmem:[%s969 + $0x18] sm:$0xff]
        %v974 = vld [vmem:[%s969 + $0x20] sm:$0xff]
        %v975 = vld [vmem:[%s969 + $0x28] sm:$0xff]
        %v976 = vld [vmem:[%s969 + $0x30] sm:$0xff]
        %v977 = vld [vmem:[%s969 + $0x38] sm:$0xff]
        %s978 = scalar_lea.vmem %s4, 64
        %v979 = vld [vmem:[%s978] sm:$0xff]
        %v980 = vld [vmem:[%s978 + $0x8] sm:$0xff]
        %v982 = vsel %vm385, %v970, 0
        %v985 = vsel %vm385, %v971, 0
        %v988 = vsel %vm385, %v972, 0
        %v991 = vsel %vm385, %v973, 0
        %v994 = vsel %vm385, %v974, 0
        %v997 = vsel %vm385, %v975, 0
        %v1000 = vsel %vm385, %v976, 0
        %v1003 = vsel %vm385, %v977, 0
        %1005 = vmatprep.subr.mxu0 0.0
        %1006 = vmatpush1.msra.mxu0 %v979
        %1007 = vmatprep.subr.mxu0 0.0
        %1008 = vmatpush1.msra.mxu0 %v980
        %1009 = vmatprep.subr.mxu0 0.0
        %1010 = vmatpush1.msra.mxu0 0.0
        %1011 = vmatprep.subr.mxu0 0.0
        %1012 = vmatpush1.msra.mxu0 0.0
        %1013 = vmatprep.subr.mxu0 0.0
        %1014 = vmatpush1.msra.mxu0 0.0
        %1015 = vmatprep.subr.mxu0 0.0
        %1016 = vmatpush1.msra.mxu0 0.0
        %1017 = vmatprep.subr.mxu0 0.0
        %1018 = vmatpush1.msra.mxu0 0.0
        %1019 = vmatprep.subr.mxu0 0.0
        %1020 = vmatpush1.msra.mxu0 0.0
        %1021 = vmatprep.subr.mxu0 0.0
        %1022 = vmatpush1.msra.mxu0 0.0
        %1023 = vmatprep.subr.mxu0 0.0
        %1024 = vmatpush1.msra.mxu0 0.0
        %1025 = vmatprep.subr.mxu0 0.0
        %1026 = vmatpush1.msra.mxu0 0.0
        %1027 = vmatprep.subr.mxu0 0.0
        %1028 = vmatpush1.msra.mxu0 0.0
        %1029 = vmatprep.subr.mxu0 0.0
        %1030 = vmatpush1.msra.mxu0 0.0
        %1031 = vmatprep.subr.mxu0 0.0
        %1032 = vmatpush1.msra.mxu0 0.0
        %1033 = vmatprep.subr.mxu0 0.0
        %1034 = vmatpush1.msra.mxu0 0.0
        %1035 = vmatprep.subr.mxu0 0.0
        %1036 = vmatpush1.msra.mxu0 0.0
        %1037 = vmatprep.subr.mxu0 0.0
        %1038 = vmatpush1.msra.mxu0 0.0
        %1039 = vmatprep.subr.mxu0 0.0
        %1040 = vmatpush1.msra.mxu0 0.0
        %1041 = vmatprep.subr.mxu0 0.0
        %1042 = vmatpush1.msra.mxu0 0.0
        %1043 = vmatprep.subr.mxu0 0.0
        %1044 = vmatpush1.msra.mxu0 0.0
        %1045 = vmatprep.subr.mxu0 0.0
        %1046 = vmatpush1.msra.mxu0 0.0
        %1047 = vmatprep.subr.mxu0 0.0
        %1048 = vmatpush1.msra.mxu0 0.0
        %1049 = vmatprep.subr.mxu0 0.0
        %1050 = vmatpush1.msra.mxu0 0.0
        %1051 = vmatprep.subr.mxu0 0.0
        %1052 = vmatpush1.msra.mxu0 0.0
        %1053 = vmatprep.subr.mxu0 0.0
        %1054 = vmatpush1.msra.mxu0 0.0
        %1055 = vmatprep.subr.mxu0 0.0
        %1056 = vmatpush1.msra.mxu0 0.0
        %1057 = vmatprep.subr.mxu0 0.0
        %1058 = vmatpush1.msra.mxu0 0.0
        %1059 = vmatprep.subr.mxu0 0.0
        %1060 = vmatpush1.msra.mxu0 0.0
        %1061 = vmatprep.subr.mxu0 0.0
        %1062 = vmatpush1.msra.mxu0 0.0
        %1063 = vmatprep.subr.mxu0 0.0
        %1064 = vmatpush1.msra.mxu0 0.0
        %1065 = vmatprep.subr.mxu0 0.0
        %1066 = vmatpush1.msra.mxu0 0.0
        %1067 = vmatprep.subr.mxu0 0.0
        %1068 = vmatpush1.msra.mxu0 0.0
        %1069 = vmatprep.mubr.f32.mxu0 0.0
        %1070 = vmatmul.mubr.f32.gmra.mrb[0].mxu0 %v982
        %v1071 = vpop.f32.mrb[0].mxu0
        %v1072 = vadd.f32 0.0, %v1071
        %v1073 = vpop.f32.mrb[0].mxu0
        %1074 = vmatprep.mubr.f32.mxu0 0.0
        %1075 = vmatmul.mubr.f32.gmra.mrb[0].mxu0 %v985
        %v1076 = vpop.f32.mrb[0].mxu0
        %v1077 = vadd.f32 0.0, %v1076
        %v1078 = vpop.f32.mrb[0].mxu0
        %1079 = vmatprep.mubr.f32.mxu0 0.0
        %1080 = vmatmul.mubr.f32.gmra.mrb[0].mxu0 %v988
        %v1081 = vpop.f32.mrb[0].mxu0
        %v1082 = vadd.f32 0.0, %v1081
        %v1083 = vpop.f32.mrb[0].mxu0
        %1084 = vmatprep.mubr.f32.mxu0 0.0
        %1085 = vmatmul.mubr.f32.gmra.mrb[0].mxu0 %v991
        %v1086 = vpop.f32.mrb[0].mxu0
        %v1087 = vadd.f32 0.0, %v1086
        %v1088 = vpop.f32.mrb[0].mxu0
        %1089 = vmatprep.mubr.f32.mxu0 0.0
        %1090 = vmatmul.mubr.f32.gmra.mrb[0].mxu0 %v994
        %v1091 = vpop.f32.mrb[0].mxu0
        %v1092 = vadd.f32 0.0, %v1091
        %v1093 = vpop.f32.mrb[0].mxu0
        %1094 = vmatprep.mubr.f32.mxu0 0.0
        %1095 = vmatmul.mubr.f32.gmra.mrb[0].mxu0 %v997
        %v1096 = vpop.f32.mrb[0].mxu0
        %v1097 = vadd.f32 0.0, %v1096
        %v1098 = vpop.f32.mrb[0].mxu0
        %1099 = vmatprep.mubr.f32.mxu0 0.0
        %1100 = vmatmul.mubr.f32.gmra.mrb[0].mxu0 %v1000
        %v1101 = vpop.f32.mrb[0].mxu0
        %v1102 = vadd.f32 0.0, %v1101
        %v1103 = vpop.f32.mrb[0].mxu0
        %1104 = vmatprep.mubr.f32.mxu0 0.0
        %1105 = vmatmul.mubr.f32.gmra.mrb[0].mxu0 %v1003
        %v1106 = vpop.f32.mrb[0].mxu0
        %v1107 = vadd.f32 0.0, %v1106
        %v1108 = vpop.f32.mrb[0].mxu0
        %1109 = vdwg.mxu0
        %v1110 = vadd.f32 %v961, %v1072
        %v1111 = vadd.f32 %v962, %v1077
        %v1112 = vadd.f32 %v963, %v1082
        %v1113 = vadd.f32 %v964, %v1087
        %v1114 = vadd.f32 %v965, %v1092
        %v1115 = vadd.f32 %v966, %v1097
        %v1116 = vadd.f32 %v967, %v1102
        %v1117 = vadd.f32 %v968, %v1107
        %s1118 = scalar_lea.vmem %s345, 16
        %v1119 = vld [vmem:[%s1118] sm:$0xff]
        %v1120 = vld [vmem:[%s1118 + $0x8] sm:$0xff]
        %v1121 = vld [vmem:[%s1118 + $0x10] sm:$0xff]
        %v1122 = vld [vmem:[%s1118 + $0x18] sm:$0xff]
        %v1123 = vld [vmem:[%s1118 + $0x20] sm:$0xff]
        %v1124 = vld [vmem:[%s1118 + $0x28] sm:$0xff]
        %v1125 = vld [vmem:[%s1118 + $0x30] sm:$0xff]
        %v1126 = vld [vmem:[%s1118 + $0x38] sm:$0xff]
        %s1127 = scalar_lea.vmem %s4, 80
        %v1128 = vld [vmem:[%s1127] sm:$0xff]
        %v1129 = vld [vmem:[%s1127 + $0x8] sm:$0xff]
        %v1131 = vsel %vm385, %v1119, 0
        %v1134 = vsel %vm385, %v1120, 0
        %v1137 = vsel %vm385, %v1121, 0
        %v1140 = vsel %vm385, %v1122, 0
        %v1143 = vsel %vm385, %v1123, 0
        %v1146 = vsel %vm385, %v1124, 0
        %v1149 = vsel %vm385, %v1125, 0
        %v1152 = vsel %vm385, %v1126, 0
        %1154 = vmatprep.subr.mxu0 0.0
        %1155 = vmatpush1.msra.mxu0 %v1128
        %1156 = vmatprep.subr.mxu0 0.0
        %1157 = vmatpush1.msra.mxu0 %v1129
        %1158 = vmatprep.subr.mxu0 0.0
        %1159 = vmatpush1.msra.mxu0 0.0
        %1160 = vmatprep.subr.mxu0 0.0
        %1161 = vmatpush1.msra.mxu0 0.0
        %1162 = vmatprep.subr.mxu0 0.0
        %1163 = vmatpush1.msra.mxu0 0.0
        %1164 = vmatprep.subr.mxu0 0.0
        %1165 = vmatpush1.msra.mxu0 0.0
        %1166 = vmatprep.subr.mxu0 0.0
        %1167 = vmatpush1.msra.mxu0 0.0
        %1168 = vmatprep.subr.mxu0 0.0
        %1169 = vmatpush1.msra.mxu0 0.0
        %1170 = vmatprep.subr.mxu0 0.0
        %1171 = vmatpush1.msra.mxu0 0.0
        %1172 = vmatprep.subr.mxu0 0.0
        %1173 = vmatpush1.msra.mxu0 0.0
        %1174 = vmatprep.subr.mxu0 0.0
        %1175 = vmatpush1.msra.mxu0 0.0
        %1176 = vmatprep.subr.mxu0 0.0
        %1177 = vmatpush1.msra.mxu0 0.0
        %1178 = vmatprep.subr.mxu0 0.0
        %1179 = vmatpush1.msra.mxu0 0.0
        %1180 = vmatprep.subr.mxu0 0.0
        %1181 = vmatpush1.msra.mxu0 0.0
        %1182 = vmatprep.subr.mxu0 0.0
        %1183 = vmatpush1.msra.mxu0 0.0
        %1184 = vmatprep.subr.mxu0 0.0
        %1185 = vmatpush1.msra.mxu0 0.0
        %1186 = vmatprep.subr.mxu0 0.0
        %1187 = vmatpush1.msra.mxu0 0.0
        %1188 = vmatprep.subr.mxu0 0.0
        %1189 = vmatpush1.msra.mxu0 0.0
        %1190 = vmatprep.subr.mxu0 0.0
        %1191 = vmatpush1.msra.mxu0 0.0
        %1192 = vmatprep.subr.mxu0 0.0
        %1193 = vmatpush1.msra.mxu0 0.0
        %1194 = vmatprep.subr.mxu0 0.0
        %1195 = vmatpush1.msra.mxu0 0.0
        %1196 = vmatprep.subr.mxu0 0.0
        %1197 = vmatpush1.msra.mxu0 0.0
        %1198 = vmatprep.subr.mxu0 0.0
        %1199 = vmatpush1.msra.mxu0 0.0
        %1200 = vmatprep.subr.mxu0 0.0
        %1201 = vmatpush1.msra.mxu0 0.0
        %1202 = vmatprep.subr.mxu0 0.0
        %1203 = vmatpush1.msra.mxu0 0.0
        %1204 = vmatprep.subr.mxu0 0.0
        %1205 = vmatpush1.msra.mxu0 0.0
        %1206 = vmatprep.subr.mxu0 0.0
        %1207 = vmatpush1.msra.mxu0 0.0
        %1208 = vmatprep.subr.mxu0 0.0
        %1209 = vmatpush1.msra.mxu0 0.0
        %1210 = vmatprep.subr.mxu0 0.0
        %1211 = vmatpush1.msra.mxu0 0.0
        %1212 = vmatprep.subr.mxu0 0.0
        %1213 = vmatpush1.msra.mxu0 0.0
        %1214 = vmatprep.subr.mxu0 0.0
        %1215 = vmatpush1.msra.mxu0 0.0
        %1216 = vmatprep.subr.mxu0 0.0
        %1217 = vmatpush1.msra.mxu0 0.0
        %1218 = vmatprep.mubr.f32.mxu0 0.0
        %1219 = vmatmul.mubr.f32.gmra.mrb[0].mxu0 %v1131
        %v1220 = vpop.f32.mrb[0].mxu0
        %v1221 = vadd.f32 0.0, %v1220
        %v1222 = vpop.f32.mrb[0].mxu0
        %1223 = vmatprep.mubr.f32.mxu0 0.0
        %1224 = vmatmul.mubr.f32.gmra.mrb[0].mxu0 %v1134
        %v1225 = vpop.f32.mrb[0].mxu0
        %v1226 = vadd.f32 0.0, %v1225
        %v1227 = vpop.f32.mrb[0].mxu0
        %1228 = vmatprep.mubr.f32.mxu0 0.0
        %1229 = vmatmul.mubr.f32.gmra.mrb[0].mxu0 %v1137
        %v1230 = vpop.f32.mrb[0].mxu0
        %v1231 = vadd.f32 0.0, %v1230
        %v1232 = vpop.f32.mrb[0].mxu0
        %1233 = vmatprep.mubr.f32.mxu0 0.0
        %1234 = vmatmul.mubr.f32.gmra.mrb[0].mxu0 %v1140
        %v1235 = vpop.f32.mrb[0].mxu0
        %v1236 = vadd.f32 0.0, %v1235
        %v1237 = vpop.f32.mrb[0].mxu0
        %1238 = vmatprep.mubr.f32.mxu0 0.0
        %1239 = vmatmul.mubr.f32.gmra.mrb[0].mxu0 %v1143
        %v1240 = vpop.f32.mrb[0].mxu0
        %v1241 = vadd.f32 0.0, %v1240
        %v1242 = vpop.f32.mrb[0].mxu0
        %1243 = vmatprep.mubr.f32.mxu0 0.0
        %1244 = vmatmul.mubr.f32.gmra.mrb[0].mxu0 %v1146
        %v1245 = vpop.f32.mrb[0].mxu0
        %v1246 = vadd.f32 0.0, %v1245
        %v1247 = vpop.f32.mrb[0].mxu0
        %1248 = vmatprep.mubr.f32.mxu0 0.0
        %1249 = vmatmul.mubr.f32.gmra.mrb[0].mxu0 %v1149
        %v1250 = vpop.f32.mrb[0].mxu0
        %v1251 = vadd.f32 0.0, %v1250
        %v1252 = vpop.f32.mrb[0].mxu0
        %1253 = vmatprep.mubr.f32.mxu0 0.0
        %1254 = vmatmul.mubr.f32.gmra.mrb[0].mxu0 %v1152
        %v1255 = vpop.f32.mrb[0].mxu0
        %v1256 = vadd.f32 0.0, %v1255
        %v1257 = vpop.f32.mrb[0].mxu0
        %1258 = vdwg.mxu0
        %v1259 = vadd.f32 %v1110, %v1221
        %v1260 = vadd.f32 %v1111, %v1226
        %v1261 = vadd.f32 %v1112, %v1231
        %v1262 = vadd.f32 %v1113, %v1236
        %v1263 = vadd.f32 %v1114, %v1241
        %v1264 = vadd.f32 %v1115, %v1246
        %v1265 = vadd.f32 %v1116, %v1251
        %v1266 = vadd.f32 %v1117, %v1256
        %v1267 = vld [vmem:[%s356] sm:$0xff]
        %v1268 = vld [vmem:[%s356 + $0x8] sm:$0xff]
        %v1269 = vld [vmem:[%s356 + $0x10] sm:$0xff]
        %v1270 = vld [vmem:[%s356 + $0x18] sm:$0xff]
        %v1271 = vld [vmem:[%s356 + $0x20] sm:$0xff]
        %v1272 = vld [vmem:[%s356 + $0x28] sm:$0xff]
        %v1273 = vld [vmem:[%s356 + $0x30] sm:$0xff]
        %v1274 = vld [vmem:[%s356 + $0x38] sm:$0xff]
        %s1275 = scalar_lea.vmem %s4, 96
        %v1276 = vld [vmem:[%s1275] sm:$0xff]
        %v1277 = vld [vmem:[%s1275 + $0x8] sm:$0xff]
        %v1279 = vsel %vm385, %v1267, 0
        %v1282 = vsel %vm385, %v1268, 0
        %v1285 = vsel %vm385, %v1269, 0
        %v1288 = vsel %vm385, %v1270, 0
        %v1291 = vsel %vm385, %v1271, 0
        %v1294 = vsel %vm385, %v1272, 0
        %v1297 = vsel %vm385, %v1273, 0
        %v1300 = vsel %vm385, %v1274, 0
        %1302 = vmatprep.subr.mxu0 0.0
        %1303 = vmatpush1.msra.mxu0 %v1276
        %1304 = vmatprep.subr.mxu0 0.0
        %1305 = vmatpush1.msra.mxu0 %v1277
        %1306 = vmatprep.subr.mxu0 0.0
        %1307 = vmatpush1.msra.mxu0 0.0
        %1308 = vmatprep.subr.mxu0 0.0
        %1309 = vmatpush1.msra.mxu0 0.0
        %1310 = vmatprep.subr.mxu0 0.0
        %1311 = vmatpush1.msra.mxu0 0.0
        %1312 = vmatprep.subr.mxu0 0.0
        %1313 = vmatpush1.msra.mxu0 0.0
        %1314 = vmatprep.subr.mxu0 0.0
        %1315 = vmatpush1.msra.mxu0 0.0
        %1316 = vmatprep.subr.mxu0 0.0
        %1317 = vmatpush1.msra.mxu0 0.0
        %1318 = vmatprep.subr.mxu0 0.0
        %1319 = vmatpush1.msra.mxu0 0.0
        %1320 = vmatprep.subr.mxu0 0.0
        %1321 = vmatpush1.msra.mxu0 0.0
        %1322 = vmatprep.subr.mxu0 0.0
        %1323 = vmatpush1.msra.mxu0 0.0
        %1324 = vmatprep.subr.mxu0 0.0
        %1325 = vmatpush1.msra.mxu0 0.0
        %1326 = vmatprep.subr.mxu0 0.0
        %1327 = vmatpush1.msra.mxu0 0.0
        %1328 = vmatprep.subr.mxu0 0.0
        %1329 = vmatpush1.msra.mxu0 0.0
        %1330 = vmatprep.subr.mxu0 0.0
        %1331 = vmatpush1.msra.mxu0 0.0
        %1332 = vmatprep.subr.mxu0 0.0
        %1333 = vmatpush1.msra.mxu0 0.0
        %1334 = vmatprep.subr.mxu0 0.0
        %1335 = vmatpush1.msra.mxu0 0.0
        %1336 = vmatprep.subr.mxu0 0.0
        %1337 = vmatpush1.msra.mxu0 0.0
        %1338 = vmatprep.subr.mxu0 0.0
        %1339 = vmatpush1.msra.mxu0 0.0
        %1340 = vmatprep.subr.mxu0 0.0
        %1341 = vmatpush1.msra.mxu0 0.0
        %1342 = vmatprep.subr.mxu0 0.0
        %1343 = vmatpush1.msra.mxu0 0.0
        %1344 = vmatprep.subr.mxu0 0.0
        %1345 = vmatpush1.msra.mxu0 0.0
        %1346 = vmatprep.subr.mxu0 0.0
        %1347 = vmatpush1.msra.mxu0 0.0
        %1348 = vmatprep.subr.mxu0 0.0
        %1349 = vmatpush1.msra.mxu0 0.0
        %1350 = vmatprep.subr.mxu0 0.0
        %1351 = vmatpush1.msra.mxu0 0.0
        %1352 = vmatprep.subr.mxu0 0.0
        %1353 = vmatpush1.msra.mxu0 0.0
        %1354 = vmatprep.subr.mxu0 0.0
        %1355 = vmatpush1.msra.mxu0 0.0
        %1356 = vmatprep.subr.mxu0 0.0
        %1357 = vmatpush1.msra.mxu0 0.0
        %1358 = vmatprep.subr.mxu0 0.0
        %1359 = vmatpush1.msra.mxu0 0.0
        %1360 = vmatprep.subr.mxu0 0.0
        %1361 = vmatpush1.msra.mxu0 0.0
        %1362 = vmatprep.subr.mxu0 0.0
        %1363 = vmatpush1.msra.mxu0 0.0
        %1364 = vmatprep.subr.mxu0 0.0
        %1365 = vmatpush1.msra.mxu0 0.0
        %1366 = vmatprep.mubr.f32.mxu0 0.0
        %1367 = vmatmul.mubr.f32.gmra.mrb[0].mxu0 %v1279
        %v1368 = vpop.f32.mrb[0].mxu0
        %v1369 = vadd.f32 0.0, %v1368
        %v1370 = vpop.f32.mrb[0].mxu0
        %1371 = vmatprep.mubr.f32.mxu0 0.0
        %1372 = vmatmul.mubr.f32.gmra.mrb[0].mxu0 %v1282
        %v1373 = vpop.f32.mrb[0].mxu0
        %v1374 = vadd.f32 0.0, %v1373
        %v1375 = vpop.f32.mrb[0].mxu0
        %1376 = vmatprep.mubr.f32.mxu0 0.0
        %1377 = vmatmul.mubr.f32.gmra.mrb[0].mxu0 %v1285
        %v1378 = vpop.f32.mrb[0].mxu0
        %v1379 = vadd.f32 0.0, %v1378
        %v1380 = vpop.f32.mrb[0].mxu0
        %1381 = vmatprep.mubr.f32.mxu0 0.0
        %1382 = vmatmul.mubr.f32.gmra.mrb[0].mxu0 %v1288
        %v1383 = vpop.f32.mrb[0].mxu0
        %v1384 = vadd.f32 0.0, %v1383
        %v1385 = vpop.f32.mrb[0].mxu0
        %1386 = vmatprep.mubr.f32.mxu0 0.0
        %1387 = vmatmul.mubr.f32.gmra.mrb[0].mxu0 %v1291
        %v1388 = vpop.f32.mrb[0].mxu0
        %v1389 = vadd.f32 0.0, %v1388
        %v1390 = vpop.f32.mrb[0].mxu0
        %1391 = vmatprep.mubr.f32.mxu0 0.0
        %1392 = vmatmul.mubr.f32.gmra.mrb[0].mxu0 %v1294
        %v1393 = vpop.f32.mrb[0].mxu0
        %v1394 = vadd.f32 0.0, %v1393
        %v1395 = vpop.f32.mrb[0].mxu0
        %1396 = vmatprep.mubr.f32.mxu0 0.0
        %1397 = vmatmul.mubr.f32.gmra.mrb[0].mxu0 %v1297
        %v1398 = vpop.f32.mrb[0].mxu0
        %v1399 = vadd.f32 0.0, %v1398
        %v1400 = vpop.f32.mrb[0].mxu0
        %1401 = vmatprep.mubr.f32.mxu0 0.0
        %1402 = vmatmul.mubr.f32.gmra.mrb[0].mxu0 %v1300
        %v1403 = vpop.f32.mrb[0].mxu0
        %v1404 = vadd.f32 0.0, %v1403
        %v1405 = vpop.f32.mrb[0].mxu0
        %1406 = vdwg.mxu0
        %v1407 = vadd.f32 %v1259, %v1369
        %v1408 = vadd.f32 %v1260, %v1374
        %v1409 = vadd.f32 %v1261, %v1379
        %v1410 = vadd.f32 %v1262, %v1384
        %v1411 = vadd.f32 %v1263, %v1389
        %v1412 = vadd.f32 %v1264, %v1394
        %v1413 = vadd.f32 %v1265, %v1399
        %v1414 = vadd.f32 %v1266, %v1404
        %s1415 = scalar_lea.vmem %s356, 8
        %v1416 = vld [vmem:[%s1415] sm:$0xff]
        %v1417 = vld [vmem:[%s1415 + $0x8] sm:$0xff]
        %v1418 = vld [vmem:[%s1415 + $0x10] sm:$0xff]
        %v1419 = vld [vmem:[%s1415 + $0x18] sm:$0xff]
        %v1420 = vld [vmem:[%s1415 + $0x20] sm:$0xff]
        %v1421 = vld [vmem:[%s1415 + $0x28] sm:$0xff]
        %v1422 = vld [vmem:[%s1415 + $0x30] sm:$0xff]
        %v1423 = vld [vmem:[%s1415 + $0x38] sm:$0xff]
        %s1424 = scalar_lea.vmem %s4, 112
        %v1425 = vld [vmem:[%s1424] sm:$0xff]
        %v1426 = vld [vmem:[%s1424 + $0x8] sm:$0xff]
        %v1428 = vsel %vm385, %v1416, 0
        %v1431 = vsel %vm385, %v1417, 0
        %v1434 = vsel %vm385, %v1418, 0
        %v1437 = vsel %vm385, %v1419, 0
        %v1440 = vsel %vm385, %v1420, 0
        %v1443 = vsel %vm385, %v1421, 0
        %v1446 = vsel %vm385, %v1422, 0
        %v1449 = vsel %vm385, %v1423, 0
        %1451 = vmatprep.subr.mxu0 0.0
        %1452 = vmatpush1.msra.mxu0 %v1425
        %1453 = vmatprep.subr.mxu0 0.0
        %1454 = vmatpush1.msra.mxu0 %v1426
        %1455 = vmatprep.subr.mxu0 0.0
        %1456 = vmatpush1.msra.mxu0 0.0
        %1457 = vmatprep.subr.mxu0 0.0
        %1458 = vmatpush1.msra.mxu0 0.0
        %1459 = vmatprep.subr.mxu0 0.0
        %1460 = vmatpush1.msra.mxu0 0.0
        %1461 = vmatprep.subr.mxu0 0.0
        %1462 = vmatpush1.msra.mxu0 0.0
        %1463 = vmatprep.subr.mxu0 0.0
        %1464 = vmatpush1.msra.mxu0 0.0
        %1465 = vmatprep.subr.mxu0 0.0
        %1466 = vmatpush1.msra.mxu0 0.0
        %1467 = vmatprep.subr.mxu0 0.0
        %1468 = vmatpush1.msra.mxu0 0.0
        %1469 = vmatprep.subr.mxu0 0.0
        %1470 = vmatpush1.msra.mxu0 0.0
        %1471 = vmatprep.subr.mxu0 0.0
        %1472 = vmatpush1.msra.mxu0 0.0
        %1473 = vmatprep.subr.mxu0 0.0
        %1474 = vmatpush1.msra.mxu0 0.0
        %1475 = vmatprep.subr.mxu0 0.0
        %1476 = vmatpush1.msra.mxu0 0.0
        %1477 = vmatprep.subr.mxu0 0.0
        %1478 = vmatpush1.msra.mxu0 0.0
        %1479 = vmatprep.subr.mxu0 0.0
        %1480 = vmatpush1.msra.mxu0 0.0
        %1481 = vmatprep.subr.mxu0 0.0
        %1482 = vmatpush1.msra.mxu0 0.0
        %1483 = vmatprep.subr.mxu0 0.0
        %1484 = vmatpush1.msra.mxu0 0.0
        %1485 = vmatprep.subr.mxu0 0.0
        %1486 = vmatpush1.msra.mxu0 0.0
        %1487 = vmatprep.subr.mxu0 0.0
        %1488 = vmatpush1.msra.mxu0 0.0
        %1489 = vmatprep.subr.mxu0 0.0
        %1490 = vmatpush1.msra.mxu0 0.0
        %1491 = vmatprep.subr.mxu0 0.0
        %1492 = vmatpush1.msra.mxu0 0.0
        %1493 = vmatprep.subr.mxu0 0.0
        %1494 = vmatpush1.msra.mxu0 0.0
        %1495 = vmatprep.subr.mxu0 0.0
        %1496 = vmatpush1.msra.mxu0 0.0
        %1497 = vmatprep.subr.mxu0 0.0
        %1498 = vmatpush1.msra.mxu0 0.0
        %1499 = vmatprep.subr.mxu0 0.0
        %1500 = vmatpush1.msra.mxu0 0.0
        %1501 = vmatprep.subr.mxu0 0.0
        %1502 = vmatpush1.msra.mxu0 0.0
        %1503 = vmatprep.subr.mxu0 0.0
        %1504 = vmatpush1.msra.mxu0 0.0
        %1505 = vmatprep.subr.mxu0 0.0
        %1506 = vmatpush1.msra.mxu0 0.0
        %1507 = vmatprep.subr.mxu0 0.0
        %1508 = vmatpush1.msra.mxu0 0.0
        %1509 = vmatprep.subr.mxu0 0.0
        %1510 = vmatpush1.msra.mxu0 0.0
        %1511 = vmatprep.subr.mxu0 0.0
        %1512 = vmatpush1.msra.mxu0 0.0
        %1513 = vmatprep.subr.mxu0 0.0
        %1514 = vmatpush1.msra.mxu0 0.0
        %1515 = vmatprep.mubr.f32.mxu0 0.0
        %1516 = vmatmul.mubr.f32.gmra.mrb[0].mxu0 %v1428
        %v1517 = vpop.f32.mrb[0].mxu0
        %v1518 = vadd.f32 0.0, %v1517
        %v1519 = vpop.f32.mrb[0].mxu0
        %1520 = vmatprep.mubr.f32.mxu0 0.0
        %1521 = vmatmul.mubr.f32.gmra.mrb[0].mxu0 %v1431
        %v1522 = vpop.f32.mrb[0].mxu0
        %v1523 = vadd.f32 0.0, %v1522
        %v1524 = vpop.f32.mrb[0].mxu0
        %1525 = vmatprep.mubr.f32.mxu0 0.0
        %1526 = vmatmul.mubr.f32.gmra.mrb[0].mxu0 %v1434
        %v1527 = vpop.f32.mrb[0].mxu0
        %v1528 = vadd.f32 0.0, %v1527
        %v1529 = vpop.f32.mrb[0].mxu0
        %1530 = vmatprep.mubr.f32.mxu0 0.0
        %1531 = vmatmul.mubr.f32.gmra.mrb[0].mxu0 %v1437
        %v1532 = vpop.f32.mrb[0].mxu0
        %v1533 = vadd.f32 0.0, %v1532
        %v1534 = vpop.f32.mrb[0].mxu0
        %1535 = vmatprep.mubr.f32.mxu0 0.0
        %1536 = vmatmul.mubr.f32.gmra.mrb[0].mxu0 %v1440
        %v1537 = vpop.f32.mrb[0].mxu0
        %v1538 = vadd.f32 0.0, %v1537
        %v1539 = vpop.f32.mrb[0].mxu0
        %1540 = vmatprep.mubr.f32.mxu0 0.0
        %1541 = vmatmul.mubr.f32.gmra.mrb[0].mxu0 %v1443
        %v1542 = vpop.f32.mrb[0].mxu0
        %v1543 = vadd.f32 0.0, %v1542
        %v1544 = vpop.f32.mrb[0].mxu0
        %1545 = vmatprep.mubr.f32.mxu0 0.0
        %1546 = vmatmul.mubr.f32.gmra.mrb[0].mxu0 %v1446
        %v1547 = vpop.f32.mrb[0].mxu0
        %v1548 = vadd.f32 0.0, %v1547
        %v1549 = vpop.f32.mrb[0].mxu0
        %1550 = vmatprep.mubr.f32.mxu0 0.0
        %1551 = vmatmul.mubr.f32.gmra.mrb[0].mxu0 %v1449
        %v1552 = vpop.f32.mrb[0].mxu0
        %v1553 = vadd.f32 0.0, %v1552
        %v1554 = vpop.f32.mrb[0].mxu0
        %1555 = vdwg.mxu0
        %v1556 = vadd.f32 %v1407, %v1518
        %v1557 = vadd.f32 %v1408, %v1523
        %v1558 = vadd.f32 %v1409, %v1528
        %v1559 = vadd.f32 %v1410, %v1533
        %v1560 = vadd.f32 %v1411, %v1538
        %v1561 = vadd.f32 %v1412, %v1543
        %v1562 = vadd.f32 %v1413, %v1548
        %v1563 = vadd.f32 %v1414, %v1553
        %s1564 = scalar_lea.vmem %s356, 16
        %v1565 = vld [vmem:[%s1564] sm:$0xff]
        %v1566 = vld [vmem:[%s1564 + $0x8] sm:$0xff]
        %v1567 = vld [vmem:[%s1564 + $0x10] sm:$0xff]
        %v1568 = vld [vmem:[%s1564 + $0x18] sm:$0xff]
        %v1569 = vld [vmem:[%s1564 + $0x20] sm:$0xff]
        %v1570 = vld [vmem:[%s1564 + $0x28] sm:$0xff]
        %v1571 = vld [vmem:[%s1564 + $0x30] sm:$0xff]
        %v1572 = vld [vmem:[%s1564 + $0x38] sm:$0xff]
        %s1573 = scalar_lea.vmem %s4, 128
        %v1574 = vld [vmem:[%s1573] sm:$0xff]
        %v1575 = vld [vmem:[%s1573 + $0x8] sm:$0xff]
        %v1577 = vsel %vm385, %v1565, 0
        %v1580 = vsel %vm385, %v1566, 0
        %v1583 = vsel %vm385, %v1567, 0
        %v1586 = vsel %vm385, %v1568, 0
        %v1589 = vsel %vm385, %v1569, 0
        %v1592 = vsel %vm385, %v1570, 0
        %v1595 = vsel %vm385, %v1571, 0
        %v1598 = vsel %vm385, %v1572, 0
        %1600 = vmatprep.subr.mxu0 0.0
        %1601 = vmatpush1.msra.mxu0 %v1574
        %1602 = vmatprep.subr.mxu0 0.0
        %1603 = vmatpush1.msra.mxu0 %v1575
        %1604 = vmatprep.subr.mxu0 0.0
        %1605 = vmatpush1.msra.mxu0 0.0
        %1606 = vmatprep.subr.mxu0 0.0
        %1607 = vmatpush1.msra.mxu0 0.0
        %1608 = vmatprep.subr.mxu0 0.0
        %1609 = vmatpush1.msra.mxu0 0.0
        %1610 = vmatprep.subr.mxu0 0.0
        %1611 = vmatpush1.msra.mxu0 0.0
        %1612 = vmatprep.subr.mxu0 0.0
        %1613 = vmatpush1.msra.mxu0 0.0
        %1614 = vmatprep.subr.mxu0 0.0
        %1615 = vmatpush1.msra.mxu0 0.0
        %1616 = vmatprep.subr.mxu0 0.0
        %1617 = vmatpush1.msra.mxu0 0.0
        %1618 = vmatprep.subr.mxu0 0.0
        %1619 = vmatpush1.msra.mxu0 0.0
        %1620 = vmatprep.subr.mxu0 0.0
        %1621 = vmatpush1.msra.mxu0 0.0
        %1622 = vmatprep.subr.mxu0 0.0
        %1623 = vmatpush1.msra.mxu0 0.0
        %1624 = vmatprep.subr.mxu0 0.0
        %1625 = vmatpush1.msra.mxu0 0.0
        %1626 = vmatprep.subr.mxu0 0.0
        %1627 = vmatpush1.msra.mxu0 0.0
        %1628 = vmatprep.subr.mxu0 0.0
        %1629 = vmatpush1.msra.mxu0 0.0
        %1630 = vmatprep.subr.mxu0 0.0
        %1631 = vmatpush1.msra.mxu0 0.0
        %1632 = vmatprep.subr.mxu0 0.0
        %1633 = vmatpush1.msra.mxu0 0.0
        %1634 = vmatprep.subr.mxu0 0.0
        %1635 = vmatpush1.msra.mxu0 0.0
        %1636 = vmatprep.subr.mxu0 0.0
        %1637 = vmatpush1.msra.mxu0 0.0
        %1638 = vmatprep.subr.mxu0 0.0
        %1639 = vmatpush1.msra.mxu0 0.0
        %1640 = vmatprep.subr.mxu0 0.0
        %1641 = vmatpush1.msra.mxu0 0.0
        %1642 = vmatprep.subr.mxu0 0.0
        %1643 = vmatpush1.msra.mxu0 0.0
        %1644 = vmatprep.subr.mxu0 0.0
        %1645 = vmatpush1.msra.mxu0 0.0
        %1646 = vmatprep.subr.mxu0 0.0
        %1647 = vmatpush1.msra.mxu0 0.0
        %1648 = vmatprep.subr.mxu0 0.0
        %1649 = vmatpush1.msra.mxu0 0.0
        %1650 = vmatprep.subr.mxu0 0.0
        %1651 = vmatpush1.msra.mxu0 0.0
        %1652 = vmatprep.subr.mxu0 0.0
        %1653 = vmatpush1.msra.mxu0 0.0
        %1654 = vmatprep.subr.mxu0 0.0
        %1655 = vmatpush1.msra.mxu0 0.0
        %1656 = vmatprep.subr.mxu0 0.0
        %1657 = vmatpush1.msra.mxu0 0.0
        %1658 = vmatprep.subr.mxu0 0.0
        %1659 = vmatpush1.msra.mxu0 0.0
        %1660 = vmatprep.subr.mxu0 0.0
        %1661 = vmatpush1.msra.mxu0 0.0
        %1662 = vmatprep.subr.mxu0 0.0
        %1663 = vmatpush1.msra.mxu0 0.0
        %1664 = vmatprep.mubr.f32.mxu0 0.0
        %1665 = vmatmul.mubr.f32.gmra.mrb[0].mxu0 %v1577
        %v1666 = vpop.f32.mrb[0].mxu0
        %v1667 = vadd.f32 0.0, %v1666
        %v1668 = vpop.f32.mrb[0].mxu0
        %1669 = vmatprep.mubr.f32.mxu0 0.0
        %1670 = vmatmul.mubr.f32.gmra.mrb[0].mxu0 %v1580
        %v1671 = vpop.f32.mrb[0].mxu0
        %v1672 = vadd.f32 0.0, %v1671
        %v1673 = vpop.f32.mrb[0].mxu0
        %1674 = vmatprep.mubr.f32.mxu0 0.0
        %1675 = vmatmul.mubr.f32.gmra.mrb[0].mxu0 %v1583
        %v1676 = vpop.f32.mrb[0].mxu0
        %v1677 = vadd.f32 0.0, %v1676
        %v1678 = vpop.f32.mrb[0].mxu0
        %1679 = vmatprep.mubr.f32.mxu0 0.0
        %1680 = vmatmul.mubr.f32.gmra.mrb[0].mxu0 %v1586
        %v1681 = vpop.f32.mrb[0].mxu0
        %v1682 = vadd.f32 0.0, %v1681
        %v1683 = vpop.f32.mrb[0].mxu0
        %1684 = vmatprep.mubr.f32.mxu0 0.0
        %1685 = vmatmul.mubr.f32.gmra.mrb[0].mxu0 %v1589
        %v1686 = vpop.f32.mrb[0].mxu0
        %v1687 = vadd.f32 0.0, %v1686
        %v1688 = vpop.f32.mrb[0].mxu0
        %1689 = vmatprep.mubr.f32.mxu0 0.0
        %1690 = vmatmul.mubr.f32.gmra.mrb[0].mxu0 %v1592
        %v1691 = vpop.f32.mrb[0].mxu0
        %v1692 = vadd.f32 0.0, %v1691
        %v1693 = vpop.f32.mrb[0].mxu0
        %1694 = vmatprep.mubr.f32.mxu0 0.0
        %1695 = vmatmul.mubr.f32.gmra.mrb[0].mxu0 %v1595
        %v1696 = vpop.f32.mrb[0].mxu0
        %v1697 = vadd.f32 0.0, %v1696
        %v1698 = vpop.f32.mrb[0].mxu0
        %1699 = vmatprep.mubr.f32.mxu0 0.0
        %1700 = vmatmul.mubr.f32.gmra.mrb[0].mxu0 %v1598
        %v1701 = vpop.f32.mrb[0].mxu0
        %v1702 = vadd.f32 0.0, %v1701
        %v1703 = vpop.f32.mrb[0].mxu0
        %1704 = vdwg.mxu0
        %v1705 = vadd.f32 %v1556, %v1667
        %v1706 = vadd.f32 %v1557, %v1672
        %v1707 = vadd.f32 %v1558, %v1677
        %v1708 = vadd.f32 %v1559, %v1682
        %v1709 = vadd.f32 %v1560, %v1687
        %v1710 = vadd.f32 %v1561, %v1692
        %v1711 = vadd.f32 %v1562, %v1697
        %v1712 = vadd.f32 %v1563, %v1702
        %1713 = vst.msk [vmem:[%s326] sm:$0xff] %vm385, %v1705
        %1714 = vst.msk [vmem:[%s326 + $0x8] sm:$0xff] %vm385, %v1706
        %1715 = vst.msk [vmem:[%s326 + $0x10] sm:$0xff] %vm385, %v1707
        %1716 = vst.msk [vmem:[%s326 + $0x18] sm:$0xff] %vm385, %v1708
        %1717 = vst.msk [vmem:[%s326 + $0x20] sm:$0xff] %vm385, %v1709
        %1718 = vst.msk [vmem:[%s326 + $0x28] sm:$0xff] %vm385, %v1710
        %1719 = vst.msk [vmem:[%s326 + $0x30] sm:$0xff] %vm385, %v1711
        %1720 = vst.msk [vmem:[%s326 + $0x38] sm:$0xff] %vm385, %v1712
        %s1721 = sand.u32 %s178, 1
        %s1722 = scalar_lea.sflag [#allocation3], %s1721
        %s1723 = sand.u32 %s178, 1
        %s1724 = smul.addr %s1723, 64
        %s1725 = scalar_lea.vmem [#allocation2], %s1724
        // Predicated region
        $region41: #{mfunit_forward.5} parent=39 // pred_check
          %p1726 = pneg %p188
        $region42: #{mfunit_forward.5} parent=39 // pred_check_branch
          %1728 = sbr.rel (%p1726) target = $region44
        $region43: #{mfunit_forward.5} parent=39 // pred_region
          %s1730 = ssub.s32 1024, 1024
          %1731 = vsyncadd %s1722, %s1730
          %s1732 = smul.addr %s24, 8
          %s1733 = smul.addr %s23, 64
          %s1734 = sadd.s32 %s1732, %s1733
          %s1735 = smul.addr %s1734, 128
          %s1736 = scalar_lea.hbm %s5, %s1735
          %s1737 = sshll.u32 %s1725, 4
          %s1738 = int_to_ptr.vmem [resolvable:$true] %s1737
          %1743 = dma.vmem_to_hbm [thread:$0]  %s1738, 1024, %s1736, %s1722, 128, 128, 8
        $region44: #{mfunit_forward.5} parent=39 // pred_fallthru
          _
      $region40: #{mfunit_forward.5} parent=5 // pred_fallthru
        _
      %p1744 = scmp.le.s32.totalorder 2, %s14
      // Predicated region
      $region45: #{mfunit_forward.5} parent=5 // pred_check
        %p1745 = pneg %p1744
      $region46: #{mfunit_forward.5} parent=5 // pred_check_branch
        %1747 = sbr.rel (%p1745) target = $region48
      $region47: #{mfunit_forward.5} parent=5 // pred_region
        %s1748 = ssub.s32 %s14, 2
        // Predicated region
        $region49: #{mfunit_forward.5} parent=47 // pred_check
          %p1749 = pneg %p194
        $region50: #{mfunit_forward.5} parent=47 // pred_check_branch
          %1751 = sbr.rel (%p1749) target = $region52
        $region51: #{mfunit_forward.5} parent=47 // pred_region
          %s1752 = sand.u32 %s179, 1
          %s1753 = scalar_lea.sflag [#allocation3], %s1752
          %s1754 = sand.u32 %s179, 1
          %s1755 = smul.addr %s1754, 64
          %s1756 = scalar_lea.vmem [#allocation2], %s1755
          %1757 = dma.done %s1753, 1024
        $region52: #{mfunit_forward.5} parent=47 // pred_fallthru
          _
      $region48: #{mfunit_forward.5} parent=5 // pred_fallthru
        _
    $region6: #{mfunit_forward.5} parent=1 // loop_footer
      %s18 = sadd.s32 1, %s14
    $region7: #{mfunit_forward.5} parent=1 // loop_footer_branch
      %13 = sbr.rel target = $region3
    $region8: #{mfunit_forward.5} parent=1 // loop_exit
      _
    %1758 = vsyncpa [#allocation3], 1
    %s1759 = scalar_lea.sflag [#allocation3], 1
    %1760 = vsyncpa %s1759, 1

</llo_original>
